<compile_context>
chip_gen: v7x
topology: tpu7x:2x2x1
jax: 0.10.0
libtpu: 0.0.40
codegen_flags: <defaults>
</compile_context>

<pallas_src>
import functools

import jax
import jax.numpy as jnp
from jax.experimental import pallas as pl
from jax.experimental.pallas import tpu as pltpu

_BN_EPS = 1e-5


def _round_up(x, m):
    return ((x + m - 1) // m) * m


def _largest_divisor_le(total, cap):
    t = max(1, min(total, cap))
    while total % t:
        t -= 1
    return t


def _default_tn():
    # 256-wide N tiles fill the 2x256x256 MXU on v6e/v7x; earlier chips have 128-wide MXUs.
    try:
        kind = jax.devices()[0].device_kind.lower()
        if ("v6" in kind) or ("v7" in kind):
            return 256
    except Exception:
        pass
    return 128


# ---------------------------------------------------------------------------
# Kernel 1: tiled matmul + folded-BN epilogue (+ ReLU / sigmoid)  -- conv hot path
# ---------------------------------------------------------------------------

def _epilogue(acc, s, b, activation):
    acc = acc * s + b
    if activation == "relu":
        acc = jnp.maximum(acc, 0.0)
    elif activation == "sigmoid":
        acc = jax.nn.sigmoid(acc)
    return acc


def _mm_single_kernel(lhs_ref, rhs_ref, s_ref, b_ref, o_ref, *, activation):
    # Single K step: no accumulator scratch, no init/finalize branches.
    acc = jnp.dot(lhs_ref[...], rhs_ref[...], preferred_element_type=jnp.float32)
    acc = acc[:, : o_ref.shape[-1]]          # drop lane-padded Cout columns (never stored)
    o_ref[...] = _epilogue(acc, s_ref[...], b_ref[...], activation).astype(o_ref.dtype)


def _mm_multi_kernel(lhs_ref, rhs_ref, s_ref, b_ref, o_ref, acc_ref, *, activation):
    @pl.when(pl.program_id(2) == 0)
    def _init():
        acc_ref[...] = jnp.zeros_like(acc_ref)

    acc_ref[...] += jnp.dot(lhs_ref[...], rhs_ref[...],
                            preferred_element_type=jnp.float32)

    @pl.when(pl.program_id(2) == pl.num_programs(2) - 1)
    def _finalize():
        acc = acc_ref[:, : o_ref.shape[-1]]
        o_ref[...] = _epilogue(acc, s_ref[...], b_ref[...], activation).astype(o_ref.dtype)


def fused_matmul(lhs, rhs, scale, shift, activation=None, out_dtype=jnp.bfloat16,
                 tm=512, tn=None, tk=512):
    """maybe_act((lhs @ rhs) * scale + shift) -> (M, N) in out_dtype.

    bf16 MXU inputs, f32 accumulation.  Weights (rhs) / scale / shift are lane-padded
    to 128; the big patch matrix and the OUTPUT are never N-padded, so small-Cout convs
    write only n columns to HBM.
    """
    m, k = lhs.shape
    k2, n = rhs.shape
    assert k == k2
    tn_pref = _default_tn() if tn is None else tn

    lhs = lhs.astype(jnp.bfloat16)
    rhs = rhs.astype(jnp.bfloat16)

    tm = min(tm, _round_up(m, 8))
    mp = _round_up(m, tm)

    nl = _round_up(n, 128)                       # lane width seen by the MXU / rhs
    if n < 128:
        tn = 128
        tno = n                                  # width actually stored to HBM
    else:
        tn = 256 if (tn_pref >= 256 and nl % 256 == 0) else 128
        tno = tn
    grid_n = nl // tn

    single = k <= tk
    if single:
        kp = k
        tk = k
    else:
        kp = _round_up(k, tk)                    # TODO(synk): extra lhs copy on this path

    if mp != m or kp != k:
        lhs = jnp.pad(lhs, ((0, mp - m), (0, kp - k)))
    if kp != k or nl != n:
        rhs = jnp.pad(rhs, ((0, kp - k), (0, nl - n)))

    s_p = scale.reshape(1, n).astype(jnp.float32)
    b_p = shift.reshape(1, n).astype(jnp.float32)
    if n >= 128 and nl != n:
        s_p = jnp.pad(s_p, ((0, 0), (0, nl - n)))
        b_p = jnp.pad(b_p, ((0, 0), (0, nl - n)))

    out_shape = jax.ShapeDtypeStruct((mp, n), out_dtype)

    if single:
        out = pl.pallas_call(
            functools.partial(_mm_single_kernel, activation=activation),
            out_shape=out_shape,
            grid_spec=pltpu.PrefetchScalarGridSpec(
                num_scalar_prefetch=0,
                grid=(mp // tm, grid_n),
                in_specs=[
                    pl.BlockSpec((tm, kp), lambda i, j: (i, 0)),
                    pl.BlockSpec((kp, tn), lambda i, j: (0, j)),
                    pl.BlockSpec((1, tno), lambda i, j: (0, j)),
                    pl.BlockSpec((1, tno), lambda i, j: (0, j)),
                ],
                out_specs=pl.BlockSpec((tm, tno), lambda i, j: (i, j)),
            ),
            compiler_params=pltpu.CompilerParams(
                dimension_semantics=("parallel", "parallel")),
        )(lhs, rhs, s_p, b_p)
    else:
        out = pl.pallas_call(
            functools.partial(_mm_multi_kernel, activation=activation),
            out_shape=out_shape,
            grid_spec=pltpu.PrefetchScalarGridSpec(
                num_scalar_prefetch=0,
                grid=(mp // tm, grid_n, kp // tk),
                in_specs=[
                    pl.BlockSpec((tm, tk), lambda i, j, kk: (i, kk)),
                    pl.BlockSpec((tk, tn), lambda i, j, kk: (kk, j)),
                    pl.BlockSpec((1, tno), lambda i, j, kk: (0, j)),
                    pl.BlockSpec((1, tno), lambda i, j, kk: (0, j)),
                ],
                out_specs=pl.BlockSpec((tm, tno), lambda i, j, kk: (i, j)),
                scratch_shapes=[pltpu.VMEM((tm, tn), jnp.float32)],
            ),
            compiler_params=pltpu.CompilerParams(
                dimension_semantics=("parallel", "parallel", "arbitrary")),
        )(lhs, rhs, s_p, b_p)

    if mp != m:
        out = out[:m]
    return out


# ---------------------------------------------------------------------------
# Kernel 2: fused ECAttention (avg-pool + 3-tap channel conv + sigmoid + gating)
# ---------------------------------------------------------------------------

def _eca_kernel(x_ref, w_ref, o_ref):
    x = x_ref[0].astype(jnp.float32)                         # (H*W, C)
    c = x.shape[-1]
    y = jnp.mean(x, axis=0, keepdims=True)                   # (1, C) global avg pool
    w0, w1, w2 = w_ref[0], w_ref[1], w_ref[2]                # 3 taps from SMEM
    lane = jax.lax.broadcasted_iota(jnp.int32, (1, c), 1)
    y_m1 = jnp.where(lane == 0, 0.0, pltpu.roll(y, shift=1, axis=1))        # y[c-1]
    y_p1 = jnp.where(lane == c - 1, 0.0, pltpu.roll(y, shift=c - 1, axis=1))  # y[c+1]
    gate = jax.nn.sigmoid(w0 * y_m1 + w1 * y + w2 * y_p1)    # (1, C)
    o_ref[0] = (x * gate).astype(o_ref.dtype)


def eca_attention(x, w1d):
    """x: (N,H,W,C) NHWC bf16.  One pass over x: pool, k=3 channel conv, sigmoid, scale."""
    n, h, w, c = x.shape
    rows = x.reshape(n, h * w, c)
    out = pl.pallas_call(
        _eca_kernel,
        out_shape=jax.ShapeDtypeStruct((n, h * w, c), x.dtype),
        grid_spec=pltpu.PrefetchScalarGridSpec(
            num_scalar_prefetch=0,
            grid=(n,),
            in_specs=[pl.BlockSpec((1, h * w, c), lambda i: (i, 0, 0)),
                      pl.BlockSpec(memory_space=pltpu.MemorySpace.SMEM)],
            out_specs=pl.BlockSpec((1, h * w, c), lambda i: (i, 0, 0)),
        ),
        compiler_params=pltpu.CompilerParams(dimension_semantics=("parallel",)),
    )(rows, w1d.astype(jnp.float32))
    return out.reshape(n, h, w, c)


# ---------------------------------------------------------------------------
# Kernel 3: ZPool reductions (max & mean written as one (., 2) output)
# ---------------------------------------------------------------------------

def _zpool_last_kernel(x_ref, o_ref):
    x = x_ref[...].astype(jnp.float32)
    o_ref[:, 0:1] = jnp.max(x, axis=-1, keepdims=True)
    o_ref[:, 1:2] = jnp.mean(x, axis=-1, keepdims=True)


def _zpool_mid_kernel(x_ref, o_ref):
    x = x_ref[...].astype(jnp.float32)
    o_ref[:, 0:1, :] = jnp.max(x, axis=1, keepdims=True)
    o_ref[:, 1:2, :] = jnp.mean(x, axis=1, keepdims=True)


def zpool_last(rows):
    """rows (M, C) -> (M, 2) f32: [:,0]=max, [:,1]=mean over the lane axis."""
    m, c = rows.shape
    tm = min(1024, _round_up(m, 8))
    mp = _round_up(m, tm)
    if mp != m:
        rows = jnp.pad(rows, ((0, mp - m), (0, 0)))
    out = pl.pallas_call(
        _zpool_last_kernel,
        out_shape=jax.ShapeDtypeStruct((mp, 2), jnp.float32),
        grid_spec=pltpu.PrefetchScalarGridSpec(
            num_scalar_prefetch=0,
            grid=(mp // tm,),
            in_specs=[pl.BlockSpec((tm, c), lambda i: (i, 0))],
            out_specs=pl.BlockSpec((tm, 2), lambda i: (i, 0)),
        ),
        compiler_params=pltpu.CompilerParams(dimension_semantics=("parallel",)),
    )(rows)
    return out[:m] if mp != m else out


def zpool_mid(x3):
    """x3 (B, R, L) -> (B, 2, L) f32: [:,0]=max, [:,1]=mean over axis 1."""
    b, r, l = x3.shape
    return pl.pallas_call(
        _zpool_mid_kernel,
        out_shape=jax.ShapeDtypeStruct((b, 2, l), jnp.float32),
        grid_spec=pltpu.PrefetchScalarGridSpec(
            num_scalar_prefetch=0,
            grid=(b,),
            in_specs=[pl.BlockSpec((1, r, l), lambda i: (i, 0, 0))],
            out_specs=pl.BlockSpec((1, 2, l), lambda i: (i, 0, 0)),
        ),
        compiler_params=pltpu.CompilerParams(dimension_semantics=("parallel",)),
    )(x3)


# ---------------------------------------------------------------------------
# Kernel 4: fused triplet combine + residual + ReLU  (H-tiled)
#   out = relu(x * (g_hw + g_cw + g_hc) / 3 + identity)
# ---------------------------------------------------------------------------

def _combine_kernel(x_ref, id_ref, ghw_ref, gcw_ref, ghc_ref, o_ref):
    g = (ghw_ref[...].astype(jnp.float32) + gcw_ref[...].astype(jnp.float32)
         + ghc_ref[...].astype(jnp.float32)) * (1.0 / 3.0)
    o_ref[...] = jnp.maximum(
        x_ref[...].astype(jnp.float32) * g + id_ref[...].astype(jnp.float32), 0.0)


def combine_residual(x, identity, g_hw, g_cw, g_hc):
    n, h, w, c = x.shape
    # Tile over H (~<=1 MB per block) so big maps fit VMEM and both v7x cores get work.
    th = _largest_divisor_le(h, max(1, (1 << 20) // max(1, w * c * 4)))
    blk = lambda i, j: (i, j, 0, 0)
    return pl.pallas_call(
        _combine_kernel,
        out_shape=jax.ShapeDtypeStruct((n, h, w, c), jnp.float32),
        grid_spec=pltpu.PrefetchScalarGridSpec(
            num_scalar_prefetch=0,
            grid=(n, h // th),
            in_specs=[pl.BlockSpec((1, th, w, c), blk),
                      pl.BlockSpec((1, th, w, c), blk),
                      pl.BlockSpec((1, th, w, 1), blk),                    # g_hw: bcast C
                      pl.BlockSpec((1, 1, w, c), lambda i, j: (i, 0, 0, 0)),  # g_cw: bcast H
                      pl.BlockSpec((1, th, 1, c), blk)],                   # g_hc: bcast W
            out_specs=pl.BlockSpec((1, th, w, c), blk),
        ),
        compiler_params=pltpu.CompilerParams(
            dimension_semantics=("parallel", "parallel")),
    )(x, identity, g_hw, g_cw, g_hc)


# ---------------------------------------------------------------------------
# JAX glue: BN folding, im2col (NHWC, bf16, K-aligned), module orchestration
# ---------------------------------------------------------------------------

def fold_bn(gamma, beta, running_mean=None, running_var=None, conv_bias=None):
    gamma = jnp.asarray(gamma, jnp.float32)
    beta = jnp.asarray(beta, jnp.float32)
    mean = jnp.zeros_like(gamma) if running_mean is None else running_mean
    var = jnp.ones_like(gamma) if running_var is None else running_var
    scale = gamma / jnp.sqrt(var + _BN_EPS)
    shift = beta - scale * mean
    if conv_bias is not None:
        shift = shift + scale * jnp.asarray(conv_bias, jnp.float32)
    return scale, shift


def im2col_nhwc(x, k, pad, k_align=128):
    """x (N,H,W,Cin) -> patches (N*H*W, Kp), Kp = round_up(k*k*Cin, 128), stride 1.

    Column order (kh, kw, cin).  The zero tail is appended inside the single concatenate
    so the patch tensor materializes exactly once, already K-aligned, in x.dtype (bf16)."""
    n, h, w, cin = x.shape
    xp = jnp.pad(x, ((0, 0), (pad, pad), (pad, pad), (0, 0)))
    cols = [xp[:, kh:kh + h, kw:kw + w, :] for kh in range(k) for kw in range(k)]
    kk = k * k * cin
    kp = _round_up(kk, k_align)
    if kp != kk:
        cols.append(jnp.zeros((n, h, w, kp - kk), x.dtype))
    return jnp.concatenate(cols, axis=-1).reshape(n * h * w, kp)


def conv2d_bn_act(x, w, scale, shift, activation, pad, out_dtype=jnp.bfloat16):
    """Stride-1 cross-correlation (PyTorch Conv2d) + folded BN/bias (+act).  NHWC in/out."""
    n, h, wd, cin = x.shape
    cout, cin2, k, _ = w.shape
    assert cin == cin2
    x = x.astype(jnp.bfloat16)                  # bf16 BEFORE im2col: patches land in bf16
    patches = im2col_nhwc(x, k, pad)
    kk = k * k * cin
    wm = jnp.transpose(w, (2, 3, 1, 0)).reshape(kk, cout)
    if patches.shape[1] != kk:
        wm = jnp.pad(wm, ((0, patches.shape[1] - kk), (0, 0)))
    out = fused_matmul(patches, wm, scale, shift, activation, out_dtype=out_dtype)
    return out.reshape(n, h, wd, cout)


def ppconv_block(x, connections, op_ws, op_bs):
    """PPConvBlock(splits=4).  bn2 is NOT folded here (it applies to the block output only)."""
    n, h, w, ch = x.shape
    d = 4
    c = ch // d
    ones = jnp.ones((c,), jnp.float32)
    states = [x[..., i * c:(i + 1) * c] for i in range(d)]
    for j in range(d, 2 * d):
        xj = sum(connections[i, j] * states[i] for i in range(j))
        k = j - d
        states.append(conv2d_bn_act(xj, op_ws[k], ones, op_bs[k].astype(jnp.float32),
                                    activation=None, pad=1))
    return jnp.concatenate(states[-d:], axis=-1)


def _gate_conv(zimg, w7, gamma, beta):
    """7x7 BasicConv(2->1, no bias) + BN, with sigmoid fused into the matmul epilogue."""
    scale, shift = fold_bn(gamma, beta)
    return conv2d_bn_act(zimg, w7, scale, shift, activation="sigmoid", pad=3,
                         out_dtype=jnp.float32)


def triplet_gates(x, p):
    """x NHWC bf16.  Returns sigmoid gates in x-broadcastable layouts:
       g_hw (N,H,W,1), g_cw (N,1,W,C), g_hc (N,H,1,C)."""
    n, h, w, c = x.shape

    # hw gate: ZPool over C, 7x7 conv over (H, W)
    z = zpool_last(x.reshape(n * h * w, c)).reshape(n, h, w, 2)
    g_hw = _gate_conv(z, p['hw_w'], p['hw_gamma'], p['hw_beta'])               # (N,H,W,1)

    # cw gate: ZPool over H first, then only the tiny pooled map is transposed
    zp = zpool_mid(x.reshape(n, h, w * c))                                     # (N,2,W*C)
    zc = jnp.transpose(zp.reshape(n, 2, w, c), (0, 3, 2, 1))                   # (N,C,W,2)
    g_cw = _gate_conv(zc, p['cw_w'], p['cw_gamma'], p['cw_beta'])              # (N,C,W,1)
    g_cw = jnp.transpose(g_cw, (0, 3, 2, 1))                                   # (N,1,W,C)

    # hc gate: ZPool over W, conv over (H, C)
    zp = zpool_mid(x.reshape(n * h, w, c))                                     # (N*H,2,C)
    zh = jnp.transpose(zp.reshape(n, h, 2, c), (0, 1, 3, 2))                   # (N,H,C,2)
    g_hc = _gate_conv(zh, p['hc_w'], p['hc_gamma'], p['hc_beta'])              # (N,H,C,1)
    g_hc = jnp.transpose(g_hc, (0, 1, 3, 2))                                   # (N,H,1,C)

    return g_hw, g_cw, g_hc


def basic_block_forward(x_nchw, p):
    x = jnp.transpose(x_nchw, (0, 2, 3, 1))             # NCHW -> NHWC once at the boundary
    identity = x                                        # TODO(synk): no downsample path

    # conv1 + bn1 + relu (fused epilogue)
    s1, b1 = fold_bn(p['bn1_gamma'], p['bn1_beta'])
    out = conv2d_bn_act(x, p['conv1_w'], s1, b1, activation="relu", pad=1)

    # ECA attention (single fused kernel)
    out = eca_attention(out, p['eca_w'])

    # conv2 (PPConvBlock), then bn2 on the block output (reference semantics)
    out = ppconv_block(out, p['connections'], p['pp_ws'], p['pp_bs'])
    s2, b2 = fold_bn(p['bn2_gamma'], p['bn2_beta'])
    out = (out.astype(jnp.float32) * s2 + b2).astype(jnp.bfloat16)

    # Triplet attention gates, then fused combine: relu(out * mean(gates) + identity)
    g_hw, g_cw, g_hc = triplet_gates(out, p)
    res = combine_residual(out, identity, g_hw, g_cw, g_hc)

    return jnp.transpose(res, (0, 3, 1, 2))             # back to NCHW (f32)


# ---------------------------------------------------------------------------
# Deterministic parameter initialization (matches the module's shapes)
# ---------------------------------------------------------------------------

def init_params(key, inplanes, planes):
    assert planes % 4 == 0
    c = planes // 4
    ks = jax.random.split(key, 16)
    p = {}
    # conv1 (3x3, inplanes -> planes, no bias) + bn1
    p['conv1_w'] = 0.1 * jax.random.normal(ks[0], (planes, inplanes, 3, 3), jnp.float32)
    p['bn1_gamma'] = jnp.ones((planes,), jnp.float32)
    p['bn1_beta'] = jnp.zeros((planes,), jnp.float32)
    # ECA: Conv1d(1, 1, k=3, no bias)
    p['eca_w'] = 0.1 * jax.random.normal(ks[1], (3,), jnp.float32)
    # PPConvBlock(planes, splits=4): connections (8,8); 4 used ops Conv2d(C, C, 3, bias=True)
    p['connections'] = jax.random.normal(ks[2], (8, 8), jnp.float32)
    p['pp_ws'] = [0.1 * jax.random.normal(ks[3 + i], (c, c, 3, 3), jnp.float32)
                  for i in range(4)]
    p['pp_bs'] = [0.01 * jax.random.normal(ks[7 + i], (c,), jnp.float32)
                  for i in range(4)]
    # bn2
    p['bn2_gamma'] = jnp.ones((planes,), jnp.float32)
    p['bn2_beta'] = jnp.zeros((planes,), jnp.float32)
    # TripletAttention: three AttentionGates, each Conv2d(2, 1, 7, no bias) + BN(1)
    for idx, name in enumerate(('cw', 'hc', 'hw')):
        p[f'{name}_w'] = 0.1 * jax.random.normal(ks[11 + idx], (1, 2, 7, 7), jnp.float32)
        p[f'{name}_gamma'] = jnp.ones((1,), jnp.float32)
        p[f'{name}_beta'] = jnp.zeros((1,), jnp.float32)
    return p


if __name__ == "__main__":
    key = jax.random.PRNGKey(0)
    kx, kprm = jax.random.split(key)

    # small shapes: batch=2, inplanes=planes=8 (divisible by splits=4), spatial 16x16
    N, C, H, W = 2, 8, 16, 16
    x = jax.random.normal(kx, (N, C, H, W), jnp.float32)
    params = init_params(kprm, inplanes=C, planes=C)

    out = jax.jit(basic_block_forward)(x, params)
    out = jax.block_until_ready(out)

    assert out.shape == (N, C, H, W), out.shape
    assert bool(jnp.all(jnp.isfinite(out)))
    assert bool(jnp.all(out >= 0.0))  # final ReLU
    print("KERNEL_OK")
</pallas_src>

<mosaic_0001>
module attributes {stable_mosaic.version = 11 : i64} {
  func.func @_eca_kernel(%arg0: i32, %arg1: memref<1x256x8xbf16, #tpu.memory_space<vmem>>, %arg2: memref<3xf32, #tpu.memory_space<smem>>, %arg3: memref<1x256x8xbf16, #tpu.memory_space<vmem>>) attributes {dimension_semantics = [#tpu.dimension_semantics<parallel>], iteration_bounds = array<i64: 2>, scalar_prefetch = 0 : i64, scratch_operands = 0 : i64, tpu.core_type = #tpu.core_type<tc>, window_params = [{transform_indices = @transform_0, window_bounds = array<i64: 1, 256, 8>}, {transform_indices = @transform_1, window_bounds = array<i64: 3>}, {transform_indices = @transform_2, window_bounds = array<i64: 1, 256, 8>}]} {
    %c0 = arith.constant 0 : index
    %c0_0 = arith.constant 0 : index
    %c0_1 = arith.constant 0 : index
    %0 = vector.load %arg1[%c0, %c0_0, %c0_1] : memref<1x256x8xbf16, #tpu.memory_space<vmem>>, vector<1x256x8xbf16>
    %1 = vector.shape_cast %0 : vector<1x256x8xbf16> to vector<256x8xbf16>
    %2 = arith.extf %1 : vector<256x8xbf16> to vector<256x8xf32>
    %cst = arith.constant dense<0.000000e+00> : vector<8xf32>
    %3 = vector.multi_reduction <add>, %2, %cst [0] : vector<256x8xf32> to vector<8xf32>
    %4 = vector.shape_cast %3 : vector<8xf32> to vector<1x8xf32>
    %cst_2 = arith.constant 2.560000e+02 : f32
    %5 = vector.broadcast %cst_2 : f32 to vector<1x8xf32>
    %6 = arith.divf %4, %5 : vector<1x8xf32>
    %c0_3 = arith.constant 0 : index
    %7 = memref.load %arg2[%c0_3] : memref<3xf32, #tpu.memory_space<smem>>
    %c1 = arith.constant 1 : index
    %8 = memref.load %arg2[%c1] : memref<3xf32, #tpu.memory_space<smem>>
    %c2 = arith.constant 2 : index
    %9 = memref.load %arg2[%c2] : memref<3xf32, #tpu.memory_space<smem>>
    %10 = tpu.iota {dimensions = array<i32: 1>} : vector<1x8xi32>
    %c0_i32 = arith.constant 0 : i32
    %11 = vector.broadcast %c0_i32 : i32 to vector<1x8xi32>
    %12 = arith.cmpi eq, %10, %11 : vector<1x8xi32>
    %c1_i32 = arith.constant 1 : i32
    %13 = tpu.dynamic_rotate %6 by %c1_i32 dim 1 : vector<1x8xf32>, i32 -> vector<1x8xf32>
    %cst_4 = arith.constant 0.000000e+00 : f32
    %14 = vector.broadcast %cst_4 : f32 to vector<1x8xf32>
    %15 = arith.select %12, %14, %13 : vector<1x8xi1>, vector<1x8xf32>
    %c7_i32 = arith.constant 7 : i32
    %16 = vector.broadcast %c7_i32 : i32 to vector<1x8xi32>
    %17 = arith.cmpi eq, %10, %16 : vector<1x8xi32>
    %c7_i32_5 = arith.constant 7 : i32
    %18 = tpu.dynamic_rotate %6 by %c7_i32_5 dim 1 : vector<1x8xf32>, i32 -> vector<1x8xf32>
    %cst_6 = arith.constant 0.000000e+00 : f32
    %19 = vector.broadcast %cst_6 : f32 to vector<1x8xf32>
    %20 = arith.select %17, %19, %18 : vector<1x8xi1>, vector<1x8xf32>
    %21 = vector.broadcast %7 : f32 to vector<1x8xf32>
    %22 = arith.mulf %21, %15 : vector<1x8xf32>
    %23 = vector.broadcast %8 : f32 to vector<1x8xf32>
    %24 = arith.mulf %23, %6 : vector<1x8xf32>
    %25 = arith.addf %22, %24 : vector<1x8xf32>
    %26 = vector.broadcast %9 : f32 to vector<1x8xf32>
    %27 = arith.mulf %26, %20 : vector<1x8xf32>
    %28 = arith.addf %25, %27 : vector<1x8xf32>
    %29 = arith.negf %28 : vector<1x8xf32>
    %30 = math.exp %29 : vector<1x8xf32>
    %cst_7 = arith.constant 1.000000e+00 : f32
    %31 = vector.broadcast %cst_7 : f32 to vector<1x8xf32>
    %32 = arith.addf %31, %30 : vector<1x8xf32>
    %33 = arith.divf %31, %32 : vector<1x8xf32>
    %34 = vector.broadcast %33 : vector<1x8xf32> to vector<256x8xf32>
    %35 = arith.mulf %2, %34 : vector<256x8xf32>
    %36 = arith.truncf %35 : vector<256x8xf32> to vector<256x8xbf16>
    %c0_8 = arith.constant 0 : index
    %c0_9 = arith.constant 0 : index
    %c0_10 = arith.constant 0 : index
    %37 = vector.load %arg3[%c0_8, %c0_9, %c0_10] : memref<1x256x8xbf16, #tpu.memory_space<vmem>>, vector<1x256x8xbf16>
    %38 = vector.shape_cast %37 : vector<1x256x8xbf16> to vector<256x8xbf16>
    %39 = vector.shape_cast %36 : vector<256x8xbf16> to vector<1x256x8xbf16>
    tpu.vector_store %arg3[%c0_8, %c0_9, %c0_10], %39 {strides = array<i32>} : memref<1x256x8xbf16, #tpu.memory_space<vmem>>, vector<1x256x8xbf16>,
    return
  }
  func.func @transform_0(%arg0: i32) -> (i32, i32, i32) {
    %c0_i32 = arith.constant 0 : i32
    %c0_i32_0 = arith.constant 0 : i32
    %c0_i32_1 = arith.constant 0 : i32
    return %arg0, %c0_i32, %c0_i32_0 : i32, i32, i32
  }
  func.func @transform_1(%arg0: i32) -> i32 {
    %c0_i32 = arith.constant 0 : i32
    %c0_i32_0 = arith.constant 0 : i32
    return %c0_i32 : i32
  }
  func.func @transform_2(%arg0: i32) -> (i32, i32, i32) {
    %c0_i32 = arith.constant 0 : i32
    %c0_i32_0 = arith.constant 0 : i32
    %c0_i32_1 = arith.constant 0 : i32
    return %arg0, %c0_i32, %c0_i32_0 : i32, i32, i32
  }
}

module attributes {stable_mosaic.version = 11 : i64} {
  func.func @_mm_single_kernel(%arg0: i32, %arg1: i32, %arg2: memref<512x128xbf16, #tpu.memory_space<vmem>>, %arg3: memref<128x128xbf16, #tpu.memory_space<vmem>>, %arg4: memref<1x8xf32, #tpu.memory_space<vmem>>, %arg5: memref<1x8xf32, #tpu.memory_space<vmem>>, %arg6: memref<512x8xbf16, #tpu.memory_space<vmem>>) attributes {dimension_semantics = [#tpu.dimension_semantics<parallel>, #tpu.dimension_semantics<parallel>], iteration_bounds = array<i64: 1, 1>, scalar_prefetch = 0 : i64, scratch_operands = 0 : i64, tpu.core_type = #tpu.core_type<tc>, window_params = [{transform_indices = @transform_0, window_bounds = array<i64: 512, 128>}, {transform_indices = @transform_1, window_bounds = array<i64: 128, 128>}, {transform_indices = @transform_2, window_bounds = array<i64: 1, 8>}, {transform_indices = @transform_3, window_bounds = array<i64: 1, 8>}, {transform_indices = @transform_4, window_bounds = array<i64: 512, 8>}]} {
    %c0 = arith.constant 0 : index
    %c0_0 = arith.constant 0 : index
    %0 = vector.load %arg2[%c0, %c0_0] : memref<512x128xbf16, #tpu.memory_space<vmem>>, vector<512x128xbf16>
    %c0_1 = arith.constant 0 : index
    %c0_2 = arith.constant 0 : index
    %1 = vector.load %arg3[%c0_1, %c0_2] : memref<128x128xbf16, #tpu.memory_space<vmem>>, vector<128x128xbf16>
    %cst = arith.constant dense<0.000000e+00> : vector<512x128xf32>
    %2 = tpu.matmul %0, %1, %cst {dimension_numbers = #tpu.dot_dimension_numbers<[1], [0], [0], [1], [0, 0, 1, 1], [], []>} : vector<512x128xbf16>, vector<128x128xbf16>, vector<512x128xf32> -> vector<512x128xf32>
    %3 = vector.extract_strided_slice %2 {offsets = [0, 0], sizes = [512, 8], strides = [1, 1]} : vector<512x128xf32> to vector<512x8xf32>
    %c0_3 = arith.constant 0 : index
    %c0_4 = arith.constant 0 : index
    %4 = vector.load %arg4[%c0_3, %c0_4] : memref<1x8xf32, #tpu.memory_space<vmem>>, vector<1x8xf32>
    %c0_5 = arith.constant 0 : index
    %c0_6 = arith.constant 0 : index
    %5 = vector.load %arg5[%c0_5, %c0_6] : memref<1x8xf32, #tpu.memory_space<vmem>>, vector<1x8xf32>
    %6 = vector.broadcast %4 : vector<1x8xf32> to vector<512x8xf32>
    %7 = arith.mulf %3, %6 : vector<512x8xf32>
    %8 = vector.broadcast %5 : vector<1x8xf32> to vector<512x8xf32>
    %9 = arith.addf %7, %8 : vector<512x8xf32>
    %cst_7 = arith.constant 0.000000e+00 : f32
    %10 = vector.broadcast %cst_7 : f32 to vector<512x8xf32>
    %11 = arith.maximumf %9, %10 : vector<512x8xf32>
    %12 = arith.truncf %11 : vector<512x8xf32> to vector<512x8xbf16>
    %c0_8 = arith.constant 0 : index
    %c0_9 = arith.constant 0 : index
    %13 = vector.load %arg6[%c0_8, %c0_9] : memref<512x8xbf16, #tpu.memory_space<vmem>>, vector<512x8xbf16>
    tpu.vector_store %arg6[%c0_8, %c0_9], %12 {strides = array<i32>} : memref<512x8xbf16, #tpu.memory_space<vmem>>, vector<512x8xbf16>,
    return
  }
  func.func @transform_0(%arg0: i32, %arg1: i32) -> (i32, i32) {
    %c0_i32 = arith.constant 0 : i32
    %c0_i32_0 = arith.constant 0 : i32
    return %arg0, %c0_i32 : i32, i32
  }
  func.func @transform_1(%arg0: i32, %arg1: i32) -> (i32, i32) {
    %c0_i32 = arith.constant 0 : i32
    %c0_i32_0 = arith.constant 0 : i32
    return %c0_i32, %arg1 : i32, i32
  }
  func.func @transform_2(%arg0: i32, %arg1: i32) -> (i32, i32) {
    %c0_i32 = arith.constant 0 : i32
    %c0_i32_0 = arith.constant 0 : i32
    return %c0_i32, %arg1 : i32, i32
  }
  func.func @transform_3(%arg0: i32, %arg1: i32) -> (i32, i32) {
    %c0_i32 = arith.constant 0 : i32
    %c0_i32_0 = arith.constant 0 : i32
    return %c0_i32, %arg1 : i32, i32
  }
  func.func @transform_4(%arg0: i32, %arg1: i32) -> (i32, i32) {
    %c0_i32 = arith.constant 0 : i32
    return %arg0, %arg1 : i32, i32
  }
}

module attributes {stable_mosaic.version = 11 : i64} {
  func.func @_mm_single_kernel(%arg0: i32, %arg1: i32, %arg2: memref<512x128xbf16, #tpu.memory_space<vmem>>, %arg3: memref<128x128xbf16, #tpu.memory_space<vmem>>, %arg4: memref<1x2xf32, #tpu.memory_space<vmem>>, %arg5: memref<1x2xf32, #tpu.memory_space<vmem>>, %arg6: memref<512x2xbf16, #tpu.memory_space<vmem>>) attributes {dimension_semantics = [#tpu.dimension_semantics<parallel>, #tpu.dimension_semantics<parallel>], iteration_bounds = array<i64: 1, 1>, scalar_prefetch = 0 : i64, scratch_operands = 0 : i64, tpu.core_type = #tpu.core_type<tc>, window_params = [{transform_indices = @transform_0, window_bounds = array<i64: 512, 128>}, {transform_indices = @transform_1, window_bounds = array<i64: 128, 128>}, {transform_indices = @transform_2, window_bounds = array<i64: 1, 2>}, {transform_indices = @transform_3, window_bounds = array<i64: 1, 2>}, {transform_indices = @transform_4, window_bounds = array<i64: 512, 2>}]} {
    %c0 = arith.constant 0 : index
    %c0_0 = arith.constant 0 : index
    %0 = vector.load %arg2[%c0, %c0_0] : memref<512x128xbf16, #tpu.memory_space<vmem>>, vector<512x128xbf16>
    %c0_1 = arith.constant 0 : index
    %c0_2 = arith.constant 0 : index
    %1 = vector.load %arg3[%c0_1, %c0_2] : memref<128x128xbf16, #tpu.memory_space<vmem>>, vector<128x128xbf16>
    %cst = arith.constant dense<0.000000e+00> : vector<512x128xf32>
    %2 = tpu.matmul %0, %1, %cst {dimension_numbers = #tpu.dot_dimension_numbers<[1], [0], [0], [1], [0, 0, 1, 1], [], []>} : vector<512x128xbf16>, vector<128x128xbf16>, vector<512x128xf32> -> vector<512x128xf32>
    %3 = vector.extract_strided_slice %2 {offsets = [0, 0], sizes = [512, 2], strides = [1, 1]} : vector<512x128xf32> to vector<512x2xf32>
    %c0_3 = arith.constant 0 : index
    %c0_4 = arith.constant 0 : index
    %4 = vector.load %arg4[%c0_3, %c0_4] : memref<1x2xf32, #tpu.memory_space<vmem>>, vector<1x2xf32>
    %c0_5 = arith.constant 0 : index
    %c0_6 = arith.constant 0 : index
    %5 = vector.load %arg5[%c0_5, %c0_6] : memref<1x2xf32, #tpu.memory_space<vmem>>, vector<1x2xf32>
    %6 = vector.broadcast %4 : vector<1x2xf32> to vector<512x2xf32>
    %7 = arith.mulf %3, %6 : vector<512x2xf32>
    %8 = vector.broadcast %5 : vector<1x2xf32> to vector<512x2xf32>
    %9 = arith.addf %7, %8 : vector<512x2xf32>
    %10 = arith.truncf %9 : vector<512x2xf32> to vector<512x2xbf16>
    %c0_7 = arith.constant 0 : index
    %c0_8 = arith.constant 0 : index
    %11 = vector.load %arg6[%c0_7, %c0_8] : memref<512x2xbf16, #tpu.memory_space<vmem>>, vector<512x2xbf16>
    tpu.vector_store %arg6[%c0_7, %c0_8], %10 {strides = array<i32>} : memref<512x2xbf16, #tpu.memory_space<vmem>>, vector<512x2xbf16>,
    return
  }
  func.func @transform_0(%arg0: i32, %arg1: i32) -> (i32, i32) {
    %c0_i32 = arith.constant 0 : i32
    %c0_i32_0 = arith.constant 0 : i32
    return %arg0, %c0_i32 : i32, i32
  }
  func.func @transform_1(%arg0: i32, %arg1: i32) -> (i32, i32) {
    %c0_i32 = arith.constant 0 : i32
    %c0_i32_0 = arith.constant 0 : i32
    return %c0_i32, %arg1 : i32, i32
  }
  func.func @transform_2(%arg0: i32, %arg1: i32) -> (i32, i32) {
    %c0_i32 = arith.constant 0 : i32
    %c0_i32_0 = arith.constant 0 : i32
    return %c0_i32, %arg1 : i32, i32
  }
  func.func @transform_3(%arg0: i32, %arg1: i32) -> (i32, i32) {
    %c0_i32 = arith.constant 0 : i32
    %c0_i32_0 = arith.constant 0 : i32
    return %c0_i32, %arg1 : i32, i32
  }
  func.func @transform_4(%arg0: i32, %arg1: i32) -> (i32, i32) {
    %c0_i32 = arith.constant 0 : i32
    return %arg0, %arg1 : i32, i32
  }
}

module attributes {stable_mosaic.version = 11 : i64} {
  func.func @_zpool_mid_kernel(%arg0: i32, %arg1: memref<1x16x8xbf16, #tpu.memory_space<vmem>>, %arg2: memref<1x2x8xf32, #tpu.memory_space<vmem>>) attributes {dimension_semantics = [#tpu.dimension_semantics<parallel>], iteration_bounds = array<i64: 32>, scalar_prefetch = 0 : i64, scratch_operands = 0 : i64, tpu.core_type = #tpu.core_type<tc>, window_params = [{transform_indices = @transform_0, window_bounds = array<i64: 1, 16, 8>}, {transform_indices = @transform_1, window_bounds = array<i64: 1, 2, 8>}]} {
    %c0 = arith.constant 0 : index
    %c0_0 = arith.constant 0 : index
    %c0_1 = arith.constant 0 : index
    %0 = vector.load %arg1[%c0, %c0_0, %c0_1] : memref<1x16x8xbf16, #tpu.memory_space<vmem>>, vector<1x16x8xbf16>
    %1 = arith.extf %0 : vector<1x16x8xbf16> to vector<1x16x8xf32>
    %cst = arith.constant dense<0xFF800000> : vector<1x8xf32>
    %2 = vector.multi_reduction <maximumf>, %1, %cst [1] : vector<1x16x8xf32> to vector<1x8xf32>
    %3 = vector.shape_cast %2 : vector<1x8xf32> to vector<1x1x8xf32>
    %c0_2 = arith.constant 0 : index
    %c0_3 = arith.constant 0 : index
    %c0_4 = arith.constant 0 : index
    %4 = vector.load %arg2[%c0_2, %c0_3, %c0_4] : memref<1x2x8xf32, #tpu.memory_space<vmem>>, vector<1x1x8xf32>
    tpu.vector_store %arg2[%c0_2, %c0_3, %c0_4], %3 {strides = array<i32>} : memref<1x2x8xf32, #tpu.memory_space<vmem>>, vector<1x1x8xf32>,
    %cst_5 = arith.constant dense<0.000000e+00> : vector<1x8xf32>
    %5 = vector.multi_reduction <add>, %1, %cst_5 [1] : vector<1x16x8xf32> to vector<1x8xf32>
    %6 = vector.shape_cast %5 : vector<1x8xf32> to vector<1x1x8xf32>
    %cst_6 = arith.constant 1.600000e+01 : f32
    %7 = vector.broadcast %cst_6 : f32 to vector<1x1x8xf32>
    %8 = arith.divf %6, %7 : vector<1x1x8xf32>
    %c0_7 = arith.constant 0 : index
    %c1 = arith.constant 1 : index
    %c0_8 = arith.constant 0 : index
    %9 = vector.load %arg2[%c0_7, %c1, %c0_8] : memref<1x2x8xf32, #tpu.memory_space<vmem>>, vector<1x1x8xf32>
    tpu.vector_store %arg2[%c0_7, %c1, %c0_8], %8 {strides = array<i32>} : memref<1x2x8xf32, #tpu.memory_space<vmem>>, vector<1x1x8xf32>,
    return
  }
  func.func @transform_0(%arg0: i32) -> (i32, i32, i32) {
    %c0_i32 = arith.constant 0 : i32
    %c0_i32_0 = arith.constant 0 : i32
    %c0_i32_1 = arith.constant 0 : i32
    return %arg0, %c0_i32, %c0_i32_0 : i32, i32, i32
  }
  func.func @transform_1(%arg0: i32) -> (i32, i32, i32) {
    %c0_i32 = arith.constant 0 : i32
    %c0_i32_0 = arith.constant 0 : i32
    %c0_i32_1 = arith.constant 0 : i32
    return %arg0, %c0_i32, %c0_i32_0 : i32, i32, i32
  }
}

module attributes {stable_mosaic.version = 11 : i64} {
  func.func @_mm_single_kernel(%arg0: i32, %arg1: i32, %arg2: memref<256x128xbf16, #tpu.memory_space<vmem>>, %arg3: memref<128x128xbf16, #tpu.memory_space<vmem>>, %arg4: memref<1x1xf32, #tpu.memory_space<vmem>>, %arg5: memref<1x1xf32, #tpu.memory_space<vmem>>, %arg6: memref<256x1xf32, #tpu.memory_space<vmem>>) attributes {dimension_semantics = [#tpu.dimension_semantics<parallel>, #tpu.dimension_semantics<parallel>], iteration_bounds = array<i64: 1, 1>, scalar_prefetch = 0 : i64, scratch_operands = 0 : i64, tpu.core_type = #tpu.core_type<tc>, window_params = [{transform_indices = @transform_0, window_bounds = array<i64: 256, 128>}, {transform_indices = @transform_1, window_bounds = array<i64: 128, 128>}, {transform_indices = @transform_2, window_bounds = array<i64: 1, 1>}, {transform_indices = @transform_3, window_bounds = array<i64: 1, 1>}, {transform_indices = @transform_4, window_bounds = array<i64: 256, 1>}]} {
    %c0 = arith.constant 0 : index
    %c0_0 = arith.constant 0 : index
    %0 = vector.load %arg2[%c0, %c0_0] : memref<256x128xbf16, #tpu.memory_space<vmem>>, vector<256x128xbf16>
    %c0_1 = arith.constant 0 : index
    %c0_2 = arith.constant 0 : index
    %1 = vector.load %arg3[%c0_1, %c0_2] : memref<128x128xbf16, #tpu.memory_space<vmem>>, vector<128x128xbf16>
    %cst = arith.constant dense<0.000000e+00> : vector<256x128xf32>
    %2 = tpu.matmul %0, %1, %cst {dimension_numbers = #tpu.dot_dimension_numbers<[1], [0], [0], [1], [0, 0, 1, 1], [], []>} : vector<256x128xbf16>, vector<128x128xbf16>, vector<256x128xf32> -> vector<256x128xf32>
    %3 = vector.extract_strided_slice %2 {offsets = [0, 0], sizes = [256, 1], strides = [1, 1]} : vector<256x128xf32> to vector<256x1xf32>
    %c0_3 = arith.constant 0 : index
    %c0_4 = arith.constant 0 : index
    %4 = vector.load %arg4[%c0_3, %c0_4] : memref<1x1xf32, #tpu.memory_space<vmem>>, vector<1x1xf32>
    %c0_5 = arith.constant 0 : index
    %c0_6 = arith.constant 0 : index
    %5 = vector.load %arg5[%c0_5, %c0_6] : memref<1x1xf32, #tpu.memory_space<vmem>>, vector<1x1xf32>
    %6 = vector.broadcast %4 : vector<1x1xf32> to vector<256x1xf32>
    %7 = arith.mulf %3, %6 : vector<256x1xf32>
    %8 = vector.broadcast %5 : vector<1x1xf32> to vector<256x1xf32>
    %9 = arith.addf %7, %8 : vector<256x1xf32>
    %10 = arith.negf %9 : vector<256x1xf32>
    %11 = math.exp %10 : vector<256x1xf32>
    %cst_7 = arith.constant 1.000000e+00 : f32
    %12 = vector.broadcast %cst_7 : f32 to vector<256x1xf32>
    %13 = arith.addf %12, %11 : vector<256x1xf32>
    %14 = arith.divf %12, %13 : vector<256x1xf32>
    %c0_8 = arith.constant 0 : index
    %c0_9 = arith.constant 0 : index
    %15 = vector.load %arg6[%c0_8, %c0_9] : memref<256x1xf32, #tpu.memory_space<vmem>>, vector<256x1xf32>
    tpu.vector_store %arg6[%c0_8, %c0_9], %14 {strides = array<i32>} : memref<256x1xf32, #tpu.memory_space<vmem>>, vector<256x1xf32>,
    return
  }
  func.func @transform_0(%arg0: i32, %arg1: i32) -> (i32, i32) {
    %c0_i32 = arith.constant 0 : i32
    %c0_i32_0 = arith.constant 0 : i32
    return %arg0, %c0_i32 : i32, i32
  }
  func.func @transform_1(%arg0: i32, %arg1: i32) -> (i32, i32) {
    %c0_i32 = arith.constant 0 : i32
    %c0_i32_0 = arith.constant 0 : i32
    return %c0_i32, %arg1 : i32, i32
  }
  func.func @transform_2(%arg0: i32, %arg1: i32) -> (i32, i32) {
    %c0_i32 = arith.constant 0 : i32
    %c0_i32_0 = arith.constant 0 : i32
    return %c0_i32, %arg1 : i32, i32
  }
  func.func @transform_3(%arg0: i32, %arg1: i32) -> (i32, i32) {
    %c0_i32 = arith.constant 0 : i32
    %c0_i32_0 = arith.constant 0 : i32
    return %c0_i32, %arg1 : i32, i32
  }
  func.func @transform_4(%arg0: i32, %arg1: i32) -> (i32, i32) {
    %c0_i32 = arith.constant 0 : i32
    return %arg0, %arg1 : i32, i32
  }
}

module attributes {stable_mosaic.version = 11 : i64} {
  func.func @_zpool_mid_kernel(%arg0: i32, %arg1: memref<1x16x128xbf16, #tpu.memory_space<vmem>>, %arg2: memref<1x2x128xf32, #tpu.memory_space<vmem>>) attributes {dimension_semantics = [#tpu.dimension_semantics<parallel>], iteration_bounds = array<i64: 2>, scalar_prefetch = 0 : i64, scratch_operands = 0 : i64, tpu.core_type = #tpu.core_type<tc>, window_params = [{transform_indices = @transform_0, window_bounds = array<i64: 1, 16, 128>}, {transform_indices = @transform_1, window_bounds = array<i64: 1, 2, 128>}]} {
    %c0 = arith.constant 0 : index
    %c0_0 = arith.constant 0 : index
    %c0_1 = arith.constant 0 : index
    %0 = vector.load %arg1[%c0, %c0_0, %c0_1] : memref<1x16x128xbf16, #tpu.memory_space<vmem>>, vector<1x16x128xbf16>
    %1 = arith.extf %0 : vector<1x16x128xbf16> to vector<1x16x128xf32>
    %cst = arith.constant dense<0xFF800000> : vector<1x128xf32>
    %2 = vector.multi_reduction <maximumf>, %1, %cst [1] : vector<1x16x128xf32> to vector<1x128xf32>
    %3 = vector.shape_cast %2 : vector<1x128xf32> to vector<1x1x128xf32>
    %c0_2 = arith.constant 0 : index
    %c0_3 = arith.constant 0 : index
    %c0_4 = arith.constant 0 : index
    %4 = vector.load %arg2[%c0_2, %c0_3, %c0_4] : memref<1x2x128xf32, #tpu.memory_space<vmem>>, vector<1x1x128xf32>
    tpu.vector_store %arg2[%c0_2, %c0_3, %c0_4], %3 {strides = array<i32>} : memref<1x2x128xf32, #tpu.memory_space<vmem>>, vector<1x1x128xf32>,
    %cst_5 = arith.constant dense<0.000000e+00> : vector<1x128xf32>
    %5 = vector.multi_reduction <add>, %1, %cst_5 [1] : vector<1x16x128xf32> to vector<1x128xf32>
    %6 = vector.shape_cast %5 : vector<1x128xf32> to vector<1x1x128xf32>
    %cst_6 = arith.constant 1.600000e+01 : f32
    %7 = vector.broadcast %cst_6 : f32 to vector<1x1x128xf32>
    %8 = arith.divf %6, %7 : vector<1x1x128xf32>
    %c0_7 = arith.constant 0 : index
    %c1 = arith.constant 1 : index
    %c0_8 = arith.constant 0 : index
    %9 = vector.load %arg2[%c0_7, %c1, %c0_8] : memref<1x2x128xf32, #tpu.memory_space<vmem>>, vector<1x1x128xf32>
    tpu.vector_store %arg2[%c0_7, %c1, %c0_8], %8 {strides = array<i32>} : memref<1x2x128xf32, #tpu.memory_space<vmem>>, vector<1x1x128xf32>,
    return
  }
  func.func @transform_0(%arg0: i32) -> (i32, i32, i32) {
    %c0_i32 = arith.constant 0 : i32
    %c0_i32_0 = arith.constant 0 : i32
    %c0_i32_1 = arith.constant 0 : i32
    return %arg0, %c0_i32, %c0_i32_0 : i32, i32, i32
  }
  func.func @transform_1(%arg0: i32) -> (i32, i32, i32) {
    %c0_i32 = arith.constant 0 : i32
    %c0_i32_0 = arith.constant 0 : i32
    %c0_i32_1 = arith.constant 0 : i32
    return %arg0, %c0_i32, %c0_i32_0 : i32, i32, i32
  }
}

module attributes {stable_mosaic.version = 11 : i64} {
  func.func @_zpool_last_kernel(%arg0: i32, %arg1: memref<512x8xbf16, #tpu.memory_space<vmem>>, %arg2: memref<512x2xf32, #tpu.memory_space<vmem>>) attributes {dimension_semantics = [#tpu.dimension_semantics<parallel>], iteration_bounds = array<i64: 1>, scalar_prefetch = 0 : i64, scratch_operands = 0 : i64, tpu.core_type = #tpu.core_type<tc>, window_params = [{transform_indices = @transform_0, window_bounds = array<i64: 512, 8>}, {transform_indices = @transform_1, window_bounds = array<i64: 512, 2>}]} {
    %c0 = arith.constant 0 : index
    %c0_0 = arith.constant 0 : index
    %0 = vector.load %arg1[%c0, %c0_0] : memref<512x8xbf16, #tpu.memory_space<vmem>>, vector<512x8xbf16>
    %1 = arith.extf %0 : vector<512x8xbf16> to vector<512x8xf32>
    %cst = arith.constant dense<0xFF800000> : vector<512xf32>
    %2 = vector.multi_reduction <maximumf>, %1, %cst [1] : vector<512x8xf32> to vector<512xf32>
    %3 = vector.shape_cast %2 : vector<512xf32> to vector<512x1xf32>
    %c0_1 = arith.constant 0 : index
    %c0_2 = arith.constant 0 : index
    %4 = vector.load %arg2[%c0_1, %c0_2] : memref<512x2xf32, #tpu.memory_space<vmem>>, vector<512x1xf32>
    tpu.vector_store %arg2[%c0_1, %c0_2], %3 {strides = array<i32>} : memref<512x2xf32, #tpu.memory_space<vmem>>, vector<512x1xf32>,
    %cst_3 = arith.constant dense<0.000000e+00> : vector<512xf32>
    %5 = vector.multi_reduction <add>, %1, %cst_3 [1] : vector<512x8xf32> to vector<512xf32>
    %6 = vector.shape_cast %5 : vector<512xf32> to vector<512x1xf32>
    %cst_4 = arith.constant 8.000000e+00 : f32
    %7 = vector.broadcast %cst_4 : f32 to vector<512x1xf32>
    %8 = arith.divf %6, %7 : vector<512x1xf32>
    %c0_5 = arith.constant 0 : index
    %c1 = arith.constant 1 : index
    %9 = vector.load %arg2[%c0_5, %c1] : memref<512x2xf32, #tpu.memory_space<vmem>>, vector<512x1xf32>
    tpu.vector_store %arg2[%c0_5, %c1], %8 {strides = array<i32>} : memref<512x2xf32, #tpu.memory_space<vmem>>, vector<512x1xf32>,
    return
  }
  func.func @transform_0(%arg0: i32) -> (i32, i32) {
    %c0_i32 = arith.constant 0 : i32
    %c0_i32_0 = arith.constant 0 : i32
    return %arg0, %c0_i32 : i32, i32
  }
  func.func @transform_1(%arg0: i32) -> (i32, i32) {
    %c0_i32 = arith.constant 0 : i32
    %c0_i32_0 = arith.constant 0 : i32
    return %arg0, %c0_i32 : i32, i32
  }
}

module attributes {stable_mosaic.version = 11 : i64} {
  func.func @_mm_single_kernel(%arg0: i32, %arg1: i32, %arg2: memref<512x128xbf16, #tpu.memory_space<vmem>>, %arg3: memref<128x128xbf16, #tpu.memory_space<vmem>>, %arg4: memref<1x1xf32, #tpu.memory_space<vmem>>, %arg5: memref<1x1xf32, #tpu.memory_space<vmem>>, %arg6: memref<512x1xf32, #tpu.memory_space<vmem>>) attributes {dimension_semantics = [#tpu.dimension_semantics<parallel>, #tpu.dimension_semantics<parallel>], iteration_bounds = array<i64: 1, 1>, scalar_prefetch = 0 : i64, scratch_operands = 0 : i64, tpu.core_type = #tpu.core_type<tc>, window_params = [{transform_indices = @transform_0, window_bounds = array<i64: 512, 128>}, {transform_indices = @transform_1, window_bounds = array<i64: 128, 128>}, {transform_indices = @transform_2, window_bounds = array<i64: 1, 1>}, {transform_indices = @transform_3, window_bounds = array<i64: 1, 1>}, {transform_indices = @transform_4, window_bounds = array<i64: 512, 1>}]} {
    %c0 = arith.constant 0 : index
    %c0_0 = arith.constant 0 : index
    %0 = vector.load %arg2[%c0, %c0_0] : memref<512x128xbf16, #tpu.memory_space<vmem>>, vector<512x128xbf16>
    %c0_1 = arith.constant 0 : index
    %c0_2 = arith.constant 0 : index
    %1 = vector.load %arg3[%c0_1, %c0_2] : memref<128x128xbf16, #tpu.memory_space<vmem>>, vector<128x128xbf16>
    %cst = arith.constant dense<0.000000e+00> : vector<512x128xf32>
    %2 = tpu.matmul %0, %1, %cst {dimension_numbers = #tpu.dot_dimension_numbers<[1], [0], [0], [1], [0, 0, 1, 1], [], []>} : vector<512x128xbf16>, vector<128x128xbf16>, vector<512x128xf32> -> vector<512x128xf32>
    %3 = vector.extract_strided_slice %2 {offsets = [0, 0], sizes = [512, 1], strides = [1, 1]} : vector<512x128xf32> to vector<512x1xf32>
    %c0_3 = arith.constant 0 : index
    %c0_4 = arith.constant 0 : index
    %4 = vector.load %arg4[%c0_3, %c0_4] : memref<1x1xf32, #tpu.memory_space<vmem>>, vector<1x1xf32>
    %c0_5 = arith.constant 0 : index
    %c0_6 = arith.constant 0 : index
    %5 = vector.load %arg5[%c0_5, %c0_6] : memref<1x1xf32, #tpu.memory_space<vmem>>, vector<1x1xf32>
    %6 = vector.broadcast %4 : vector<1x1xf32> to vector<512x1xf32>
    %7 = arith.mulf %3, %6 : vector<512x1xf32>
    %8 = vector.broadcast %5 : vector<1x1xf32> to vector<512x1xf32>
    %9 = arith.addf %7, %8 : vector<512x1xf32>
    %10 = arith.negf %9 : vector<512x1xf32>
    %11 = math.exp %10 : vector<512x1xf32>
    %cst_7 = arith.constant 1.000000e+00 : f32
    %12 = vector.broadcast %cst_7 : f32 to vector<512x1xf32>
    %13 = arith.addf %12, %11 : vector<512x1xf32>
    %14 = arith.divf %12, %13 : vector<512x1xf32>
    %c0_8 = arith.constant 0 : index
    %c0_9 = arith.constant 0 : index
    %15 = vector.load %arg6[%c0_8, %c0_9] : memref<512x1xf32, #tpu.memory_space<vmem>>, vector<512x1xf32>
    tpu.vector_store %arg6[%c0_8, %c0_9], %14 {strides = array<i32>} : memref<512x1xf32, #tpu.memory_space<vmem>>, vector<512x1xf32>,
    return
  }
  func.func @transform_0(%arg0: i32, %arg1: i32) -> (i32, i32) {
    %c0_i32 = arith.constant 0 : i32
    %c0_i32_0 = arith.constant 0 : i32
    return %arg0, %c0_i32 : i32, i32
  }
  func.func @transform_1(%arg0: i32, %arg1: i32) -> (i32, i32) {
    %c0_i32 = arith.constant 0 : i32
    %c0_i32_0 = arith.constant 0 : i32
    return %c0_i32, %arg1 : i32, i32
  }
  func.func @transform_2(%arg0: i32, %arg1: i32) -> (i32, i32) {
    %c0_i32 = arith.constant 0 : i32
    %c0_i32_0 = arith.constant 0 : i32
    return %c0_i32, %arg1 : i32, i32
  }
  func.func @transform_3(%arg0: i32, %arg1: i32) -> (i32, i32) {
    %c0_i32 = arith.constant 0 : i32
    %c0_i32_0 = arith.constant 0 : i32
    return %c0_i32, %arg1 : i32, i32
  }
  func.func @transform_4(%arg0: i32, %arg1: i32) -> (i32, i32) {
    %c0_i32 = arith.constant 0 : i32
    return %arg0, %arg1 : i32, i32
  }
}

module attributes {stable_mosaic.version = 11 : i64} {
  func.func @_combine_kernel(%arg0: i32, %arg1: i32, %arg2: memref<1x16x16x8xbf16, #tpu.memory_space<vmem>>, %arg3: memref<1x16x16x8xf32, #tpu.memory_space<vmem>>, %arg4: memref<1x16x16x1xf32, #tpu.memory_space<vmem>>, %arg5: memref<1x1x16x8xf32, #tpu.memory_space<vmem>>, %arg6: memref<1x16x1x8xf32, #tpu.memory_space<vmem>>, %arg7: memref<1x16x16x8xf32, #tpu.memory_space<vmem>>) attributes {dimension_semantics = [#tpu.dimension_semantics<parallel>, #tpu.dimension_semantics<parallel>], iteration_bounds = array<i64: 2, 1>, scalar_prefetch = 0 : i64, scratch_operands = 0 : i64, tpu.core_type = #tpu.core_type<tc>, window_params = [{transform_indices = @transform_0, window_bounds = array<i64: 1, 16, 16, 8>}, {transform_indices = @transform_1, window_bounds = array<i64: 1, 16, 16, 8>}, {transform_indices = @transform_2, window_bounds = array<i64: 1, 16, 16, 1>}, {transform_indices = @transform_3, window_bounds = array<i64: 1, 1, 16, 8>}, {transform_indices = @transform_4, window_bounds = array<i64: 1, 16, 1, 8>}, {transform_indices = @transform_5, window_bounds = array<i64: 1, 16, 16, 8>}]} {
    %c0 = arith.constant 0 : index
    %c0_0 = arith.constant 0 : index
    %c0_1 = arith.constant 0 : index
    %c0_2 = arith.constant 0 : index
    %0 = vector.load %arg4[%c0, %c0_0, %c0_1, %c0_2] : memref<1x16x16x1xf32, #tpu.memory_space<vmem>>, vector<1x16x16x1xf32>
    %c0_3 = arith.constant 0 : index
    %c0_4 = arith.constant 0 : index
    %c0_5 = arith.constant 0 : index
    %c0_6 = arith.constant 0 : index
    %1 = vector.load %arg5[%c0_3, %c0_4, %c0_5, %c0_6] : memref<1x1x16x8xf32, #tpu.memory_space<vmem>>, vector<1x1x16x8xf32>
    %2 = vector.broadcast %0 : vector<1x16x16x1xf32> to vector<1x16x16x8xf32>
    %3 = vector.broadcast %1 : vector<1x1x16x8xf32> to vector<1x16x16x8xf32>
    %4 = arith.addf %2, %3 : vector<1x16x16x8xf32>
    %c0_7 = arith.constant 0 : index
    %c0_8 = arith.constant 0 : index
    %c0_9 = arith.constant 0 : index
    %c0_10 = arith.constant 0 : index
    %5 = vector.load %arg6[%c0_7, %c0_8, %c0_9, %c0_10] : memref<1x16x1x8xf32, #tpu.memory_space<vmem>>, vector<1x16x1x8xf32>
    %6 = vector.broadcast %5 : vector<1x16x1x8xf32> to vector<1x16x16x8xf32>
    %7 = arith.addf %4, %6 : vector<1x16x16x8xf32>
    %cst = arith.constant 0.333333343 : f32
    %8 = vector.broadcast %cst : f32 to vector<1x16x16x8xf32>
    %9 = arith.mulf %7, %8 : vector<1x16x16x8xf32>
    %c0_11 = arith.constant 0 : index
    %c0_12 = arith.constant 0 : index
    %c0_13 = arith.constant 0 : index
    %c0_14 = arith.constant 0 : index
    %10 = vector.load %arg2[%c0_11, %c0_12, %c0_13, %c0_14] : memref<1x16x16x8xbf16, #tpu.memory_space<vmem>>, vector<1x16x16x8xbf16>
    %11 = arith.extf %10 : vector<1x16x16x8xbf16> to vector<1x16x16x8xf32>
    %12 = arith.mulf %11, %9 : vector<1x16x16x8xf32>
    %c0_15 = arith.constant 0 : index
    %c0_16 = arith.constant 0 : index
    %c0_17 = arith.constant 0 : index
    %c0_18 = arith.constant 0 : index
    %13 = vector.load %arg3[%c0_15, %c0_16, %c0_17, %c0_18] : memref<1x16x16x8xf32, #tpu.memory_space<vmem>>, vector<1x16x16x8xf32>
    %14 = arith.addf %12, %13 : vector<1x16x16x8xf32>
    %cst_19 = arith.constant 0.000000e+00 : f32
    %15 = vector.broadcast %cst_19 : f32 to vector<1x16x16x8xf32>
    %16 = arith.maximumf %14, %15 : vector<1x16x16x8xf32>
    %c0_20 = arith.constant 0 : index
    %c0_21 = arith.constant 0 : index
    %c0_22 = arith.constant 0 : index
    %c0_23 = arith.constant 0 : index
    %17 = vector.load %arg7[%c0_20, %c0_21, %c0_22, %c0_23] : memref<1x16x16x8xf32, #tpu.memory_space<vmem>>, vector<1x16x16x8xf32>
    tpu.vector_store %arg7[%c0_20, %c0_21, %c0_22, %c0_23], %16 {strides = array<i32>} : memref<1x16x16x8xf32, #tpu.memory_space<vmem>>, vector<1x16x16x8xf32>,
    return
  }
  func.func @transform_0(%arg0: i32, %arg1: i32) -> (i32, i32, i32, i32) {
    %c0_i32 = arith.constant 0 : i32
    %c0_i32_0 = arith.constant 0 : i32
    %c0_i32_1 = arith.constant 0 : i32
    return %arg0, %arg1, %c0_i32, %c0_i32_0 : i32, i32, i32, i32
  }
  func.func @transform_1(%arg0: i32, %arg1: i32) -> (i32, i32, i32, i32) {
    %c0_i32 = arith.constant 0 : i32
    %c0_i32_0 = arith.constant 0 : i32
    %c0_i32_1 = arith.constant 0 : i32
    return %arg0, %arg1, %c0_i32, %c0_i32_0 : i32, i32, i32, i32
  }
  func.func @transform_2(%arg0: i32, %arg1: i32) -> (i32, i32, i32, i32) {
    %c0_i32 = arith.constant 0 : i32
    %c0_i32_0 = arith.constant 0 : i32
    %c0_i32_1 = arith.constant 0 : i32
    return %arg0, %arg1, %c0_i32, %c0_i32_0 : i32, i32, i32, i32
  }
  func.func @transform_3(%arg0: i32, %arg1: i32) -> (i32, i32, i32, i32) {
    %c0_i32 = arith.constant 0 : i32
    %c0_i32_0 = arith.constant 0 : i32
    %c0_i32_1 = arith.constant 0 : i32
    %c0_i32_2 = arith.constant 0 : i32
    return %arg0, %c0_i32, %c0_i32_0, %c0_i32_1 : i32, i32, i32, i32
  }
  func.func @transform_4(%arg0: i32, %arg1: i32) -> (i32, i32, i32, i32) {
    %c0_i32 = arith.constant 0 : i32
    %c0_i32_0 = arith.constant 0 : i32
    %c0_i32_1 = arith.constant 0 : i32
    return %arg0, %arg1, %c0_i32, %c0_i32_0 : i32, i32, i32, i32
  }
  func.func @transform_5(%arg0: i32, %arg1: i32) -> (i32, i32, i32, i32) {
    %c0_i32 = arith.constant 0 : i32
    %c0_i32_0 = arith.constant 0 : i32
    %c0_i32_1 = arith.constant 0 : i32
    return %arg0, %arg1, %c0_i32, %c0_i32_0 : i32, i32, i32, i32
  }
}

</mosaic_0001>

<llo_original>
// kernel: basic_block_forward.14
$region0: #{basic_block_forward.14}
  #allocation0 [shape = 'u32[]', space=smem, size = 0x4, offset = 0x4, fixed_abs, tag = 'smem constant byte address 0x4 - core index']
  #allocation1 [shape = 'u32[144,128]{1,0:T(1,128)}', space=vmem, size = 0x12000, scoped, tag = 'internal scratch']
  %s0 = inlined_call_operand.vmem [shape: bf16[2,256,8], index: 0, kind: input, shape index: {}]
  %s1 = inlined_call_operand.vmem [shape: f32[3], index: 1, kind: input, shape index: {}]
  %s2 = inlined_call_operand.vmem [shape: bf16[2,256,8], index: 2, kind: output, shape index: {}]
  %s3 = sld [smem:[#allocation0]]
  $region45: #{basic_block_forward.14} parent=0
    _
  %s5 = ssub.s32 1, %s3
  %s6 = scalar_select 0, %s5, %s3
  $region1: #{basic_block_forward.14} parent=0
    #allocation2 [shape = 'u8[512]{0}', space=smem, size = 0x200, scoped, tag = 'input window, operand 1, single buffered']
    #allocation3 [shape = 's32[2]{0}', space=sflag, size = 0x8, scoped, tag = 'scoped memory for basic_block_forward.14']
    %7 = vsyncpa [#allocation3], 0
    loop: start=0, step=1, limit=4
    $region2: #{basic_block_forward.14} parent=1 // loop_pre_header
      _
    $region3: #{basic_block_forward.14} parent=1 // loop_header
      %s9 = sphi 0, %s13
      %p10 = scmp.ge.s32.totalorder %s9, 4
      %s19 = sphi 0, %s21
      %s22 = sphi 0, %s19
      %s23 = sphi 0, %s22
      %s39 = sphi 0, %s23
      %s43 = sphi 0, %s43
      %s45 = sphi 0, %s43
      %s46 = sphi 0, %s45
      %s60 = sphi 0, %s46
      %s66 = sphi 0, %s68
      %s69 = sphi 0, %s66
      %s70 = sphi 0, %s69
      %s86 = sphi 0, %s70
    $region4: #{basic_block_forward.14} parent=1 // loop_header_branch
      %12 = sbr.rel (%p10) target = $region8
    $region5: #{basic_block_forward.14} parent=1 // loop_body
      %s14 = ssub.s32 %s9, 1
      %s15 = ssub.s32 %s9, 2
      %s16 = sadd.s32 %s9, 1
      %s17 = ssub.s32 %s9, %s16
      %p18 = scmp.eq.s32.totalorder %s17, 0
      %s20 = sadd.s32 %s19, 1
      %s21 = scalar_select %p18, %s19, %s20
      %p24 = pneg %p18
      %p25 = scmp.eq.s32.totalorder %s9, 1
      %p26 = por %p24, %p25
      %p27 = scmp.ne.s32.totalorder %s19, %s22
      %p28 = scmp.eq.s32.totalorder %s9, 0
      %p29 = por %p27, %p28
      %p30 = scmp.ne.s32.totalorder %s19, %s22
      %p31 = scmp.eq.s32.totalorder %s14, 1
      %p32 = por %p30, %p31
      %p33 = scmp.ne.s32.totalorder %s22, %s23
      %p34 = scmp.eq.s32.totalorder %s14, 0
      %p35 = por %p33, %p34
      %p36 = scmp.ne.s32.totalorder %s22, %s23
      %p37 = scmp.eq.s32.totalorder %s15, 1
      %p38 = por %p36, %p37
      %p40 = scmp.ne.s32.totalorder %s23, %s39
      %p41 = scmp.eq.s32.totalorder %s15, 0
      %p42 = por %p40, %p41
      %s44 = sadd.s32 %s43, 1
      %p47 = scmp.eq.s32.totalorder %s9, 1
      %p48 = scmp.ne.s32.totalorder %s43, %s45
      %p49 = scmp.eq.s32.totalorder %s9, 0
      %p50 = por %p48, %p49
      %p51 = scmp.ne.s32.totalorder %s43, %s45
      %p52 = scmp.eq.s32.totalorder %s14, 1
      %p53 = por %p51, %p52
      %p54 = scmp.ne.s32.totalorder %s45, %s46
      %p55 = scmp.eq.s32.totalorder %s14, 0
      %p56 = por %p54, %p55
      %p57 = scmp.ne.s32.totalorder %s45, %s46
      %p58 = scmp.eq.s32.totalorder %s15, 1
      %p59 = por %p57, %p58
      %p61 = scmp.ne.s32.totalorder %s46, %s60
      %p62 = scmp.eq.s32.totalorder %s15, 0
      %p63 = por %p61, %p62
      %s64 = ssub.s32 %s9, %s16
      %p65 = scmp.eq.s32.totalorder %s64, 0
      %s67 = sadd.s32 %s66, 1
      %s68 = scalar_select %p65, %s66, %s67
      %p71 = pneg %p65
      %p72 = scmp.eq.s32.totalorder %s9, 1
      %p73 = por %p71, %p72
      %p74 = scmp.ne.s32.totalorder %s66, %s69
      %p75 = scmp.eq.s32.totalorder %s9, 0
      %p76 = por %p74, %p75
      %p77 = scmp.ne.s32.totalorder %s66, %s69
      %p78 = scmp.eq.s32.totalorder %s14, 1
      %p79 = por %p77, %p78
      %p80 = scmp.ne.s32.totalorder %s69, %s70
      %p81 = scmp.eq.s32.totalorder %s14, 0
      %p82 = por %p80, %p81
      %p83 = scmp.ne.s32.totalorder %s69, %s70
      %p84 = scmp.eq.s32.totalorder %s15, 1
      %p85 = por %p83, %p84
      %p87 = scmp.ne.s32.totalorder %s70, %s86
      %p88 = scmp.eq.s32.totalorder %s15, 0
      %p89 = por %p87, %p88
      %p90 = scmp.le.s32.totalorder 1, %s9
      %p91 = scmp.lt.s32.totalorder %s9, 3
      %p92 = pnand %p90, %p91
      %p93 = pneg %p92
      // Predicated region
      $region9: #{basic_block_forward.14} parent=5 // pred_check
        _
      $region10: #{basic_block_forward.14} parent=5 // pred_check_branch
        %95 = sbr.rel (%p92) target = $region12
      $region11: #{basic_block_forward.14} parent=5 // pred_region
        %s96 = ssub.s32 %s9, 1
        // Predicated region
        $region13: #{basic_block_forward.14} parent=11 // pred_check
          %p97 = pneg %p56
        $region14: #{basic_block_forward.14} parent=11 // pred_check_branch
          %99 = sbr.rel (%p97) target = $region16
        $region15: #{basic_block_forward.14} parent=11 // pred_region
          %s101 = ssub.s32 16, 16
          %102 = vsyncadd [#allocation3], %s101
          %s104 = sshll.u32 %s1, 4
          %s105 = int_to_ptr.vmem [resolvable:$true] %s104
          %107 = dma.vmem_to_smem %s105, 16, [#allocation2], [#allocation3]
        $region16: #{basic_block_forward.14} parent=11 // pred_fallthru
          _
      $region12: #{basic_block_forward.14} parent=5 // pred_fallthru
        _
      %p108 = scmp.lt.s32.totalorder %s9, 2
      // Predicated region
      $region17: #{basic_block_forward.14} parent=5 // pred_check
        %p109 = pneg %p108
      $region18: #{basic_block_forward.14} parent=5 // pred_check_branch
        %111 = sbr.rel (%p109) target = $region20
      $region19: #{basic_block_forward.14} parent=5 // pred_region
        // Predicated region
        $region21: #{basic_block_forward.14} parent=19 // pred_check
          %p112 = pneg %p29
        $region22: #{basic_block_forward.14} parent=19 // pred_check_branch
          %114 = sbr.rel (%p112) target = $region24
        $region23: #{basic_block_forward.14} parent=19 // pred_region
          %p115 = scmp.lt.s32.totalorder %s9, 1
          %s116 = scalar_select %p115, %s9, 1
          %s117 = smul.addr %s116, 32
          %s118 = smul.addr %s117, 4
          %s119 = scalar_lea.vmem %s0, %s118
        $region24: #{basic_block_forward.14} parent=19 // pred_fallthru
          _
      $region20: #{basic_block_forward.14} parent=5 // pred_fallthru
        _
      %p120 = scmp.le.s32.totalorder 1, %s9
      %p121 = scmp.lt.s32.totalorder %s9, 3
      %p122 = pnand %p120, %p121
      %p123 = pneg %p122
      // Predicated region
      $region25: #{basic_block_forward.14} parent=5 // pred_check
        _
      $region26: #{basic_block_forward.14} parent=5 // pred_check_branch
        %125 = sbr.rel (%p122) target = $region28
      $region27: #{basic_block_forward.14} parent=5 // pred_region
        %s126 = ssub.s32 %s9, 1
        // Predicated region
        $region29: #{basic_block_forward.14} parent=27 // pred_check
          %p127 = pneg %p56
        $region30: #{basic_block_forward.14} parent=27 // pred_check_branch
          %129 = sbr.rel (%p127) target = $region32
        $region31: #{basic_block_forward.14} parent=27 // pred_region
          %130 = dma.done [#allocation3], 16
        $region32: #{basic_block_forward.14} parent=27 // pred_fallthru
          _
        %131 = sfence
        %p132 = scmp.lt.s32.totalorder %s14, 1
        %s133 = scalar_select %p132, %s14, 1
        %s134 = smul.addr %s133, 32
        %s135 = smul.addr %s134, 4
        %s136 = scalar_lea.vmem %s0, %s135
        %p137 = pneg %p35
        %p138 = pneg %p32
        %p139 = pneg %p56
        %p140 = pneg %p53
        %p141 = pneg %p82
        %p142 = pneg %p79
        %p143 = scmp.lt.s32.totalorder %s14, 1
        %s144 = scalar_select %p143, %s14, 1
        %s145 = smul.addr %s144, 32
        %s146 = smul.addr %s145, 4
        %s147 = scalar_lea.vmem %s2, %s146
        %p148 = scmp.lt.s32.totalorder %s14, 1
        %s149 = scalar_select %p148, %s14, 1
        %s150 = smul.addr %s149, 32
        %s151 = smul.addr %s150, 4
        %s152 = scalar_lea.vmem %s0, %s151
        %p153 = scmp.lt.s32.totalorder %s14, 1
        %s154 = scalar_select %p153, %s14, 1
        %s155 = smul.addr %s154, 32
        %s156 = smul.addr %s155, 4
        %s157 = scalar_lea.vmem %s2, %s156
        %v158 = vld [vmem:[%s152] sm:$0xf]
        %v159 = vld [vmem:[%s152 + $0x4] sm:$0xf]
        %v160 = vld [vmem:[%s152 + $0x8] sm:$0xf]
        %v161 = vld [vmem:[%s152 + $0xc] sm:$0xf]
        %v162 = vld [vmem:[%s152 + $0x10] sm:$0xf]
        %v163 = vld [vmem:[%s152 + $0x14] sm:$0xf]
        %v164 = vld [vmem:[%s152 + $0x18] sm:$0xf]
        %v165 = vld [vmem:[%s152 + $0x1c] sm:$0xf]
        %v166 = vld [vmem:[%s152 + $0x20] sm:$0xf]
        %v167 = vld [vmem:[%s152 + $0x24] sm:$0xf]
        %v168 = vld [vmem:[%s152 + $0x28] sm:$0xf]
        %v169 = vld [vmem:[%s152 + $0x2c] sm:$0xf]
        %v170 = vld [vmem:[%s152 + $0x30] sm:$0xf]
        %v171 = vld [vmem:[%s152 + $0x34] sm:$0xf]
        %v172 = vld [vmem:[%s152 + $0x38] sm:$0xf]
        %v173 = vld [vmem:[%s152 + $0x3c] sm:$0xf]
        %v174 = vld [vmem:[%s152 + $0x40] sm:$0xf]
        %v175 = vld [vmem:[%s152 + $0x44] sm:$0xf]
        %v176 = vld [vmem:[%s152 + $0x48] sm:$0xf]
        %v177 = vld [vmem:[%s152 + $0x4c] sm:$0xf]
        %v178 = vld [vmem:[%s152 + $0x50] sm:$0xf]
        %v179 = vld [vmem:[%s152 + $0x54] sm:$0xf]
        %v180 = vld [vmem:[%s152 + $0x58] sm:$0xf]
        %v181 = vld [vmem:[%s152 + $0x5c] sm:$0xf]
        %v182 = vld [vmem:[%s152 + $0x60] sm:$0xf]
        %v183 = vld [vmem:[%s152 + $0x64] sm:$0xf]
        %v184 = vld [vmem:[%s152 + $0x68] sm:$0xf]
        %v185 = vld [vmem:[%s152 + $0x6c] sm:$0xf]
        %v186 = vld [vmem:[%s152 + $0x70] sm:$0xf]
        %v187 = vld [vmem:[%s152 + $0x74] sm:$0xf]
        %v188 = vld [vmem:[%s152 + $0x78] sm:$0xf]
        %v189 = vld [vmem:[%s152 + $0x7c] sm:$0xf]
        %v190 = vunpack.c.l.bf16 %v158
        %v191 = vunpack.c.l.bf16 %v159
        %v192 = vunpack.c.l.bf16 %v160
        %v193 = vunpack.c.l.bf16 %v161
        %v194 = vunpack.c.l.bf16 %v162
        %v195 = vunpack.c.l.bf16 %v163
        %v196 = vunpack.c.l.bf16 %v164
        %v197 = vunpack.c.l.bf16 %v165
        %v198 = vunpack.c.l.bf16 %v166
        %v199 = vunpack.c.l.bf16 %v167
        %v200 = vunpack.c.l.bf16 %v168
        %v201 = vunpack.c.l.bf16 %v169
        %v202 = vunpack.c.l.bf16 %v170
        %v203 = vunpack.c.l.bf16 %v171
        %v204 = vunpack.c.l.bf16 %v172
        %v205 = vunpack.c.l.bf16 %v173
        %v206 = vunpack.c.l.bf16 %v174
        %v207 = vunpack.c.l.bf16 %v175
        %v208 = vunpack.c.l.bf16 %v176
        %v209 = vunpack.c.l.bf16 %v177
        %v210 = vunpack.c.l.bf16 %v178
        %v211 = vunpack.c.l.bf16 %v179
        %v212 = vunpack.c.l.bf16 %v180
        %v213 = vunpack.c.l.bf16 %v181
        %v214 = vunpack.c.l.bf16 %v182
        %v215 = vunpack.c.l.bf16 %v183
        %v216 = vunpack.c.l.bf16 %v184
        %v217 = vunpack.c.l.bf16 %v185
        %v218 = vunpack.c.l.bf16 %v186
        %v219 = vunpack.c.l.bf16 %v187
        %v220 = vunpack.c.l.bf16 %v188
        %v221 = vunpack.c.l.bf16 %v189
        %vm222 = vcmask 64512
        %v223 = vsel %vm222, %v190, 0.0
        %v224 = vsel %vm222, %v191, 0.0
        %v225 = vadd.f32 %v223, %v224
        %v226 = vsel %vm222, %v192, 0.0
        %v227 = vadd.f32 %v225, %v226
        %v228 = vsel %vm222, %v193, 0.0
        %v229 = vadd.f32 %v227, %v228
        %v230 = vsel %vm222, %v194, 0.0
        %v231 = vadd.f32 %v229, %v230
        %v232 = vsel %vm222, %v195, 0.0
        %v233 = vadd.f32 %v231, %v232
        %v234 = vsel %vm222, %v196, 0.0
        %v235 = vadd.f32 %v233, %v234
        %v236 = vsel %vm222, %v197, 0.0
        %v237 = vadd.f32 %v235, %v236
        %v238 = vsel %vm222, %v198, 0.0
        %v239 = vadd.f32 %v237, %v238
        %v240 = vsel %vm222, %v199, 0.0
        %v241 = vadd.f32 %v239, %v240
        %v242 = vsel %vm222, %v200, 0.0
        %v243 = vadd.f32 %v241, %v242
        %v244 = vsel %vm222, %v201, 0.0
        %v245 = vadd.f32 %v243, %v244
        %v246 = vsel %vm222, %v202, 0.0
        %v247 = vadd.f32 %v245, %v246
        %v248 = vsel %vm222, %v203, 0.0
        %v249 = vadd.f32 %v247, %v248
        %v250 = vsel %vm222, %v204, 0.0
        %v251 = vadd.f32 %v249, %v250
        %v252 = vsel %vm222, %v205, 0.0
        %v253 = vadd.f32 %v251, %v252
        %v254 = vsel %vm222, %v206, 0.0
        %v255 = vadd.f32 %v253, %v254
        %v256 = vsel %vm222, %v207, 0.0
        %v257 = vadd.f32 %v255, %v256
        %v258 = vsel %vm222, %v208, 0.0
        %v259 = vadd.f32 %v257, %v258
        %v260 = vsel %vm222, %v209, 0.0
        %v261 = vadd.f32 %v259, %v260
        %v262 = vsel %vm222, %v210, 0.0
        %v263 = vadd.f32 %v261, %v262
        %v264 = vsel %vm222, %v211, 0.0
        %v265 = vadd.f32 %v263, %v264
        %v266 = vsel %vm222, %v212, 0.0
        %v267 = vadd.f32 %v265, %v266
        %v268 = vsel %vm222, %v213, 0.0
        %v269 = vadd.f32 %v267, %v268
        %v270 = vsel %vm222, %v214, 0.0
        %v271 = vadd.f32 %v269, %v270
        %v272 = vsel %vm222, %v215, 0.0
        %v273 = vadd.f32 %v271, %v272
        %v274 = vsel %vm222, %v216, 0.0
        %v275 = vadd.f32 %v273, %v274
        %v276 = vsel %vm222, %v217, 0.0
        %v277 = vadd.f32 %v275, %v276
        %v278 = vsel %vm222, %v218, 0.0
        %v279 = vadd.f32 %v277, %v278
        %v280 = vsel %vm222, %v219, 0.0
        %v281 = vadd.f32 %v279, %v280
        %v282 = vsel %vm222, %v220, 0.0
        %v283 = vadd.f32 %v281, %v282
        %v284 = vsel %vm222, %v221, 0.0
        %v285 = vadd.f32 %v283, %v284
        %v286 = vrot.slane %v285, 4
        %v287 = vadd.f32 %v285, %v286
        %v288 = vrot.slane %v287, 2
        %v289 = vadd.f32 %v287, %v288
        %v290 = vrot.slane %v289, 1
        %v291 = vadd.f32 %v289, %v290
        %v292 = vrcp.pop 256.0
        %v293 = vmul.f32 %v291, %v292
        %s294 = sld [smem:[#allocation2]]
        %s295 = sld [smem:[#allocation2 + $0x1]]
        %s296 = sld [smem:[#allocation2 + $0x2]]
        %v297 = vlaneseq
        %v298 = vand.u32 %v297, 127
        %vm299 = vcmp.eq.s32.totalorder %v298, 0
        %vm300 = vcmask 1047616
        %301 = vrot.lane.b32.xlu0 %v293, 8
        %v302 = vpop.permute.xlu0 %301
        %v303 = vsel %vm300, %v302, %v293
        %304 = vrot.lane.b32.xlu0 %v303, 8
        %v305 = vpop.permute.xlu0 %304
        %v306 = vsel %vm300, %v305, %v293
        %308 = vrot.lane.b32.xlu0 %v306, 121
        %v309 = vpop.permute.xlu0 %308
        %v311 = vsel %vm299, 0.0, %v309
        %vm312 = vcmp.eq.s32.totalorder %v298, 7
        %313 = vrot.lane.b32.xlu0 %v306, 127
        %v314 = vpop.permute.xlu0 %313
        %v316 = vsel %vm312, 0.0, %v314
        %v317 = vstv %s294
        %v318 = vmul.f32 %v317, %v311
        %v319 = vstv %s295
        %v320 = vmul.f32 %v319, %v293
        %v321 = vadd.f32 %v318, %v320
        %v322 = vstv %s296
        %v323 = vmul.f32 %v322, %v316
        %v324 = vadd.f32 %v321, %v323
        %v325 = vxor.u32 %v324, 2147483648
        %v326 = vmul.f32 %v325, 1.442695
        %v327 = vpow.pop %v326
        %v328 = vadd.f32 %v327, 1.0
        %v329 = vrcp.pop %v328
        %v330 = vmul.f32 1.0, %v329
        %v331 = vlaneseq
        %v332 = vshrl.u32 %v331, 7
        %v333 = vsub.s32 0, %v332
        %v334 = vrot.slane %v330, %v333
        %v335 = vmul.f32 %v190, %v334
        %v336 = vmul.f32 %v191, %v334
        %v337 = vmul.f32 %v192, %v334
        %v338 = vmul.f32 %v193, %v334
        %v339 = vmul.f32 %v194, %v334
        %v340 = vmul.f32 %v195, %v334
        %v341 = vmul.f32 %v196, %v334
        %v342 = vmul.f32 %v197, %v334
        %v343 = vmul.f32 %v198, %v334
        %v344 = vmul.f32 %v199, %v334
        %v345 = vmul.f32 %v200, %v334
        %v346 = vmul.f32 %v201, %v334
        %v347 = vmul.f32 %v202, %v334
        %v348 = vmul.f32 %v203, %v334
        %v349 = vmul.f32 %v204, %v334
        %v350 = vmul.f32 %v205, %v334
        %v351 = vmul.f32 %v206, %v334
        %v352 = vmul.f32 %v207, %v334
        %v353 = vmul.f32 %v208, %v334
        %v354 = vmul.f32 %v209, %v334
        %v355 = vmul.f32 %v210, %v334
        %v356 = vmul.f32 %v211, %v334
        %v357 = vmul.f32 %v212, %v334
        %v358 = vmul.f32 %v213, %v334
        %v359 = vmul.f32 %v214, %v334
        %v360 = vmul.f32 %v215, %v334
        %v361 = vmul.f32 %v216, %v334
        %v362 = vmul.f32 %v217, %v334
        %v363 = vmul.f32 %v218, %v334
        %v364 = vmul.f32 %v219, %v334
        %v365 = vmul.f32 %v220, %v334
        %v366 = vmul.f32 %v221, %v334
        %v367 = vpack.c.bf16 %v336, %v335
        %v368 = vpack.c.bf16 %v338, %v337
        %v369 = vpack.c.bf16 %v340, %v339
        %v370 = vpack.c.bf16 %v342, %v341
        %v371 = vpack.c.bf16 %v344, %v343
        %v372 = vpack.c.bf16 %v346, %v345
        %v373 = vpack.c.bf16 %v348, %v347
        %v374 = vpack.c.bf16 %v350, %v349
        %v375 = vpack.c.bf16 %v352, %v351
        %v376 = vpack.c.bf16 %v354, %v353
        %v377 = vpack.c.bf16 %v356, %v355
        %v378 = vpack.c.bf16 %v358, %v357
        %v379 = vpack.c.bf16 %v360, %v359
        %v380 = vpack.c.bf16 %v362, %v361
        %v381 = vpack.c.bf16 %v364, %v363
        %v382 = vpack.c.bf16 %v366, %v365
        %v399 = vunpack.c.l.b16 %v367
        %v400 = vunpack.c.h.b16 %v367
        %v401 = vunpack.c.l.b16 %v368
        %v402 = vunpack.c.h.b16 %v368
        %v403 = vunpack.c.l.b16 %v369
        %v404 = vunpack.c.h.b16 %v369
        %v405 = vunpack.c.l.b16 %v370
        %v406 = vunpack.c.h.b16 %v370
        %v407 = vunpack.c.l.b16 %v371
        %v408 = vunpack.c.h.b16 %v371
        %v409 = vunpack.c.l.b16 %v372
        %v410 = vunpack.c.h.b16 %v372
        %v411 = vunpack.c.l.b16 %v373
        %v412 = vunpack.c.h.b16 %v373
        %v413 = vunpack.c.l.b16 %v374
        %v414 = vunpack.c.h.b16 %v374
        %v415 = vunpack.c.l.b16 %v375
        %v416 = vunpack.c.h.b16 %v375
        %v417 = vunpack.c.l.b16 %v376
        %v418 = vunpack.c.h.b16 %v376
        %v419 = vunpack.c.l.b16 %v377
        %v420 = vunpack.c.h.b16 %v377
        %v421 = vunpack.c.l.b16 %v378
        %v422 = vunpack.c.h.b16 %v378
        %v423 = vunpack.c.l.b16 %v379
        %v424 = vunpack.c.h.b16 %v379
        %v425 = vunpack.c.l.b16 %v380
        %v426 = vunpack.c.h.b16 %v380
        %v427 = vunpack.c.l.b16 %v381
        %v428 = vunpack.c.h.b16 %v381
        %v429 = vunpack.c.l.b16 %v382
        %v430 = vunpack.c.h.b16 %v382
        %v431 = vpack.c.b16 %v399, %v399
        %v432 = vpack.c.b16 %v400, %v400
        %v433 = vpack.c.b16 %v401, %v401
        %v434 = vpack.c.b16 %v402, %v402
        %v435 = vpack.c.b16 %v403, %v403
        %v436 = vpack.c.b16 %v404, %v404
        %v437 = vpack.c.b16 %v405, %v405
        %v438 = vpack.c.b16 %v406, %v406
        %v439 = vpack.c.b16 %v407, %v407
        %v440 = vpack.c.b16 %v408, %v408
        %v441 = vpack.c.b16 %v409, %v409
        %v442 = vpack.c.b16 %v410, %v410
        %v443 = vpack.c.b16 %v411, %v411
        %v444 = vpack.c.b16 %v412, %v412
        %v445 = vpack.c.b16 %v413, %v413
        %v446 = vpack.c.b16 %v414, %v414
        %v447 = vpack.c.b16 %v415, %v415
        %v448 = vpack.c.b16 %v416, %v416
        %v449 = vpack.c.b16 %v417, %v417
        %v450 = vpack.c.b16 %v418, %v418
        %v451 = vpack.c.b16 %v419, %v419
        %v452 = vpack.c.b16 %v420, %v420
        %v453 = vpack.c.b16 %v421, %v421
        %v454 = vpack.c.b16 %v422, %v422
        %v455 = vpack.c.b16 %v423, %v423
        %v456 = vpack.c.b16 %v424, %v424
        %v457 = vpack.c.b16 %v425, %v425
        %v458 = vpack.c.b16 %v426, %v426
        %v459 = vpack.c.b16 %v427, %v427
        %v460 = vpack.c.b16 %v428, %v428
        %v461 = vpack.c.b16 %v429, %v429
        %v462 = vpack.c.b16 %v430, %v430
        %vm495 = vcmask 60416
        %496 = vst.msk [vmem:[%s157] sm:$0xf] %vm495, %v431
        %497 = vst.msk [vmem:[%s157 + $0x4] sm:$0xf] %vm495, %v432
        %498 = vst.msk [vmem:[%s157 + $0x8] sm:$0xf] %vm495, %v433
        %499 = vst.msk [vmem:[%s157 + $0xc] sm:$0xf] %vm495, %v434
        %500 = vst.msk [vmem:[%s157 + $0x10] sm:$0xf] %vm495, %v435
        %501 = vst.msk [vmem:[%s157 + $0x14] sm:$0xf] %vm495, %v436
        %502 = vst.msk [vmem:[%s157 + $0x18] sm:$0xf] %vm495, %v437
        %503 = vst.msk [vmem:[%s157 + $0x1c] sm:$0xf] %vm495, %v438
        %504 = vst.msk [vmem:[%s157 + $0x20] sm:$0xf] %vm495, %v439
        %505 = vst.msk [vmem:[%s157 + $0x24] sm:$0xf] %vm495, %v440
        %506 = vst.msk [vmem:[%s157 + $0x28] sm:$0xf] %vm495, %v441
        %507 = vst.msk [vmem:[%s157 + $0x2c] sm:$0xf] %vm495, %v442
        %508 = vst.msk [vmem:[%s157 + $0x30] sm:$0xf] %vm495, %v443
        %509 = vst.msk [vmem:[%s157 + $0x34] sm:$0xf] %vm495, %v444
        %510 = vst.msk [vmem:[%s157 + $0x38] sm:$0xf] %vm495, %v445
        %511 = vst.msk [vmem:[%s157 + $0x3c] sm:$0xf] %vm495, %v446
        %512 = vst.msk [vmem:[%s157 + $0x40] sm:$0xf] %vm495, %v447
        %513 = vst.msk [vmem:[%s157 + $0x44] sm:$0xf] %vm495, %v448
        %514 = vst.msk [vmem:[%s157 + $0x48] sm:$0xf] %vm495, %v449
        %515 = vst.msk [vmem:[%s157 + $0x4c] sm:$0xf] %vm495, %v450
        %516 = vst.msk [vmem:[%s157 + $0x50] sm:$0xf] %vm495, %v451
        %517 = vst.msk [vmem:[%s157 + $0x54] sm:$0xf] %vm495, %v452
        %518 = vst.msk [vmem:[%s157 + $0x58] sm:$0xf] %vm495, %v453
        %519 = vst.msk [vmem:[%s157 + $0x5c] sm:$0xf] %vm495, %v454
        %520 = vst.msk [vmem:[%s157 + $0x60] sm:$0xf] %vm495, %v455
        %521 = vst.msk [vmem:[%s157 + $0x64] sm:$0xf] %vm495, %v456
        %522 = vst.msk [vmem:[%s157 + $0x68] sm:$0xf] %vm495, %v457
        %523 = vst.msk [vmem:[%s157 + $0x6c] sm:$0xf] %vm495, %v458
        %524 = vst.msk [vmem:[%s157 + $0x70] sm:$0xf] %vm495, %v459
        %525 = vst.msk [vmem:[%s157 + $0x74] sm:$0xf] %vm495, %v460
        %526 = vst.msk [vmem:[%s157 + $0x78] sm:$0xf] %vm495, %v461
        %527 = vst.msk [vmem:[%s157 + $0x7c] sm:$0xf] %vm495, %v462
        %p528 = scmp.lt.s32.totalorder %s14, 1
        %s529 = scalar_select %p528, %s14, 1
        %s530 = smul.addr %s529, 32
        %s531 = smul.addr %s530, 4
        %s532 = scalar_lea.vmem %s2, %s531
        // Predicated region
        $region33: #{basic_block_forward.14} parent=27 // pred_check
          %p533 = pneg %p79
        $region34: #{basic_block_forward.14} parent=27 // pred_check_branch
          %535 = sbr.rel (%p533) target = $region36
        $region35: #{basic_block_forward.14} parent=27 // pred_region
          _
        $region36: #{basic_block_forward.14} parent=27 // pred_fallthru
          _
      $region28: #{basic_block_forward.14} parent=5 // pred_fallthru
        _
      %p536 = scmp.le.s32.totalorder 2, %s9
      // Predicated region
      $region37: #{basic_block_forward.14} parent=5 // pred_check
        %p537 = pneg %p536
      $region38: #{basic_block_forward.14} parent=5 // pred_check_branch
        %539 = sbr.rel (%p537) target = $region40
      $region39: #{basic_block_forward.14} parent=5 // pred_region
        %s540 = ssub.s32 %s9, 2
        // Predicated region
        $region41: #{basic_block_forward.14} parent=39 // pred_check
          %p541 = pneg %p85
        $region42: #{basic_block_forward.14} parent=39 // pred_check_branch
          %543 = sbr.rel (%p541) target = $region44
        $region43: #{basic_block_forward.14} parent=39 // pred_region
          %p544 = scmp.lt.s32.totalorder %s15, 1
          %s545 = scalar_select %p544, %s15, 1
          %s546 = smul.addr %s545, 32
          %s547 = smul.addr %s546, 4
          %s548 = scalar_lea.vmem %s2, %s547
        $region44: #{basic_block_forward.14} parent=39 // pred_fallthru
          _
      $region40: #{basic_block_forward.14} parent=5 // pred_fallthru
        _
    $region6: #{basic_block_forward.14} parent=1 // loop_footer
      %s13 = sadd.s32 1, %s9
    $region7: #{basic_block_forward.14} parent=1 // loop_footer_branch
      %8 = sbr.rel target = $region3
    $region8: #{basic_block_forward.14} parent=1 // loop_exit
      _
    %549 = vsyncpa [#allocation3], 1
    %s550 = scalar_lea.sflag [#allocation3], 1
    %551 = vsyncpa %s550, 1

// kernel: basic_block_forward.13
$region0: #{basic_block_forward.13}
  #allocation0 [shape = 'u32[]', space=smem, size = 0x4, offset = 0x4, fixed_abs, tag = 'smem constant byte address 0x4 - core index']
  #allocation1 [shape = 'u32[144,128]{1,0:T(1,128)}', space=vmem, size = 0x12000, scoped, tag = 'internal scratch']
  %s0 = inlined_call_operand.vmem [shape: bf16[512,128], index: 0, kind: input, shape index: {}]
  %s1 = inlined_call_operand.vmem [shape: bf16[128,128], index: 1, kind: input, shape index: {}]
  %s2 = inlined_call_operand.vmem [shape: f32[1,8], index: 2, kind: input, shape index: {}]
  %s3 = inlined_call_operand.vmem [shape: f32[1,8], index: 3, kind: input, shape index: {}]
  %s4 = inlined_call_operand.vmem [shape: bf16[512,8], index: 4, kind: output, shape index: {}]
  %s5 = sld [smem:[#allocation0]]
  $region26: #{basic_block_forward.13} parent=0
    _
  %s7 = ssub.s32 1, %s5
  %s8 = scalar_select 0, %s7, %s5
  // Predicated region
  $region2: #{basic_block_forward.13} parent=0 // pred_check
    _
  $region3: #{basic_block_forward.13} parent=0 // pred_check_branch
    %10 = sbr.rel (0) target = $region5
  $region4: #{basic_block_forward.13} parent=0 // pred_region
    _
  $region5: #{basic_block_forward.13} parent=0 // pred_fallthru
    _
  // Predicated region
  $region6: #{basic_block_forward.13} parent=0 // pred_check
    _
  $region7: #{basic_block_forward.13} parent=0 // pred_check_branch
    %12 = sbr.rel (0) target = $region9
  $region8: #{basic_block_forward.13} parent=0 // pred_region
    _
  $region9: #{basic_block_forward.13} parent=0 // pred_fallthru
    _
  // Predicated region
  $region10: #{basic_block_forward.13} parent=0 // pred_check
    _
  $region11: #{basic_block_forward.13} parent=0 // pred_check_branch
    %14 = sbr.rel (0) target = $region13
  $region12: #{basic_block_forward.13} parent=0 // pred_region
    _
  $region13: #{basic_block_forward.13} parent=0 // pred_fallthru
    _
  // Predicated region
  $region14: #{basic_block_forward.13} parent=0 // pred_check
    _
  $region15: #{basic_block_forward.13} parent=0 // pred_check_branch
    %16 = sbr.rel (0) target = $region17
  $region16: #{basic_block_forward.13} parent=0 // pred_region
    _
  $region17: #{basic_block_forward.13} parent=0 // pred_fallthru
    _
  %v18 = vld [vmem:[%s0] sm:$0xf]
  %v19 = vld [vmem:[%s0 + $0x4] sm:$0xf]
  %v20 = vld [vmem:[%s0 + $0x8] sm:$0xf]
  %v21 = vld [vmem:[%s0 + $0xc] sm:$0xf]
  %v22 = vld [vmem:[%s0 + $0x10] sm:$0xf]
  %v23 = vld [vmem:[%s0 + $0x14] sm:$0xf]
  %v24 = vld [vmem:[%s0 + $0x18] sm:$0xf]
  %v25 = vld [vmem:[%s0 + $0x1c] sm:$0xf]
  %v26 = vld [vmem:[%s0 + $0x20] sm:$0xf]
  %v27 = vld [vmem:[%s0 + $0x24] sm:$0xf]
  %v28 = vld [vmem:[%s0 + $0x28] sm:$0xf]
  %v29 = vld [vmem:[%s0 + $0x2c] sm:$0xf]
  %v30 = vld [vmem:[%s0 + $0x30] sm:$0xf]
  %v31 = vld [vmem:[%s0 + $0x34] sm:$0xf]
  %v32 = vld [vmem:[%s0 + $0x38] sm:$0xf]
  %v33 = vld [vmem:[%s0 + $0x3c] sm:$0xf]
  %v34 = vld [vmem:[%s0 + $0x40] sm:$0xf]
  %v35 = vld [vmem:[%s0 + $0x44] sm:$0xf]
  %v36 = vld [vmem:[%s0 + $0x48] sm:$0xf]
  %v37 = vld [vmem:[%s0 + $0x4c] sm:$0xf]
  %v38 = vld [vmem:[%s0 + $0x50] sm:$0xf]
  %v39 = vld [vmem:[%s0 + $0x54] sm:$0xf]
  %v40 = vld [vmem:[%s0 + $0x58] sm:$0xf]
  %v41 = vld [vmem:[%s0 + $0x5c] sm:$0xf]
  %v42 = vld [vmem:[%s0 + $0x60] sm:$0xf]
  %v43 = vld [vmem:[%s0 + $0x64] sm:$0xf]
  %v44 = vld [vmem:[%s0 + $0x68] sm:$0xf]
  %v45 = vld [vmem:[%s0 + $0x6c] sm:$0xf]
  %v46 = vld [vmem:[%s0 + $0x70] sm:$0xf]
  %v47 = vld [vmem:[%s0 + $0x74] sm:$0xf]
  %v48 = vld [vmem:[%s0 + $0x78] sm:$0xf]
  %v49 = vld [vmem:[%s0 + $0x7c] sm:$0xf]
  %v50 = vld [vmem:[%s0 + $0x80] sm:$0xf]
  %v51 = vld [vmem:[%s0 + $0x84] sm:$0xf]
  %v52 = vld [vmem:[%s0 + $0x88] sm:$0xf]
  %v53 = vld [vmem:[%s0 + $0x8c] sm:$0xf]
  %v54 = vld [vmem:[%s0 + $0x90] sm:$0xf]
  %v55 = vld [vmem:[%s0 + $0x94] sm:$0xf]
  %v56 = vld [vmem:[%s0 + $0x98] sm:$0xf]
  %v57 = vld [vmem:[%s0 + $0x9c] sm:$0xf]
  %v58 = vld [vmem:[%s0 + $0xa0] sm:$0xf]
  %v59 = vld [vmem:[%s0 + $0xa4] sm:$0xf]
  %v60 = vld [vmem:[%s0 + $0xa8] sm:$0xf]
  %v61 = vld [vmem:[%s0 + $0xac] sm:$0xf]
  %v62 = vld [vmem:[%s0 + $0xb0] sm:$0xf]
  %v63 = vld [vmem:[%s0 + $0xb4] sm:$0xf]
  %v64 = vld [vmem:[%s0 + $0xb8] sm:$0xf]
  %v65 = vld [vmem:[%s0 + $0xbc] sm:$0xf]
  %v66 = vld [vmem:[%s0 + $0xc0] sm:$0xf]
  %v67 = vld [vmem:[%s0 + $0xc4] sm:$0xf]
  %v68 = vld [vmem:[%s0 + $0xc8] sm:$0xf]
  %v69 = vld [vmem:[%s0 + $0xcc] sm:$0xf]
  %v70 = vld [vmem:[%s0 + $0xd0] sm:$0xf]
  %v71 = vld [vmem:[%s0 + $0xd4] sm:$0xf]
  %v72 = vld [vmem:[%s0 + $0xd8] sm:$0xf]
  %v73 = vld [vmem:[%s0 + $0xdc] sm:$0xf]
  %v74 = vld [vmem:[%s0 + $0xe0] sm:$0xf]
  %v75 = vld [vmem:[%s0 + $0xe4] sm:$0xf]
  %v76 = vld [vmem:[%s0 + $0xe8] sm:$0xf]
  %v77 = vld [vmem:[%s0 + $0xec] sm:$0xf]
  %v78 = vld [vmem:[%s0 + $0xf0] sm:$0xf]
  %v79 = vld [vmem:[%s0 + $0xf4] sm:$0xf]
  %v80 = vld [vmem:[%s0 + $0xf8] sm:$0xf]
  %v81 = vld [vmem:[%s0 + $0xfc] sm:$0xf]
  %v82 = vld [vmem:[%s1] sm:$0xf]
  %v83 = vld [vmem:[%s1 + $0x4] sm:$0xf]
  %v84 = vld [vmem:[%s1 + $0x8] sm:$0xf]
  %v85 = vld [vmem:[%s1 + $0xc] sm:$0xf]
  %v86 = vld [vmem:[%s1 + $0x10] sm:$0xf]
  %v87 = vld [vmem:[%s1 + $0x14] sm:$0xf]
  %v88 = vld [vmem:[%s1 + $0x18] sm:$0xf]
  %v89 = vld [vmem:[%s1 + $0x1c] sm:$0xf]
  %v90 = vld [vmem:[%s1 + $0x20] sm:$0xf]
  %v91 = vld [vmem:[%s1 + $0x24] sm:$0xf]
  %v92 = vld [vmem:[%s1 + $0x28] sm:$0xf]
  %v93 = vld [vmem:[%s1 + $0x2c] sm:$0xf]
  %v94 = vld [vmem:[%s1 + $0x30] sm:$0xf]
  %v95 = vld [vmem:[%s1 + $0x34] sm:$0xf]
  %v96 = vld [vmem:[%s1 + $0x38] sm:$0xf]
  %v97 = vld [vmem:[%s1 + $0x3c] sm:$0xf]
  %v162 = vunpack.c.l.b16 %v18
  %v163 = vunpack.c.l.b16 %v19
  %v164 = vunpack.c.l.b16 %v20
  %v165 = vunpack.c.l.b16 %v21
  %v166 = vunpack.c.l.b16 %v22
  %v167 = vunpack.c.l.b16 %v23
  %v168 = vunpack.c.l.b16 %v24
  %v169 = vunpack.c.l.b16 %v25
  %v170 = vunpack.c.l.b16 %v26
  %v171 = vunpack.c.l.b16 %v27
  %v172 = vunpack.c.l.b16 %v28
  %v173 = vunpack.c.l.b16 %v29
  %v174 = vunpack.c.l.b16 %v30
  %v175 = vunpack.c.l.b16 %v31
  %v176 = vunpack.c.l.b16 %v32
  %v177 = vunpack.c.l.b16 %v33
  %v178 = vunpack.c.l.b16 %v34
  %v179 = vunpack.c.l.b16 %v35
  %v180 = vunpack.c.l.b16 %v36
  %v181 = vunpack.c.l.b16 %v37
  %v182 = vunpack.c.l.b16 %v38
  %v183 = vunpack.c.l.b16 %v39
  %v184 = vunpack.c.l.b16 %v40
  %v185 = vunpack.c.l.b16 %v41
  %v186 = vunpack.c.l.b16 %v42
  %v187 = vunpack.c.l.b16 %v43
  %v188 = vunpack.c.l.b16 %v44
  %v189 = vunpack.c.l.b16 %v45
  %v190 = vunpack.c.l.b16 %v46
  %v191 = vunpack.c.l.b16 %v47
  %v192 = vunpack.c.l.b16 %v48
  %v193 = vunpack.c.l.b16 %v49
  %v194 = vunpack.c.l.b16 %v50
  %v195 = vunpack.c.l.b16 %v51
  %v196 = vunpack.c.l.b16 %v52
  %v197 = vunpack.c.l.b16 %v53
  %v198 = vunpack.c.l.b16 %v54
  %v199 = vunpack.c.l.b16 %v55
  %v200 = vunpack.c.l.b16 %v56
  %v201 = vunpack.c.l.b16 %v57
  %v202 = vunpack.c.l.b16 %v58
  %v203 = vunpack.c.l.b16 %v59
  %v204 = vunpack.c.l.b16 %v60
  %v205 = vunpack.c.l.b16 %v61
  %v206 = vunpack.c.l.b16 %v62
  %v207 = vunpack.c.l.b16 %v63
  %v208 = vunpack.c.l.b16 %v64
  %v209 = vunpack.c.l.b16 %v65
  %v210 = vunpack.c.l.b16 %v66
  %v211 = vunpack.c.l.b16 %v67
  %v212 = vunpack.c.l.b16 %v68
  %v213 = vunpack.c.l.b16 %v69
  %v214 = vunpack.c.l.b16 %v70
  %v215 = vunpack.c.l.b16 %v71
  %v216 = vunpack.c.l.b16 %v72
  %v217 = vunpack.c.l.b16 %v73
  %v218 = vunpack.c.l.b16 %v74
  %v219 = vunpack.c.l.b16 %v75
  %v220 = vunpack.c.l.b16 %v76
  %v221 = vunpack.c.l.b16 %v77
  %v222 = vunpack.c.l.b16 %v78
  %v223 = vunpack.c.l.b16 %v79
  %v224 = vunpack.c.l.b16 %v80
  %v225 = vunpack.c.l.b16 %v81
  %v226 = vpack.c.b16 %v163, %v162
  %v227 = vpack.c.b16 %v165, %v164
  %v228 = vpack.c.b16 %v167, %v166
  %v229 = vpack.c.b16 %v169, %v168
  %v230 = vpack.c.b16 %v171, %v170
  %v231 = vpack.c.b16 %v173, %v172
  %v232 = vpack.c.b16 %v175, %v174
  %v233 = vpack.c.b16 %v177, %v176
  %v234 = vpack.c.b16 %v179, %v178
  %v235 = vpack.c.b16 %v181, %v180
  %v236 = vpack.c.b16 %v183, %v182
  %v237 = vpack.c.b16 %v185, %v184
  %v238 = vpack.c.b16 %v187, %v186
  %v239 = vpack.c.b16 %v189, %v188
  %v240 = vpack.c.b16 %v191, %v190
  %v241 = vpack.c.b16 %v193, %v192
  %v242 = vpack.c.b16 %v195, %v194
  %v243 = vpack.c.b16 %v197, %v196
  %v244 = vpack.c.b16 %v199, %v198
  %v245 = vpack.c.b16 %v201, %v200
  %v246 = vpack.c.b16 %v203, %v202
  %v247 = vpack.c.b16 %v205, %v204
  %v248 = vpack.c.b16 %v207, %v206
  %v249 = vpack.c.b16 %v209, %v208
  %v250 = vpack.c.b16 %v211, %v210
  %v251 = vpack.c.b16 %v213, %v212
  %v252 = vpack.c.b16 %v215, %v214
  %v253 = vpack.c.b16 %v217, %v216
  %v254 = vpack.c.b16 %v219, %v218
  %v255 = vpack.c.b16 %v221, %v220
  %v256 = vpack.c.b16 %v223, %v222
  %v257 = vpack.c.b16 %v225, %v224
  %v306 = vunpack.c.l.b16 %v82
  %v307 = vunpack.c.l.b16 %v83
  %v308 = vunpack.c.l.b16 %v84
  %v309 = vunpack.c.l.b16 %v85
  %v310 = vunpack.c.l.b16 %v86
  %v311 = vunpack.c.l.b16 %v87
  %v312 = vunpack.c.l.b16 %v88
  %v313 = vunpack.c.l.b16 %v89
  %v314 = vunpack.c.l.b16 %v90
  %v315 = vunpack.c.l.b16 %v91
  %v316 = vunpack.c.l.b16 %v92
  %v317 = vunpack.c.l.b16 %v93
  %v318 = vunpack.c.l.b16 %v94
  %v319 = vunpack.c.l.b16 %v95
  %v320 = vunpack.c.l.b16 %v96
  %v321 = vunpack.c.l.b16 %v97
  %v322 = vpack.c.b16 %v307, %v306
  %v323 = vpack.c.b16 %v309, %v308
  %v324 = vpack.c.b16 %v311, %v310
  %v325 = vpack.c.b16 %v313, %v312
  %v326 = vpack.c.b16 %v315, %v314
  %v327 = vpack.c.b16 %v317, %v316
  %v328 = vpack.c.b16 %v319, %v318
  %v329 = vpack.c.b16 %v321, %v320
  %338 = vmatprep.subr.bf16.mxu0 0
  %339 = vmatpush1.bf16.msra.mxu0 %v322
  %340 = vmatprep.subr.bf16.mxu0 0
  %341 = vmatpush1.bf16.msra.mxu0 %v323
  %342 = vmatprep.subr.bf16.mxu0 0
  %343 = vmatpush1.bf16.msra.mxu0 %v324
  %344 = vmatprep.subr.bf16.mxu0 0
  %345 = vmatpush1.bf16.msra.mxu0 %v325
  %346 = vmatprep.subr.bf16.mxu0 0
  %347 = vmatpush1.bf16.msra.mxu0 %v326
  %348 = vmatprep.subr.bf16.mxu0 0
  %349 = vmatpush1.bf16.msra.mxu0 %v327
  %350 = vmatprep.subr.bf16.mxu0 0
  %351 = vmatpush1.bf16.msra.mxu0 %v328
  %352 = vmatprep.subr.bf16.mxu0 0
  %353 = vmatpush1.bf16.msra.mxu0 %v329
  %354 = vmatprep.subr.bf16.mxu0 0
  %355 = vmatpush1.bf16.msra.mxu0 0
  %356 = vmatprep.subr.bf16.mxu0 0
  %357 = vmatpush1.bf16.msra.mxu0 0
  %358 = vmatprep.subr.bf16.mxu0 0
  %359 = vmatpush1.bf16.msra.mxu0 0
  %360 = vmatprep.subr.bf16.mxu0 0
  %361 = vmatpush1.bf16.msra.mxu0 0
  %362 = vmatprep.subr.bf16.mxu0 0
  %363 = vmatpush1.bf16.msra.mxu0 0
  %364 = vmatprep.subr.bf16.mxu0 0
  %365 = vmatpush1.bf16.msra.mxu0 0
  %366 = vmatprep.subr.bf16.mxu0 0
  %367 = vmatpush1.bf16.msra.mxu0 0
  %368 = vmatprep.subr.bf16.mxu0 0
  %369 = vmatpush1.bf16.msra.mxu0 0
  %370 = vmatprep.mubr.bf16.mxu0 0
  %371 = vmatmul.mubr.bf16.gmra.mrb[0].mxu0 %v226
  %v372 = vpop.f32.mrb[0].mxu0
  %v373 = vadd.f32 0.0, %v372
  %v374 = vpop.f32.mrb[0].mxu0
  %v375 = vpop.f32.mrb[0].mxu0
  %v376 = vadd.f32 0.0, %v375
  %v377 = vpop.f32.mrb[0].mxu0
  %378 = vmatprep.mubr.bf16.mxu0 0
  %379 = vmatmul.mubr.bf16.gmra.mrb[0].mxu0 %v227
  %v380 = vpop.f32.mrb[0].mxu0
  %v381 = vadd.f32 0.0, %v380
  %v382 = vpop.f32.mrb[0].mxu0
  %v383 = vpop.f32.mrb[0].mxu0
  %v384 = vadd.f32 0.0, %v383
  %v385 = vpop.f32.mrb[0].mxu0
  %386 = vmatprep.mubr.bf16.mxu0 0
  %387 = vmatmul.mubr.bf16.gmra.mrb[0].mxu0 %v228
  %v388 = vpop.f32.mrb[0].mxu0
  %v389 = vadd.f32 0.0, %v388
  %v390 = vpop.f32.mrb[0].mxu0
  %v391 = vpop.f32.mrb[0].mxu0
  %v392 = vadd.f32 0.0, %v391
  %v393 = vpop.f32.mrb[0].mxu0
  %394 = vmatprep.mubr.bf16.mxu0 0
  %395 = vmatmul.mubr.bf16.gmra.mrb[0].mxu0 %v229
  %v396 = vpop.f32.mrb[0].mxu0
  %v397 = vadd.f32 0.0, %v396
  %v398 = vpop.f32.mrb[0].mxu0
  %v399 = vpop.f32.mrb[0].mxu0
  %v400 = vadd.f32 0.0, %v399
  %v401 = vpop.f32.mrb[0].mxu0
  %402 = vmatprep.mubr.bf16.mxu0 0
  %403 = vmatmul.mubr.bf16.gmra.mrb[0].mxu0 %v230
  %v404 = vpop.f32.mrb[0].mxu0
  %v405 = vadd.f32 0.0, %v404
  %v406 = vpop.f32.mrb[0].mxu0
  %v407 = vpop.f32.mrb[0].mxu0
  %v408 = vadd.f32 0.0, %v407
  %v409 = vpop.f32.mrb[0].mxu0
  %410 = vmatprep.mubr.bf16.mxu0 0
  %411 = vmatmul.mubr.bf16.gmra.mrb[0].mxu0 %v231
  %v412 = vpop.f32.mrb[0].mxu0
  %v413 = vadd.f32 0.0, %v412
  %v414 = vpop.f32.mrb[0].mxu0
  %v415 = vpop.f32.mrb[0].mxu0
  %v416 = vadd.f32 0.0, %v415
  %v417 = vpop.f32.mrb[0].mxu0
  %418 = vmatprep.mubr.bf16.mxu0 0
  %419 = vmatmul.mubr.bf16.gmra.mrb[0].mxu0 %v232
  %v420 = vpop.f32.mrb[0].mxu0
  %v421 = vadd.f32 0.0, %v420
  %v422 = vpop.f32.mrb[0].mxu0
  %v423 = vpop.f32.mrb[0].mxu0
  %v424 = vadd.f32 0.0, %v423
  %v425 = vpop.f32.mrb[0].mxu0
  %426 = vmatprep.mubr.bf16.mxu0 0
  %427 = vmatmul.mubr.bf16.gmra.mrb[0].mxu0 %v233
  %v428 = vpop.f32.mrb[0].mxu0
  %v429 = vadd.f32 0.0, %v428
  %v430 = vpop.f32.mrb[0].mxu0
  %v431 = vpop.f32.mrb[0].mxu0
  %v432 = vadd.f32 0.0, %v431
  %v433 = vpop.f32.mrb[0].mxu0
  %434 = vmatprep.mubr.bf16.mxu0 0
  %435 = vmatmul.mubr.bf16.gmra.mrb[0].mxu0 %v234
  %v436 = vpop.f32.mrb[0].mxu0
  %v437 = vadd.f32 0.0, %v436
  %v438 = vpop.f32.mrb[0].mxu0
  %v439 = vpop.f32.mrb[0].mxu0
  %v440 = vadd.f32 0.0, %v439
  %v441 = vpop.f32.mrb[0].mxu0
  %442 = vmatprep.mubr.bf16.mxu0 0
  %443 = vmatmul.mubr.bf16.gmra.mrb[0].mxu0 %v235
  %v444 = vpop.f32.mrb[0].mxu0
  %v445 = vadd.f32 0.0, %v444
  %v446 = vpop.f32.mrb[0].mxu0
  %v447 = vpop.f32.mrb[0].mxu0
  %v448 = vadd.f32 0.0, %v447
  %v449 = vpop.f32.mrb[0].mxu0
  %450 = vmatprep.mubr.bf16.mxu0 0
  %451 = vmatmul.mubr.bf16.gmra.mrb[0].mxu0 %v236
  %v452 = vpop.f32.mrb[0].mxu0
  %v453 = vadd.f32 0.0, %v452
  %v454 = vpop.f32.mrb[0].mxu0
  %v455 = vpop.f32.mrb[0].mxu0
  %v456 = vadd.f32 0.0, %v455
  %v457 = vpop.f32.mrb[0].mxu0
  %458 = vmatprep.mubr.bf16.mxu0 0
  %459 = vmatmul.mubr.bf16.gmra.mrb[0].mxu0 %v237
  %v460 = vpop.f32.mrb[0].mxu0
  %v461 = vadd.f32 0.0, %v460
  %v462 = vpop.f32.mrb[0].mxu0
  %v463 = vpop.f32.mrb[0].mxu0
  %v464 = vadd.f32 0.0, %v463
  %v465 = vpop.f32.mrb[0].mxu0
  %466 = vmatprep.mubr.bf16.mxu0 0
  %467 = vmatmul.mubr.bf16.gmra.mrb[0].mxu0 %v238
  %v468 = vpop.f32.mrb[0].mxu0
  %v469 = vadd.f32 0.0, %v468
  %v470 = vpop.f32.mrb[0].mxu0
  %v471 = vpop.f32.mrb[0].mxu0
  %v472 = vadd.f32 0.0, %v471
  %v473 = vpop.f32.mrb[0].mxu0
  %474 = vmatprep.mubr.bf16.mxu0 0
  %475 = vmatmul.mubr.bf16.gmra.mrb[0].mxu0 %v239
  %v476 = vpop.f32.mrb[0].mxu0
  %v477 = vadd.f32 0.0, %v476
  %v478 = vpop.f32.mrb[0].mxu0
  %v479 = vpop.f32.mrb[0].mxu0
  %v480 = vadd.f32 0.0, %v479
  %v481 = vpop.f32.mrb[0].mxu0
  %482 = vmatprep.mubr.bf16.mxu0 0
  %483 = vmatmul.mubr.bf16.gmra.mrb[0].mxu0 %v240
  %v484 = vpop.f32.mrb[0].mxu0
  %v485 = vadd.f32 0.0, %v484
  %v486 = vpop.f32.mrb[0].mxu0
  %v487 = vpop.f32.mrb[0].mxu0
  %v488 = vadd.f32 0.0, %v487
  %v489 = vpop.f32.mrb[0].mxu0
  %490 = vmatprep.mubr.bf16.mxu0 0
  %491 = vmatmul.mubr.bf16.gmra.mrb[0].mxu0 %v241
  %v492 = vpop.f32.mrb[0].mxu0
  %v493 = vadd.f32 0.0, %v492
  %v494 = vpop.f32.mrb[0].mxu0
  %v495 = vpop.f32.mrb[0].mxu0
  %v496 = vadd.f32 0.0, %v495
  %v497 = vpop.f32.mrb[0].mxu0
  %498 = vmatprep.mubr.bf16.mxu0 0
  %499 = vmatmul.mubr.bf16.gmra.mrb[0].mxu0 %v242
  %v500 = vpop.f32.mrb[0].mxu0
  %v501 = vadd.f32 0.0, %v500
  %v502 = vpop.f32.mrb[0].mxu0
  %v503 = vpop.f32.mrb[0].mxu0
  %v504 = vadd.f32 0.0, %v503
  %v505 = vpop.f32.mrb[0].mxu0
  %506 = vmatprep.mubr.bf16.mxu0 0
  %507 = vmatmul.mubr.bf16.gmra.mrb[0].mxu0 %v243
  %v508 = vpop.f32.mrb[0].mxu0
  %v509 = vadd.f32 0.0, %v508
  %v510 = vpop.f32.mrb[0].mxu0
  %v511 = vpop.f32.mrb[0].mxu0
  %v512 = vadd.f32 0.0, %v511
  %v513 = vpop.f32.mrb[0].mxu0
  %514 = vmatprep.mubr.bf16.mxu0 0
  %515 = vmatmul.mubr.bf16.gmra.mrb[0].mxu0 %v244
  %v516 = vpop.f32.mrb[0].mxu0
  %v517 = vadd.f32 0.0, %v516
  %v518 = vpop.f32.mrb[0].mxu0
  %v519 = vpop.f32.mrb[0].mxu0
  %v520 = vadd.f32 0.0, %v519
  %v521 = vpop.f32.mrb[0].mxu0
  %522 = vmatprep.mubr.bf16.mxu0 0
  %523 = vmatmul.mubr.bf16.gmra.mrb[0].mxu0 %v245
  %v524 = vpop.f32.mrb[0].mxu0
  %v525 = vadd.f32 0.0, %v524
  %v526 = vpop.f32.mrb[0].mxu0
  %v527 = vpop.f32.mrb[0].mxu0
  %v528 = vadd.f32 0.0, %v527
  %v529 = vpop.f32.mrb[0].mxu0
  %530 = vmatprep.mubr.bf16.mxu0 0
  %531 = vmatmul.mubr.bf16.gmra.mrb[0].mxu0 %v246
  %v532 = vpop.f32.mrb[0].mxu0
  %v533 = vadd.f32 0.0, %v532
  %v534 = vpop.f32.mrb[0].mxu0
  %v535 = vpop.f32.mrb[0].mxu0
  %v536 = vadd.f32 0.0, %v535
  %v537 = vpop.f32.mrb[0].mxu0
  %538 = vmatprep.mubr.bf16.mxu0 0
  %539 = vmatmul.mubr.bf16.gmra.mrb[0].mxu0 %v247
  %v540 = vpop.f32.mrb[0].mxu0
  %v541 = vadd.f32 0.0, %v540
  %v542 = vpop.f32.mrb[0].mxu0
  %v543 = vpop.f32.mrb[0].mxu0
  %v544 = vadd.f32 0.0, %v543
  %v545 = vpop.f32.mrb[0].mxu0
  %546 = vmatprep.mubr.bf16.mxu0 0
  %547 = vmatmul.mubr.bf16.gmra.mrb[0].mxu0 %v248
  %v548 = vpop.f32.mrb[0].mxu0
  %v549 = vadd.f32 0.0, %v548
  %v550 = vpop.f32.mrb[0].mxu0
  %v551 = vpop.f32.mrb[0].mxu0
  %v552 = vadd.f32 0.0, %v551
  %v553 = vpop.f32.mrb[0].mxu0
  %554 = vmatprep.mubr.bf16.mxu0 0
  %555 = vmatmul.mubr.bf16.gmra.mrb[0].mxu0 %v249
  %v556 = vpop.f32.mrb[0].mxu0
  %v557 = vadd.f32 0.0, %v556
  %v558 = vpop.f32.mrb[0].mxu0
  %v559 = vpop.f32.mrb[0].mxu0
  %v560 = vadd.f32 0.0, %v559
  %v561 = vpop.f32.mrb[0].mxu0
  %562 = vmatprep.mubr.bf16.mxu0 0
  %563 = vmatmul.mubr.bf16.gmra.mrb[0].mxu0 %v250
  %v564 = vpop.f32.mrb[0].mxu0
  %v565 = vadd.f32 0.0, %v564
  %v566 = vpop.f32.mrb[0].mxu0
  %v567 = vpop.f32.mrb[0].mxu0
  %v568 = vadd.f32 0.0, %v567
  %v569 = vpop.f32.mrb[0].mxu0
  %570 = vmatprep.mubr.bf16.mxu0 0
  %571 = vmatmul.mubr.bf16.gmra.mrb[0].mxu0 %v251
  %v572 = vpop.f32.mrb[0].mxu0
  %v573 = vadd.f32 0.0, %v572
  %v574 = vpop.f32.mrb[0].mxu0
  %v575 = vpop.f32.mrb[0].mxu0
  %v576 = vadd.f32 0.0, %v575
  %v577 = vpop.f32.mrb[0].mxu0
  %578 = vmatprep.mubr.bf16.mxu0 0
  %579 = vmatmul.mubr.bf16.gmra.mrb[0].mxu0 %v252
  %v580 = vpop.f32.mrb[0].mxu0
  %v581 = vadd.f32 0.0, %v580
  %v582 = vpop.f32.mrb[0].mxu0
  %v583 = vpop.f32.mrb[0].mxu0
  %v584 = vadd.f32 0.0, %v583
  %v585 = vpop.f32.mrb[0].mxu0
  %586 = vmatprep.mubr.bf16.mxu0 0
  %587 = vmatmul.mubr.bf16.gmra.mrb[0].mxu0 %v253
  %v588 = vpop.f32.mrb[0].mxu0
  %v589 = vadd.f32 0.0, %v588
  %v590 = vpop.f32.mrb[0].mxu0
  %v591 = vpop.f32.mrb[0].mxu0
  %v592 = vadd.f32 0.0, %v591
  %v593 = vpop.f32.mrb[0].mxu0
  %594 = vmatprep.mubr.bf16.mxu0 0
  %595 = vmatmul.mubr.bf16.gmra.mrb[0].mxu0 %v254
  %v596 = vpop.f32.mrb[0].mxu0
  %v597 = vadd.f32 0.0, %v596
  %v598 = vpop.f32.mrb[0].mxu0
  %v599 = vpop.f32.mrb[0].mxu0
  %v600 = vadd.f32 0.0, %v599
  %v601 = vpop.f32.mrb[0].mxu0
  %602 = vmatprep.mubr.bf16.mxu0 0
  %603 = vmatmul.mubr.bf16.gmra.mrb[0].mxu0 %v255
  %v604 = vpop.f32.mrb[0].mxu0
  %v605 = vadd.f32 0.0, %v604
  %v606 = vpop.f32.mrb[0].mxu0
  %v607 = vpop.f32.mrb[0].mxu0
  %v608 = vadd.f32 0.0, %v607
  %v609 = vpop.f32.mrb[0].mxu0
  %610 = vmatprep.mubr.bf16.mxu0 0
  %611 = vmatmul.mubr.bf16.gmra.mrb[0].mxu0 %v256
  %v612 = vpop.f32.mrb[0].mxu0
  %v613 = vadd.f32 0.0, %v612
  %v614 = vpop.f32.mrb[0].mxu0
  %v615 = vpop.f32.mrb[0].mxu0
  %v616 = vadd.f32 0.0, %v615
  %v617 = vpop.f32.mrb[0].mxu0
  %618 = vmatprep.mubr.bf16.mxu0 0
  %619 = vmatmul.mubr.bf16.gmra.mrb[0].mxu0 %v257
  %v620 = vpop.f32.mrb[0].mxu0
  %v621 = vadd.f32 0.0, %v620
  %v622 = vpop.f32.mrb[0].mxu0
  %v623 = vpop.f32.mrb[0].mxu0
  %v624 = vadd.f32 0.0, %v623
  %v625 = vpop.f32.mrb[0].mxu0
  %626 = vdwg.mxu0
  %v627 = vld [vmem:[%s2] sm:$0x1]
  %v628 = vld [vmem:[%s3] sm:$0x1]
  %v630 = vlaneseq
  %v631 = vshrl.u32 %v630, 7
  %v632 = vsub.s32 0, %v631
  %v633 = vrot.slane %v627, %v632
  %v635 = vmul.f32 %v373, %v633
  %v636 = vmul.f32 %v376, %v633
  %v637 = vmul.f32 %v381, %v633
  %v638 = vmul.f32 %v384, %v633
  %v639 = vmul.f32 %v389, %v633
  %v640 = vmul.f32 %v392, %v633
  %v641 = vmul.f32 %v397, %v633
  %v642 = vmul.f32 %v400, %v633
  %v643 = vmul.f32 %v405, %v633
  %v644 = vmul.f32 %v408, %v633
  %v645 = vmul.f32 %v413, %v633
  %v646 = vmul.f32 %v416, %v633
  %v647 = vmul.f32 %v421, %v633
  %v648 = vmul.f32 %v424, %v633
  %v649 = vmul.f32 %v429, %v633
  %v650 = vmul.f32 %v432, %v633
  %v651 = vmul.f32 %v437, %v633
  %v652 = vmul.f32 %v440, %v633
  %v653 = vmul.f32 %v445, %v633
  %v654 = vmul.f32 %v448, %v633
  %v655 = vmul.f32 %v453, %v633
  %v656 = vmul.f32 %v456, %v633
  %v657 = vmul.f32 %v461, %v633
  %v658 = vmul.f32 %v464, %v633
  %v659 = vmul.f32 %v469, %v633
  %v660 = vmul.f32 %v472, %v633
  %v661 = vmul.f32 %v477, %v633
  %v662 = vmul.f32 %v480, %v633
  %v663 = vmul.f32 %v485, %v633
  %v664 = vmul.f32 %v488, %v633
  %v665 = vmul.f32 %v493, %v633
  %v666 = vmul.f32 %v496, %v633
  %v667 = vmul.f32 %v501, %v633
  %v668 = vmul.f32 %v504, %v633
  %v669 = vmul.f32 %v509, %v633
  %v670 = vmul.f32 %v512, %v633
  %v671 = vmul.f32 %v517, %v633
  %v672 = vmul.f32 %v520, %v633
  %v673 = vmul.f32 %v525, %v633
  %v674 = vmul.f32 %v528, %v633
  %v675 = vmul.f32 %v533, %v633
  %v676 = vmul.f32 %v536, %v633
  %v677 = vmul.f32 %v541, %v633
  %v678 = vmul.f32 %v544, %v633
  %v679 = vmul.f32 %v549, %v633
  %v680 = vmul.f32 %v552, %v633
  %v681 = vmul.f32 %v557, %v633
  %v682 = vmul.f32 %v560, %v633
  %v683 = vmul.f32 %v565, %v633
  %v684 = vmul.f32 %v568, %v633
  %v685 = vmul.f32 %v573, %v633
  %v686 = vmul.f32 %v576, %v633
  %v687 = vmul.f32 %v581, %v633
  %v688 = vmul.f32 %v584, %v633
  %v689 = vmul.f32 %v589, %v633
  %v690 = vmul.f32 %v592, %v633
  %v691 = vmul.f32 %v597, %v633
  %v692 = vmul.f32 %v600, %v633
  %v693 = vmul.f32 %v605, %v633
  %v694 = vmul.f32 %v608, %v633
  %v695 = vmul.f32 %v613, %v633
  %v696 = vmul.f32 %v616, %v633
  %v697 = vmul.f32 %v621, %v633
  %v698 = vmul.f32 %v624, %v633
  %v700 = vlaneseq
  %v701 = vshrl.u32 %v700, 7
  %v702 = vsub.s32 0, %v701
  %v703 = vrot.slane %v628, %v702
  %v705 = vadd.f32 %v635, %v703
  %v706 = vadd.f32 %v636, %v703
  %v707 = vadd.f32 %v637, %v703
  %v708 = vadd.f32 %v638, %v703
  %v709 = vadd.f32 %v639, %v703
  %v710 = vadd.f32 %v640, %v703
  %v711 = vadd.f32 %v641, %v703
  %v712 = vadd.f32 %v642, %v703
  %v713 = vadd.f32 %v643, %v703
  %v714 = vadd.f32 %v644, %v703
  %v715 = vadd.f32 %v645, %v703
  %v716 = vadd.f32 %v646, %v703
  %v717 = vadd.f32 %v647, %v703
  %v718 = vadd.f32 %v648, %v703
  %v719 = vadd.f32 %v649, %v703
  %v720 = vadd.f32 %v650, %v703
  %v721 = vadd.f32 %v651, %v703
  %v722 = vadd.f32 %v652, %v703
  %v723 = vadd.f32 %v653, %v703
  %v724 = vadd.f32 %v654, %v703
  %v725 = vadd.f32 %v655, %v703
  %v726 = vadd.f32 %v656, %v703
  %v727 = vadd.f32 %v657, %v703
  %v728 = vadd.f32 %v658, %v703
  %v729 = vadd.f32 %v659, %v703
  %v730 = vadd.f32 %v660, %v703
  %v731 = vadd.f32 %v661, %v703
  %v732 = vadd.f32 %v662, %v703
  %v733 = vadd.f32 %v663, %v703
  %v734 = vadd.f32 %v664, %v703
  %v735 = vadd.f32 %v665, %v703
  %v736 = vadd.f32 %v666, %v703
  %v737 = vadd.f32 %v667, %v703
  %v738 = vadd.f32 %v668, %v703
  %v739 = vadd.f32 %v669, %v703
  %v740 = vadd.f32 %v670, %v703
  %v741 = vadd.f32 %v671, %v703
  %v742 = vadd.f32 %v672, %v703
  %v743 = vadd.f32 %v673, %v703
  %v744 = vadd.f32 %v674, %v703
  %v745 = vadd.f32 %v675, %v703
  %v746 = vadd.f32 %v676, %v703
  %v747 = vadd.f32 %v677, %v703
  %v748 = vadd.f32 %v678, %v703
  %v749 = vadd.f32 %v679, %v703
  %v750 = vadd.f32 %v680, %v703
  %v751 = vadd.f32 %v681, %v703
  %v752 = vadd.f32 %v682, %v703
  %v753 = vadd.f32 %v683, %v703
  %v754 = vadd.f32 %v684, %v703
  %v755 = vadd.f32 %v685, %v703
  %v756 = vadd.f32 %v686, %v703
  %v757 = vadd.f32 %v687, %v703
  %v758 = vadd.f32 %v688, %v703
  %v759 = vadd.f32 %v689, %v703
  %v760 = vadd.f32 %v690, %v703
  %v761 = vadd.f32 %v691, %v703
  %v762 = vadd.f32 %v692, %v703
  %v763 = vadd.f32 %v693, %v703
  %v764 = vadd.f32 %v694, %v703
  %v765 = vadd.f32 %v695, %v703
  %v766 = vadd.f32 %v696, %v703
  %v767 = vadd.f32 %v697, %v703
  %v768 = vadd.f32 %v698, %v703
  %v769 = vmax.f32 %v705, 0.0
  %v770 = vmax.f32 %v706, 0.0
  %v771 = vmax.f32 %v707, 0.0
  %v772 = vmax.f32 %v708, 0.0
  %v773 = vmax.f32 %v709, 0.0
  %v774 = vmax.f32 %v710, 0.0
  %v775 = vmax.f32 %v711, 0.0
  %v776 = vmax.f32 %v712, 0.0
  %v777 = vmax.f32 %v713, 0.0
  %v778 = vmax.f32 %v714, 0.0
  %v779 = vmax.f32 %v715, 0.0
  %v780 = vmax.f32 %v716, 0.0
  %v781 = vmax.f32 %v717, 0.0
  %v782 = vmax.f32 %v718, 0.0
  %v783 = vmax.f32 %v719, 0.0
  %v784 = vmax.f32 %v720, 0.0
  %v785 = vmax.f32 %v721, 0.0
  %v786 = vmax.f32 %v722, 0.0
  %v787 = vmax.f32 %v723, 0.0
  %v788 = vmax.f32 %v724, 0.0
  %v789 = vmax.f32 %v725, 0.0
  %v790 = vmax.f32 %v726, 0.0
  %v791 = vmax.f32 %v727, 0.0
  %v792 = vmax.f32 %v728, 0.0
  %v793 = vmax.f32 %v729, 0.0
  %v794 = vmax.f32 %v730, 0.0
  %v795 = vmax.f32 %v731, 0.0
  %v796 = vmax.f32 %v732, 0.0
  %v797 = vmax.f32 %v733, 0.0
  %v798 = vmax.f32 %v734, 0.0
  %v799 = vmax.f32 %v735, 0.0
  %v800 = vmax.f32 %v736, 0.0
  %v801 = vmax.f32 %v737, 0.0
  %v802 = vmax.f32 %v738, 0.0
  %v803 = vmax.f32 %v739, 0.0
  %v804 = vmax.f32 %v740, 0.0
  %v805 = vmax.f32 %v741, 0.0
  %v806 = vmax.f32 %v742, 0.0
  %v807 = vmax.f32 %v743, 0.0
  %v808 = vmax.f32 %v744, 0.0
  %v809 = vmax.f32 %v745, 0.0
  %v810 = vmax.f32 %v746, 0.0
  %v811 = vmax.f32 %v747, 0.0
  %v812 = vmax.f32 %v748, 0.0
  %v813 = vmax.f32 %v749, 0.0
  %v814 = vmax.f32 %v750, 0.0
  %v815 = vmax.f32 %v751, 0.0
  %v816 = vmax.f32 %v752, 0.0
  %v817 = vmax.f32 %v753, 0.0
  %v818 = vmax.f32 %v754, 0.0
  %v819 = vmax.f32 %v755, 0.0
  %v820 = vmax.f32 %v756, 0.0
  %v821 = vmax.f32 %v757, 0.0
  %v822 = vmax.f32 %v758, 0.0
  %v823 = vmax.f32 %v759, 0.0
  %v824 = vmax.f32 %v760, 0.0
  %v825 = vmax.f32 %v761, 0.0
  %v826 = vmax.f32 %v762, 0.0
  %v827 = vmax.f32 %v763, 0.0
  %v828 = vmax.f32 %v764, 0.0
  %v829 = vmax.f32 %v765, 0.0
  %v830 = vmax.f32 %v766, 0.0
  %v831 = vmax.f32 %v767, 0.0
  %v832 = vmax.f32 %v768, 0.0
  %v833 = vpack.c.bf16 %v770, %v769
  %v834 = vpack.c.bf16 %v772, %v771
  %v835 = vpack.c.bf16 %v774, %v773
  %v836 = vpack.c.bf16 %v776, %v775
  %v837 = vpack.c.bf16 %v778, %v777
  %v838 = vpack.c.bf16 %v780, %v779
  %v839 = vpack.c.bf16 %v782, %v781
  %v840 = vpack.c.bf16 %v784, %v783
  %v841 = vpack.c.bf16 %v786, %v785
  %v842 = vpack.c.bf16 %v788, %v787
  %v843 = vpack.c.bf16 %v790, %v789
  %v844 = vpack.c.bf16 %v792, %v791
  %v845 = vpack.c.bf16 %v794, %v793
  %v846 = vpack.c.bf16 %v796, %v795
  %v847 = vpack.c.bf16 %v798, %v797
  %v848 = vpack.c.bf16 %v800, %v799
  %v849 = vpack.c.bf16 %v802, %v801
  %v850 = vpack.c.bf16 %v804, %v803
  %v851 = vpack.c.bf16 %v806, %v805
  %v852 = vpack.c.bf16 %v808, %v807
  %v853 = vpack.c.bf16 %v810, %v809
  %v854 = vpack.c.bf16 %v812, %v811
  %v855 = vpack.c.bf16 %v814, %v813
  %v856 = vpack.c.bf16 %v816, %v815
  %v857 = vpack.c.bf16 %v818, %v817
  %v858 = vpack.c.bf16 %v820, %v819
  %v859 = vpack.c.bf16 %v822, %v821
  %v860 = vpack.c.bf16 %v824, %v823
  %v861 = vpack.c.bf16 %v826, %v825
  %v862 = vpack.c.bf16 %v828, %v827
  %v863 = vpack.c.bf16 %v830, %v829
  %v864 = vpack.c.bf16 %v832, %v831
  %v897 = vunpack.c.l.b16 %v833
  %v898 = vunpack.c.h.b16 %v833
  %v899 = vunpack.c.l.b16 %v834
  %v900 = vunpack.c.h.b16 %v834
  %v901 = vunpack.c.l.b16 %v835
  %v902 = vunpack.c.h.b16 %v835
  %v903 = vunpack.c.l.b16 %v836
  %v904 = vunpack.c.h.b16 %v836
  %v905 = vunpack.c.l.b16 %v837
  %v906 = vunpack.c.h.b16 %v837
  %v907 = vunpack.c.l.b16 %v838
  %v908 = vunpack.c.h.b16 %v838
  %v909 = vunpack.c.l.b16 %v839
  %v910 = vunpack.c.h.b16 %v839
  %v911 = vunpack.c.l.b16 %v840
  %v912 = vunpack.c.h.b16 %v840
  %v913 = vunpack.c.l.b16 %v841
  %v914 = vunpack.c.h.b16 %v841
  %v915 = vunpack.c.l.b16 %v842
  %v916 = vunpack.c.h.b16 %v842
  %v917 = vunpack.c.l.b16 %v843
  %v918 = vunpack.c.h.b16 %v843
  %v919 = vunpack.c.l.b16 %v844
  %v920 = vunpack.c.h.b16 %v844
  %v921 = vunpack.c.l.b16 %v845
  %v922 = vunpack.c.h.b16 %v845
  %v923 = vunpack.c.l.b16 %v846
  %v924 = vunpack.c.h.b16 %v846
  %v925 = vunpack.c.l.b16 %v847
  %v926 = vunpack.c.h.b16 %v847
  %v927 = vunpack.c.l.b16 %v848
  %v928 = vunpack.c.h.b16 %v848
  %v929 = vunpack.c.l.b16 %v849
  %v930 = vunpack.c.h.b16 %v849
  %v931 = vunpack.c.l.b16 %v850
  %v932 = vunpack.c.h.b16 %v850
  %v933 = vunpack.c.l.b16 %v851
  %v934 = vunpack.c.h.b16 %v851
  %v935 = vunpack.c.l.b16 %v852
  %v936 = vunpack.c.h.b16 %v852
  %v937 = vunpack.c.l.b16 %v853
  %v938 = vunpack.c.h.b16 %v853
  %v939 = vunpack.c.l.b16 %v854
  %v940 = vunpack.c.h.b16 %v854
  %v941 = vunpack.c.l.b16 %v855
  %v942 = vunpack.c.h.b16 %v855
  %v943 = vunpack.c.l.b16 %v856
  %v944 = vunpack.c.h.b16 %v856
  %v945 = vunpack.c.l.b16 %v857
  %v946 = vunpack.c.h.b16 %v857
  %v947 = vunpack.c.l.b16 %v858
  %v948 = vunpack.c.h.b16 %v858
  %v949 = vunpack.c.l.b16 %v859
  %v950 = vunpack.c.h.b16 %v859
  %v951 = vunpack.c.l.b16 %v860
  %v952 = vunpack.c.h.b16 %v860
  %v953 = vunpack.c.l.b16 %v861
  %v954 = vunpack.c.h.b16 %v861
  %v955 = vunpack.c.l.b16 %v862
  %v956 = vunpack.c.h.b16 %v862
  %v957 = vunpack.c.l.b16 %v863
  %v958 = vunpack.c.h.b16 %v863
  %v959 = vunpack.c.l.b16 %v864
  %v960 = vunpack.c.h.b16 %v864
  %v961 = vpack.c.b16 %v897, %v897
  %v962 = vpack.c.b16 %v898, %v898
  %v963 = vpack.c.b16 %v899, %v899
  %v964 = vpack.c.b16 %v900, %v900
  %v965 = vpack.c.b16 %v901, %v901
  %v966 = vpack.c.b16 %v902, %v902
  %v967 = vpack.c.b16 %v903, %v903
  %v968 = vpack.c.b16 %v904, %v904
  %v969 = vpack.c.b16 %v905, %v905
  %v970 = vpack.c.b16 %v906, %v906
  %v971 = vpack.c.b16 %v907, %v907
  %v972 = vpack.c.b16 %v908, %v908
  %v973 = vpack.c.b16 %v909, %v909
  %v974 = vpack.c.b16 %v910, %v910
  %v975 = vpack.c.b16 %v911, %v911
  %v976 = vpack.c.b16 %v912, %v912
  %v977 = vpack.c.b16 %v913, %v913
  %v978 = vpack.c.b16 %v914, %v914
  %v979 = vpack.c.b16 %v915, %v915
  %v980 = vpack.c.b16 %v916, %v916
  %v981 = vpack.c.b16 %v917, %v917
  %v982 = vpack.c.b16 %v918, %v918
  %v983 = vpack.c.b16 %v919, %v919
  %v984 = vpack.c.b16 %v920, %v920
  %v985 = vpack.c.b16 %v921, %v921
  %v986 = vpack.c.b16 %v922, %v922
  %v987 = vpack.c.b16 %v923, %v923
  %v988 = vpack.c.b16 %v924, %v924
  %v989 = vpack.c.b16 %v925, %v925
  %v990 = vpack.c.b16 %v926, %v926
  %v991 = vpack.c.b16 %v927, %v927
  %v992 = vpack.c.b16 %v928, %v928
  %v993 = vpack.c.b16 %v929, %v929
  %v994 = vpack.c.b16 %v930, %v930
  %v995 = vpack.c.b16 %v931, %v931
  %v996 = vpack.c.b16 %v932, %v932
  %v997 = vpack.c.b16 %v933, %v933
  %v998 = vpack.c.b16 %v934, %v934
  %v999 = vpack.c.b16 %v935, %v935
  %v1000 = vpack.c.b16 %v936, %v936
  %v1001 = vpack.c.b16 %v937, %v937
  %v1002 = vpack.c.b16 %v938, %v938
  %v1003 = vpack.c.b16 %v939, %v939
  %v1004 = vpack.c.b16 %v940, %v940
  %v1005 = vpack.c.b16 %v941, %v941
  %v1006 = vpack.c.b16 %v942, %v942
  %v1007 = vpack.c.b16 %v943, %v943
  %v1008 = vpack.c.b16 %v944, %v944
  %v1009 = vpack.c.b16 %v945, %v945
  %v1010 = vpack.c.b16 %v946, %v946
  %v1011 = vpack.c.b16 %v947, %v947
  %v1012 = vpack.c.b16 %v948, %v948
  %v1013 = vpack.c.b16 %v949, %v949
  %v1014 = vpack.c.b16 %v950, %v950
  %v1015 = vpack.c.b16 %v951, %v951
  %v1016 = vpack.c.b16 %v952, %v952
  %v1017 = vpack.c.b16 %v953, %v953
  %v1018 = vpack.c.b16 %v954, %v954
  %v1019 = vpack.c.b16 %v955, %v955
  %v1020 = vpack.c.b16 %v956, %v956
  %v1021 = vpack.c.b16 %v957, %v957
  %v1022 = vpack.c.b16 %v958, %v958
  %v1023 = vpack.c.b16 %v959, %v959
  %v1024 = vpack.c.b16 %v960, %v960
  %vm1089 = vcmask 60416
  %1090 = vst.msk [vmem:[%s4] sm:$0xf] %vm1089, %v961
  %1091 = vst.msk [vmem:[%s4 + $0x4] sm:$0xf] %vm1089, %v962
  %1092 = vst.msk [vmem:[%s4 + $0x8] sm:$0xf] %vm1089, %v963
  %1093 = vst.msk [vmem:[%s4 + $0xc] sm:$0xf] %vm1089, %v964
  %1094 = vst.msk [vmem:[%s4 + $0x10] sm:$0xf] %vm1089, %v965
  %1095 = vst.msk [vmem:[%s4 + $0x14] sm:$0xf] %vm1089, %v966
  %1096 = vst.msk [vmem:[%s4 + $0x18] sm:$0xf] %vm1089, %v967
  %1097 = vst.msk [vmem:[%s4 + $0x1c] sm:$0xf] %vm1089, %v968
  %1098 = vst.msk [vmem:[%s4 + $0x20] sm:$0xf] %vm1089, %v969
  %1099 = vst.msk [vmem:[%s4 + $0x24] sm:$0xf] %vm1089, %v970
  %1100 = vst.msk [vmem:[%s4 + $0x28] sm:$0xf] %vm1089, %v971
  %1101 = vst.msk [vmem:[%s4 + $0x2c] sm:$0xf] %vm1089, %v972
  %1102 = vst.msk [vmem:[%s4 + $0x30] sm:$0xf] %vm1089, %v973
  %1103 = vst.msk [vmem:[%s4 + $0x34] sm:$0xf] %vm1089, %v974
  %1104 = vst.msk [vmem:[%s4 + $0x38] sm:$0xf] %vm1089, %v975
  %1105 = vst.msk [vmem:[%s4 + $0x3c] sm:$0xf] %vm1089, %v976
  %1106 = vst.msk [vmem:[%s4 + $0x40] sm:$0xf] %vm1089, %v977
  %1107 = vst.msk [vmem:[%s4 + $0x44] sm:$0xf] %vm1089, %v978
  %1108 = vst.msk [vmem:[%s4 + $0x48] sm:$0xf] %vm1089, %v979
  %1109 = vst.msk [vmem:[%s4 + $0x4c] sm:$0xf] %vm1089, %v980
  %1110 = vst.msk [vmem:[%s4 + $0x50] sm:$0xf] %vm1089, %v981
  %1111 = vst.msk [vmem:[%s4 + $0x54] sm:$0xf] %vm1089, %v982
  %1112 = vst.msk [vmem:[%s4 + $0x58] sm:$0xf] %vm1089, %v983
  %1113 = vst.msk [vmem:[%s4 + $0x5c] sm:$0xf] %vm1089, %v984
  %1114 = vst.msk [vmem:[%s4 + $0x60] sm:$0xf] %vm1089, %v985
  %1115 = vst.msk [vmem:[%s4 + $0x64] sm:$0xf] %vm1089, %v986
  %1116 = vst.msk [vmem:[%s4 + $0x68] sm:$0xf] %vm1089, %v987
  %1117 = vst.msk [vmem:[%s4 + $0x6c] sm:$0xf] %vm1089, %v988
  %1118 = vst.msk [vmem:[%s4 + $0x70] sm:$0xf] %vm1089, %v989
  %1119 = vst.msk [vmem:[%s4 + $0x74] sm:$0xf] %vm1089, %v990
  %1120 = vst.msk [vmem:[%s4 + $0x78] sm:$0xf] %vm1089, %v991
  %1121 = vst.msk [vmem:[%s4 + $0x7c] sm:$0xf] %vm1089, %v992
  %1122 = vst.msk [vmem:[%s4 + $0x80] sm:$0xf] %vm1089, %v993
  %1123 = vst.msk [vmem:[%s4 + $0x84] sm:$0xf] %vm1089, %v994
  %1124 = vst.msk [vmem:[%s4 + $0x88] sm:$0xf] %vm1089, %v995
  %1125 = vst.msk [vmem:[%s4 + $0x8c] sm:$0xf] %vm1089, %v996
  %1126 = vst.msk [vmem:[%s4 + $0x90] sm:$0xf] %vm1089, %v997
  %1127 = vst.msk [vmem:[%s4 + $0x94] sm:$0xf] %vm1089, %v998
  %1128 = vst.msk [vmem:[%s4 + $0x98] sm:$0xf] %vm1089, %v999
  %1129 = vst.msk [vmem:[%s4 + $0x9c] sm:$0xf] %vm1089, %v1000
  %1130 = vst.msk [vmem:[%s4 + $0xa0] sm:$0xf] %vm1089, %v1001
  %1131 = vst.msk [vmem:[%s4 + $0xa4] sm:$0xf] %vm1089, %v1002
  %1132 = vst.msk [vmem:[%s4 + $0xa8] sm:$0xf] %vm1089, %v1003
  %1133 = vst.msk [vmem:[%s4 + $0xac] sm:$0xf] %vm1089, %v1004
  %1134 = vst.msk [vmem:[%s4 + $0xb0] sm:$0xf] %vm1089, %v1005
  %1135 = vst.msk [vmem:[%s4 + $0xb4] sm:$0xf] %vm1089, %v1006
  %1136 = vst.msk [vmem:[%s4 + $0xb8] sm:$0xf] %vm1089, %v1007
  %1137 = vst.msk [vmem:[%s4 + $0xbc] sm:$0xf] %vm1089, %v1008
  %1138 = vst.msk [vmem:[%s4 + $0xc0] sm:$0xf] %vm1089, %v1009
  %1139 = vst.msk [vmem:[%s4 + $0xc4] sm:$0xf] %vm1089, %v1010
  %1140 = vst.msk [vmem:[%s4 + $0xc8] sm:$0xf] %vm1089, %v1011
  %1141 = vst.msk [vmem:[%s4 + $0xcc] sm:$0xf] %vm1089, %v1012
  %1142 = vst.msk [vmem:[%s4 + $0xd0] sm:$0xf] %vm1089, %v1013
  %1143 = vst.msk [vmem:[%s4 + $0xd4] sm:$0xf] %vm1089, %v1014
  %1144 = vst.msk [vmem:[%s4 + $0xd8] sm:$0xf] %vm1089, %v1015
  %1145 = vst.msk [vmem:[%s4 + $0xdc] sm:$0xf] %vm1089, %v1016
  %1146 = vst.msk [vmem:[%s4 + $0xe0] sm:$0xf] %vm1089, %v1017
  %1147 = vst.msk [vmem:[%s4 + $0xe4] sm:$0xf] %vm1089, %v1018
  %1148 = vst.msk [vmem:[%s4 + $0xe8] sm:$0xf] %vm1089, %v1019
  %1149 = vst.msk [vmem:[%s4 + $0xec] sm:$0xf] %vm1089, %v1020
  %1150 = vst.msk [vmem:[%s4 + $0xf0] sm:$0xf] %vm1089, %v1021
  %1151 = vst.msk [vmem:[%s4 + $0xf4] sm:$0xf] %vm1089, %v1022
  %1152 = vst.msk [vmem:[%s4 + $0xf8] sm:$0xf] %vm1089, %v1023
  %1153 = vst.msk [vmem:[%s4 + $0xfc] sm:$0xf] %vm1089, %v1024
  // Predicated region
  $region18: #{basic_block_forward.13} parent=0 // pred_check
    _
  $region19: #{basic_block_forward.13} parent=0 // pred_check_branch
    %1155 = sbr.rel (0) target = $region21
  $region20: #{basic_block_forward.13} parent=0 // pred_region
    _
  $region21: #{basic_block_forward.13} parent=0 // pred_fallthru
    _
  // Predicated region
  $region22: #{basic_block_forward.13} parent=0 // pred_check
    _
  $region23: #{basic_block_forward.13} parent=0 // pred_check_branch
    %1157 = sbr.rel (0) target = $region25
  $region24: #{basic_block_forward.13} parent=0 // pred_region
    _
  $region25: #{basic_block_forward.13} parent=0 // pred_fallthru
    _

// kernel: basic_block_forward.23
$region0: #{basic_block_forward.23}
  #allocation0 [shape = 'u32[]', space=smem, size = 0x4, offset = 0x4, fixed_abs, tag = 'smem constant byte address 0x4 - core index']
  #allocation1 [shape = 'u32[144,128]{1,0:T(1,128)}', space=vmem, size = 0x12000, scoped, tag = 'internal scratch']
  %s0 = inlined_call_operand.vmem [shape: bf16[32,16,8], index: 0, kind: input, shape index: {}]
  %s1 = inlined_call_operand.vmem [shape: f32[32,2,8], index: 1, kind: output, shape index: {}]
  %s2 = sld [smem:[#allocation0]]
  $region37: #{basic_block_forward.23} parent=0
    _
  %s4 = ssub.s32 1, %s2
  %s5 = scalar_select 0, %s4, %s2
  loop: start=0, step=1, limit=34
  $region2: #{basic_block_forward.23} parent=0 // loop_pre_header
    _
  $region3: #{basic_block_forward.23} parent=0 // loop_header
    %s7 = sphi 0, %s11
    %p8 = scmp.ge.s32.totalorder %s7, 34
    %s17 = sphi 0, %s19
    %s20 = sphi 0, %s17
    %s21 = sphi 0, %s20
    %s37 = sphi 0, %s21
    %s43 = sphi 0, %s45
    %s46 = sphi 0, %s43
    %s47 = sphi 0, %s46
    %s63 = sphi 0, %s47
  $region4: #{basic_block_forward.23} parent=0 // loop_header_branch
    %10 = sbr.rel (%p8) target = $region8
  $region5: #{basic_block_forward.23} parent=0 // loop_body
    %s12 = ssub.s32 %s7, 1
    %s13 = ssub.s32 %s7, 2
    %s14 = sadd.s32 %s7, 1
    %s15 = ssub.s32 %s7, %s14
    %p16 = scmp.eq.s32.totalorder %s15, 0
    %s18 = sadd.s32 %s17, 1
    %s19 = scalar_select %p16, %s17, %s18
    %p22 = pneg %p16
    %p23 = scmp.eq.s32.totalorder %s7, 31
    %p24 = por %p22, %p23
    %p25 = scmp.ne.s32.totalorder %s17, %s20
    %p26 = scmp.eq.s32.totalorder %s7, 0
    %p27 = por %p25, %p26
    %p28 = scmp.ne.s32.totalorder %s17, %s20
    %p29 = scmp.eq.s32.totalorder %s12, 31
    %p30 = por %p28, %p29
    %p31 = scmp.ne.s32.totalorder %s20, %s21
    %p32 = scmp.eq.s32.totalorder %s12, 0
    %p33 = por %p31, %p32
    %p34 = scmp.ne.s32.totalorder %s20, %s21
    %p35 = scmp.eq.s32.totalorder %s13, 31
    %p36 = por %p34, %p35
    %p38 = scmp.ne.s32.totalorder %s21, %s37
    %p39 = scmp.eq.s32.totalorder %s13, 0
    %p40 = por %p38, %p39
    %s41 = ssub.s32 %s7, %s14
    %p42 = scmp.eq.s32.totalorder %s41, 0
    %s44 = sadd.s32 %s43, 1
    %s45 = scalar_select %p42, %s43, %s44
    %p48 = pneg %p42
    %p49 = scmp.eq.s32.totalorder %s7, 31
    %p50 = por %p48, %p49
    %p51 = scmp.ne.s32.totalorder %s43, %s46
    %p52 = scmp.eq.s32.totalorder %s7, 0
    %p53 = por %p51, %p52
    %p54 = scmp.ne.s32.totalorder %s43, %s46
    %p55 = scmp.eq.s32.totalorder %s12, 31
    %p56 = por %p54, %p55
    %p57 = scmp.ne.s32.totalorder %s46, %s47
    %p58 = scmp.eq.s32.totalorder %s12, 0
    %p59 = por %p57, %p58
    %p60 = scmp.ne.s32.totalorder %s46, %s47
    %p61 = scmp.eq.s32.totalorder %s13, 31
    %p62 = por %p60, %p61
    %p64 = scmp.ne.s32.totalorder %s47, %s63
    %p65 = scmp.eq.s32.totalorder %s13, 0
    %p66 = por %p64, %p65
    %p67 = scmp.le.s32.totalorder 1, %s7
    %p68 = scmp.lt.s32.totalorder %s7, 33
    %p69 = pnand %p67, %p68
    %p70 = pneg %p69
    // Predicated region
    $region9: #{basic_block_forward.23} parent=5 // pred_check
      _
    $region10: #{basic_block_forward.23} parent=5 // pred_check_branch
      %72 = sbr.rel (%p69) target = $region12
    $region11: #{basic_block_forward.23} parent=5 // pred_region
      %s73 = ssub.s32 %s7, 1
    $region12: #{basic_block_forward.23} parent=5 // pred_fallthru
      _
    %p74 = scmp.lt.s32.totalorder %s7, 32
    // Predicated region
    $region13: #{basic_block_forward.23} parent=5 // pred_check
      %p75 = pneg %p74
    $region14: #{basic_block_forward.23} parent=5 // pred_check_branch
      %77 = sbr.rel (%p75) target = $region16
    $region15: #{basic_block_forward.23} parent=5 // pred_region
      // Predicated region
      $region17: #{basic_block_forward.23} parent=15 // pred_check
        %p78 = pneg %p27
      $region18: #{basic_block_forward.23} parent=15 // pred_check_branch
        %80 = sbr.rel (%p78) target = $region20
      $region19: #{basic_block_forward.23} parent=15 // pred_region
        %p81 = scmp.lt.s32.totalorder %s7, 31
        %s82 = scalar_select %p81, %s7, 31
        %s83 = smul.addr %s82, 2
        %s84 = smul.addr %s83, 4
        %s85 = scalar_lea.vmem %s0, %s84
      $region20: #{basic_block_forward.23} parent=15 // pred_fallthru
        _
    $region16: #{basic_block_forward.23} parent=5 // pred_fallthru
      _
    %p86 = scmp.le.s32.totalorder 1, %s7
    %p87 = scmp.lt.s32.totalorder %s7, 33
    %p88 = pnand %p86, %p87
    %p89 = pneg %p88
    // Predicated region
    $region21: #{basic_block_forward.23} parent=5 // pred_check
      _
    $region22: #{basic_block_forward.23} parent=5 // pred_check_branch
      %91 = sbr.rel (%p88) target = $region24
    $region23: #{basic_block_forward.23} parent=5 // pred_region
      %s92 = ssub.s32 %s7, 1
      %p93 = scmp.lt.s32.totalorder %s12, 31
      %s94 = scalar_select %p93, %s12, 31
      %s95 = smul.addr %s94, 2
      %s96 = smul.addr %s95, 4
      %s97 = scalar_lea.vmem %s0, %s96
      %p98 = pneg %p33
      %p99 = pneg %p30
      %p100 = pneg %p59
      %p101 = pneg %p56
      %p102 = scmp.lt.s32.totalorder %s12, 31
      %s103 = scalar_select %p102, %s12, 31
      %s104 = smul.addr %s103, 2
      %s105 = scalar_lea.vmem %s1, %s104
      %p106 = scmp.lt.s32.totalorder %s12, 31
      %s107 = scalar_select %p106, %s12, 31
      %s108 = smul.addr %s107, 2
      %s109 = smul.addr %s108, 4
      %s110 = scalar_lea.vmem %s0, %s109
      %p111 = scmp.lt.s32.totalorder %s12, 31
      %s112 = scalar_select %p111, %s12, 31
      %s113 = smul.addr %s112, 2
      %s114 = scalar_lea.vmem %s1, %s113
      %v115 = vld [vmem:[%s110] sm:$0xf]
      %v116 = vld [vmem:[%s110 + $0x4] sm:$0xf]
      %v117 = vunpack.c.l.bf16 %v115
      %v118 = vunpack.c.l.bf16 %v116
      %vm119 = vcmask 64512
      %v120 = vsel %vm119, %v117, -inf
      %v121 = vsel %vm119, %v118, -inf
      %v122 = vmax.f32 %v120, %v121
      %v123 = vrot.slane %v122, 4
      %v124 = vmax.f32 %v122, %v123
      %v125 = vrot.slane %v124, 2
      %v126 = vmax.f32 %v124, %v125
      %v127 = vrot.slane %v126, 1
      %v128 = vmax.f32 %v126, %v127
      %vm129 = vcmask 57344
      %130 = vst.msk [vmem:[%s114] sm:$0x1] %vm129, %v128
      %v131 = vsel %vm119, %v117, 0.0
      %v132 = vsel %vm119, %v118, 0.0
      %v133 = vadd.f32 %v131, %v132
      %v134 = vrot.slane %v133, 4
      %v135 = vadd.f32 %v133, %v134
      %v136 = vrot.slane %v135, 2
      %v137 = vadd.f32 %v135, %v136
      %v138 = vrot.slane %v137, 1
      %v139 = vadd.f32 %v137, %v138
      %v140 = vrcp.pop 16.0
      %v141 = vmul.f32 %v139, %v140
      %142 = vst.msk [vmem:[%s114 + $0x1] sm:$0x1] %vm129, %v141
      %p143 = scmp.lt.s32.totalorder %s12, 31
      %s144 = scalar_select %p143, %s12, 31
      %s145 = smul.addr %s144, 2
      %s146 = scalar_lea.vmem %s1, %s145
      // Predicated region
      $region25: #{basic_block_forward.23} parent=23 // pred_check
        %p147 = pneg %p56
      $region26: #{basic_block_forward.23} parent=23 // pred_check_branch
        %149 = sbr.rel (%p147) target = $region28
      $region27: #{basic_block_forward.23} parent=23 // pred_region
        _
      $region28: #{basic_block_forward.23} parent=23 // pred_fallthru
        _
    $region24: #{basic_block_forward.23} parent=5 // pred_fallthru
      _
    %p150 = scmp.le.s32.totalorder 2, %s7
    // Predicated region
    $region29: #{basic_block_forward.23} parent=5 // pred_check
      %p151 = pneg %p150
    $region30: #{basic_block_forward.23} parent=5 // pred_check_branch
      %153 = sbr.rel (%p151) target = $region32
    $region31: #{basic_block_forward.23} parent=5 // pred_region
      %s154 = ssub.s32 %s7, 2
      // Predicated region
      $region33: #{basic_block_forward.23} parent=31 // pred_check
        %p155 = pneg %p62
      $region34: #{basic_block_forward.23} parent=31 // pred_check_branch
        %157 = sbr.rel (%p155) target = $region36
      $region35: #{basic_block_forward.23} parent=31 // pred_region
        %p158 = scmp.lt.s32.totalorder %s13, 31
        %s159 = scalar_select %p158, %s13, 31
        %s160 = smul.addr %s159, 2
        %s161 = scalar_lea.vmem %s1, %s160
      $region36: #{basic_block_forward.23} parent=31 // pred_fallthru
        _
    $region32: #{basic_block_forward.23} parent=5 // pred_fallthru
      _
  $region6: #{basic_block_forward.23} parent=0 // loop_footer
    %s11 = sadd.s32 1, %s7
  $region7: #{basic_block_forward.23} parent=0 // loop_footer_branch
    %6 = sbr.rel target = $region3
  $region8: #{basic_block_forward.23} parent=0 // loop_exit
    _

// kernel: basic_block_forward.15
$region0: #{basic_block_forward.15}
  #allocation0 [shape = 'u32[]', space=smem, size = 0x4, offset = 0x4, fixed_abs, tag = 'smem constant byte address 0x4 - core index']
  #allocation1 [shape = 'u32[144,128]{1,0:T(1,128)}', space=vmem, size = 0x12000, scoped, tag = 'internal scratch']
  %s0 = inlined_call_operand.vmem [shape: bf16[512,128], index: 0, kind: input, shape index: {}]
  %s1 = inlined_call_operand.vmem [shape: bf16[128,128], index: 1, kind: input, shape index: {}]
  %s2 = inlined_call_operand.vmem [shape: f32[1,2], index: 2, kind: input, shape index: {}]
  %s3 = inlined_call_operand.vmem [shape: f32[1,2], index: 3, kind: input, shape index: {}]
  %s4 = inlined_call_operand.vmem [shape: bf16[512,2], index: 4, kind: output, shape index: {}]
  %s5 = sld [smem:[#allocation0]]
  $region26: #{basic_block_forward.15} parent=0
    _
  %s7 = ssub.s32 1, %s5
  %s8 = scalar_select 0, %s7, %s5
  // Predicated region
  $region2: #{basic_block_forward.15} parent=0 // pred_check
    _
  $region3: #{basic_block_forward.15} parent=0 // pred_check_branch
    %10 = sbr.rel (0) target = $region5
  $region4: #{basic_block_forward.15} parent=0 // pred_region
    _
  $region5: #{basic_block_forward.15} parent=0 // pred_fallthru
    _
  // Predicated region
  $region6: #{basic_block_forward.15} parent=0 // pred_check
    _
  $region7: #{basic_block_forward.15} parent=0 // pred_check_branch
    %12 = sbr.rel (0) target = $region9
  $region8: #{basic_block_forward.15} parent=0 // pred_region
    _
  $region9: #{basic_block_forward.15} parent=0 // pred_fallthru
    _
  // Predicated region
  $region10: #{basic_block_forward.15} parent=0 // pred_check
    _
  $region11: #{basic_block_forward.15} parent=0 // pred_check_branch
    %14 = sbr.rel (0) target = $region13
  $region12: #{basic_block_forward.15} parent=0 // pred_region
    _
  $region13: #{basic_block_forward.15} parent=0 // pred_fallthru
    _
  // Predicated region
  $region14: #{basic_block_forward.15} parent=0 // pred_check
    _
  $region15: #{basic_block_forward.15} parent=0 // pred_check_branch
    %16 = sbr.rel (0) target = $region17
  $region16: #{basic_block_forward.15} parent=0 // pred_region
    _
  $region17: #{basic_block_forward.15} parent=0 // pred_fallthru
    _
  %v18 = vld [vmem:[%s0] sm:$0xf]
  %v19 = vld [vmem:[%s0 + $0x4] sm:$0xf]
  %v20 = vld [vmem:[%s0 + $0x8] sm:$0xf]
  %v21 = vld [vmem:[%s0 + $0xc] sm:$0xf]
  %v22 = vld [vmem:[%s0 + $0x10] sm:$0xf]
  %v23 = vld [vmem:[%s0 + $0x14] sm:$0xf]
  %v24 = vld [vmem:[%s0 + $0x18] sm:$0xf]
  %v25 = vld [vmem:[%s0 + $0x1c] sm:$0xf]
  %v26 = vld [vmem:[%s0 + $0x20] sm:$0xf]
  %v27 = vld [vmem:[%s0 + $0x24] sm:$0xf]
  %v28 = vld [vmem:[%s0 + $0x28] sm:$0xf]
  %v29 = vld [vmem:[%s0 + $0x2c] sm:$0xf]
  %v30 = vld [vmem:[%s0 + $0x30] sm:$0xf]
  %v31 = vld [vmem:[%s0 + $0x34] sm:$0xf]
  %v32 = vld [vmem:[%s0 + $0x38] sm:$0xf]
  %v33 = vld [vmem:[%s0 + $0x3c] sm:$0xf]
  %v34 = vld [vmem:[%s0 + $0x40] sm:$0xf]
  %v35 = vld [vmem:[%s0 + $0x44] sm:$0xf]
  %v36 = vld [vmem:[%s0 + $0x48] sm:$0xf]
  %v37 = vld [vmem:[%s0 + $0x4c] sm:$0xf]
  %v38 = vld [vmem:[%s0 + $0x50] sm:$0xf]
  %v39 = vld [vmem:[%s0 + $0x54] sm:$0xf]
  %v40 = vld [vmem:[%s0 + $0x58] sm:$0xf]
  %v41 = vld [vmem:[%s0 + $0x5c] sm:$0xf]
  %v42 = vld [vmem:[%s0 + $0x60] sm:$0xf]
  %v43 = vld [vmem:[%s0 + $0x64] sm:$0xf]
  %v44 = vld [vmem:[%s0 + $0x68] sm:$0xf]
  %v45 = vld [vmem:[%s0 + $0x6c] sm:$0xf]
  %v46 = vld [vmem:[%s0 + $0x70] sm:$0xf]
  %v47 = vld [vmem:[%s0 + $0x74] sm:$0xf]
  %v48 = vld [vmem:[%s0 + $0x78] sm:$0xf]
  %v49 = vld [vmem:[%s0 + $0x7c] sm:$0xf]
  %v50 = vld [vmem:[%s0 + $0x80] sm:$0xf]
  %v51 = vld [vmem:[%s0 + $0x84] sm:$0xf]
  %v52 = vld [vmem:[%s0 + $0x88] sm:$0xf]
  %v53 = vld [vmem:[%s0 + $0x8c] sm:$0xf]
  %v54 = vld [vmem:[%s0 + $0x90] sm:$0xf]
  %v55 = vld [vmem:[%s0 + $0x94] sm:$0xf]
  %v56 = vld [vmem:[%s0 + $0x98] sm:$0xf]
  %v57 = vld [vmem:[%s0 + $0x9c] sm:$0xf]
  %v58 = vld [vmem:[%s0 + $0xa0] sm:$0xf]
  %v59 = vld [vmem:[%s0 + $0xa4] sm:$0xf]
  %v60 = vld [vmem:[%s0 + $0xa8] sm:$0xf]
  %v61 = vld [vmem:[%s0 + $0xac] sm:$0xf]
  %v62 = vld [vmem:[%s0 + $0xb0] sm:$0xf]
  %v63 = vld [vmem:[%s0 + $0xb4] sm:$0xf]
  %v64 = vld [vmem:[%s0 + $0xb8] sm:$0xf]
  %v65 = vld [vmem:[%s0 + $0xbc] sm:$0xf]
  %v66 = vld [vmem:[%s0 + $0xc0] sm:$0xf]
  %v67 = vld [vmem:[%s0 + $0xc4] sm:$0xf]
  %v68 = vld [vmem:[%s0 + $0xc8] sm:$0xf]
  %v69 = vld [vmem:[%s0 + $0xcc] sm:$0xf]
  %v70 = vld [vmem:[%s0 + $0xd0] sm:$0xf]
  %v71 = vld [vmem:[%s0 + $0xd4] sm:$0xf]
  %v72 = vld [vmem:[%s0 + $0xd8] sm:$0xf]
  %v73 = vld [vmem:[%s0 + $0xdc] sm:$0xf]
  %v74 = vld [vmem:[%s0 + $0xe0] sm:$0xf]
  %v75 = vld [vmem:[%s0 + $0xe4] sm:$0xf]
  %v76 = vld [vmem:[%s0 + $0xe8] sm:$0xf]
  %v77 = vld [vmem:[%s0 + $0xec] sm:$0xf]
  %v78 = vld [vmem:[%s0 + $0xf0] sm:$0xf]
  %v79 = vld [vmem:[%s0 + $0xf4] sm:$0xf]
  %v80 = vld [vmem:[%s0 + $0xf8] sm:$0xf]
  %v81 = vld [vmem:[%s0 + $0xfc] sm:$0xf]
  %v82 = vld [vmem:[%s1] sm:$0xf]
  %v83 = vld [vmem:[%s1 + $0x4] sm:$0xf]
  %v84 = vld [vmem:[%s1 + $0x8] sm:$0xf]
  %v85 = vld [vmem:[%s1 + $0xc] sm:$0xf]
  %v86 = vld [vmem:[%s1 + $0x10] sm:$0xf]
  %v87 = vld [vmem:[%s1 + $0x14] sm:$0xf]
  %v88 = vld [vmem:[%s1 + $0x18] sm:$0xf]
  %v89 = vld [vmem:[%s1 + $0x1c] sm:$0xf]
  %v90 = vld [vmem:[%s1 + $0x20] sm:$0xf]
  %v91 = vld [vmem:[%s1 + $0x24] sm:$0xf]
  %v92 = vld [vmem:[%s1 + $0x28] sm:$0xf]
  %v93 = vld [vmem:[%s1 + $0x2c] sm:$0xf]
  %v94 = vld [vmem:[%s1 + $0x30] sm:$0xf]
  %v95 = vld [vmem:[%s1 + $0x34] sm:$0xf]
  %v96 = vld [vmem:[%s1 + $0x38] sm:$0xf]
  %v97 = vld [vmem:[%s1 + $0x3c] sm:$0xf]
  %v162 = vunpack.c.l.b16 %v18
  %v163 = vunpack.c.l.b16 %v19
  %v164 = vunpack.c.l.b16 %v20
  %v165 = vunpack.c.l.b16 %v21
  %v166 = vunpack.c.l.b16 %v22
  %v167 = vunpack.c.l.b16 %v23
  %v168 = vunpack.c.l.b16 %v24
  %v169 = vunpack.c.l.b16 %v25
  %v170 = vunpack.c.l.b16 %v26
  %v171 = vunpack.c.l.b16 %v27
  %v172 = vunpack.c.l.b16 %v28
  %v173 = vunpack.c.l.b16 %v29
  %v174 = vunpack.c.l.b16 %v30
  %v175 = vunpack.c.l.b16 %v31
  %v176 = vunpack.c.l.b16 %v32
  %v177 = vunpack.c.l.b16 %v33
  %v178 = vunpack.c.l.b16 %v34
  %v179 = vunpack.c.l.b16 %v35
  %v180 = vunpack.c.l.b16 %v36
  %v181 = vunpack.c.l.b16 %v37
  %v182 = vunpack.c.l.b16 %v38
  %v183 = vunpack.c.l.b16 %v39
  %v184 = vunpack.c.l.b16 %v40
  %v185 = vunpack.c.l.b16 %v41
  %v186 = vunpack.c.l.b16 %v42
  %v187 = vunpack.c.l.b16 %v43
  %v188 = vunpack.c.l.b16 %v44
  %v189 = vunpack.c.l.b16 %v45
  %v190 = vunpack.c.l.b16 %v46
  %v191 = vunpack.c.l.b16 %v47
  %v192 = vunpack.c.l.b16 %v48
  %v193 = vunpack.c.l.b16 %v49
  %v194 = vunpack.c.l.b16 %v50
  %v195 = vunpack.c.l.b16 %v51
  %v196 = vunpack.c.l.b16 %v52
  %v197 = vunpack.c.l.b16 %v53
  %v198 = vunpack.c.l.b16 %v54
  %v199 = vunpack.c.l.b16 %v55
  %v200 = vunpack.c.l.b16 %v56
  %v201 = vunpack.c.l.b16 %v57
  %v202 = vunpack.c.l.b16 %v58
  %v203 = vunpack.c.l.b16 %v59
  %v204 = vunpack.c.l.b16 %v60
  %v205 = vunpack.c.l.b16 %v61
  %v206 = vunpack.c.l.b16 %v62
  %v207 = vunpack.c.l.b16 %v63
  %v208 = vunpack.c.l.b16 %v64
  %v209 = vunpack.c.l.b16 %v65
  %v210 = vunpack.c.l.b16 %v66
  %v211 = vunpack.c.l.b16 %v67
  %v212 = vunpack.c.l.b16 %v68
  %v213 = vunpack.c.l.b16 %v69
  %v214 = vunpack.c.l.b16 %v70
  %v215 = vunpack.c.l.b16 %v71
  %v216 = vunpack.c.l.b16 %v72
  %v217 = vunpack.c.l.b16 %v73
  %v218 = vunpack.c.l.b16 %v74
  %v219 = vunpack.c.l.b16 %v75
  %v220 = vunpack.c.l.b16 %v76
  %v221 = vunpack.c.l.b16 %v77
  %v222 = vunpack.c.l.b16 %v78
  %v223 = vunpack.c.l.b16 %v79
  %v224 = vunpack.c.l.b16 %v80
  %v225 = vunpack.c.l.b16 %v81
  %v226 = vpack.c.b16 %v163, %v162
  %v227 = vpack.c.b16 %v165, %v164
  %v228 = vpack.c.b16 %v167, %v166
  %v229 = vpack.c.b16 %v169, %v168
  %v230 = vpack.c.b16 %v171, %v170
  %v231 = vpack.c.b16 %v173, %v172
  %v232 = vpack.c.b16 %v175, %v174
  %v233 = vpack.c.b16 %v177, %v176
  %v234 = vpack.c.b16 %v179, %v178
  %v235 = vpack.c.b16 %v181, %v180
  %v236 = vpack.c.b16 %v183, %v182
  %v237 = vpack.c.b16 %v185, %v184
  %v238 = vpack.c.b16 %v187, %v186
  %v239 = vpack.c.b16 %v189, %v188
  %v240 = vpack.c.b16 %v191, %v190
  %v241 = vpack.c.b16 %v193, %v192
  %v242 = vpack.c.b16 %v195, %v194
  %v243 = vpack.c.b16 %v197, %v196
  %v244 = vpack.c.b16 %v199, %v198
  %v245 = vpack.c.b16 %v201, %v200
  %v246 = vpack.c.b16 %v203, %v202
  %v247 = vpack.c.b16 %v205, %v204
  %v248 = vpack.c.b16 %v207, %v206
  %v249 = vpack.c.b16 %v209, %v208
  %v250 = vpack.c.b16 %v211, %v210
  %v251 = vpack.c.b16 %v213, %v212
  %v252 = vpack.c.b16 %v215, %v214
  %v253 = vpack.c.b16 %v217, %v216
  %v254 = vpack.c.b16 %v219, %v218
  %v255 = vpack.c.b16 %v221, %v220
  %v256 = vpack.c.b16 %v223, %v222
  %v257 = vpack.c.b16 %v225, %v224
  %v306 = vunpack.c.l.b16 %v82
  %v307 = vunpack.c.l.b16 %v83
  %v308 = vunpack.c.l.b16 %v84
  %v309 = vunpack.c.l.b16 %v85
  %v310 = vunpack.c.l.b16 %v86
  %v311 = vunpack.c.l.b16 %v87
  %v312 = vunpack.c.l.b16 %v88
  %v313 = vunpack.c.l.b16 %v89
  %v314 = vunpack.c.l.b16 %v90
  %v315 = vunpack.c.l.b16 %v91
  %v316 = vunpack.c.l.b16 %v92
  %v317 = vunpack.c.l.b16 %v93
  %v318 = vunpack.c.l.b16 %v94
  %v319 = vunpack.c.l.b16 %v95
  %v320 = vunpack.c.l.b16 %v96
  %v321 = vunpack.c.l.b16 %v97
  %v322 = vpack.c.b16 %v307, %v306
  %v323 = vpack.c.b16 %v309, %v308
  %v324 = vpack.c.b16 %v311, %v310
  %v325 = vpack.c.b16 %v313, %v312
  %v326 = vpack.c.b16 %v315, %v314
  %v327 = vpack.c.b16 %v317, %v316
  %v328 = vpack.c.b16 %v319, %v318
  %v329 = vpack.c.b16 %v321, %v320
  %338 = vmatprep.subr.bf16.mxu0 0
  %339 = vmatpush1.bf16.msra.mxu0 %v322
  %340 = vmatprep.subr.bf16.mxu0 0
  %341 = vmatpush1.bf16.msra.mxu0 %v323
  %342 = vmatprep.subr.bf16.mxu0 0
  %343 = vmatpush1.bf16.msra.mxu0 %v324
  %344 = vmatprep.subr.bf16.mxu0 0
  %345 = vmatpush1.bf16.msra.mxu0 %v325
  %346 = vmatprep.subr.bf16.mxu0 0
  %347 = vmatpush1.bf16.msra.mxu0 %v326
  %348 = vmatprep.subr.bf16.mxu0 0
  %349 = vmatpush1.bf16.msra.mxu0 %v327
  %350 = vmatprep.subr.bf16.mxu0 0
  %351 = vmatpush1.bf16.msra.mxu0 %v328
  %352 = vmatprep.subr.bf16.mxu0 0
  %353 = vmatpush1.bf16.msra.mxu0 %v329
  %354 = vmatprep.subr.bf16.mxu0 0
  %355 = vmatpush1.bf16.msra.mxu0 0
  %356 = vmatprep.subr.bf16.mxu0 0
  %357 = vmatpush1.bf16.msra.mxu0 0
  %358 = vmatprep.subr.bf16.mxu0 0
  %359 = vmatpush1.bf16.msra.mxu0 0
  %360 = vmatprep.subr.bf16.mxu0 0
  %361 = vmatpush1.bf16.msra.mxu0 0
  %362 = vmatprep.subr.bf16.mxu0 0
  %363 = vmatpush1.bf16.msra.mxu0 0
  %364 = vmatprep.subr.bf16.mxu0 0
  %365 = vmatpush1.bf16.msra.mxu0 0
  %366 = vmatprep.subr.bf16.mxu0 0
  %367 = vmatpush1.bf16.msra.mxu0 0
  %368 = vmatprep.subr.bf16.mxu0 0
  %369 = vmatpush1.bf16.msra.mxu0 0
  %370 = vmatprep.mubr.bf16.mxu0 0
  %371 = vmatmul.mubr.bf16.gmra.mrb[0].mxu0 %v226
  %v372 = vpop.f32.mrb[0].mxu0
  %v373 = vadd.f32 0.0, %v372
  %v374 = vpop.f32.mrb[0].mxu0
  %v375 = vpop.f32.mrb[0].mxu0
  %v376 = vadd.f32 0.0, %v375
  %v377 = vpop.f32.mrb[0].mxu0
  %378 = vmatprep.mubr.bf16.mxu0 0
  %379 = vmatmul.mubr.bf16.gmra.mrb[0].mxu0 %v227
  %v380 = vpop.f32.mrb[0].mxu0
  %v381 = vadd.f32 0.0, %v380
  %v382 = vpop.f32.mrb[0].mxu0
  %v383 = vpop.f32.mrb[0].mxu0
  %v384 = vadd.f32 0.0, %v383
  %v385 = vpop.f32.mrb[0].mxu0
  %386 = vmatprep.mubr.bf16.mxu0 0
  %387 = vmatmul.mubr.bf16.gmra.mrb[0].mxu0 %v228
  %v388 = vpop.f32.mrb[0].mxu0
  %v389 = vadd.f32 0.0, %v388
  %v390 = vpop.f32.mrb[0].mxu0
  %v391 = vpop.f32.mrb[0].mxu0
  %v392 = vadd.f32 0.0, %v391
  %v393 = vpop.f32.mrb[0].mxu0
  %394 = vmatprep.mubr.bf16.mxu0 0
  %395 = vmatmul.mubr.bf16.gmra.mrb[0].mxu0 %v229
  %v396 = vpop.f32.mrb[0].mxu0
  %v397 = vadd.f32 0.0, %v396
  %v398 = vpop.f32.mrb[0].mxu0
  %v399 = vpop.f32.mrb[0].mxu0
  %v400 = vadd.f32 0.0, %v399
  %v401 = vpop.f32.mrb[0].mxu0
  %402 = vmatprep.mubr.bf16.mxu0 0
  %403 = vmatmul.mubr.bf16.gmra.mrb[0].mxu0 %v230
  %v404 = vpop.f32.mrb[0].mxu0
  %v405 = vadd.f32 0.0, %v404
  %v406 = vpop.f32.mrb[0].mxu0
  %v407 = vpop.f32.mrb[0].mxu0
  %v408 = vadd.f32 0.0, %v407
  %v409 = vpop.f32.mrb[0].mxu0
  %410 = vmatprep.mubr.bf16.mxu0 0
  %411 = vmatmul.mubr.bf16.gmra.mrb[0].mxu0 %v231
  %v412 = vpop.f32.mrb[0].mxu0
  %v413 = vadd.f32 0.0, %v412
  %v414 = vpop.f32.mrb[0].mxu0
  %v415 = vpop.f32.mrb[0].mxu0
  %v416 = vadd.f32 0.0, %v415
  %v417 = vpop.f32.mrb[0].mxu0
  %418 = vmatprep.mubr.bf16.mxu0 0
  %419 = vmatmul.mubr.bf16.gmra.mrb[0].mxu0 %v232
  %v420 = vpop.f32.mrb[0].mxu0
  %v421 = vadd.f32 0.0, %v420
  %v422 = vpop.f32.mrb[0].mxu0
  %v423 = vpop.f32.mrb[0].mxu0
  %v424 = vadd.f32 0.0, %v423
  %v425 = vpop.f32.mrb[0].mxu0
  %426 = vmatprep.mubr.bf16.mxu0 0
  %427 = vmatmul.mubr.bf16.gmra.mrb[0].mxu0 %v233
  %v428 = vpop.f32.mrb[0].mxu0
  %v429 = vadd.f32 0.0, %v428
  %v430 = vpop.f32.mrb[0].mxu0
  %v431 = vpop.f32.mrb[0].mxu0
  %v432 = vadd.f32 0.0, %v431
  %v433 = vpop.f32.mrb[0].mxu0
  %434 = vmatprep.mubr.bf16.mxu0 0
  %435 = vmatmul.mubr.bf16.gmra.mrb[0].mxu0 %v234
  %v436 = vpop.f32.mrb[0].mxu0
  %v437 = vadd.f32 0.0, %v436
  %v438 = vpop.f32.mrb[0].mxu0
  %v439 = vpop.f32.mrb[0].mxu0
  %v440 = vadd.f32 0.0, %v439
  %v441 = vpop.f32.mrb[0].mxu0
  %442 = vmatprep.mubr.bf16.mxu0 0
  %443 = vmatmul.mubr.bf16.gmra.mrb[0].mxu0 %v235
  %v444 = vpop.f32.mrb[0].mxu0
  %v445 = vadd.f32 0.0, %v444
  %v446 = vpop.f32.mrb[0].mxu0
  %v447 = vpop.f32.mrb[0].mxu0
  %v448 = vadd.f32 0.0, %v447
  %v449 = vpop.f32.mrb[0].mxu0
  %450 = vmatprep.mubr.bf16.mxu0 0
  %451 = vmatmul.mubr.bf16.gmra.mrb[0].mxu0 %v236
  %v452 = vpop.f32.mrb[0].mxu0
  %v453 = vadd.f32 0.0, %v452
  %v454 = vpop.f32.mrb[0].mxu0
  %v455 = vpop.f32.mrb[0].mxu0
  %v456 = vadd.f32 0.0, %v455
  %v457 = vpop.f32.mrb[0].mxu0
  %458 = vmatprep.mubr.bf16.mxu0 0
  %459 = vmatmul.mubr.bf16.gmra.mrb[0].mxu0 %v237
  %v460 = vpop.f32.mrb[0].mxu0
  %v461 = vadd.f32 0.0, %v460
  %v462 = vpop.f32.mrb[0].mxu0
  %v463 = vpop.f32.mrb[0].mxu0
  %v464 = vadd.f32 0.0, %v463
  %v465 = vpop.f32.mrb[0].mxu0
  %466 = vmatprep.mubr.bf16.mxu0 0
  %467 = vmatmul.mubr.bf16.gmra.mrb[0].mxu0 %v238
  %v468 = vpop.f32.mrb[0].mxu0
  %v469 = vadd.f32 0.0, %v468
  %v470 = vpop.f32.mrb[0].mxu0
  %v471 = vpop.f32.mrb[0].mxu0
  %v472 = vadd.f32 0.0, %v471
  %v473 = vpop.f32.mrb[0].mxu0
  %474 = vmatprep.mubr.bf16.mxu0 0
  %475 = vmatmul.mubr.bf16.gmra.mrb[0].mxu0 %v239
  %v476 = vpop.f32.mrb[0].mxu0
  %v477 = vadd.f32 0.0, %v476
  %v478 = vpop.f32.mrb[0].mxu0
  %v479 = vpop.f32.mrb[0].mxu0
  %v480 = vadd.f32 0.0, %v479
  %v481 = vpop.f32.mrb[0].mxu0
  %482 = vmatprep.mubr.bf16.mxu0 0
  %483 = vmatmul.mubr.bf16.gmra.mrb[0].mxu0 %v240
  %v484 = vpop.f32.mrb[0].mxu0
  %v485 = vadd.f32 0.0, %v484
  %v486 = vpop.f32.mrb[0].mxu0
  %v487 = vpop.f32.mrb[0].mxu0
  %v488 = vadd.f32 0.0, %v487
  %v489 = vpop.f32.mrb[0].mxu0
  %490 = vmatprep.mubr.bf16.mxu0 0
  %491 = vmatmul.mubr.bf16.gmra.mrb[0].mxu0 %v241
  %v492 = vpop.f32.mrb[0].mxu0
  %v493 = vadd.f32 0.0, %v492
  %v494 = vpop.f32.mrb[0].mxu0
  %v495 = vpop.f32.mrb[0].mxu0
  %v496 = vadd.f32 0.0, %v495
  %v497 = vpop.f32.mrb[0].mxu0
  %498 = vmatprep.mubr.bf16.mxu0 0
  %499 = vmatmul.mubr.bf16.gmra.mrb[0].mxu0 %v242
  %v500 = vpop.f32.mrb[0].mxu0
  %v501 = vadd.f32 0.0, %v500
  %v502 = vpop.f32.mrb[0].mxu0
  %v503 = vpop.f32.mrb[0].mxu0
  %v504 = vadd.f32 0.0, %v503
  %v505 = vpop.f32.mrb[0].mxu0
  %506 = vmatprep.mubr.bf16.mxu0 0
  %507 = vmatmul.mubr.bf16.gmra.mrb[0].mxu0 %v243
  %v508 = vpop.f32.mrb[0].mxu0
  %v509 = vadd.f32 0.0, %v508
  %v510 = vpop.f32.mrb[0].mxu0
  %v511 = vpop.f32.mrb[0].mxu0
  %v512 = vadd.f32 0.0, %v511
  %v513 = vpop.f32.mrb[0].mxu0
  %514 = vmatprep.mubr.bf16.mxu0 0
  %515 = vmatmul.mubr.bf16.gmra.mrb[0].mxu0 %v244
  %v516 = vpop.f32.mrb[0].mxu0
  %v517 = vadd.f32 0.0, %v516
  %v518 = vpop.f32.mrb[0].mxu0
  %v519 = vpop.f32.mrb[0].mxu0
  %v520 = vadd.f32 0.0, %v519
  %v521 = vpop.f32.mrb[0].mxu0
  %522 = vmatprep.mubr.bf16.mxu0 0
  %523 = vmatmul.mubr.bf16.gmra.mrb[0].mxu0 %v245
  %v524 = vpop.f32.mrb[0].mxu0
  %v525 = vadd.f32 0.0, %v524
  %v526 = vpop.f32.mrb[0].mxu0
  %v527 = vpop.f32.mrb[0].mxu0
  %v528 = vadd.f32 0.0, %v527
  %v529 = vpop.f32.mrb[0].mxu0
  %530 = vmatprep.mubr.bf16.mxu0 0
  %531 = vmatmul.mubr.bf16.gmra.mrb[0].mxu0 %v246
  %v532 = vpop.f32.mrb[0].mxu0
  %v533 = vadd.f32 0.0, %v532
  %v534 = vpop.f32.mrb[0].mxu0
  %v535 = vpop.f32.mrb[0].mxu0
  %v536 = vadd.f32 0.0, %v535
  %v537 = vpop.f32.mrb[0].mxu0
  %538 = vmatprep.mubr.bf16.mxu0 0
  %539 = vmatmul.mubr.bf16.gmra.mrb[0].mxu0 %v247
  %v540 = vpop.f32.mrb[0].mxu0
  %v541 = vadd.f32 0.0, %v540
  %v542 = vpop.f32.mrb[0].mxu0
  %v543 = vpop.f32.mrb[0].mxu0
  %v544 = vadd.f32 0.0, %v543
  %v545 = vpop.f32.mrb[0].mxu0
  %546 = vmatprep.mubr.bf16.mxu0 0
  %547 = vmatmul.mubr.bf16.gmra.mrb[0].mxu0 %v248
  %v548 = vpop.f32.mrb[0].mxu0
  %v549 = vadd.f32 0.0, %v548
  %v550 = vpop.f32.mrb[0].mxu0
  %v551 = vpop.f32.mrb[0].mxu0
  %v552 = vadd.f32 0.0, %v551
  %v553 = vpop.f32.mrb[0].mxu0
  %554 = vmatprep.mubr.bf16.mxu0 0
  %555 = vmatmul.mubr.bf16.gmra.mrb[0].mxu0 %v249
  %v556 = vpop.f32.mrb[0].mxu0
  %v557 = vadd.f32 0.0, %v556
  %v558 = vpop.f32.mrb[0].mxu0
  %v559 = vpop.f32.mrb[0].mxu0
  %v560 = vadd.f32 0.0, %v559
  %v561 = vpop.f32.mrb[0].mxu0
  %562 = vmatprep.mubr.bf16.mxu0 0
  %563 = vmatmul.mubr.bf16.gmra.mrb[0].mxu0 %v250
  %v564 = vpop.f32.mrb[0].mxu0
  %v565 = vadd.f32 0.0, %v564
  %v566 = vpop.f32.mrb[0].mxu0
  %v567 = vpop.f32.mrb[0].mxu0
  %v568 = vadd.f32 0.0, %v567
  %v569 = vpop.f32.mrb[0].mxu0
  %570 = vmatprep.mubr.bf16.mxu0 0
  %571 = vmatmul.mubr.bf16.gmra.mrb[0].mxu0 %v251
  %v572 = vpop.f32.mrb[0].mxu0
  %v573 = vadd.f32 0.0, %v572
  %v574 = vpop.f32.mrb[0].mxu0
  %v575 = vpop.f32.mrb[0].mxu0
  %v576 = vadd.f32 0.0, %v575
  %v577 = vpop.f32.mrb[0].mxu0
  %578 = vmatprep.mubr.bf16.mxu0 0
  %579 = vmatmul.mubr.bf16.gmra.mrb[0].mxu0 %v252
  %v580 = vpop.f32.mrb[0].mxu0
  %v581 = vadd.f32 0.0, %v580
  %v582 = vpop.f32.mrb[0].mxu0
  %v583 = vpop.f32.mrb[0].mxu0
  %v584 = vadd.f32 0.0, %v583
  %v585 = vpop.f32.mrb[0].mxu0
  %586 = vmatprep.mubr.bf16.mxu0 0
  %587 = vmatmul.mubr.bf16.gmra.mrb[0].mxu0 %v253
  %v588 = vpop.f32.mrb[0].mxu0
  %v589 = vadd.f32 0.0, %v588
  %v590 = vpop.f32.mrb[0].mxu0
  %v591 = vpop.f32.mrb[0].mxu0
  %v592 = vadd.f32 0.0, %v591
  %v593 = vpop.f32.mrb[0].mxu0
  %594 = vmatprep.mubr.bf16.mxu0 0
  %595 = vmatmul.mubr.bf16.gmra.mrb[0].mxu0 %v254
  %v596 = vpop.f32.mrb[0].mxu0
  %v597 = vadd.f32 0.0, %v596
  %v598 = vpop.f32.mrb[0].mxu0
  %v599 = vpop.f32.mrb[0].mxu0
  %v600 = vadd.f32 0.0, %v599
  %v601 = vpop.f32.mrb[0].mxu0
  %602 = vmatprep.mubr.bf16.mxu0 0
  %603 = vmatmul.mubr.bf16.gmra.mrb[0].mxu0 %v255
  %v604 = vpop.f32.mrb[0].mxu0
  %v605 = vadd.f32 0.0, %v604
  %v606 = vpop.f32.mrb[0].mxu0
  %v607 = vpop.f32.mrb[0].mxu0
  %v608 = vadd.f32 0.0, %v607
  %v609 = vpop.f32.mrb[0].mxu0
  %610 = vmatprep.mubr.bf16.mxu0 0
  %611 = vmatmul.mubr.bf16.gmra.mrb[0].mxu0 %v256
  %v612 = vpop.f32.mrb[0].mxu0
  %v613 = vadd.f32 0.0, %v612
  %v614 = vpop.f32.mrb[0].mxu0
  %v615 = vpop.f32.mrb[0].mxu0
  %v616 = vadd.f32 0.0, %v615
  %v617 = vpop.f32.mrb[0].mxu0
  %618 = vmatprep.mubr.bf16.mxu0 0
  %619 = vmatmul.mubr.bf16.gmra.mrb[0].mxu0 %v257
  %v620 = vpop.f32.mrb[0].mxu0
  %v621 = vadd.f32 0.0, %v620
  %v622 = vpop.f32.mrb[0].mxu0
  %v623 = vpop.f32.mrb[0].mxu0
  %v624 = vadd.f32 0.0, %v623
  %v625 = vpop.f32.mrb[0].mxu0
  %626 = vdwg.mxu0
  %v627 = vld [vmem:[%s2] sm:$0x1]
  %v628 = vld [vmem:[%s3] sm:$0x1]
  %v630 = vlaneseq
  %v631 = vshrl.u32 %v630, 7
  %v632 = vsub.s32 0, %v631
  %v633 = vrot.slane %v627, %v632
  %v635 = vmul.f32 %v373, %v633
  %v636 = vmul.f32 %v376, %v633
  %v637 = vmul.f32 %v381, %v633
  %v638 = vmul.f32 %v384, %v633
  %v639 = vmul.f32 %v389, %v633
  %v640 = vmul.f32 %v392, %v633
  %v641 = vmul.f32 %v397, %v633
  %v642 = vmul.f32 %v400, %v633
  %v643 = vmul.f32 %v405, %v633
  %v644 = vmul.f32 %v408, %v633
  %v645 = vmul.f32 %v413, %v633
  %v646 = vmul.f32 %v416, %v633
  %v647 = vmul.f32 %v421, %v633
  %v648 = vmul.f32 %v424, %v633
  %v649 = vmul.f32 %v429, %v633
  %v650 = vmul.f32 %v432, %v633
  %v651 = vmul.f32 %v437, %v633
  %v652 = vmul.f32 %v440, %v633
  %v653 = vmul.f32 %v445, %v633
  %v654 = vmul.f32 %v448, %v633
  %v655 = vmul.f32 %v453, %v633
  %v656 = vmul.f32 %v456, %v633
  %v657 = vmul.f32 %v461, %v633
  %v658 = vmul.f32 %v464, %v633
  %v659 = vmul.f32 %v469, %v633
  %v660 = vmul.f32 %v472, %v633
  %v661 = vmul.f32 %v477, %v633
  %v662 = vmul.f32 %v480, %v633
  %v663 = vmul.f32 %v485, %v633
  %v664 = vmul.f32 %v488, %v633
  %v665 = vmul.f32 %v493, %v633
  %v666 = vmul.f32 %v496, %v633
  %v667 = vmul.f32 %v501, %v633
  %v668 = vmul.f32 %v504, %v633
  %v669 = vmul.f32 %v509, %v633
  %v670 = vmul.f32 %v512, %v633
  %v671 = vmul.f32 %v517, %v633
  %v672 = vmul.f32 %v520, %v633
  %v673 = vmul.f32 %v525, %v633
  %v674 = vmul.f32 %v528, %v633
  %v675 = vmul.f32 %v533, %v633
  %v676 = vmul.f32 %v536, %v633
  %v677 = vmul.f32 %v541, %v633
  %v678 = vmul.f32 %v544, %v633
  %v679 = vmul.f32 %v549, %v633
  %v680 = vmul.f32 %v552, %v633
  %v681 = vmul.f32 %v557, %v633
  %v682 = vmul.f32 %v560, %v633
  %v683 = vmul.f32 %v565, %v633
  %v684 = vmul.f32 %v568, %v633
  %v685 = vmul.f32 %v573, %v633
  %v686 = vmul.f32 %v576, %v633
  %v687 = vmul.f32 %v581, %v633
  %v688 = vmul.f32 %v584, %v633
  %v689 = vmul.f32 %v589, %v633
  %v690 = vmul.f32 %v592, %v633
  %v691 = vmul.f32 %v597, %v633
  %v692 = vmul.f32 %v600, %v633
  %v693 = vmul.f32 %v605, %v633
  %v694 = vmul.f32 %v608, %v633
  %v695 = vmul.f32 %v613, %v633
  %v696 = vmul.f32 %v616, %v633
  %v697 = vmul.f32 %v621, %v633
  %v698 = vmul.f32 %v624, %v633
  %v700 = vlaneseq
  %v701 = vshrl.u32 %v700, 7
  %v702 = vsub.s32 0, %v701
  %v703 = vrot.slane %v628, %v702
  %v705 = vadd.f32 %v635, %v703
  %v706 = vadd.f32 %v636, %v703
  %v707 = vadd.f32 %v637, %v703
  %v708 = vadd.f32 %v638, %v703
  %v709 = vadd.f32 %v639, %v703
  %v710 = vadd.f32 %v640, %v703
  %v711 = vadd.f32 %v641, %v703
  %v712 = vadd.f32 %v642, %v703
  %v713 = vadd.f32 %v643, %v703
  %v714 = vadd.f32 %v644, %v703
  %v715 = vadd.f32 %v645, %v703
  %v716 = vadd.f32 %v646, %v703
  %v717 = vadd.f32 %v647, %v703
  %v718 = vadd.f32 %v648, %v703
  %v719 = vadd.f32 %v649, %v703
  %v720 = vadd.f32 %v650, %v703
  %v721 = vadd.f32 %v651, %v703
  %v722 = vadd.f32 %v652, %v703
  %v723 = vadd.f32 %v653, %v703
  %v724 = vadd.f32 %v654, %v703
  %v725 = vadd.f32 %v655, %v703
  %v726 = vadd.f32 %v656, %v703
  %v727 = vadd.f32 %v657, %v703
  %v728 = vadd.f32 %v658, %v703
  %v729 = vadd.f32 %v659, %v703
  %v730 = vadd.f32 %v660, %v703
  %v731 = vadd.f32 %v661, %v703
  %v732 = vadd.f32 %v662, %v703
  %v733 = vadd.f32 %v663, %v703
  %v734 = vadd.f32 %v664, %v703
  %v735 = vadd.f32 %v665, %v703
  %v736 = vadd.f32 %v666, %v703
  %v737 = vadd.f32 %v667, %v703
  %v738 = vadd.f32 %v668, %v703
  %v739 = vadd.f32 %v669, %v703
  %v740 = vadd.f32 %v670, %v703
  %v741 = vadd.f32 %v671, %v703
  %v742 = vadd.f32 %v672, %v703
  %v743 = vadd.f32 %v673, %v703
  %v744 = vadd.f32 %v674, %v703
  %v745 = vadd.f32 %v675, %v703
  %v746 = vadd.f32 %v676, %v703
  %v747 = vadd.f32 %v677, %v703
  %v748 = vadd.f32 %v678, %v703
  %v749 = vadd.f32 %v679, %v703
  %v750 = vadd.f32 %v680, %v703
  %v751 = vadd.f32 %v681, %v703
  %v752 = vadd.f32 %v682, %v703
  %v753 = vadd.f32 %v683, %v703
  %v754 = vadd.f32 %v684, %v703
  %v755 = vadd.f32 %v685, %v703
  %v756 = vadd.f32 %v686, %v703
  %v757 = vadd.f32 %v687, %v703
  %v758 = vadd.f32 %v688, %v703
  %v759 = vadd.f32 %v689, %v703
  %v760 = vadd.f32 %v690, %v703
  %v761 = vadd.f32 %v691, %v703
  %v762 = vadd.f32 %v692, %v703
  %v763 = vadd.f32 %v693, %v703
  %v764 = vadd.f32 %v694, %v703
  %v765 = vadd.f32 %v695, %v703
  %v766 = vadd.f32 %v696, %v703
  %v767 = vadd.f32 %v697, %v703
  %v768 = vadd.f32 %v698, %v703
  %v769 = vpack.c.bf16 %v706, %v705
  %v770 = vpack.c.bf16 %v708, %v707
  %v771 = vpack.c.bf16 %v710, %v709
  %v772 = vpack.c.bf16 %v712, %v711
  %v773 = vpack.c.bf16 %v714, %v713
  %v774 = vpack.c.bf16 %v716, %v715
  %v775 = vpack.c.bf16 %v718, %v717
  %v776 = vpack.c.bf16 %v720, %v719
  %v777 = vpack.c.bf16 %v722, %v721
  %v778 = vpack.c.bf16 %v724, %v723
  %v779 = vpack.c.bf16 %v726, %v725
  %v780 = vpack.c.bf16 %v728, %v727
  %v781 = vpack.c.bf16 %v730, %v729
  %v782 = vpack.c.bf16 %v732, %v731
  %v783 = vpack.c.bf16 %v734, %v733
  %v784 = vpack.c.bf16 %v736, %v735
  %v785 = vpack.c.bf16 %v738, %v737
  %v786 = vpack.c.bf16 %v740, %v739
  %v787 = vpack.c.bf16 %v742, %v741
  %v788 = vpack.c.bf16 %v744, %v743
  %v789 = vpack.c.bf16 %v746, %v745
  %v790 = vpack.c.bf16 %v748, %v747
  %v791 = vpack.c.bf16 %v750, %v749
  %v792 = vpack.c.bf16 %v752, %v751
  %v793 = vpack.c.bf16 %v754, %v753
  %v794 = vpack.c.bf16 %v756, %v755
  %v795 = vpack.c.bf16 %v758, %v757
  %v796 = vpack.c.bf16 %v760, %v759
  %v797 = vpack.c.bf16 %v762, %v761
  %v798 = vpack.c.bf16 %v764, %v763
  %v799 = vpack.c.bf16 %v766, %v765
  %v800 = vpack.c.bf16 %v768, %v767
  %v833 = vunpack.c.l.b16 %v769
  %v834 = vunpack.c.h.b16 %v769
  %v835 = vunpack.c.l.b16 %v770
  %v836 = vunpack.c.h.b16 %v770
  %v837 = vunpack.c.l.b16 %v771
  %v838 = vunpack.c.h.b16 %v771
  %v839 = vunpack.c.l.b16 %v772
  %v840 = vunpack.c.h.b16 %v772
  %v841 = vunpack.c.l.b16 %v773
  %v842 = vunpack.c.h.b16 %v773
  %v843 = vunpack.c.l.b16 %v774
  %v844 = vunpack.c.h.b16 %v774
  %v845 = vunpack.c.l.b16 %v775
  %v846 = vunpack.c.h.b16 %v775
  %v847 = vunpack.c.l.b16 %v776
  %v848 = vunpack.c.h.b16 %v776
  %v849 = vunpack.c.l.b16 %v777
  %v850 = vunpack.c.h.b16 %v777
  %v851 = vunpack.c.l.b16 %v778
  %v852 = vunpack.c.h.b16 %v778
  %v853 = vunpack.c.l.b16 %v779
  %v854 = vunpack.c.h.b16 %v779
  %v855 = vunpack.c.l.b16 %v780
  %v856 = vunpack.c.h.b16 %v780
  %v857 = vunpack.c.l.b16 %v781
  %v858 = vunpack.c.h.b16 %v781
  %v859 = vunpack.c.l.b16 %v782
  %v860 = vunpack.c.h.b16 %v782
  %v861 = vunpack.c.l.b16 %v783
  %v862 = vunpack.c.h.b16 %v783
  %v863 = vunpack.c.l.b16 %v784
  %v864 = vunpack.c.h.b16 %v784
  %v865 = vunpack.c.l.b16 %v785
  %v866 = vunpack.c.h.b16 %v785
  %v867 = vunpack.c.l.b16 %v786
  %v868 = vunpack.c.h.b16 %v786
  %v869 = vunpack.c.l.b16 %v787
  %v870 = vunpack.c.h.b16 %v787
  %v871 = vunpack.c.l.b16 %v788
  %v872 = vunpack.c.h.b16 %v788
  %v873 = vunpack.c.l.b16 %v789
  %v874 = vunpack.c.h.b16 %v789
  %v875 = vunpack.c.l.b16 %v790
  %v876 = vunpack.c.h.b16 %v790
  %v877 = vunpack.c.l.b16 %v791
  %v878 = vunpack.c.h.b16 %v791
  %v879 = vunpack.c.l.b16 %v792
  %v880 = vunpack.c.h.b16 %v792
  %v881 = vunpack.c.l.b16 %v793
  %v882 = vunpack.c.h.b16 %v793
  %v883 = vunpack.c.l.b16 %v794
  %v884 = vunpack.c.h.b16 %v794
  %v885 = vunpack.c.l.b16 %v795
  %v886 = vunpack.c.h.b16 %v795
  %v887 = vunpack.c.l.b16 %v796
  %v888 = vunpack.c.h.b16 %v796
  %v889 = vunpack.c.l.b16 %v797
  %v890 = vunpack.c.h.b16 %v797
  %v891 = vunpack.c.l.b16 %v798
  %v892 = vunpack.c.h.b16 %v798
  %v893 = vunpack.c.l.b16 %v799
  %v894 = vunpack.c.h.b16 %v799
  %v895 = vunpack.c.l.b16 %v800
  %v896 = vunpack.c.h.b16 %v800
  %v897 = vpack.c.b16 %v833, %v833
  %v898 = vpack.c.b16 %v834, %v834
  %v899 = vpack.c.b16 %v835, %v835
  %v900 = vpack.c.b16 %v836, %v836
  %v901 = vpack.c.b16 %v837, %v837
  %v902 = vpack.c.b16 %v838, %v838
  %v903 = vpack.c.b16 %v839, %v839
  %v904 = vpack.c.b16 %v840, %v840
  %v905 = vpack.c.b16 %v841, %v841
  %v906 = vpack.c.b16 %v842, %v842
  %v907 = vpack.c.b16 %v843, %v843
  %v908 = vpack.c.b16 %v844, %v844
  %v909 = vpack.c.b16 %v845, %v845
  %v910 = vpack.c.b16 %v846, %v846
  %v911 = vpack.c.b16 %v847, %v847
  %v912 = vpack.c.b16 %v848, %v848
  %v913 = vpack.c.b16 %v849, %v849
  %v914 = vpack.c.b16 %v850, %v850
  %v915 = vpack.c.b16 %v851, %v851
  %v916 = vpack.c.b16 %v852, %v852
  %v917 = vpack.c.b16 %v853, %v853
  %v918 = vpack.c.b16 %v854, %v854
  %v919 = vpack.c.b16 %v855, %v855
  %v920 = vpack.c.b16 %v856, %v856
  %v921 = vpack.c.b16 %v857, %v857
  %v922 = vpack.c.b16 %v858, %v858
  %v923 = vpack.c.b16 %v859, %v859
  %v924 = vpack.c.b16 %v860, %v860
  %v925 = vpack.c.b16 %v861, %v861
  %v926 = vpack.c.b16 %v862, %v862
  %v927 = vpack.c.b16 %v863, %v863
  %v928 = vpack.c.b16 %v864, %v864
  %v929 = vpack.c.b16 %v865, %v865
  %v930 = vpack.c.b16 %v866, %v866
  %v931 = vpack.c.b16 %v867, %v867
  %v932 = vpack.c.b16 %v868, %v868
  %v933 = vpack.c.b16 %v869, %v869
  %v934 = vpack.c.b16 %v870, %v870
  %v935 = vpack.c.b16 %v871, %v871
  %v936 = vpack.c.b16 %v872, %v872
  %v937 = vpack.c.b16 %v873, %v873
  %v938 = vpack.c.b16 %v874, %v874
  %v939 = vpack.c.b16 %v875, %v875
  %v940 = vpack.c.b16 %v876, %v876
  %v941 = vpack.c.b16 %v877, %v877
  %v942 = vpack.c.b16 %v878, %v878
  %v943 = vpack.c.b16 %v879, %v879
  %v944 = vpack.c.b16 %v880, %v880
  %v945 = vpack.c.b16 %v881, %v881
  %v946 = vpack.c.b16 %v882, %v882
  %v947 = vpack.c.b16 %v883, %v883
  %v948 = vpack.c.b16 %v884, %v884
  %v949 = vpack.c.b16 %v885, %v885
  %v950 = vpack.c.b16 %v886, %v886
  %v951 = vpack.c.b16 %v887, %v887
  %v952 = vpack.c.b16 %v888, %v888
  %v953 = vpack.c.b16 %v889, %v889
  %v954 = vpack.c.b16 %v890, %v890
  %v955 = vpack.c.b16 %v891, %v891
  %v956 = vpack.c.b16 %v892, %v892
  %v957 = vpack.c.b16 %v893, %v893
  %v958 = vpack.c.b16 %v894, %v894
  %v959 = vpack.c.b16 %v895, %v895
  %v960 = vpack.c.b16 %v896, %v896
  %vm1025 = vcmask 11264
  %1026 = vst.msk [vmem:[%s4] sm:$0xf] %vm1025, %v897
  %1027 = vst.msk [vmem:[%s4 + $0x4] sm:$0xf] %vm1025, %v898
  %1028 = vst.msk [vmem:[%s4 + $0x8] sm:$0xf] %vm1025, %v899
  %1029 = vst.msk [vmem:[%s4 + $0xc] sm:$0xf] %vm1025, %v900
  %1030 = vst.msk [vmem:[%s4 + $0x10] sm:$0xf] %vm1025, %v901
  %1031 = vst.msk [vmem:[%s4 + $0x14] sm:$0xf] %vm1025, %v902
  %1032 = vst.msk [vmem:[%s4 + $0x18] sm:$0xf] %vm1025, %v903
  %1033 = vst.msk [vmem:[%s4 + $0x1c] sm:$0xf] %vm1025, %v904
  %1034 = vst.msk [vmem:[%s4 + $0x20] sm:$0xf] %vm1025, %v905
  %1035 = vst.msk [vmem:[%s4 + $0x24] sm:$0xf] %vm1025, %v906
  %1036 = vst.msk [vmem:[%s4 + $0x28] sm:$0xf] %vm1025, %v907
  %1037 = vst.msk [vmem:[%s4 + $0x2c] sm:$0xf] %vm1025, %v908
  %1038 = vst.msk [vmem:[%s4 + $0x30] sm:$0xf] %vm1025, %v909
  %1039 = vst.msk [vmem:[%s4 + $0x34] sm:$0xf] %vm1025, %v910
  %1040 = vst.msk [vmem:[%s4 + $0x38] sm:$0xf] %vm1025, %v911
  %1041 = vst.msk [vmem:[%s4 + $0x3c] sm:$0xf] %vm1025, %v912
  %1042 = vst.msk [vmem:[%s4 + $0x40] sm:$0xf] %vm1025, %v913
  %1043 = vst.msk [vmem:[%s4 + $0x44] sm:$0xf] %vm1025, %v914
  %1044 = vst.msk [vmem:[%s4 + $0x48] sm:$0xf] %vm1025, %v915
  %1045 = vst.msk [vmem:[%s4 + $0x4c] sm:$0xf] %vm1025, %v916
  %1046 = vst.msk [vmem:[%s4 + $0x50] sm:$0xf] %vm1025, %v917
  %1047 = vst.msk [vmem:[%s4 + $0x54] sm:$0xf] %vm1025, %v918
  %1048 = vst.msk [vmem:[%s4 + $0x58] sm:$0xf] %vm1025, %v919
  %1049 = vst.msk [vmem:[%s4 + $0x5c] sm:$0xf] %vm1025, %v920
  %1050 = vst.msk [vmem:[%s4 + $0x60] sm:$0xf] %vm1025, %v921
  %1051 = vst.msk [vmem:[%s4 + $0x64] sm:$0xf] %vm1025, %v922
  %1052 = vst.msk [vmem:[%s4 + $0x68] sm:$0xf] %vm1025, %v923
  %1053 = vst.msk [vmem:[%s4 + $0x6c] sm:$0xf] %vm1025, %v924
  %1054 = vst.msk [vmem:[%s4 + $0x70] sm:$0xf] %vm1025, %v925
  %1055 = vst.msk [vmem:[%s4 + $0x74] sm:$0xf] %vm1025, %v926
  %1056 = vst.msk [vmem:[%s4 + $0x78] sm:$0xf] %vm1025, %v927
  %1057 = vst.msk [vmem:[%s4 + $0x7c] sm:$0xf] %vm1025, %v928
  %1058 = vst.msk [vmem:[%s4 + $0x80] sm:$0xf] %vm1025, %v929
  %1059 = vst.msk [vmem:[%s4 + $0x84] sm:$0xf] %vm1025, %v930
  %1060 = vst.msk [vmem:[%s4 + $0x88] sm:$0xf] %vm1025, %v931
  %1061 = vst.msk [vmem:[%s4 + $0x8c] sm:$0xf] %vm1025, %v932
  %1062 = vst.msk [vmem:[%s4 + $0x90] sm:$0xf] %vm1025, %v933
  %1063 = vst.msk [vmem:[%s4 + $0x94] sm:$0xf] %vm1025, %v934
  %1064 = vst.msk [vmem:[%s4 + $0x98] sm:$0xf] %vm1025, %v935
  %1065 = vst.msk [vmem:[%s4 + $0x9c] sm:$0xf] %vm1025, %v936
  %1066 = vst.msk [vmem:[%s4 + $0xa0] sm:$0xf] %vm1025, %v937
  %1067 = vst.msk [vmem:[%s4 + $0xa4] sm:$0xf] %vm1025, %v938
  %1068 = vst.msk [vmem:[%s4 + $0xa8] sm:$0xf] %vm1025, %v939
  %1069 = vst.msk [vmem:[%s4 + $0xac] sm:$0xf] %vm1025, %v940
  %1070 = vst.msk [vmem:[%s4 + $0xb0] sm:$0xf] %vm1025, %v941
  %1071 = vst.msk [vmem:[%s4 + $0xb4] sm:$0xf] %vm1025, %v942
  %1072 = vst.msk [vmem:[%s4 + $0xb8] sm:$0xf] %vm1025, %v943
  %1073 = vst.msk [vmem:[%s4 + $0xbc] sm:$0xf] %vm1025, %v944
  %1074 = vst.msk [vmem:[%s4 + $0xc0] sm:$0xf] %vm1025, %v945
  %1075 = vst.msk [vmem:[%s4 + $0xc4] sm:$0xf] %vm1025, %v946
  %1076 = vst.msk [vmem:[%s4 + $0xc8] sm:$0xf] %vm1025, %v947
  %1077 = vst.msk [vmem:[%s4 + $0xcc] sm:$0xf] %vm1025, %v948
  %1078 = vst.msk [vmem:[%s4 + $0xd0] sm:$0xf] %vm1025, %v949
  %1079 = vst.msk [vmem:[%s4 + $0xd4] sm:$0xf] %vm1025, %v950
  %1080 = vst.msk [vmem:[%s4 + $0xd8] sm:$0xf] %vm1025, %v951
  %1081 = vst.msk [vmem:[%s4 + $0xdc] sm:$0xf] %vm1025, %v952
  %1082 = vst.msk [vmem:[%s4 + $0xe0] sm:$0xf] %vm1025, %v953
  %1083 = vst.msk [vmem:[%s4 + $0xe4] sm:$0xf] %vm1025, %v954
  %1084 = vst.msk [vmem:[%s4 + $0xe8] sm:$0xf] %vm1025, %v955
  %1085 = vst.msk [vmem:[%s4 + $0xec] sm:$0xf] %vm1025, %v956
  %1086 = vst.msk [vmem:[%s4 + $0xf0] sm:$0xf] %vm1025, %v957
  %1087 = vst.msk [vmem:[%s4 + $0xf4] sm:$0xf] %vm1025, %v958
  %1088 = vst.msk [vmem:[%s4 + $0xf8] sm:$0xf] %vm1025, %v959
  %1089 = vst.msk [vmem:[%s4 + $0xfc] sm:$0xf] %vm1025, %v960
  // Predicated region
  $region18: #{basic_block_forward.15} parent=0 // pred_check
    _
  $region19: #{basic_block_forward.15} parent=0 // pred_check_branch
    %1091 = sbr.rel (0) target = $region21
  $region20: #{basic_block_forward.15} parent=0 // pred_region
    _
  $region21: #{basic_block_forward.15} parent=0 // pred_fallthru
    _
  // Predicated region
  $region22: #{basic_block_forward.15} parent=0 // pred_check
    _
  $region23: #{basic_block_forward.15} parent=0 // pred_check_branch
    %1093 = sbr.rel (0) target = $region25
  $region24: #{basic_block_forward.15} parent=0 // pred_region
    _
  $region25: #{basic_block_forward.15} parent=0 // pred_fallthru
    _

// kernel: basic_block_forward.24
$region0: #{basic_block_forward.24}
  #allocation0 [shape = 'u32[]', space=smem, size = 0x4, offset = 0x4, fixed_abs, tag = 'smem constant byte address 0x4 - core index']
  #allocation1 [shape = 'u32[144,128]{1,0:T(1,128)}', space=vmem, size = 0x12000, scoped, tag = 'internal scratch']
  #allocation2 [shape = 'f32[1,1]{1,0:T(1,128)S(1)}', space=vmem, size = 0x200, scoped, tag = 'scoped memory for basic_block_forward.24']
  #allocation3 [shape = 'f32[1,1]{1,0:T(1,128)S(1)}', space=vmem, size = 0x200, scoped, tag = 'scoped memory for basic_block_forward.24']
  %s0 = inlined_call_operand.vmem [shape: bf16[256,128], index: 0, kind: input, shape index: {}]
  %s1 = inlined_call_operand.vmem [shape: bf16[128,128], index: 1, kind: input, shape index: {}]
  %s2 = inlined_call_operand.<no memory space> [shape: f32[1,1], index: 2, kind: input, shape index: {}]
  %s3 = inlined_call_operand.<no memory space> [shape: f32[1,1], index: 3, kind: input, shape index: {}]
  %s4 = inlined_call_operand.vmem [shape: f32[256,1], index: 4, kind: output, shape index: {}]
  %s5 = sld [smem:[#allocation0]]
  $region26: #{basic_block_forward.24} parent=0
    _
  %s7 = ssub.s32 1, %s5
  %s8 = scalar_select 0, %s7, %s5
  %v9 = vstv %s2
  %10 = vst [vmem:[#allocation2] sm:$0x1] %v9
  %v11 = vstv %s3
  %12 = vst [vmem:[#allocation3] sm:$0x1] %v11
  // Predicated region
  $region2: #{basic_block_forward.24} parent=0 // pred_check
    _
  $region3: #{basic_block_forward.24} parent=0 // pred_check_branch
    %14 = sbr.rel (0) target = $region5
  $region4: #{basic_block_forward.24} parent=0 // pred_region
    _
  $region5: #{basic_block_forward.24} parent=0 // pred_fallthru
    _
  // Predicated region
  $region6: #{basic_block_forward.24} parent=0 // pred_check
    _
  $region7: #{basic_block_forward.24} parent=0 // pred_check_branch
    %16 = sbr.rel (0) target = $region9
  $region8: #{basic_block_forward.24} parent=0 // pred_region
    _
  $region9: #{basic_block_forward.24} parent=0 // pred_fallthru
    _
  // Predicated region
  $region10: #{basic_block_forward.24} parent=0 // pred_check
    _
  $region11: #{basic_block_forward.24} parent=0 // pred_check_branch
    %18 = sbr.rel (0) target = $region13
  $region12: #{basic_block_forward.24} parent=0 // pred_region
    _
  $region13: #{basic_block_forward.24} parent=0 // pred_fallthru
    _
  // Predicated region
  $region14: #{basic_block_forward.24} parent=0 // pred_check
    _
  $region15: #{basic_block_forward.24} parent=0 // pred_check_branch
    %20 = sbr.rel (0) target = $region17
  $region16: #{basic_block_forward.24} parent=0 // pred_region
    _
  $region17: #{basic_block_forward.24} parent=0 // pred_fallthru
    _
  %v22 = vld [vmem:[%s0] sm:$0xf]
  %v23 = vld [vmem:[%s0 + $0x4] sm:$0xf]
  %v24 = vld [vmem:[%s0 + $0x8] sm:$0xf]
  %v25 = vld [vmem:[%s0 + $0xc] sm:$0xf]
  %v26 = vld [vmem:[%s0 + $0x10] sm:$0xf]
  %v27 = vld [vmem:[%s0 + $0x14] sm:$0xf]
  %v28 = vld [vmem:[%s0 + $0x18] sm:$0xf]
  %v29 = vld [vmem:[%s0 + $0x1c] sm:$0xf]
  %v30 = vld [vmem:[%s0 + $0x20] sm:$0xf]
  %v31 = vld [vmem:[%s0 + $0x24] sm:$0xf]
  %v32 = vld [vmem:[%s0 + $0x28] sm:$0xf]
  %v33 = vld [vmem:[%s0 + $0x2c] sm:$0xf]
  %v34 = vld [vmem:[%s0 + $0x30] sm:$0xf]
  %v35 = vld [vmem:[%s0 + $0x34] sm:$0xf]
  %v36 = vld [vmem:[%s0 + $0x38] sm:$0xf]
  %v37 = vld [vmem:[%s0 + $0x3c] sm:$0xf]
  %v38 = vld [vmem:[%s0 + $0x40] sm:$0xf]
  %v39 = vld [vmem:[%s0 + $0x44] sm:$0xf]
  %v40 = vld [vmem:[%s0 + $0x48] sm:$0xf]
  %v41 = vld [vmem:[%s0 + $0x4c] sm:$0xf]
  %v42 = vld [vmem:[%s0 + $0x50] sm:$0xf]
  %v43 = vld [vmem:[%s0 + $0x54] sm:$0xf]
  %v44 = vld [vmem:[%s0 + $0x58] sm:$0xf]
  %v45 = vld [vmem:[%s0 + $0x5c] sm:$0xf]
  %v46 = vld [vmem:[%s0 + $0x60] sm:$0xf]
  %v47 = vld [vmem:[%s0 + $0x64] sm:$0xf]
  %v48 = vld [vmem:[%s0 + $0x68] sm:$0xf]
  %v49 = vld [vmem:[%s0 + $0x6c] sm:$0xf]
  %v50 = vld [vmem:[%s0 + $0x70] sm:$0xf]
  %v51 = vld [vmem:[%s0 + $0x74] sm:$0xf]
  %v52 = vld [vmem:[%s0 + $0x78] sm:$0xf]
  %v53 = vld [vmem:[%s0 + $0x7c] sm:$0xf]
  %v54 = vld [vmem:[%s1] sm:$0xf]
  %v55 = vld [vmem:[%s1 + $0x4] sm:$0xf]
  %v56 = vld [vmem:[%s1 + $0x8] sm:$0xf]
  %v57 = vld [vmem:[%s1 + $0xc] sm:$0xf]
  %v58 = vld [vmem:[%s1 + $0x10] sm:$0xf]
  %v59 = vld [vmem:[%s1 + $0x14] sm:$0xf]
  %v60 = vld [vmem:[%s1 + $0x18] sm:$0xf]
  %v61 = vld [vmem:[%s1 + $0x1c] sm:$0xf]
  %v62 = vld [vmem:[%s1 + $0x20] sm:$0xf]
  %v63 = vld [vmem:[%s1 + $0x24] sm:$0xf]
  %v64 = vld [vmem:[%s1 + $0x28] sm:$0xf]
  %v65 = vld [vmem:[%s1 + $0x2c] sm:$0xf]
  %v66 = vld [vmem:[%s1 + $0x30] sm:$0xf]
  %v67 = vld [vmem:[%s1 + $0x34] sm:$0xf]
  %v68 = vld [vmem:[%s1 + $0x38] sm:$0xf]
  %v69 = vld [vmem:[%s1 + $0x3c] sm:$0xf]
  %v102 = vunpack.c.l.b16 %v22
  %v103 = vunpack.c.l.b16 %v23
  %v104 = vunpack.c.l.b16 %v24
  %v105 = vunpack.c.l.b16 %v25
  %v106 = vunpack.c.l.b16 %v26
  %v107 = vunpack.c.l.b16 %v27
  %v108 = vunpack.c.l.b16 %v28
  %v109 = vunpack.c.l.b16 %v29
  %v110 = vunpack.c.l.b16 %v30
  %v111 = vunpack.c.l.b16 %v31
  %v112 = vunpack.c.l.b16 %v32
  %v113 = vunpack.c.l.b16 %v33
  %v114 = vunpack.c.l.b16 %v34
  %v115 = vunpack.c.l.b16 %v35
  %v116 = vunpack.c.l.b16 %v36
  %v117 = vunpack.c.l.b16 %v37
  %v118 = vunpack.c.l.b16 %v38
  %v119 = vunpack.c.l.b16 %v39
  %v120 = vunpack.c.l.b16 %v40
  %v121 = vunpack.c.l.b16 %v41
  %v122 = vunpack.c.l.b16 %v42
  %v123 = vunpack.c.l.b16 %v43
  %v124 = vunpack.c.l.b16 %v44
  %v125 = vunpack.c.l.b16 %v45
  %v126 = vunpack.c.l.b16 %v46
  %v127 = vunpack.c.l.b16 %v47
  %v128 = vunpack.c.l.b16 %v48
  %v129 = vunpack.c.l.b16 %v49
  %v130 = vunpack.c.l.b16 %v50
  %v131 = vunpack.c.l.b16 %v51
  %v132 = vunpack.c.l.b16 %v52
  %v133 = vunpack.c.l.b16 %v53
  %v134 = vpack.c.b16 %v103, %v102
  %v135 = vpack.c.b16 %v105, %v104
  %v136 = vpack.c.b16 %v107, %v106
  %v137 = vpack.c.b16 %v109, %v108
  %v138 = vpack.c.b16 %v111, %v110
  %v139 = vpack.c.b16 %v113, %v112
  %v140 = vpack.c.b16 %v115, %v114
  %v141 = vpack.c.b16 %v117, %v116
  %v142 = vpack.c.b16 %v119, %v118
  %v143 = vpack.c.b16 %v121, %v120
  %v144 = vpack.c.b16 %v123, %v122
  %v145 = vpack.c.b16 %v125, %v124
  %v146 = vpack.c.b16 %v127, %v126
  %v147 = vpack.c.b16 %v129, %v128
  %v148 = vpack.c.b16 %v131, %v130
  %v149 = vpack.c.b16 %v133, %v132
  %v182 = vunpack.c.l.b16 %v54
  %v183 = vunpack.c.l.b16 %v55
  %v184 = vunpack.c.l.b16 %v56
  %v185 = vunpack.c.l.b16 %v57
  %v186 = vunpack.c.l.b16 %v58
  %v187 = vunpack.c.l.b16 %v59
  %v188 = vunpack.c.l.b16 %v60
  %v189 = vunpack.c.l.b16 %v61
  %v190 = vunpack.c.l.b16 %v62
  %v191 = vunpack.c.l.b16 %v63
  %v192 = vunpack.c.l.b16 %v64
  %v193 = vunpack.c.l.b16 %v65
  %v194 = vunpack.c.l.b16 %v66
  %v195 = vunpack.c.l.b16 %v67
  %v196 = vunpack.c.l.b16 %v68
  %v197 = vunpack.c.l.b16 %v69
  %v198 = vpack.c.b16 %v183, %v182
  %v199 = vpack.c.b16 %v185, %v184
  %v200 = vpack.c.b16 %v187, %v186
  %v201 = vpack.c.b16 %v189, %v188
  %v202 = vpack.c.b16 %v191, %v190
  %v203 = vpack.c.b16 %v193, %v192
  %v204 = vpack.c.b16 %v195, %v194
  %v205 = vpack.c.b16 %v197, %v196
  %214 = vmatprep.subr.bf16.mxu0 0
  %215 = vmatpush1.bf16.msra.mxu0 %v198
  %216 = vmatprep.subr.bf16.mxu0 0
  %217 = vmatpush1.bf16.msra.mxu0 %v199
  %218 = vmatprep.subr.bf16.mxu0 0
  %219 = vmatpush1.bf16.msra.mxu0 %v200
  %220 = vmatprep.subr.bf16.mxu0 0
  %221 = vmatpush1.bf16.msra.mxu0 %v201
  %222 = vmatprep.subr.bf16.mxu0 0
  %223 = vmatpush1.bf16.msra.mxu0 %v202
  %224 = vmatprep.subr.bf16.mxu0 0
  %225 = vmatpush1.bf16.msra.mxu0 %v203
  %226 = vmatprep.subr.bf16.mxu0 0
  %227 = vmatpush1.bf16.msra.mxu0 %v204
  %228 = vmatprep.subr.bf16.mxu0 0
  %229 = vmatpush1.bf16.msra.mxu0 %v205
  %230 = vmatprep.subr.bf16.mxu0 0
  %231 = vmatpush1.bf16.msra.mxu0 0
  %232 = vmatprep.subr.bf16.mxu0 0
  %233 = vmatpush1.bf16.msra.mxu0 0
  %234 = vmatprep.subr.bf16.mxu0 0
  %235 = vmatpush1.bf16.msra.mxu0 0
  %236 = vmatprep.subr.bf16.mxu0 0
  %237 = vmatpush1.bf16.msra.mxu0 0
  %238 = vmatprep.subr.bf16.mxu0 0
  %239 = vmatpush1.bf16.msra.mxu0 0
  %240 = vmatprep.subr.bf16.mxu0 0
  %241 = vmatpush1.bf16.msra.mxu0 0
  %242 = vmatprep.subr.bf16.mxu0 0
  %243 = vmatpush1.bf16.msra.mxu0 0
  %244 = vmatprep.subr.bf16.mxu0 0
  %245 = vmatpush1.bf16.msra.mxu0 0
  %246 = vmatprep.mubr.bf16.mxu0 0
  %247 = vmatmul.mubr.bf16.gmra.mrb[0].mxu0 %v134
  %v248 = vpop.f32.mrb[0].mxu0
  %v249 = vadd.f32 0.0, %v248
  %v250 = vpop.f32.mrb[0].mxu0
  %v251 = vpop.f32.mrb[0].mxu0
  %v252 = vadd.f32 0.0, %v251
  %v253 = vpop.f32.mrb[0].mxu0
  %254 = vmatprep.mubr.bf16.mxu0 0
  %255 = vmatmul.mubr.bf16.gmra.mrb[0].mxu0 %v135
  %v256 = vpop.f32.mrb[0].mxu0
  %v257 = vadd.f32 0.0, %v256
  %v258 = vpop.f32.mrb[0].mxu0
  %v259 = vpop.f32.mrb[0].mxu0
  %v260 = vadd.f32 0.0, %v259
  %v261 = vpop.f32.mrb[0].mxu0
  %262 = vmatprep.mubr.bf16.mxu0 0
  %263 = vmatmul.mubr.bf16.gmra.mrb[0].mxu0 %v136
  %v264 = vpop.f32.mrb[0].mxu0
  %v265 = vadd.f32 0.0, %v264
  %v266 = vpop.f32.mrb[0].mxu0
  %v267 = vpop.f32.mrb[0].mxu0
  %v268 = vadd.f32 0.0, %v267
  %v269 = vpop.f32.mrb[0].mxu0
  %270 = vmatprep.mubr.bf16.mxu0 0
  %271 = vmatmul.mubr.bf16.gmra.mrb[0].mxu0 %v137
  %v272 = vpop.f32.mrb[0].mxu0
  %v273 = vadd.f32 0.0, %v272
  %v274 = vpop.f32.mrb[0].mxu0
  %v275 = vpop.f32.mrb[0].mxu0
  %v276 = vadd.f32 0.0, %v275
  %v277 = vpop.f32.mrb[0].mxu0
  %278 = vmatprep.mubr.bf16.mxu0 0
  %279 = vmatmul.mubr.bf16.gmra.mrb[0].mxu0 %v138
  %v280 = vpop.f32.mrb[0].mxu0
  %v281 = vadd.f32 0.0, %v280
  %v282 = vpop.f32.mrb[0].mxu0
  %v283 = vpop.f32.mrb[0].mxu0
  %v284 = vadd.f32 0.0, %v283
  %v285 = vpop.f32.mrb[0].mxu0
  %286 = vmatprep.mubr.bf16.mxu0 0
  %287 = vmatmul.mubr.bf16.gmra.mrb[0].mxu0 %v139
  %v288 = vpop.f32.mrb[0].mxu0
  %v289 = vadd.f32 0.0, %v288
  %v290 = vpop.f32.mrb[0].mxu0
  %v291 = vpop.f32.mrb[0].mxu0
  %v292 = vadd.f32 0.0, %v291
  %v293 = vpop.f32.mrb[0].mxu0
  %294 = vmatprep.mubr.bf16.mxu0 0
  %295 = vmatmul.mubr.bf16.gmra.mrb[0].mxu0 %v140
  %v296 = vpop.f32.mrb[0].mxu0
  %v297 = vadd.f32 0.0, %v296
  %v298 = vpop.f32.mrb[0].mxu0
  %v299 = vpop.f32.mrb[0].mxu0
  %v300 = vadd.f32 0.0, %v299
  %v301 = vpop.f32.mrb[0].mxu0
  %302 = vmatprep.mubr.bf16.mxu0 0
  %303 = vmatmul.mubr.bf16.gmra.mrb[0].mxu0 %v141
  %v304 = vpop.f32.mrb[0].mxu0
  %v305 = vadd.f32 0.0, %v304
  %v306 = vpop.f32.mrb[0].mxu0
  %v307 = vpop.f32.mrb[0].mxu0
  %v308 = vadd.f32 0.0, %v307
  %v309 = vpop.f32.mrb[0].mxu0
  %310 = vmatprep.mubr.bf16.mxu0 0
  %311 = vmatmul.mubr.bf16.gmra.mrb[0].mxu0 %v142
  %v312 = vpop.f32.mrb[0].mxu0
  %v313 = vadd.f32 0.0, %v312
  %v314 = vpop.f32.mrb[0].mxu0
  %v315 = vpop.f32.mrb[0].mxu0
  %v316 = vadd.f32 0.0, %v315
  %v317 = vpop.f32.mrb[0].mxu0
  %318 = vmatprep.mubr.bf16.mxu0 0
  %319 = vmatmul.mubr.bf16.gmra.mrb[0].mxu0 %v143
  %v320 = vpop.f32.mrb[0].mxu0
  %v321 = vadd.f32 0.0, %v320
  %v322 = vpop.f32.mrb[0].mxu0
  %v323 = vpop.f32.mrb[0].mxu0
  %v324 = vadd.f32 0.0, %v323
  %v325 = vpop.f32.mrb[0].mxu0
  %326 = vmatprep.mubr.bf16.mxu0 0
  %327 = vmatmul.mubr.bf16.gmra.mrb[0].mxu0 %v144
  %v328 = vpop.f32.mrb[0].mxu0
  %v329 = vadd.f32 0.0, %v328
  %v330 = vpop.f32.mrb[0].mxu0
  %v331 = vpop.f32.mrb[0].mxu0
  %v332 = vadd.f32 0.0, %v331
  %v333 = vpop.f32.mrb[0].mxu0
  %334 = vmatprep.mubr.bf16.mxu0 0
  %335 = vmatmul.mubr.bf16.gmra.mrb[0].mxu0 %v145
  %v336 = vpop.f32.mrb[0].mxu0
  %v337 = vadd.f32 0.0, %v336
  %v338 = vpop.f32.mrb[0].mxu0
  %v339 = vpop.f32.mrb[0].mxu0
  %v340 = vadd.f32 0.0, %v339
  %v341 = vpop.f32.mrb[0].mxu0
  %342 = vmatprep.mubr.bf16.mxu0 0
  %343 = vmatmul.mubr.bf16.gmra.mrb[0].mxu0 %v146
  %v344 = vpop.f32.mrb[0].mxu0
  %v345 = vadd.f32 0.0, %v344
  %v346 = vpop.f32.mrb[0].mxu0
  %v347 = vpop.f32.mrb[0].mxu0
  %v348 = vadd.f32 0.0, %v347
  %v349 = vpop.f32.mrb[0].mxu0
  %350 = vmatprep.mubr.bf16.mxu0 0
  %351 = vmatmul.mubr.bf16.gmra.mrb[0].mxu0 %v147
  %v352 = vpop.f32.mrb[0].mxu0
  %v353 = vadd.f32 0.0, %v352
  %v354 = vpop.f32.mrb[0].mxu0
  %v355 = vpop.f32.mrb[0].mxu0
  %v356 = vadd.f32 0.0, %v355
  %v357 = vpop.f32.mrb[0].mxu0
  %358 = vmatprep.mubr.bf16.mxu0 0
  %359 = vmatmul.mubr.bf16.gmra.mrb[0].mxu0 %v148
  %v360 = vpop.f32.mrb[0].mxu0
  %v361 = vadd.f32 0.0, %v360
  %v362 = vpop.f32.mrb[0].mxu0
  %v363 = vpop.f32.mrb[0].mxu0
  %v364 = vadd.f32 0.0, %v363
  %v365 = vpop.f32.mrb[0].mxu0
  %366 = vmatprep.mubr.bf16.mxu0 0
  %367 = vmatmul.mubr.bf16.gmra.mrb[0].mxu0 %v149
  %v368 = vpop.f32.mrb[0].mxu0
  %v369 = vadd.f32 0.0, %v368
  %v370 = vpop.f32.mrb[0].mxu0
  %v371 = vpop.f32.mrb[0].mxu0
  %v372 = vadd.f32 0.0, %v371
  %v373 = vpop.f32.mrb[0].mxu0
  %374 = vdwg.mxu0
  %v375 = vld [vmem:[#allocation2] sm:$0x1]
  %v376 = vld [vmem:[#allocation3] sm:$0x1]
  %v378 = vlaneseq
  %v379 = vshrl.u32 %v378, 7
  %v380 = vsub.s32 0, %v379
  %v381 = vrot.slane %v375, %v380
  %v383 = vmul.f32 %v249, %v381
  %v384 = vmul.f32 %v252, %v381
  %v385 = vmul.f32 %v257, %v381
  %v386 = vmul.f32 %v260, %v381
  %v387 = vmul.f32 %v265, %v381
  %v388 = vmul.f32 %v268, %v381
  %v389 = vmul.f32 %v273, %v381
  %v390 = vmul.f32 %v276, %v381
  %v391 = vmul.f32 %v281, %v381
  %v392 = vmul.f32 %v284, %v381
  %v393 = vmul.f32 %v289, %v381
  %v394 = vmul.f32 %v292, %v381
  %v395 = vmul.f32 %v297, %v381
  %v396 = vmul.f32 %v300, %v381
  %v397 = vmul.f32 %v305, %v381
  %v398 = vmul.f32 %v308, %v381
  %v399 = vmul.f32 %v313, %v381
  %v400 = vmul.f32 %v316, %v381
  %v401 = vmul.f32 %v321, %v381
  %v402 = vmul.f32 %v324, %v381
  %v403 = vmul.f32 %v329, %v381
  %v404 = vmul.f32 %v332, %v381
  %v405 = vmul.f32 %v337, %v381
  %v406 = vmul.f32 %v340, %v381
  %v407 = vmul.f32 %v345, %v381
  %v408 = vmul.f32 %v348, %v381
  %v409 = vmul.f32 %v353, %v381
  %v410 = vmul.f32 %v356, %v381
  %v411 = vmul.f32 %v361, %v381
  %v412 = vmul.f32 %v364, %v381
  %v413 = vmul.f32 %v369, %v381
  %v414 = vmul.f32 %v372, %v381
  %v416 = vlaneseq
  %v417 = vshrl.u32 %v416, 7
  %v418 = vsub.s32 0, %v417
  %v419 = vrot.slane %v376, %v418
  %v421 = vadd.f32 %v383, %v419
  %v422 = vadd.f32 %v384, %v419
  %v423 = vadd.f32 %v385, %v419
  %v424 = vadd.f32 %v386, %v419
  %v425 = vadd.f32 %v387, %v419
  %v426 = vadd.f32 %v388, %v419
  %v427 = vadd.f32 %v389, %v419
  %v428 = vadd.f32 %v390, %v419
  %v429 = vadd.f32 %v391, %v419
  %v430 = vadd.f32 %v392, %v419
  %v431 = vadd.f32 %v393, %v419
  %v432 = vadd.f32 %v394, %v419
  %v433 = vadd.f32 %v395, %v419
  %v434 = vadd.f32 %v396, %v419
  %v435 = vadd.f32 %v397, %v419
  %v436 = vadd.f32 %v398, %v419
  %v437 = vadd.f32 %v399, %v419
  %v438 = vadd.f32 %v400, %v419
  %v439 = vadd.f32 %v401, %v419
  %v440 = vadd.f32 %v402, %v419
  %v441 = vadd.f32 %v403, %v419
  %v442 = vadd.f32 %v404, %v419
  %v443 = vadd.f32 %v405, %v419
  %v444 = vadd.f32 %v406, %v419
  %v445 = vadd.f32 %v407, %v419
  %v446 = vadd.f32 %v408, %v419
  %v447 = vadd.f32 %v409, %v419
  %v448 = vadd.f32 %v410, %v419
  %v449 = vadd.f32 %v411, %v419
  %v450 = vadd.f32 %v412, %v419
  %v451 = vadd.f32 %v413, %v419
  %v452 = vadd.f32 %v414, %v419
  %v453 = vxor.u32 %v421, 2147483648
  %v454 = vxor.u32 %v422, 2147483648
  %v455 = vxor.u32 %v423, 2147483648
  %v456 = vxor.u32 %v424, 2147483648
  %v457 = vxor.u32 %v425, 2147483648
  %v458 = vxor.u32 %v426, 2147483648
  %v459 = vxor.u32 %v427, 2147483648
  %v460 = vxor.u32 %v428, 2147483648
  %v461 = vxor.u32 %v429, 2147483648
  %v462 = vxor.u32 %v430, 2147483648
  %v463 = vxor.u32 %v431, 2147483648
  %v464 = vxor.u32 %v432, 2147483648
  %v465 = vxor.u32 %v433, 2147483648
  %v466 = vxor.u32 %v434, 2147483648
  %v467 = vxor.u32 %v435, 2147483648
  %v468 = vxor.u32 %v436, 2147483648
  %v469 = vxor.u32 %v437, 2147483648
  %v470 = vxor.u32 %v438, 2147483648
  %v471 = vxor.u32 %v439, 2147483648
  %v472 = vxor.u32 %v440, 2147483648
  %v473 = vxor.u32 %v441, 2147483648
  %v474 = vxor.u32 %v442, 2147483648
  %v475 = vxor.u32 %v443, 2147483648
  %v476 = vxor.u32 %v444, 2147483648
  %v477 = vxor.u32 %v445, 2147483648
  %v478 = vxor.u32 %v446, 2147483648
  %v479 = vxor.u32 %v447, 2147483648
  %v480 = vxor.u32 %v448, 2147483648
  %v481 = vxor.u32 %v449, 2147483648
  %v482 = vxor.u32 %v450, 2147483648
  %v483 = vxor.u32 %v451, 2147483648
  %v484 = vxor.u32 %v452, 2147483648
  %v485 = vmul.f32 %v453, 1.442695
  %v486 = vpow.pop %v485
  %v487 = vmul.f32 %v454, 1.442695
  %v488 = vpow.pop %v487
  %v489 = vmul.f32 %v455, 1.442695
  %v490 = vpow.pop %v489
  %v491 = vmul.f32 %v456, 1.442695
  %v492 = vpow.pop %v491
  %v493 = vmul.f32 %v457, 1.442695
  %v494 = vpow.pop %v493
  %v495 = vmul.f32 %v458, 1.442695
  %v496 = vpow.pop %v495
  %v497 = vmul.f32 %v459, 1.442695
  %v498 = vpow.pop %v497
  %v499 = vmul.f32 %v460, 1.442695
  %v500 = vpow.pop %v499
  %v501 = vmul.f32 %v461, 1.442695
  %v502 = vpow.pop %v501
  %v503 = vmul.f32 %v462, 1.442695
  %v504 = vpow.pop %v503
  %v505 = vmul.f32 %v463, 1.442695
  %v506 = vpow.pop %v505
  %v507 = vmul.f32 %v464, 1.442695
  %v508 = vpow.pop %v507
  %v509 = vmul.f32 %v465, 1.442695
  %v510 = vpow.pop %v509
  %v511 = vmul.f32 %v466, 1.442695
  %v512 = vpow.pop %v511
  %v513 = vmul.f32 %v467, 1.442695
  %v514 = vpow.pop %v513
  %v515 = vmul.f32 %v468, 1.442695
  %v516 = vpow.pop %v515
  %v517 = vmul.f32 %v469, 1.442695
  %v518 = vpow.pop %v517
  %v519 = vmul.f32 %v470, 1.442695
  %v520 = vpow.pop %v519
  %v521 = vmul.f32 %v471, 1.442695
  %v522 = vpow.pop %v521
  %v523 = vmul.f32 %v472, 1.442695
  %v524 = vpow.pop %v523
  %v525 = vmul.f32 %v473, 1.442695
  %v526 = vpow.pop %v525
  %v527 = vmul.f32 %v474, 1.442695
  %v528 = vpow.pop %v527
  %v529 = vmul.f32 %v475, 1.442695
  %v530 = vpow.pop %v529
  %v531 = vmul.f32 %v476, 1.442695
  %v532 = vpow.pop %v531
  %v533 = vmul.f32 %v477, 1.442695
  %v534 = vpow.pop %v533
  %v535 = vmul.f32 %v478, 1.442695
  %v536 = vpow.pop %v535
  %v537 = vmul.f32 %v479, 1.442695
  %v538 = vpow.pop %v537
  %v539 = vmul.f32 %v480, 1.442695
  %v540 = vpow.pop %v539
  %v541 = vmul.f32 %v481, 1.442695
  %v542 = vpow.pop %v541
  %v543 = vmul.f32 %v482, 1.442695
  %v544 = vpow.pop %v543
  %v545 = vmul.f32 %v483, 1.442695
  %v546 = vpow.pop %v545
  %v547 = vmul.f32 %v484, 1.442695
  %v548 = vpow.pop %v547
  %v549 = vadd.f32 %v486, 1.0
  %v550 = vadd.f32 %v488, 1.0
  %v551 = vadd.f32 %v490, 1.0
  %v552 = vadd.f32 %v492, 1.0
  %v553 = vadd.f32 %v494, 1.0
  %v554 = vadd.f32 %v496, 1.0
  %v555 = vadd.f32 %v498, 1.0
  %v556 = vadd.f32 %v500, 1.0
  %v557 = vadd.f32 %v502, 1.0
  %v558 = vadd.f32 %v504, 1.0
  %v559 = vadd.f32 %v506, 1.0
  %v560 = vadd.f32 %v508, 1.0
  %v561 = vadd.f32 %v510, 1.0
  %v562 = vadd.f32 %v512, 1.0
  %v563 = vadd.f32 %v514, 1.0
  %v564 = vadd.f32 %v516, 1.0
  %v565 = vadd.f32 %v518, 1.0
  %v566 = vadd.f32 %v520, 1.0
  %v567 = vadd.f32 %v522, 1.0
  %v568 = vadd.f32 %v524, 1.0
  %v569 = vadd.f32 %v526, 1.0
  %v570 = vadd.f32 %v528, 1.0
  %v571 = vadd.f32 %v530, 1.0
  %v572 = vadd.f32 %v532, 1.0
  %v573 = vadd.f32 %v534, 1.0
  %v574 = vadd.f32 %v536, 1.0
  %v575 = vadd.f32 %v538, 1.0
  %v576 = vadd.f32 %v540, 1.0
  %v577 = vadd.f32 %v542, 1.0
  %v578 = vadd.f32 %v544, 1.0
  %v579 = vadd.f32 %v546, 1.0
  %v580 = vadd.f32 %v548, 1.0
  %v581 = vrcp.pop %v549
  %v582 = vmul.f32 1.0, %v581
  %v583 = vrcp.pop %v550
  %v584 = vmul.f32 1.0, %v583
  %v585 = vrcp.pop %v551
  %v586 = vmul.f32 1.0, %v585
  %v587 = vrcp.pop %v552
  %v588 = vmul.f32 1.0, %v587
  %v589 = vrcp.pop %v553
  %v590 = vmul.f32 1.0, %v589
  %v591 = vrcp.pop %v554
  %v592 = vmul.f32 1.0, %v591
  %v593 = vrcp.pop %v555
  %v594 = vmul.f32 1.0, %v593
  %v595 = vrcp.pop %v556
  %v596 = vmul.f32 1.0, %v595
  %v597 = vrcp.pop %v557
  %v598 = vmul.f32 1.0, %v597
  %v599 = vrcp.pop %v558
  %v600 = vmul.f32 1.0, %v599
  %v601 = vrcp.pop %v559
  %v602 = vmul.f32 1.0, %v601
  %v603 = vrcp.pop %v560
  %v604 = vmul.f32 1.0, %v603
  %v605 = vrcp.pop %v561
  %v606 = vmul.f32 1.0, %v605
  %v607 = vrcp.pop %v562
  %v608 = vmul.f32 1.0, %v607
  %v609 = vrcp.pop %v563
  %v610 = vmul.f32 1.0, %v609
  %v611 = vrcp.pop %v564
  %v612 = vmul.f32 1.0, %v611
  %v613 = vrcp.pop %v565
  %v614 = vmul.f32 1.0, %v613
  %v615 = vrcp.pop %v566
  %v616 = vmul.f32 1.0, %v615
  %v617 = vrcp.pop %v567
  %v618 = vmul.f32 1.0, %v617
  %v619 = vrcp.pop %v568
  %v620 = vmul.f32 1.0, %v619
  %v621 = vrcp.pop %v569
  %v622 = vmul.f32 1.0, %v621
  %v623 = vrcp.pop %v570
  %v624 = vmul.f32 1.0, %v623
  %v625 = vrcp.pop %v571
  %v626 = vmul.f32 1.0, %v625
  %v627 = vrcp.pop %v572
  %v628 = vmul.f32 1.0, %v627
  %v629 = vrcp.pop %v573
  %v630 = vmul.f32 1.0, %v629
  %v631 = vrcp.pop %v574
  %v632 = vmul.f32 1.0, %v631
  %v633 = vrcp.pop %v575
  %v634 = vmul.f32 1.0, %v633
  %v635 = vrcp.pop %v576
  %v636 = vmul.f32 1.0, %v635
  %v637 = vrcp.pop %v577
  %v638 = vmul.f32 1.0, %v637
  %v639 = vrcp.pop %v578
  %v640 = vmul.f32 1.0, %v639
  %v641 = vrcp.pop %v579
  %v642 = vmul.f32 1.0, %v641
  %v643 = vrcp.pop %v580
  %v644 = vmul.f32 1.0, %v643
  %vm645 = vcmask 7168
  %646 = vst.msk [vmem:[%s4] sm:$0xff] %vm645, %v582
  %647 = vst.msk [vmem:[%s4 + $0x8] sm:$0xff] %vm645, %v584
  %648 = vst.msk [vmem:[%s4 + $0x10] sm:$0xff] %vm645, %v586
  %649 = vst.msk [vmem:[%s4 + $0x18] sm:$0xff] %vm645, %v588
  %650 = vst.msk [vmem:[%s4 + $0x20] sm:$0xff] %vm645, %v590
  %651 = vst.msk [vmem:[%s4 + $0x28] sm:$0xff] %vm645, %v592
  %652 = vst.msk [vmem:[%s4 + $0x30] sm:$0xff] %vm645, %v594
  %653 = vst.msk [vmem:[%s4 + $0x38] sm:$0xff] %vm645, %v596
  %654 = vst.msk [vmem:[%s4 + $0x40] sm:$0xff] %vm645, %v598
  %655 = vst.msk [vmem:[%s4 + $0x48] sm:$0xff] %vm645, %v600
  %656 = vst.msk [vmem:[%s4 + $0x50] sm:$0xff] %vm645, %v602
  %657 = vst.msk [vmem:[%s4 + $0x58] sm:$0xff] %vm645, %v604
  %658 = vst.msk [vmem:[%s4 + $0x60] sm:$0xff] %vm645, %v606
  %659 = vst.msk [vmem:[%s4 + $0x68] sm:$0xff] %vm645, %v608
  %660 = vst.msk [vmem:[%s4 + $0x70] sm:$0xff] %vm645, %v610
  %661 = vst.msk [vmem:[%s4 + $0x78] sm:$0xff] %vm645, %v612
  %662 = vst.msk [vmem:[%s4 + $0x80] sm:$0xff] %vm645, %v614
  %663 = vst.msk [vmem:[%s4 + $0x88] sm:$0xff] %vm645, %v616
  %664 = vst.msk [vmem:[%s4 + $0x90] sm:$0xff] %vm645, %v618
  %665 = vst.msk [vmem:[%s4 + $0x98] sm:$0xff] %vm645, %v620
  %666 = vst.msk [vmem:[%s4 + $0xa0] sm:$0xff] %vm645, %v622
  %667 = vst.msk [vmem:[%s4 + $0xa8] sm:$0xff] %vm645, %v624
  %668 = vst.msk [vmem:[%s4 + $0xb0] sm:$0xff] %vm645, %v626
  %669 = vst.msk [vmem:[%s4 + $0xb8] sm:$0xff] %vm645, %v628
  %670 = vst.msk [vmem:[%s4 + $0xc0] sm:$0xff] %vm645, %v630
  %671 = vst.msk [vmem:[%s4 + $0xc8] sm:$0xff] %vm645, %v632
  %672 = vst.msk [vmem:[%s4 + $0xd0] sm:$0xff] %vm645, %v634
  %673 = vst.msk [vmem:[%s4 + $0xd8] sm:$0xff] %vm645, %v636
  %674 = vst.msk [vmem:[%s4 + $0xe0] sm:$0xff] %vm645, %v638
  %675 = vst.msk [vmem:[%s4 + $0xe8] sm:$0xff] %vm645, %v640
  %676 = vst.msk [vmem:[%s4 + $0xf0] sm:$0xff] %vm645, %v642
  %677 = vst.msk [vmem:[%s4 + $0xf8] sm:$0xff] %vm645, %v644
  // Predicated region
  $region18: #{basic_block_forward.24} parent=0 // pred_check
    _
  $region19: #{basic_block_forward.24} parent=0 // pred_check_branch
    %679 = sbr.rel (0) target = $region21
  $region20: #{basic_block_forward.24} parent=0 // pred_region
    _
  $region21: #{basic_block_forward.24} parent=0 // pred_fallthru
    _
  // Predicated region
  $region22: #{basic_block_forward.24} parent=0 // pred_check
    _
  $region23: #{basic_block_forward.24} parent=0 // pred_check_branch
    %681 = sbr.rel (0) target = $region25
  $region24: #{basic_block_forward.24} parent=0 // pred_region
    _
  $region25: #{basic_block_forward.24} parent=0 // pred_fallthru
    _

// kernel: basic_block_forward.21
$region0: #{basic_block_forward.21}
  #allocation0 [shape = 'u32[]', space=smem, size = 0x4, offset = 0x4, fixed_abs, tag = 'smem constant byte address 0x4 - core index']
  #allocation1 [shape = 'u32[144,128]{1,0:T(1,128)}', space=vmem, size = 0x12000, scoped, tag = 'internal scratch']
  %s0 = inlined_call_operand.vmem [shape: bf16[2,16,128], index: 0, kind: input, shape index: {}]
  %s1 = inlined_call_operand.vmem [shape: f32[2,2,128], index: 1, kind: output, shape index: {}]
  %s2 = sld [smem:[#allocation0]]
  $region37: #{basic_block_forward.21} parent=0
    _
  %s4 = ssub.s32 1, %s2
  %s5 = scalar_select 0, %s4, %s2
  loop: start=0, step=1, limit=4
  $region2: #{basic_block_forward.21} parent=0 // loop_pre_header
    _
  $region3: #{basic_block_forward.21} parent=0 // loop_header
    %s7 = sphi 0, %s11
    %p8 = scmp.ge.s32.totalorder %s7, 4
    %s17 = sphi 0, %s19
    %s20 = sphi 0, %s17
    %s21 = sphi 0, %s20
    %s37 = sphi 0, %s21
    %s43 = sphi 0, %s45
    %s46 = sphi 0, %s43
    %s47 = sphi 0, %s46
    %s63 = sphi 0, %s47
  $region4: #{basic_block_forward.21} parent=0 // loop_header_branch
    %10 = sbr.rel (%p8) target = $region8
  $region5: #{basic_block_forward.21} parent=0 // loop_body
    %s12 = ssub.s32 %s7, 1
    %s13 = ssub.s32 %s7, 2
    %s14 = sadd.s32 %s7, 1
    %s15 = ssub.s32 %s7, %s14
    %p16 = scmp.eq.s32.totalorder %s15, 0
    %s18 = sadd.s32 %s17, 1
    %s19 = scalar_select %p16, %s17, %s18
    %p22 = pneg %p16
    %p23 = scmp.eq.s32.totalorder %s7, 1
    %p24 = por %p22, %p23
    %p25 = scmp.ne.s32.totalorder %s17, %s20
    %p26 = scmp.eq.s32.totalorder %s7, 0
    %p27 = por %p25, %p26
    %p28 = scmp.ne.s32.totalorder %s17, %s20
    %p29 = scmp.eq.s32.totalorder %s12, 1
    %p30 = por %p28, %p29
    %p31 = scmp.ne.s32.totalorder %s20, %s21
    %p32 = scmp.eq.s32.totalorder %s12, 0
    %p33 = por %p31, %p32
    %p34 = scmp.ne.s32.totalorder %s20, %s21
    %p35 = scmp.eq.s32.totalorder %s13, 1
    %p36 = por %p34, %p35
    %p38 = scmp.ne.s32.totalorder %s21, %s37
    %p39 = scmp.eq.s32.totalorder %s13, 0
    %p40 = por %p38, %p39
    %s41 = ssub.s32 %s7, %s14
    %p42 = scmp.eq.s32.totalorder %s41, 0
    %s44 = sadd.s32 %s43, 1
    %s45 = scalar_select %p42, %s43, %s44
    %p48 = pneg %p42
    %p49 = scmp.eq.s32.totalorder %s7, 1
    %p50 = por %p48, %p49
    %p51 = scmp.ne.s32.totalorder %s43, %s46
    %p52 = scmp.eq.s32.totalorder %s7, 0
    %p53 = por %p51, %p52
    %p54 = scmp.ne.s32.totalorder %s43, %s46
    %p55 = scmp.eq.s32.totalorder %s12, 1
    %p56 = por %p54, %p55
    %p57 = scmp.ne.s32.totalorder %s46, %s47
    %p58 = scmp.eq.s32.totalorder %s12, 0
    %p59 = por %p57, %p58
    %p60 = scmp.ne.s32.totalorder %s46, %s47
    %p61 = scmp.eq.s32.totalorder %s13, 1
    %p62 = por %p60, %p61
    %p64 = scmp.ne.s32.totalorder %s47, %s63
    %p65 = scmp.eq.s32.totalorder %s13, 0
    %p66 = por %p64, %p65
    %p67 = scmp.le.s32.totalorder 1, %s7
    %p68 = scmp.lt.s32.totalorder %s7, 3
    %p69 = pnand %p67, %p68
    %p70 = pneg %p69
    // Predicated region
    $region9: #{basic_block_forward.21} parent=5 // pred_check
      _
    $region10: #{basic_block_forward.21} parent=5 // pred_check_branch
      %72 = sbr.rel (%p69) target = $region12
    $region11: #{basic_block_forward.21} parent=5 // pred_region
      %s73 = ssub.s32 %s7, 1
    $region12: #{basic_block_forward.21} parent=5 // pred_fallthru
      _
    %p74 = scmp.lt.s32.totalorder %s7, 2
    // Predicated region
    $region13: #{basic_block_forward.21} parent=5 // pred_check
      %p75 = pneg %p74
    $region14: #{basic_block_forward.21} parent=5 // pred_check_branch
      %77 = sbr.rel (%p75) target = $region16
    $region15: #{basic_block_forward.21} parent=5 // pred_region
      // Predicated region
      $region17: #{basic_block_forward.21} parent=15 // pred_check
        %p78 = pneg %p27
      $region18: #{basic_block_forward.21} parent=15 // pred_check_branch
        %80 = sbr.rel (%p78) target = $region20
      $region19: #{basic_block_forward.21} parent=15 // pred_region
        %p81 = scmp.lt.s32.totalorder %s7, 1
        %s82 = scalar_select %p81, %s7, 1
        %s83 = smul.addr %s82, 2
        %s84 = smul.addr %s83, 4
        %s85 = scalar_lea.vmem %s0, %s84
      $region20: #{basic_block_forward.21} parent=15 // pred_fallthru
        _
    $region16: #{basic_block_forward.21} parent=5 // pred_fallthru
      _
    %p86 = scmp.le.s32.totalorder 1, %s7
    %p87 = scmp.lt.s32.totalorder %s7, 3
    %p88 = pnand %p86, %p87
    %p89 = pneg %p88
    // Predicated region
    $region21: #{basic_block_forward.21} parent=5 // pred_check
      _
    $region22: #{basic_block_forward.21} parent=5 // pred_check_branch
      %91 = sbr.rel (%p88) target = $region24
    $region23: #{basic_block_forward.21} parent=5 // pred_region
      %s92 = ssub.s32 %s7, 1
      %p93 = scmp.lt.s32.totalorder %s12, 1
      %s94 = scalar_select %p93, %s12, 1
      %s95 = smul.addr %s94, 2
      %s96 = smul.addr %s95, 4
      %s97 = scalar_lea.vmem %s0, %s96
      %p98 = pneg %p33
      %p99 = pneg %p30
      %p100 = pneg %p59
      %p101 = pneg %p56
      %p102 = scmp.lt.s32.totalorder %s12, 1
      %s103 = scalar_select %p102, %s12, 1
      %s104 = smul.addr %s103, 2
      %s105 = scalar_lea.vmem %s1, %s104
      %p106 = scmp.lt.s32.totalorder %s12, 1
      %s107 = scalar_select %p106, %s12, 1
      %s108 = smul.addr %s107, 2
      %s109 = smul.addr %s108, 4
      %s110 = scalar_lea.vmem %s0, %s109
      %p111 = scmp.lt.s32.totalorder %s12, 1
      %s112 = scalar_select %p111, %s12, 1
      %s113 = smul.addr %s112, 2
      %s114 = scalar_lea.vmem %s1, %s113
      %v115 = vld [vmem:[%s110] sm:$0xf]
      %v116 = vld [vmem:[%s110 + $0x4] sm:$0xf]
      %v117 = vunpack.c.l.bf16 %v115
      %v118 = vunpack.c.l.bf16 %v116
      %v119 = vmax.f32 %v117, %v118
      %v120 = vrot.slane %v119, 4
      %v121 = vmax.f32 %v119, %v120
      %v122 = vrot.slane %v121, 2
      %v123 = vmax.f32 %v121, %v122
      %v124 = vrot.slane %v123, 1
      %v125 = vmax.f32 %v123, %v124
      %126 = vst [vmem:[%s114] sm:$0x1] %v125
      %v127 = vadd.f32 %v117, %v118
      %v128 = vrot.slane %v127, 4
      %v129 = vadd.f32 %v127, %v128
      %v130 = vrot.slane %v129, 2
      %v131 = vadd.f32 %v129, %v130
      %v132 = vrot.slane %v131, 1
      %v133 = vadd.f32 %v131, %v132
      %v134 = vrcp.pop 16.0
      %v135 = vmul.f32 %v133, %v134
      %136 = vst [vmem:[%s114 + $0x1] sm:$0x1] %v135
      %p137 = scmp.lt.s32.totalorder %s12, 1
      %s138 = scalar_select %p137, %s12, 1
      %s139 = smul.addr %s138, 2
      %s140 = scalar_lea.vmem %s1, %s139
      // Predicated region
      $region25: #{basic_block_forward.21} parent=23 // pred_check
        %p141 = pneg %p56
      $region26: #{basic_block_forward.21} parent=23 // pred_check_branch
        %143 = sbr.rel (%p141) target = $region28
      $region27: #{basic_block_forward.21} parent=23 // pred_region
        _
      $region28: #{basic_block_forward.21} parent=23 // pred_fallthru
        _
    $region24: #{basic_block_forward.21} parent=5 // pred_fallthru
      _
    %p144 = scmp.le.s32.totalorder 2, %s7
    // Predicated region
    $region29: #{basic_block_forward.21} parent=5 // pred_check
      %p145 = pneg %p144
    $region30: #{basic_block_forward.21} parent=5 // pred_check_branch
      %147 = sbr.rel (%p145) target = $region32
    $region31: #{basic_block_forward.21} parent=5 // pred_region
      %s148 = ssub.s32 %s7, 2
      // Predicated region
      $region33: #{basic_block_forward.21} parent=31 // pred_check
        %p149 = pneg %p62
      $region34: #{basic_block_forward.21} parent=31 // pred_check_branch
        %151 = sbr.rel (%p149) target = $region36
      $region35: #{basic_block_forward.21} parent=31 // pred_region
        %p152 = scmp.lt.s32.totalorder %s13, 1
        %s153 = scalar_select %p152, %s13, 1
        %s154 = smul.addr %s153, 2
        %s155 = scalar_lea.vmem %s1, %s154
      $region36: #{basic_block_forward.21} parent=31 // pred_fallthru
        _
    $region32: #{basic_block_forward.21} parent=5 // pred_fallthru
      _
  $region6: #{basic_block_forward.21} parent=0 // loop_footer
    %s11 = sadd.s32 1, %s7
  $region7: #{basic_block_forward.21} parent=0 // loop_footer_branch
    %6 = sbr.rel target = $region3
  $region8: #{basic_block_forward.21} parent=0 // loop_exit
    _

// kernel: basic_block_forward.19
$region0: #{basic_block_forward.19}
  #allocation0 [shape = 'u32[]', space=smem, size = 0x4, offset = 0x4, fixed_abs, tag = 'smem constant byte address 0x4 - core index']
  #allocation1 [shape = 'u32[144,128]{1,0:T(1,128)}', space=vmem, size = 0x12000, scoped, tag = 'internal scratch']
  %s0 = inlined_call_operand.vmem [shape: bf16[512,8], index: 0, kind: input, shape index: {}]
  %s1 = inlined_call_operand.vmem [shape: f32[512,2], index: 1, kind: output, shape index: {}]
  %s2 = sld [smem:[#allocation0]]
  $region14: #{basic_block_forward.19} parent=0
    _
  %s4 = ssub.s32 1, %s2
  %s5 = scalar_select 0, %s4, %s2
  // Predicated region
  $region2: #{basic_block_forward.19} parent=0 // pred_check
    _
  $region3: #{basic_block_forward.19} parent=0 // pred_check_branch
    %7 = sbr.rel (0) target = $region5
  $region4: #{basic_block_forward.19} parent=0 // pred_region
    _
  $region5: #{basic_block_forward.19} parent=0 // pred_fallthru
    _
  %v8 = vld [vmem:[%s0] sm:$0xf]
  %v9 = vld [vmem:[%s0 + $0x4] sm:$0xf]
  %v10 = vld [vmem:[%s0 + $0x8] sm:$0xf]
  %v11 = vld [vmem:[%s0 + $0xc] sm:$0xf]
  %v12 = vld [vmem:[%s0 + $0x10] sm:$0xf]
  %v13 = vld [vmem:[%s0 + $0x14] sm:$0xf]
  %v14 = vld [vmem:[%s0 + $0x18] sm:$0xf]
  %v15 = vld [vmem:[%s0 + $0x1c] sm:$0xf]
  %v16 = vld [vmem:[%s0 + $0x20] sm:$0xf]
  %v17 = vld [vmem:[%s0 + $0x24] sm:$0xf]
  %v18 = vld [vmem:[%s0 + $0x28] sm:$0xf]
  %v19 = vld [vmem:[%s0 + $0x2c] sm:$0xf]
  %v20 = vld [vmem:[%s0 + $0x30] sm:$0xf]
  %v21 = vld [vmem:[%s0 + $0x34] sm:$0xf]
  %v22 = vld [vmem:[%s0 + $0x38] sm:$0xf]
  %v23 = vld [vmem:[%s0 + $0x3c] sm:$0xf]
  %v24 = vld [vmem:[%s0 + $0x40] sm:$0xf]
  %v25 = vld [vmem:[%s0 + $0x44] sm:$0xf]
  %v26 = vld [vmem:[%s0 + $0x48] sm:$0xf]
  %v27 = vld [vmem:[%s0 + $0x4c] sm:$0xf]
  %v28 = vld [vmem:[%s0 + $0x50] sm:$0xf]
  %v29 = vld [vmem:[%s0 + $0x54] sm:$0xf]
  %v30 = vld [vmem:[%s0 + $0x58] sm:$0xf]
  %v31 = vld [vmem:[%s0 + $0x5c] sm:$0xf]
  %v32 = vld [vmem:[%s0 + $0x60] sm:$0xf]
  %v33 = vld [vmem:[%s0 + $0x64] sm:$0xf]
  %v34 = vld [vmem:[%s0 + $0x68] sm:$0xf]
  %v35 = vld [vmem:[%s0 + $0x6c] sm:$0xf]
  %v36 = vld [vmem:[%s0 + $0x70] sm:$0xf]
  %v37 = vld [vmem:[%s0 + $0x74] sm:$0xf]
  %v38 = vld [vmem:[%s0 + $0x78] sm:$0xf]
  %v39 = vld [vmem:[%s0 + $0x7c] sm:$0xf]
  %v40 = vld [vmem:[%s0 + $0x80] sm:$0xf]
  %v41 = vld [vmem:[%s0 + $0x84] sm:$0xf]
  %v42 = vld [vmem:[%s0 + $0x88] sm:$0xf]
  %v43 = vld [vmem:[%s0 + $0x8c] sm:$0xf]
  %v44 = vld [vmem:[%s0 + $0x90] sm:$0xf]
  %v45 = vld [vmem:[%s0 + $0x94] sm:$0xf]
  %v46 = vld [vmem:[%s0 + $0x98] sm:$0xf]
  %v47 = vld [vmem:[%s0 + $0x9c] sm:$0xf]
  %v48 = vld [vmem:[%s0 + $0xa0] sm:$0xf]
  %v49 = vld [vmem:[%s0 + $0xa4] sm:$0xf]
  %v50 = vld [vmem:[%s0 + $0xa8] sm:$0xf]
  %v51 = vld [vmem:[%s0 + $0xac] sm:$0xf]
  %v52 = vld [vmem:[%s0 + $0xb0] sm:$0xf]
  %v53 = vld [vmem:[%s0 + $0xb4] sm:$0xf]
  %v54 = vld [vmem:[%s0 + $0xb8] sm:$0xf]
  %v55 = vld [vmem:[%s0 + $0xbc] sm:$0xf]
  %v56 = vld [vmem:[%s0 + $0xc0] sm:$0xf]
  %v57 = vld [vmem:[%s0 + $0xc4] sm:$0xf]
  %v58 = vld [vmem:[%s0 + $0xc8] sm:$0xf]
  %v59 = vld [vmem:[%s0 + $0xcc] sm:$0xf]
  %v60 = vld [vmem:[%s0 + $0xd0] sm:$0xf]
  %v61 = vld [vmem:[%s0 + $0xd4] sm:$0xf]
  %v62 = vld [vmem:[%s0 + $0xd8] sm:$0xf]
  %v63 = vld [vmem:[%s0 + $0xdc] sm:$0xf]
  %v64 = vld [vmem:[%s0 + $0xe0] sm:$0xf]
  %v65 = vld [vmem:[%s0 + $0xe4] sm:$0xf]
  %v66 = vld [vmem:[%s0 + $0xe8] sm:$0xf]
  %v67 = vld [vmem:[%s0 + $0xec] sm:$0xf]
  %v68 = vld [vmem:[%s0 + $0xf0] sm:$0xf]
  %v69 = vld [vmem:[%s0 + $0xf4] sm:$0xf]
  %v70 = vld [vmem:[%s0 + $0xf8] sm:$0xf]
  %v71 = vld [vmem:[%s0 + $0xfc] sm:$0xf]
  %v72 = vunpack.c.l.bf16 %v8
  %v73 = vunpack.c.l.bf16 %v9
  %v74 = vunpack.c.l.bf16 %v10
  %v75 = vunpack.c.l.bf16 %v11
  %v76 = vunpack.c.l.bf16 %v12
  %v77 = vunpack.c.l.bf16 %v13
  %v78 = vunpack.c.l.bf16 %v14
  %v79 = vunpack.c.l.bf16 %v15
  %v80 = vunpack.c.l.bf16 %v16
  %v81 = vunpack.c.l.bf16 %v17
  %v82 = vunpack.c.l.bf16 %v18
  %v83 = vunpack.c.l.bf16 %v19
  %v84 = vunpack.c.l.bf16 %v20
  %v85 = vunpack.c.l.bf16 %v21
  %v86 = vunpack.c.l.bf16 %v22
  %v87 = vunpack.c.l.bf16 %v23
  %v88 = vunpack.c.l.bf16 %v24
  %v89 = vunpack.c.l.bf16 %v25
  %v90 = vunpack.c.l.bf16 %v26
  %v91 = vunpack.c.l.bf16 %v27
  %v92 = vunpack.c.l.bf16 %v28
  %v93 = vunpack.c.l.bf16 %v29
  %v94 = vunpack.c.l.bf16 %v30
  %v95 = vunpack.c.l.bf16 %v31
  %v96 = vunpack.c.l.bf16 %v32
  %v97 = vunpack.c.l.bf16 %v33
  %v98 = vunpack.c.l.bf16 %v34
  %v99 = vunpack.c.l.bf16 %v35
  %v100 = vunpack.c.l.bf16 %v36
  %v101 = vunpack.c.l.bf16 %v37
  %v102 = vunpack.c.l.bf16 %v38
  %v103 = vunpack.c.l.bf16 %v39
  %v104 = vunpack.c.l.bf16 %v40
  %v105 = vunpack.c.l.bf16 %v41
  %v106 = vunpack.c.l.bf16 %v42
  %v107 = vunpack.c.l.bf16 %v43
  %v108 = vunpack.c.l.bf16 %v44
  %v109 = vunpack.c.l.bf16 %v45
  %v110 = vunpack.c.l.bf16 %v46
  %v111 = vunpack.c.l.bf16 %v47
  %v112 = vunpack.c.l.bf16 %v48
  %v113 = vunpack.c.l.bf16 %v49
  %v114 = vunpack.c.l.bf16 %v50
  %v115 = vunpack.c.l.bf16 %v51
  %v116 = vunpack.c.l.bf16 %v52
  %v117 = vunpack.c.l.bf16 %v53
  %v118 = vunpack.c.l.bf16 %v54
  %v119 = vunpack.c.l.bf16 %v55
  %v120 = vunpack.c.l.bf16 %v56
  %v121 = vunpack.c.l.bf16 %v57
  %v122 = vunpack.c.l.bf16 %v58
  %v123 = vunpack.c.l.bf16 %v59
  %v124 = vunpack.c.l.bf16 %v60
  %v125 = vunpack.c.l.bf16 %v61
  %v126 = vunpack.c.l.bf16 %v62
  %v127 = vunpack.c.l.bf16 %v63
  %v128 = vunpack.c.l.bf16 %v64
  %v129 = vunpack.c.l.bf16 %v65
  %v130 = vunpack.c.l.bf16 %v66
  %v131 = vunpack.c.l.bf16 %v67
  %v132 = vunpack.c.l.bf16 %v68
  %v133 = vunpack.c.l.bf16 %v69
  %v134 = vunpack.c.l.bf16 %v70
  %v135 = vunpack.c.l.bf16 %v71
  %vm136 = vcmask 64512
  %v137 = vsel %vm136, %v72, -inf
  %138 = vmax.xlane.f32.xlu0 %v137
  %v139 = vpop.xlane.xlu0 %138
  %v140 = vsel %vm136, %v73, -inf
  %141 = vmax.xlane.f32.xlu0 %v140
  %v142 = vpop.xlane.xlu0 %141
  %v143 = vsel %vm136, %v74, -inf
  %144 = vmax.xlane.f32.xlu0 %v143
  %v145 = vpop.xlane.xlu0 %144
  %v146 = vsel %vm136, %v75, -inf
  %147 = vmax.xlane.f32.xlu0 %v146
  %v148 = vpop.xlane.xlu0 %147
  %v149 = vsel %vm136, %v76, -inf
  %150 = vmax.xlane.f32.xlu0 %v149
  %v151 = vpop.xlane.xlu0 %150
  %v152 = vsel %vm136, %v77, -inf
  %153 = vmax.xlane.f32.xlu0 %v152
  %v154 = vpop.xlane.xlu0 %153
  %v155 = vsel %vm136, %v78, -inf
  %156 = vmax.xlane.f32.xlu0 %v155
  %v157 = vpop.xlane.xlu0 %156
  %v158 = vsel %vm136, %v79, -inf
  %159 = vmax.xlane.f32.xlu0 %v158
  %v160 = vpop.xlane.xlu0 %159
  %v161 = vsel %vm136, %v80, -inf
  %162 = vmax.xlane.f32.xlu0 %v161
  %v163 = vpop.xlane.xlu0 %162
  %v164 = vsel %vm136, %v81, -inf
  %165 = vmax.xlane.f32.xlu0 %v164
  %v166 = vpop.xlane.xlu0 %165
  %v167 = vsel %vm136, %v82, -inf
  %168 = vmax.xlane.f32.xlu0 %v167
  %v169 = vpop.xlane.xlu0 %168
  %v170 = vsel %vm136, %v83, -inf
  %171 = vmax.xlane.f32.xlu0 %v170
  %v172 = vpop.xlane.xlu0 %171
  %v173 = vsel %vm136, %v84, -inf
  %174 = vmax.xlane.f32.xlu0 %v173
  %v175 = vpop.xlane.xlu0 %174
  %v176 = vsel %vm136, %v85, -inf
  %177 = vmax.xlane.f32.xlu0 %v176
  %v178 = vpop.xlane.xlu0 %177
  %v179 = vsel %vm136, %v86, -inf
  %180 = vmax.xlane.f32.xlu0 %v179
  %v181 = vpop.xlane.xlu0 %180
  %v182 = vsel %vm136, %v87, -inf
  %183 = vmax.xlane.f32.xlu0 %v182
  %v184 = vpop.xlane.xlu0 %183
  %v185 = vsel %vm136, %v88, -inf
  %186 = vmax.xlane.f32.xlu0 %v185
  %v187 = vpop.xlane.xlu0 %186
  %v188 = vsel %vm136, %v89, -inf
  %189 = vmax.xlane.f32.xlu0 %v188
  %v190 = vpop.xlane.xlu0 %189
  %v191 = vsel %vm136, %v90, -inf
  %192 = vmax.xlane.f32.xlu0 %v191
  %v193 = vpop.xlane.xlu0 %192
  %v194 = vsel %vm136, %v91, -inf
  %195 = vmax.xlane.f32.xlu0 %v194
  %v196 = vpop.xlane.xlu0 %195
  %v197 = vsel %vm136, %v92, -inf
  %198 = vmax.xlane.f32.xlu0 %v197
  %v199 = vpop.xlane.xlu0 %198
  %v200 = vsel %vm136, %v93, -inf
  %201 = vmax.xlane.f32.xlu0 %v200
  %v202 = vpop.xlane.xlu0 %201
  %v203 = vsel %vm136, %v94, -inf
  %204 = vmax.xlane.f32.xlu0 %v203
  %v205 = vpop.xlane.xlu0 %204
  %v206 = vsel %vm136, %v95, -inf
  %207 = vmax.xlane.f32.xlu0 %v206
  %v208 = vpop.xlane.xlu0 %207
  %v209 = vsel %vm136, %v96, -inf
  %210 = vmax.xlane.f32.xlu0 %v209
  %v211 = vpop.xlane.xlu0 %210
  %v212 = vsel %vm136, %v97, -inf
  %213 = vmax.xlane.f32.xlu0 %v212
  %v214 = vpop.xlane.xlu0 %213
  %v215 = vsel %vm136, %v98, -inf
  %216 = vmax.xlane.f32.xlu0 %v215
  %v217 = vpop.xlane.xlu0 %216
  %v218 = vsel %vm136, %v99, -inf
  %219 = vmax.xlane.f32.xlu0 %v218
  %v220 = vpop.xlane.xlu0 %219
  %v221 = vsel %vm136, %v100, -inf
  %222 = vmax.xlane.f32.xlu0 %v221
  %v223 = vpop.xlane.xlu0 %222
  %v224 = vsel %vm136, %v101, -inf
  %225 = vmax.xlane.f32.xlu0 %v224
  %v226 = vpop.xlane.xlu0 %225
  %v227 = vsel %vm136, %v102, -inf
  %228 = vmax.xlane.f32.xlu0 %v227
  %v229 = vpop.xlane.xlu0 %228
  %v230 = vsel %vm136, %v103, -inf
  %231 = vmax.xlane.f32.xlu0 %v230
  %v232 = vpop.xlane.xlu0 %231
  %v233 = vsel %vm136, %v104, -inf
  %234 = vmax.xlane.f32.xlu0 %v233
  %v235 = vpop.xlane.xlu0 %234
  %v236 = vsel %vm136, %v105, -inf
  %237 = vmax.xlane.f32.xlu0 %v236
  %v238 = vpop.xlane.xlu0 %237
  %v239 = vsel %vm136, %v106, -inf
  %240 = vmax.xlane.f32.xlu0 %v239
  %v241 = vpop.xlane.xlu0 %240
  %v242 = vsel %vm136, %v107, -inf
  %243 = vmax.xlane.f32.xlu0 %v242
  %v244 = vpop.xlane.xlu0 %243
  %v245 = vsel %vm136, %v108, -inf
  %246 = vmax.xlane.f32.xlu0 %v245
  %v247 = vpop.xlane.xlu0 %246
  %v248 = vsel %vm136, %v109, -inf
  %249 = vmax.xlane.f32.xlu0 %v248
  %v250 = vpop.xlane.xlu0 %249
  %v251 = vsel %vm136, %v110, -inf
  %252 = vmax.xlane.f32.xlu0 %v251
  %v253 = vpop.xlane.xlu0 %252
  %v254 = vsel %vm136, %v111, -inf
  %255 = vmax.xlane.f32.xlu0 %v254
  %v256 = vpop.xlane.xlu0 %255
  %v257 = vsel %vm136, %v112, -inf
  %258 = vmax.xlane.f32.xlu0 %v257
  %v259 = vpop.xlane.xlu0 %258
  %v260 = vsel %vm136, %v113, -inf
  %261 = vmax.xlane.f32.xlu0 %v260
  %v262 = vpop.xlane.xlu0 %261
  %v263 = vsel %vm136, %v114, -inf
  %264 = vmax.xlane.f32.xlu0 %v263
  %v265 = vpop.xlane.xlu0 %264
  %v266 = vsel %vm136, %v115, -inf
  %267 = vmax.xlane.f32.xlu0 %v266
  %v268 = vpop.xlane.xlu0 %267
  %v269 = vsel %vm136, %v116, -inf
  %270 = vmax.xlane.f32.xlu0 %v269
  %v271 = vpop.xlane.xlu0 %270
  %v272 = vsel %vm136, %v117, -inf
  %273 = vmax.xlane.f32.xlu0 %v272
  %v274 = vpop.xlane.xlu0 %273
  %v275 = vsel %vm136, %v118, -inf
  %276 = vmax.xlane.f32.xlu0 %v275
  %v277 = vpop.xlane.xlu0 %276
  %v278 = vsel %vm136, %v119, -inf
  %279 = vmax.xlane.f32.xlu0 %v278
  %v280 = vpop.xlane.xlu0 %279
  %v281 = vsel %vm136, %v120, -inf
  %282 = vmax.xlane.f32.xlu0 %v281
  %v283 = vpop.xlane.xlu0 %282
  %v284 = vsel %vm136, %v121, -inf
  %285 = vmax.xlane.f32.xlu0 %v284
  %v286 = vpop.xlane.xlu0 %285
  %v287 = vsel %vm136, %v122, -inf
  %288 = vmax.xlane.f32.xlu0 %v287
  %v289 = vpop.xlane.xlu0 %288
  %v290 = vsel %vm136, %v123, -inf
  %291 = vmax.xlane.f32.xlu0 %v290
  %v292 = vpop.xlane.xlu0 %291
  %v293 = vsel %vm136, %v124, -inf
  %294 = vmax.xlane.f32.xlu0 %v293
  %v295 = vpop.xlane.xlu0 %294
  %v296 = vsel %vm136, %v125, -inf
  %297 = vmax.xlane.f32.xlu0 %v296
  %v298 = vpop.xlane.xlu0 %297
  %v299 = vsel %vm136, %v126, -inf
  %300 = vmax.xlane.f32.xlu0 %v299
  %v301 = vpop.xlane.xlu0 %300
  %v302 = vsel %vm136, %v127, -inf
  %303 = vmax.xlane.f32.xlu0 %v302
  %v304 = vpop.xlane.xlu0 %303
  %v305 = vsel %vm136, %v128, -inf
  %306 = vmax.xlane.f32.xlu0 %v305
  %v307 = vpop.xlane.xlu0 %306
  %v308 = vsel %vm136, %v129, -inf
  %309 = vmax.xlane.f32.xlu0 %v308
  %v310 = vpop.xlane.xlu0 %309
  %v311 = vsel %vm136, %v130, -inf
  %312 = vmax.xlane.f32.xlu0 %v311
  %v313 = vpop.xlane.xlu0 %312
  %v314 = vsel %vm136, %v131, -inf
  %315 = vmax.xlane.f32.xlu0 %v314
  %v316 = vpop.xlane.xlu0 %315
  %v317 = vsel %vm136, %v132, -inf
  %318 = vmax.xlane.f32.xlu0 %v317
  %v319 = vpop.xlane.xlu0 %318
  %v320 = vsel %vm136, %v133, -inf
  %321 = vmax.xlane.f32.xlu0 %v320
  %v322 = vpop.xlane.xlu0 %321
  %v323 = vsel %vm136, %v134, -inf
  %324 = vmax.xlane.f32.xlu0 %v323
  %v325 = vpop.xlane.xlu0 %324
  %v326 = vsel %vm136, %v135, -inf
  %327 = vmax.xlane.f32.xlu0 %v326
  %v328 = vpop.xlane.xlu0 %327
  %vm329 = vcmask 7168
  %330 = vst.msk [vmem:[%s1] sm:$0xff] %vm329, %v139
  %331 = vst.msk [vmem:[%s1 + $0x8] sm:$0xff] %vm329, %v142
  %332 = vst.msk [vmem:[%s1 + $0x10] sm:$0xff] %vm329, %v145
  %333 = vst.msk [vmem:[%s1 + $0x18] sm:$0xff] %vm329, %v148
  %334 = vst.msk [vmem:[%s1 + $0x20] sm:$0xff] %vm329, %v151
  %335 = vst.msk [vmem:[%s1 + $0x28] sm:$0xff] %vm329, %v154
  %336 = vst.msk [vmem:[%s1 + $0x30] sm:$0xff] %vm329, %v157
  %337 = vst.msk [vmem:[%s1 + $0x38] sm:$0xff] %vm329, %v160
  %338 = vst.msk [vmem:[%s1 + $0x40] sm:$0xff] %vm329, %v163
  %339 = vst.msk [vmem:[%s1 + $0x48] sm:$0xff] %vm329, %v166
  %340 = vst.msk [vmem:[%s1 + $0x50] sm:$0xff] %vm329, %v169
  %341 = vst.msk [vmem:[%s1 + $0x58] sm:$0xff] %vm329, %v172
  %342 = vst.msk [vmem:[%s1 + $0x60] sm:$0xff] %vm329, %v175
  %343 = vst.msk [vmem:[%s1 + $0x68] sm:$0xff] %vm329, %v178
  %344 = vst.msk [vmem:[%s1 + $0x70] sm:$0xff] %vm329, %v181
  %345 = vst.msk [vmem:[%s1 + $0x78] sm:$0xff] %vm329, %v184
  %346 = vst.msk [vmem:[%s1 + $0x80] sm:$0xff] %vm329, %v187
  %347 = vst.msk [vmem:[%s1 + $0x88] sm:$0xff] %vm329, %v190
  %348 = vst.msk [vmem:[%s1 + $0x90] sm:$0xff] %vm329, %v193
  %349 = vst.msk [vmem:[%s1 + $0x98] sm:$0xff] %vm329, %v196
  %350 = vst.msk [vmem:[%s1 + $0xa0] sm:$0xff] %vm329, %v199
  %351 = vst.msk [vmem:[%s1 + $0xa8] sm:$0xff] %vm329, %v202
  %352 = vst.msk [vmem:[%s1 + $0xb0] sm:$0xff] %vm329, %v205
  %353 = vst.msk [vmem:[%s1 + $0xb8] sm:$0xff] %vm329, %v208
  %354 = vst.msk [vmem:[%s1 + $0xc0] sm:$0xff] %vm329, %v211
  %355 = vst.msk [vmem:[%s1 + $0xc8] sm:$0xff] %vm329, %v214
  %356 = vst.msk [vmem:[%s1 + $0xd0] sm:$0xff] %vm329, %v217
  %357 = vst.msk [vmem:[%s1 + $0xd8] sm:$0xff] %vm329, %v220
  %358 = vst.msk [vmem:[%s1 + $0xe0] sm:$0xff] %vm329, %v223
  %359 = vst.msk [vmem:[%s1 + $0xe8] sm:$0xff] %vm329, %v226
  %360 = vst.msk [vmem:[%s1 + $0xf0] sm:$0xff] %vm329, %v229
  %361 = vst.msk [vmem:[%s1 + $0xf8] sm:$0xff] %vm329, %v232
  %362 = vst.msk [vmem:[%s1 + $0x100] sm:$0xff] %vm329, %v235
  %363 = vst.msk [vmem:[%s1 + $0x108] sm:$0xff] %vm329, %v238
  %364 = vst.msk [vmem:[%s1 + $0x110] sm:$0xff] %vm329, %v241
  %365 = vst.msk [vmem:[%s1 + $0x118] sm:$0xff] %vm329, %v244
  %366 = vst.msk [vmem:[%s1 + $0x120] sm:$0xff] %vm329, %v247
  %367 = vst.msk [vmem:[%s1 + $0x128] sm:$0xff] %vm329, %v250
  %368 = vst.msk [vmem:[%s1 + $0x130] sm:$0xff] %vm329, %v253
  %369 = vst.msk [vmem:[%s1 + $0x138] sm:$0xff] %vm329, %v256
  %370 = vst.msk [vmem:[%s1 + $0x140] sm:$0xff] %vm329, %v259
  %371 = vst.msk [vmem:[%s1 + $0x148] sm:$0xff] %vm329, %v262
  %372 = vst.msk [vmem:[%s1 + $0x150] sm:$0xff] %vm329, %v265
  %373 = vst.msk [vmem:[%s1 + $0x158] sm:$0xff] %vm329, %v268
  %374 = vst.msk [vmem:[%s1 + $0x160] sm:$0xff] %vm329, %v271
  %375 = vst.msk [vmem:[%s1 + $0x168] sm:$0xff] %vm329, %v274
  %376 = vst.msk [vmem:[%s1 + $0x170] sm:$0xff] %vm329, %v277
  %377 = vst.msk [vmem:[%s1 + $0x178] sm:$0xff] %vm329, %v280
  %378 = vst.msk [vmem:[%s1 + $0x180] sm:$0xff] %vm329, %v283
  %379 = vst.msk [vmem:[%s1 + $0x188] sm:$0xff] %vm329, %v286
  %380 = vst.msk [vmem:[%s1 + $0x190] sm:$0xff] %vm329, %v289
  %381 = vst.msk [vmem:[%s1 + $0x198] sm:$0xff] %vm329, %v292
  %382 = vst.msk [vmem:[%s1 + $0x1a0] sm:$0xff] %vm329, %v295
  %383 = vst.msk [vmem:[%s1 + $0x1a8] sm:$0xff] %vm329, %v298
  %384 = vst.msk [vmem:[%s1 + $0x1b0] sm:$0xff] %vm329, %v301
  %385 = vst.msk [vmem:[%s1 + $0x1b8] sm:$0xff] %vm329, %v304
  %386 = vst.msk [vmem:[%s1 + $0x1c0] sm:$0xff] %vm329, %v307
  %387 = vst.msk [vmem:[%s1 + $0x1c8] sm:$0xff] %vm329, %v310
  %388 = vst.msk [vmem:[%s1 + $0x1d0] sm:$0xff] %vm329, %v313
  %389 = vst.msk [vmem:[%s1 + $0x1d8] sm:$0xff] %vm329, %v316
  %390 = vst.msk [vmem:[%s1 + $0x1e0] sm:$0xff] %vm329, %v319
  %391 = vst.msk [vmem:[%s1 + $0x1e8] sm:$0xff] %vm329, %v322
  %392 = vst.msk [vmem:[%s1 + $0x1f0] sm:$0xff] %vm329, %v325
  %393 = vst.msk [vmem:[%s1 + $0x1f8] sm:$0xff] %vm329, %v328
  %v394 = vsel %vm136, %v72, 0.0
  %395 = vadd.xlane.f32.xlu0 %v394
  %v396 = vpop.xlane.xlu0 %395
  %v397 = vsel %vm136, %v73, 0.0
  %398 = vadd.xlane.f32.xlu0 %v397
  %v399 = vpop.xlane.xlu0 %398
  %v400 = vsel %vm136, %v74, 0.0
  %401 = vadd.xlane.f32.xlu0 %v400
  %v402 = vpop.xlane.xlu0 %401
  %v403 = vsel %vm136, %v75, 0.0
  %404 = vadd.xlane.f32.xlu0 %v403
  %v405 = vpop.xlane.xlu0 %404
  %v406 = vsel %vm136, %v76, 0.0
  %407 = vadd.xlane.f32.xlu0 %v406
  %v408 = vpop.xlane.xlu0 %407
  %v409 = vsel %vm136, %v77, 0.0
  %410 = vadd.xlane.f32.xlu0 %v409
  %v411 = vpop.xlane.xlu0 %410
  %v412 = vsel %vm136, %v78, 0.0
  %413 = vadd.xlane.f32.xlu0 %v412
  %v414 = vpop.xlane.xlu0 %413
  %v415 = vsel %vm136, %v79, 0.0
  %416 = vadd.xlane.f32.xlu0 %v415
  %v417 = vpop.xlane.xlu0 %416
  %v418 = vsel %vm136, %v80, 0.0
  %419 = vadd.xlane.f32.xlu0 %v418
  %v420 = vpop.xlane.xlu0 %419
  %v421 = vsel %vm136, %v81, 0.0
  %422 = vadd.xlane.f32.xlu0 %v421
  %v423 = vpop.xlane.xlu0 %422
  %v424 = vsel %vm136, %v82, 0.0
  %425 = vadd.xlane.f32.xlu0 %v424
  %v426 = vpop.xlane.xlu0 %425
  %v427 = vsel %vm136, %v83, 0.0
  %428 = vadd.xlane.f32.xlu0 %v427
  %v429 = vpop.xlane.xlu0 %428
  %v430 = vsel %vm136, %v84, 0.0
  %431 = vadd.xlane.f32.xlu0 %v430
  %v432 = vpop.xlane.xlu0 %431
  %v433 = vsel %vm136, %v85, 0.0
  %434 = vadd.xlane.f32.xlu0 %v433
  %v435 = vpop.xlane.xlu0 %434
  %v436 = vsel %vm136, %v86, 0.0
  %437 = vadd.xlane.f32.xlu0 %v436
  %v438 = vpop.xlane.xlu0 %437
  %v439 = vsel %vm136, %v87, 0.0
  %440 = vadd.xlane.f32.xlu0 %v439
  %v441 = vpop.xlane.xlu0 %440
  %v442 = vsel %vm136, %v88, 0.0
  %443 = vadd.xlane.f32.xlu0 %v442
  %v444 = vpop.xlane.xlu0 %443
  %v445 = vsel %vm136, %v89, 0.0
  %446 = vadd.xlane.f32.xlu0 %v445
  %v447 = vpop.xlane.xlu0 %446
  %v448 = vsel %vm136, %v90, 0.0
  %449 = vadd.xlane.f32.xlu0 %v448
  %v450 = vpop.xlane.xlu0 %449
  %v451 = vsel %vm136, %v91, 0.0
  %452 = vadd.xlane.f32.xlu0 %v451
  %v453 = vpop.xlane.xlu0 %452
  %v454 = vsel %vm136, %v92, 0.0
  %455 = vadd.xlane.f32.xlu0 %v454
  %v456 = vpop.xlane.xlu0 %455
  %v457 = vsel %vm136, %v93, 0.0
  %458 = vadd.xlane.f32.xlu0 %v457
  %v459 = vpop.xlane.xlu0 %458
  %v460 = vsel %vm136, %v94, 0.0
  %461 = vadd.xlane.f32.xlu0 %v460
  %v462 = vpop.xlane.xlu0 %461
  %v463 = vsel %vm136, %v95, 0.0
  %464 = vadd.xlane.f32.xlu0 %v463
  %v465 = vpop.xlane.xlu0 %464
  %v466 = vsel %vm136, %v96, 0.0
  %467 = vadd.xlane.f32.xlu0 %v466
  %v468 = vpop.xlane.xlu0 %467
  %v469 = vsel %vm136, %v97, 0.0
  %470 = vadd.xlane.f32.xlu0 %v469
  %v471 = vpop.xlane.xlu0 %470
  %v472 = vsel %vm136, %v98, 0.0
  %473 = vadd.xlane.f32.xlu0 %v472
  %v474 = vpop.xlane.xlu0 %473
  %v475 = vsel %vm136, %v99, 0.0
  %476 = vadd.xlane.f32.xlu0 %v475
  %v477 = vpop.xlane.xlu0 %476
  %v478 = vsel %vm136, %v100, 0.0
  %479 = vadd.xlane.f32.xlu0 %v478
  %v480 = vpop.xlane.xlu0 %479
  %v481 = vsel %vm136, %v101, 0.0
  %482 = vadd.xlane.f32.xlu0 %v481
  %v483 = vpop.xlane.xlu0 %482
  %v484 = vsel %vm136, %v102, 0.0
  %485 = vadd.xlane.f32.xlu0 %v484
  %v486 = vpop.xlane.xlu0 %485
  %v487 = vsel %vm136, %v103, 0.0
  %488 = vadd.xlane.f32.xlu0 %v487
  %v489 = vpop.xlane.xlu0 %488
  %v490 = vsel %vm136, %v104, 0.0
  %491 = vadd.xlane.f32.xlu0 %v490
  %v492 = vpop.xlane.xlu0 %491
  %v493 = vsel %vm136, %v105, 0.0
  %494 = vadd.xlane.f32.xlu0 %v493
  %v495 = vpop.xlane.xlu0 %494
  %v496 = vsel %vm136, %v106, 0.0
  %497 = vadd.xlane.f32.xlu0 %v496
  %v498 = vpop.xlane.xlu0 %497
  %v499 = vsel %vm136, %v107, 0.0
  %500 = vadd.xlane.f32.xlu0 %v499
  %v501 = vpop.xlane.xlu0 %500
  %v502 = vsel %vm136, %v108, 0.0
  %503 = vadd.xlane.f32.xlu0 %v502
  %v504 = vpop.xlane.xlu0 %503
  %v505 = vsel %vm136, %v109, 0.0
  %506 = vadd.xlane.f32.xlu0 %v505
  %v507 = vpop.xlane.xlu0 %506
  %v508 = vsel %vm136, %v110, 0.0
  %509 = vadd.xlane.f32.xlu0 %v508
  %v510 = vpop.xlane.xlu0 %509
  %v511 = vsel %vm136, %v111, 0.0
  %512 = vadd.xlane.f32.xlu0 %v511
  %v513 = vpop.xlane.xlu0 %512
  %v514 = vsel %vm136, %v112, 0.0
  %515 = vadd.xlane.f32.xlu0 %v514
  %v516 = vpop.xlane.xlu0 %515
  %v517 = vsel %vm136, %v113, 0.0
  %518 = vadd.xlane.f32.xlu0 %v517
  %v519 = vpop.xlane.xlu0 %518
  %v520 = vsel %vm136, %v114, 0.0
  %521 = vadd.xlane.f32.xlu0 %v520
  %v522 = vpop.xlane.xlu0 %521
  %v523 = vsel %vm136, %v115, 0.0
  %524 = vadd.xlane.f32.xlu0 %v523
  %v525 = vpop.xlane.xlu0 %524
  %v526 = vsel %vm136, %v116, 0.0
  %527 = vadd.xlane.f32.xlu0 %v526
  %v528 = vpop.xlane.xlu0 %527
  %v529 = vsel %vm136, %v117, 0.0
  %530 = vadd.xlane.f32.xlu0 %v529
  %v531 = vpop.xlane.xlu0 %530
  %v532 = vsel %vm136, %v118, 0.0
  %533 = vadd.xlane.f32.xlu0 %v532
  %v534 = vpop.xlane.xlu0 %533
  %v535 = vsel %vm136, %v119, 0.0
  %536 = vadd.xlane.f32.xlu0 %v535
  %v537 = vpop.xlane.xlu0 %536
  %v538 = vsel %vm136, %v120, 0.0
  %539 = vadd.xlane.f32.xlu0 %v538
  %v540 = vpop.xlane.xlu0 %539
  %v541 = vsel %vm136, %v121, 0.0
  %542 = vadd.xlane.f32.xlu0 %v541
  %v543 = vpop.xlane.xlu0 %542
  %v544 = vsel %vm136, %v122, 0.0
  %545 = vadd.xlane.f32.xlu0 %v544
  %v546 = vpop.xlane.xlu0 %545
  %v547 = vsel %vm136, %v123, 0.0
  %548 = vadd.xlane.f32.xlu0 %v547
  %v549 = vpop.xlane.xlu0 %548
  %v550 = vsel %vm136, %v124, 0.0
  %551 = vadd.xlane.f32.xlu0 %v550
  %v552 = vpop.xlane.xlu0 %551
  %v553 = vsel %vm136, %v125, 0.0
  %554 = vadd.xlane.f32.xlu0 %v553
  %v555 = vpop.xlane.xlu0 %554
  %v556 = vsel %vm136, %v126, 0.0
  %557 = vadd.xlane.f32.xlu0 %v556
  %v558 = vpop.xlane.xlu0 %557
  %v559 = vsel %vm136, %v127, 0.0
  %560 = vadd.xlane.f32.xlu0 %v559
  %v561 = vpop.xlane.xlu0 %560
  %v562 = vsel %vm136, %v128, 0.0
  %563 = vadd.xlane.f32.xlu0 %v562
  %v564 = vpop.xlane.xlu0 %563
  %v565 = vsel %vm136, %v129, 0.0
  %566 = vadd.xlane.f32.xlu0 %v565
  %v567 = vpop.xlane.xlu0 %566
  %v568 = vsel %vm136, %v130, 0.0
  %569 = vadd.xlane.f32.xlu0 %v568
  %v570 = vpop.xlane.xlu0 %569
  %v571 = vsel %vm136, %v131, 0.0
  %572 = vadd.xlane.f32.xlu0 %v571
  %v573 = vpop.xlane.xlu0 %572
  %v574 = vsel %vm136, %v132, 0.0
  %575 = vadd.xlane.f32.xlu0 %v574
  %v576 = vpop.xlane.xlu0 %575
  %v577 = vsel %vm136, %v133, 0.0
  %578 = vadd.xlane.f32.xlu0 %v577
  %v579 = vpop.xlane.xlu0 %578
  %v580 = vsel %vm136, %v134, 0.0
  %581 = vadd.xlane.f32.xlu0 %v580
  %v582 = vpop.xlane.xlu0 %581
  %v583 = vsel %vm136, %v135, 0.0
  %584 = vadd.xlane.f32.xlu0 %v583
  %v585 = vpop.xlane.xlu0 %584
  %v586 = vrcp.pop 8.0
  %v587 = vmul.f32 %v396, %v586
  %v588 = vmul.f32 %v399, %v586
  %v589 = vmul.f32 %v402, %v586
  %v590 = vmul.f32 %v405, %v586
  %v591 = vmul.f32 %v408, %v586
  %v592 = vmul.f32 %v411, %v586
  %v593 = vmul.f32 %v414, %v586
  %v594 = vmul.f32 %v417, %v586
  %v595 = vmul.f32 %v420, %v586
  %v596 = vmul.f32 %v423, %v586
  %v597 = vmul.f32 %v426, %v586
  %v598 = vmul.f32 %v429, %v586
  %v599 = vmul.f32 %v432, %v586
  %v600 = vmul.f32 %v435, %v586
  %v601 = vmul.f32 %v438, %v586
  %v602 = vmul.f32 %v441, %v586
  %v603 = vmul.f32 %v444, %v586
  %v604 = vmul.f32 %v447, %v586
  %v605 = vmul.f32 %v450, %v586
  %v606 = vmul.f32 %v453, %v586
  %v607 = vmul.f32 %v456, %v586
  %v608 = vmul.f32 %v459, %v586
  %v609 = vmul.f32 %v462, %v586
  %v610 = vmul.f32 %v465, %v586
  %v611 = vmul.f32 %v468, %v586
  %v612 = vmul.f32 %v471, %v586
  %v613 = vmul.f32 %v474, %v586
  %v614 = vmul.f32 %v477, %v586
  %v615 = vmul.f32 %v480, %v586
  %v616 = vmul.f32 %v483, %v586
  %v617 = vmul.f32 %v486, %v586
  %v618 = vmul.f32 %v489, %v586
  %v619 = vmul.f32 %v492, %v586
  %v620 = vmul.f32 %v495, %v586
  %v621 = vmul.f32 %v498, %v586
  %v622 = vmul.f32 %v501, %v586
  %v623 = vmul.f32 %v504, %v586
  %v624 = vmul.f32 %v507, %v586
  %v625 = vmul.f32 %v510, %v586
  %v626 = vmul.f32 %v513, %v586
  %v627 = vmul.f32 %v516, %v586
  %v628 = vmul.f32 %v519, %v586
  %v629 = vmul.f32 %v522, %v586
  %v630 = vmul.f32 %v525, %v586
  %v631 = vmul.f32 %v528, %v586
  %v632 = vmul.f32 %v531, %v586
  %v633 = vmul.f32 %v534, %v586
  %v634 = vmul.f32 %v537, %v586
  %v635 = vmul.f32 %v540, %v586
  %v636 = vmul.f32 %v543, %v586
  %v637 = vmul.f32 %v546, %v586
  %v638 = vmul.f32 %v549, %v586
  %v639 = vmul.f32 %v552, %v586
  %v640 = vmul.f32 %v555, %v586
  %v641 = vmul.f32 %v558, %v586
  %v642 = vmul.f32 %v561, %v586
  %v643 = vmul.f32 %v564, %v586
  %v644 = vmul.f32 %v567, %v586
  %v645 = vmul.f32 %v570, %v586
  %v646 = vmul.f32 %v573, %v586
  %v647 = vmul.f32 %v576, %v586
  %v648 = vmul.f32 %v579, %v586
  %v649 = vmul.f32 %v582, %v586
  %v650 = vmul.f32 %v585, %v586
  %vm651 = vcmask 15368
  %652 = vst.msk [vmem:[%s1] sm:$0xff] %vm651, %v587
  %653 = vst.msk [vmem:[%s1 + $0x8] sm:$0xff] %vm651, %v588
  %654 = vst.msk [vmem:[%s1 + $0x10] sm:$0xff] %vm651, %v589
  %655 = vst.msk [vmem:[%s1 + $0x18] sm:$0xff] %vm651, %v590
  %656 = vst.msk [vmem:[%s1 + $0x20] sm:$0xff] %vm651, %v591
  %657 = vst.msk [vmem:[%s1 + $0x28] sm:$0xff] %vm651, %v592
  %658 = vst.msk [vmem:[%s1 + $0x30] sm:$0xff] %vm651, %v593
  %659 = vst.msk [vmem:[%s1 + $0x38] sm:$0xff] %vm651, %v594
  %660 = vst.msk [vmem:[%s1 + $0x40] sm:$0xff] %vm651, %v595
  %661 = vst.msk [vmem:[%s1 + $0x48] sm:$0xff] %vm651, %v596
  %662 = vst.msk [vmem:[%s1 + $0x50] sm:$0xff] %vm651, %v597
  %663 = vst.msk [vmem:[%s1 + $0x58] sm:$0xff] %vm651, %v598
  %664 = vst.msk [vmem:[%s1 + $0x60] sm:$0xff] %vm651, %v599
  %665 = vst.msk [vmem:[%s1 + $0x68] sm:$0xff] %vm651, %v600
  %666 = vst.msk [vmem:[%s1 + $0x70] sm:$0xff] %vm651, %v601
  %667 = vst.msk [vmem:[%s1 + $0x78] sm:$0xff] %vm651, %v602
  %668 = vst.msk [vmem:[%s1 + $0x80] sm:$0xff] %vm651, %v603
  %669 = vst.msk [vmem:[%s1 + $0x88] sm:$0xff] %vm651, %v604
  %670 = vst.msk [vmem:[%s1 + $0x90] sm:$0xff] %vm651, %v605
  %671 = vst.msk [vmem:[%s1 + $0x98] sm:$0xff] %vm651, %v606
  %672 = vst.msk [vmem:[%s1 + $0xa0] sm:$0xff] %vm651, %v607
  %673 = vst.msk [vmem:[%s1 + $0xa8] sm:$0xff] %vm651, %v608
  %674 = vst.msk [vmem:[%s1 + $0xb0] sm:$0xff] %vm651, %v609
  %675 = vst.msk [vmem:[%s1 + $0xb8] sm:$0xff] %vm651, %v610
  %676 = vst.msk [vmem:[%s1 + $0xc0] sm:$0xff] %vm651, %v611
  %677 = vst.msk [vmem:[%s1 + $0xc8] sm:$0xff] %vm651, %v612
  %678 = vst.msk [vmem:[%s1 + $0xd0] sm:$0xff] %vm651, %v613
  %679 = vst.msk [vmem:[%s1 + $0xd8] sm:$0xff] %vm651, %v614
  %680 = vst.msk [vmem:[%s1 + $0xe0] sm:$0xff] %vm651, %v615
  %681 = vst.msk [vmem:[%s1 + $0xe8] sm:$0xff] %vm651, %v616
  %682 = vst.msk [vmem:[%s1 + $0xf0] sm:$0xff] %vm651, %v617
  %683 = vst.msk [vmem:[%s1 + $0xf8] sm:$0xff] %vm651, %v618
  %684 = vst.msk [vmem:[%s1 + $0x100] sm:$0xff] %vm651, %v619
  %685 = vst.msk [vmem:[%s1 + $0x108] sm:$0xff] %vm651, %v620
  %686 = vst.msk [vmem:[%s1 + $0x110] sm:$0xff] %vm651, %v621
  %687 = vst.msk [vmem:[%s1 + $0x118] sm:$0xff] %vm651, %v622
  %688 = vst.msk [vmem:[%s1 + $0x120] sm:$0xff] %vm651, %v623
  %689 = vst.msk [vmem:[%s1 + $0x128] sm:$0xff] %vm651, %v624
  %690 = vst.msk [vmem:[%s1 + $0x130] sm:$0xff] %vm651, %v625
  %691 = vst.msk [vmem:[%s1 + $0x138] sm:$0xff] %vm651, %v626
  %692 = vst.msk [vmem:[%s1 + $0x140] sm:$0xff] %vm651, %v627
  %693 = vst.msk [vmem:[%s1 + $0x148] sm:$0xff] %vm651, %v628
  %694 = vst.msk [vmem:[%s1 + $0x150] sm:$0xff] %vm651, %v629
  %695 = vst.msk [vmem:[%s1 + $0x158] sm:$0xff] %vm651, %v630
  %696 = vst.msk [vmem:[%s1 + $0x160] sm:$0xff] %vm651, %v631
  %697 = vst.msk [vmem:[%s1 + $0x168] sm:$0xff] %vm651, %v632
  %698 = vst.msk [vmem:[%s1 + $0x170] sm:$0xff] %vm651, %v633
  %699 = vst.msk [vmem:[%s1 + $0x178] sm:$0xff] %vm651, %v634
  %700 = vst.msk [vmem:[%s1 + $0x180] sm:$0xff] %vm651, %v635
  %701 = vst.msk [vmem:[%s1 + $0x188] sm:$0xff] %vm651, %v636
  %702 = vst.msk [vmem:[%s1 + $0x190] sm:$0xff] %vm651, %v637
  %703 = vst.msk [vmem:[%s1 + $0x198] sm:$0xff] %vm651, %v638
  %704 = vst.msk [vmem:[%s1 + $0x1a0] sm:$0xff] %vm651, %v639
  %705 = vst.msk [vmem:[%s1 + $0x1a8] sm:$0xff] %vm651, %v640
  %706 = vst.msk [vmem:[%s1 + $0x1b0] sm:$0xff] %vm651, %v641
  %707 = vst.msk [vmem:[%s1 + $0x1b8] sm:$0xff] %vm651, %v642
  %708 = vst.msk [vmem:[%s1 + $0x1c0] sm:$0xff] %vm651, %v643
  %709 = vst.msk [vmem:[%s1 + $0x1c8] sm:$0xff] %vm651, %v644
  %710 = vst.msk [vmem:[%s1 + $0x1d0] sm:$0xff] %vm651, %v645
  %711 = vst.msk [vmem:[%s1 + $0x1d8] sm:$0xff] %vm651, %v646
  %712 = vst.msk [vmem:[%s1 + $0x1e0] sm:$0xff] %vm651, %v647
  %713 = vst.msk [vmem:[%s1 + $0x1e8] sm:$0xff] %vm651, %v648
  %714 = vst.msk [vmem:[%s1 + $0x1f0] sm:$0xff] %vm651, %v649
  %715 = vst.msk [vmem:[%s1 + $0x1f8] sm:$0xff] %vm651, %v650
  // Predicated region
  $region6: #{basic_block_forward.19} parent=0 // pred_check
    _
  $region7: #{basic_block_forward.19} parent=0 // pred_check_branch
    %717 = sbr.rel (0) target = $region9
  $region8: #{basic_block_forward.19} parent=0 // pred_region
    _
  $region9: #{basic_block_forward.19} parent=0 // pred_fallthru
    _
  // Predicated region
  $region10: #{basic_block_forward.19} parent=0 // pred_check
    _
  $region11: #{basic_block_forward.19} parent=0 // pred_check_branch
    %719 = sbr.rel (0) target = $region13
  $region12: #{basic_block_forward.19} parent=0 // pred_region
    _
  $region13: #{basic_block_forward.19} parent=0 // pred_fallthru
    _

// kernel: basic_block_forward.20
$region0: #{basic_block_forward.20}
  #allocation0 [shape = 'u32[]', space=smem, size = 0x4, offset = 0x4, fixed_abs, tag = 'smem constant byte address 0x4 - core index']
  #allocation1 [shape = 'u32[144,128]{1,0:T(1,128)}', space=vmem, size = 0x12000, scoped, tag = 'internal scratch']
  #allocation2 [shape = 'f32[1,1]{1,0:T(1,128)S(1)}', space=vmem, size = 0x200, scoped, tag = 'scoped memory for basic_block_forward.20']
  #allocation3 [shape = 'f32[1,1]{1,0:T(1,128)S(1)}', space=vmem, size = 0x200, scoped, tag = 'scoped memory for basic_block_forward.20']
  %s0 = inlined_call_operand.vmem [shape: bf16[512,128], index: 0, kind: input, shape index: {}]
  %s1 = inlined_call_operand.vmem [shape: bf16[128,128], index: 1, kind: input, shape index: {}]
  %s2 = inlined_call_operand.<no memory space> [shape: f32[1,1], index: 2, kind: input, shape index: {}]
  %s3 = inlined_call_operand.<no memory space> [shape: f32[1,1], index: 3, kind: input, shape index: {}]
  %s4 = inlined_call_operand.vmem [shape: f32[512,1], index: 4, kind: output, shape index: {}]
  %s5 = sld [smem:[#allocation0]]
  $region26: #{basic_block_forward.20} parent=0
    _
  %s7 = ssub.s32 1, %s5
  %s8 = scalar_select 0, %s7, %s5
  %v9 = vstv %s2
  %10 = vst [vmem:[#allocation2] sm:$0x1] %v9
  %v11 = vstv %s3
  %12 = vst [vmem:[#allocation3] sm:$0x1] %v11
  // Predicated region
  $region2: #{basic_block_forward.20} parent=0 // pred_check
    _
  $region3: #{basic_block_forward.20} parent=0 // pred_check_branch
    %14 = sbr.rel (0) target = $region5
  $region4: #{basic_block_forward.20} parent=0 // pred_region
    _
  $region5: #{basic_block_forward.20} parent=0 // pred_fallthru
    _
  // Predicated region
  $region6: #{basic_block_forward.20} parent=0 // pred_check
    _
  $region7: #{basic_block_forward.20} parent=0 // pred_check_branch
    %16 = sbr.rel (0) target = $region9
  $region8: #{basic_block_forward.20} parent=0 // pred_region
    _
  $region9: #{basic_block_forward.20} parent=0 // pred_fallthru
    _
  // Predicated region
  $region10: #{basic_block_forward.20} parent=0 // pred_check
    _
  $region11: #{basic_block_forward.20} parent=0 // pred_check_branch
    %18 = sbr.rel (0) target = $region13
  $region12: #{basic_block_forward.20} parent=0 // pred_region
    _
  $region13: #{basic_block_forward.20} parent=0 // pred_fallthru
    _
  // Predicated region
  $region14: #{basic_block_forward.20} parent=0 // pred_check
    _
  $region15: #{basic_block_forward.20} parent=0 // pred_check_branch
    %20 = sbr.rel (0) target = $region17
  $region16: #{basic_block_forward.20} parent=0 // pred_region
    _
  $region17: #{basic_block_forward.20} parent=0 // pred_fallthru
    _
  %v22 = vld [vmem:[%s0] sm:$0xf]
  %v23 = vld [vmem:[%s0 + $0x4] sm:$0xf]
  %v24 = vld [vmem:[%s0 + $0x8] sm:$0xf]
  %v25 = vld [vmem:[%s0 + $0xc] sm:$0xf]
  %v26 = vld [vmem:[%s0 + $0x10] sm:$0xf]
  %v27 = vld [vmem:[%s0 + $0x14] sm:$0xf]
  %v28 = vld [vmem:[%s0 + $0x18] sm:$0xf]
  %v29 = vld [vmem:[%s0 + $0x1c] sm:$0xf]
  %v30 = vld [vmem:[%s0 + $0x20] sm:$0xf]
  %v31 = vld [vmem:[%s0 + $0x24] sm:$0xf]
  %v32 = vld [vmem:[%s0 + $0x28] sm:$0xf]
  %v33 = vld [vmem:[%s0 + $0x2c] sm:$0xf]
  %v34 = vld [vmem:[%s0 + $0x30] sm:$0xf]
  %v35 = vld [vmem:[%s0 + $0x34] sm:$0xf]
  %v36 = vld [vmem:[%s0 + $0x38] sm:$0xf]
  %v37 = vld [vmem:[%s0 + $0x3c] sm:$0xf]
  %v38 = vld [vmem:[%s0 + $0x40] sm:$0xf]
  %v39 = vld [vmem:[%s0 + $0x44] sm:$0xf]
  %v40 = vld [vmem:[%s0 + $0x48] sm:$0xf]
  %v41 = vld [vmem:[%s0 + $0x4c] sm:$0xf]
  %v42 = vld [vmem:[%s0 + $0x50] sm:$0xf]
  %v43 = vld [vmem:[%s0 + $0x54] sm:$0xf]
  %v44 = vld [vmem:[%s0 + $0x58] sm:$0xf]
  %v45 = vld [vmem:[%s0 + $0x5c] sm:$0xf]
  %v46 = vld [vmem:[%s0 + $0x60] sm:$0xf]
  %v47 = vld [vmem:[%s0 + $0x64] sm:$0xf]
  %v48 = vld [vmem:[%s0 + $0x68] sm:$0xf]
  %v49 = vld [vmem:[%s0 + $0x6c] sm:$0xf]
  %v50 = vld [vmem:[%s0 + $0x70] sm:$0xf]
  %v51 = vld [vmem:[%s0 + $0x74] sm:$0xf]
  %v52 = vld [vmem:[%s0 + $0x78] sm:$0xf]
  %v53 = vld [vmem:[%s0 + $0x7c] sm:$0xf]
  %v54 = vld [vmem:[%s0 + $0x80] sm:$0xf]
  %v55 = vld [vmem:[%s0 + $0x84] sm:$0xf]
  %v56 = vld [vmem:[%s0 + $0x88] sm:$0xf]
  %v57 = vld [vmem:[%s0 + $0x8c] sm:$0xf]
  %v58 = vld [vmem:[%s0 + $0x90] sm:$0xf]
  %v59 = vld [vmem:[%s0 + $0x94] sm:$0xf]
  %v60 = vld [vmem:[%s0 + $0x98] sm:$0xf]
  %v61 = vld [vmem:[%s0 + $0x9c] sm:$0xf]
  %v62 = vld [vmem:[%s0 + $0xa0] sm:$0xf]
  %v63 = vld [vmem:[%s0 + $0xa4] sm:$0xf]
  %v64 = vld [vmem:[%s0 + $0xa8] sm:$0xf]
  %v65 = vld [vmem:[%s0 + $0xac] sm:$0xf]
  %v66 = vld [vmem:[%s0 + $0xb0] sm:$0xf]
  %v67 = vld [vmem:[%s0 + $0xb4] sm:$0xf]
  %v68 = vld [vmem:[%s0 + $0xb8] sm:$0xf]
  %v69 = vld [vmem:[%s0 + $0xbc] sm:$0xf]
  %v70 = vld [vmem:[%s0 + $0xc0] sm:$0xf]
  %v71 = vld [vmem:[%s0 + $0xc4] sm:$0xf]
  %v72 = vld [vmem:[%s0 + $0xc8] sm:$0xf]
  %v73 = vld [vmem:[%s0 + $0xcc] sm:$0xf]
  %v74 = vld [vmem:[%s0 + $0xd0] sm:$0xf]
  %v75 = vld [vmem:[%s0 + $0xd4] sm:$0xf]
  %v76 = vld [vmem:[%s0 + $0xd8] sm:$0xf]
  %v77 = vld [vmem:[%s0 + $0xdc] sm:$0xf]
  %v78 = vld [vmem:[%s0 + $0xe0] sm:$0xf]
  %v79 = vld [vmem:[%s0 + $0xe4] sm:$0xf]
  %v80 = vld [vmem:[%s0 + $0xe8] sm:$0xf]
  %v81 = vld [vmem:[%s0 + $0xec] sm:$0xf]
  %v82 = vld [vmem:[%s0 + $0xf0] sm:$0xf]
  %v83 = vld [vmem:[%s0 + $0xf4] sm:$0xf]
  %v84 = vld [vmem:[%s0 + $0xf8] sm:$0xf]
  %v85 = vld [vmem:[%s0 + $0xfc] sm:$0xf]
  %v86 = vld [vmem:[%s1] sm:$0xf]
  %v87 = vld [vmem:[%s1 + $0x4] sm:$0xf]
  %v88 = vld [vmem:[%s1 + $0x8] sm:$0xf]
  %v89 = vld [vmem:[%s1 + $0xc] sm:$0xf]
  %v90 = vld [vmem:[%s1 + $0x10] sm:$0xf]
  %v91 = vld [vmem:[%s1 + $0x14] sm:$0xf]
  %v92 = vld [vmem:[%s1 + $0x18] sm:$0xf]
  %v93 = vld [vmem:[%s1 + $0x1c] sm:$0xf]
  %v94 = vld [vmem:[%s1 + $0x20] sm:$0xf]
  %v95 = vld [vmem:[%s1 + $0x24] sm:$0xf]
  %v96 = vld [vmem:[%s1 + $0x28] sm:$0xf]
  %v97 = vld [vmem:[%s1 + $0x2c] sm:$0xf]
  %v98 = vld [vmem:[%s1 + $0x30] sm:$0xf]
  %v99 = vld [vmem:[%s1 + $0x34] sm:$0xf]
  %v100 = vld [vmem:[%s1 + $0x38] sm:$0xf]
  %v101 = vld [vmem:[%s1 + $0x3c] sm:$0xf]
  %v166 = vunpack.c.l.b16 %v22
  %v167 = vunpack.c.l.b16 %v23
  %v168 = vunpack.c.l.b16 %v24
  %v169 = vunpack.c.l.b16 %v25
  %v170 = vunpack.c.l.b16 %v26
  %v171 = vunpack.c.l.b16 %v27
  %v172 = vunpack.c.l.b16 %v28
  %v173 = vunpack.c.l.b16 %v29
  %v174 = vunpack.c.l.b16 %v30
  %v175 = vunpack.c.l.b16 %v31
  %v176 = vunpack.c.l.b16 %v32
  %v177 = vunpack.c.l.b16 %v33
  %v178 = vunpack.c.l.b16 %v34
  %v179 = vunpack.c.l.b16 %v35
  %v180 = vunpack.c.l.b16 %v36
  %v181 = vunpack.c.l.b16 %v37
  %v182 = vunpack.c.l.b16 %v38
  %v183 = vunpack.c.l.b16 %v39
  %v184 = vunpack.c.l.b16 %v40
  %v185 = vunpack.c.l.b16 %v41
  %v186 = vunpack.c.l.b16 %v42
  %v187 = vunpack.c.l.b16 %v43
  %v188 = vunpack.c.l.b16 %v44
  %v189 = vunpack.c.l.b16 %v45
  %v190 = vunpack.c.l.b16 %v46
  %v191 = vunpack.c.l.b16 %v47
  %v192 = vunpack.c.l.b16 %v48
  %v193 = vunpack.c.l.b16 %v49
  %v194 = vunpack.c.l.b16 %v50
  %v195 = vunpack.c.l.b16 %v51
  %v196 = vunpack.c.l.b16 %v52
  %v197 = vunpack.c.l.b16 %v53
  %v198 = vunpack.c.l.b16 %v54
  %v199 = vunpack.c.l.b16 %v55
  %v200 = vunpack.c.l.b16 %v56
  %v201 = vunpack.c.l.b16 %v57
  %v202 = vunpack.c.l.b16 %v58
  %v203 = vunpack.c.l.b16 %v59
  %v204 = vunpack.c.l.b16 %v60
  %v205 = vunpack.c.l.b16 %v61
  %v206 = vunpack.c.l.b16 %v62
  %v207 = vunpack.c.l.b16 %v63
  %v208 = vunpack.c.l.b16 %v64
  %v209 = vunpack.c.l.b16 %v65
  %v210 = vunpack.c.l.b16 %v66
  %v211 = vunpack.c.l.b16 %v67
  %v212 = vunpack.c.l.b16 %v68
  %v213 = vunpack.c.l.b16 %v69
  %v214 = vunpack.c.l.b16 %v70
  %v215 = vunpack.c.l.b16 %v71
  %v216 = vunpack.c.l.b16 %v72
  %v217 = vunpack.c.l.b16 %v73
  %v218 = vunpack.c.l.b16 %v74
  %v219 = vunpack.c.l.b16 %v75
  %v220 = vunpack.c.l.b16 %v76
  %v221 = vunpack.c.l.b16 %v77
  %v222 = vunpack.c.l.b16 %v78
  %v223 = vunpack.c.l.b16 %v79
  %v224 = vunpack.c.l.b16 %v80
  %v225 = vunpack.c.l.b16 %v81
  %v226 = vunpack.c.l.b16 %v82
  %v227 = vunpack.c.l.b16 %v83
  %v228 = vunpack.c.l.b16 %v84
  %v229 = vunpack.c.l.b16 %v85
  %v230 = vpack.c.b16 %v167, %v166
  %v231 = vpack.c.b16 %v169, %v168
  %v232 = vpack.c.b16 %v171, %v170
  %v233 = vpack.c.b16 %v173, %v172
  %v234 = vpack.c.b16 %v175, %v174
  %v235 = vpack.c.b16 %v177, %v176
  %v236 = vpack.c.b16 %v179, %v178
  %v237 = vpack.c.b16 %v181, %v180
  %v238 = vpack.c.b16 %v183, %v182
  %v239 = vpack.c.b16 %v185, %v184
  %v240 = vpack.c.b16 %v187, %v186
  %v241 = vpack.c.b16 %v189, %v188
  %v242 = vpack.c.b16 %v191, %v190
  %v243 = vpack.c.b16 %v193, %v192
  %v244 = vpack.c.b16 %v195, %v194
  %v245 = vpack.c.b16 %v197, %v196
  %v246 = vpack.c.b16 %v199, %v198
  %v247 = vpack.c.b16 %v201, %v200
  %v248 = vpack.c.b16 %v203, %v202
  %v249 = vpack.c.b16 %v205, %v204
  %v250 = vpack.c.b16 %v207, %v206
  %v251 = vpack.c.b16 %v209, %v208
  %v252 = vpack.c.b16 %v211, %v210
  %v253 = vpack.c.b16 %v213, %v212
  %v254 = vpack.c.b16 %v215, %v214
  %v255 = vpack.c.b16 %v217, %v216
  %v256 = vpack.c.b16 %v219, %v218
  %v257 = vpack.c.b16 %v221, %v220
  %v258 = vpack.c.b16 %v223, %v222
  %v259 = vpack.c.b16 %v225, %v224
  %v260 = vpack.c.b16 %v227, %v226
  %v261 = vpack.c.b16 %v229, %v228
  %v310 = vunpack.c.l.b16 %v86
  %v311 = vunpack.c.l.b16 %v87
  %v312 = vunpack.c.l.b16 %v88
  %v313 = vunpack.c.l.b16 %v89
  %v314 = vunpack.c.l.b16 %v90
  %v315 = vunpack.c.l.b16 %v91
  %v316 = vunpack.c.l.b16 %v92
  %v317 = vunpack.c.l.b16 %v93
  %v318 = vunpack.c.l.b16 %v94
  %v319 = vunpack.c.l.b16 %v95
  %v320 = vunpack.c.l.b16 %v96
  %v321 = vunpack.c.l.b16 %v97
  %v322 = vunpack.c.l.b16 %v98
  %v323 = vunpack.c.l.b16 %v99
  %v324 = vunpack.c.l.b16 %v100
  %v325 = vunpack.c.l.b16 %v101
  %v326 = vpack.c.b16 %v311, %v310
  %v327 = vpack.c.b16 %v313, %v312
  %v328 = vpack.c.b16 %v315, %v314
  %v329 = vpack.c.b16 %v317, %v316
  %v330 = vpack.c.b16 %v319, %v318
  %v331 = vpack.c.b16 %v321, %v320
  %v332 = vpack.c.b16 %v323, %v322
  %v333 = vpack.c.b16 %v325, %v324
  %342 = vmatprep.subr.bf16.mxu0 0
  %343 = vmatpush1.bf16.msra.mxu0 %v326
  %344 = vmatprep.subr.bf16.mxu0 0
  %345 = vmatpush1.bf16.msra.mxu0 %v327
  %346 = vmatprep.subr.bf16.mxu0 0
  %347 = vmatpush1.bf16.msra.mxu0 %v328
  %348 = vmatprep.subr.bf16.mxu0 0
  %349 = vmatpush1.bf16.msra.mxu0 %v329
  %350 = vmatprep.subr.bf16.mxu0 0
  %351 = vmatpush1.bf16.msra.mxu0 %v330
  %352 = vmatprep.subr.bf16.mxu0 0
  %353 = vmatpush1.bf16.msra.mxu0 %v331
  %354 = vmatprep.subr.bf16.mxu0 0
  %355 = vmatpush1.bf16.msra.mxu0 %v332
  %356 = vmatprep.subr.bf16.mxu0 0
  %357 = vmatpush1.bf16.msra.mxu0 %v333
  %358 = vmatprep.subr.bf16.mxu0 0
  %359 = vmatpush1.bf16.msra.mxu0 0
  %360 = vmatprep.subr.bf16.mxu0 0
  %361 = vmatpush1.bf16.msra.mxu0 0
  %362 = vmatprep.subr.bf16.mxu0 0
  %363 = vmatpush1.bf16.msra.mxu0 0
  %364 = vmatprep.subr.bf16.mxu0 0
  %365 = vmatpush1.bf16.msra.mxu0 0
  %366 = vmatprep.subr.bf16.mxu0 0
  %367 = vmatpush1.bf16.msra.mxu0 0
  %368 = vmatprep.subr.bf16.mxu0 0
  %369 = vmatpush1.bf16.msra.mxu0 0
  %370 = vmatprep.subr.bf16.mxu0 0
  %371 = vmatpush1.bf16.msra.mxu0 0
  %372 = vmatprep.subr.bf16.mxu0 0
  %373 = vmatpush1.bf16.msra.mxu0 0
  %374 = vmatprep.mubr.bf16.mxu0 0
  %375 = vmatmul.mubr.bf16.gmra.mrb[0].mxu0 %v230
  %v376 = vpop.f32.mrb[0].mxu0
  %v377 = vadd.f32 0.0, %v376
  %v378 = vpop.f32.mrb[0].mxu0
  %v379 = vpop.f32.mrb[0].mxu0
  %v380 = vadd.f32 0.0, %v379
  %v381 = vpop.f32.mrb[0].mxu0
  %382 = vmatprep.mubr.bf16.mxu0 0
  %383 = vmatmul.mubr.bf16.gmra.mrb[0].mxu0 %v231
  %v384 = vpop.f32.mrb[0].mxu0
  %v385 = vadd.f32 0.0, %v384
  %v386 = vpop.f32.mrb[0].mxu0
  %v387 = vpop.f32.mrb[0].mxu0
  %v388 = vadd.f32 0.0, %v387
  %v389 = vpop.f32.mrb[0].mxu0
  %390 = vmatprep.mubr.bf16.mxu0 0
  %391 = vmatmul.mubr.bf16.gmra.mrb[0].mxu0 %v232
  %v392 = vpop.f32.mrb[0].mxu0
  %v393 = vadd.f32 0.0, %v392
  %v394 = vpop.f32.mrb[0].mxu0
  %v395 = vpop.f32.mrb[0].mxu0
  %v396 = vadd.f32 0.0, %v395
  %v397 = vpop.f32.mrb[0].mxu0
  %398 = vmatprep.mubr.bf16.mxu0 0
  %399 = vmatmul.mubr.bf16.gmra.mrb[0].mxu0 %v233
  %v400 = vpop.f32.mrb[0].mxu0
  %v401 = vadd.f32 0.0, %v400
  %v402 = vpop.f32.mrb[0].mxu0
  %v403 = vpop.f32.mrb[0].mxu0
  %v404 = vadd.f32 0.0, %v403
  %v405 = vpop.f32.mrb[0].mxu0
  %406 = vmatprep.mubr.bf16.mxu0 0
  %407 = vmatmul.mubr.bf16.gmra.mrb[0].mxu0 %v234
  %v408 = vpop.f32.mrb[0].mxu0
  %v409 = vadd.f32 0.0, %v408
  %v410 = vpop.f32.mrb[0].mxu0
  %v411 = vpop.f32.mrb[0].mxu0
  %v412 = vadd.f32 0.0, %v411
  %v413 = vpop.f32.mrb[0].mxu0
  %414 = vmatprep.mubr.bf16.mxu0 0
  %415 = vmatmul.mubr.bf16.gmra.mrb[0].mxu0 %v235
  %v416 = vpop.f32.mrb[0].mxu0
  %v417 = vadd.f32 0.0, %v416
  %v418 = vpop.f32.mrb[0].mxu0
  %v419 = vpop.f32.mrb[0].mxu0
  %v420 = vadd.f32 0.0, %v419
  %v421 = vpop.f32.mrb[0].mxu0
  %422 = vmatprep.mubr.bf16.mxu0 0
  %423 = vmatmul.mubr.bf16.gmra.mrb[0].mxu0 %v236
  %v424 = vpop.f32.mrb[0].mxu0
  %v425 = vadd.f32 0.0, %v424
  %v426 = vpop.f32.mrb[0].mxu0
  %v427 = vpop.f32.mrb[0].mxu0
  %v428 = vadd.f32 0.0, %v427
  %v429 = vpop.f32.mrb[0].mxu0
  %430 = vmatprep.mubr.bf16.mxu0 0
  %431 = vmatmul.mubr.bf16.gmra.mrb[0].mxu0 %v237
  %v432 = vpop.f32.mrb[0].mxu0
  %v433 = vadd.f32 0.0, %v432
  %v434 = vpop.f32.mrb[0].mxu0
  %v435 = vpop.f32.mrb[0].mxu0
  %v436 = vadd.f32 0.0, %v435
  %v437 = vpop.f32.mrb[0].mxu0
  %438 = vmatprep.mubr.bf16.mxu0 0
  %439 = vmatmul.mubr.bf16.gmra.mrb[0].mxu0 %v238
  %v440 = vpop.f32.mrb[0].mxu0
  %v441 = vadd.f32 0.0, %v440
  %v442 = vpop.f32.mrb[0].mxu0
  %v443 = vpop.f32.mrb[0].mxu0
  %v444 = vadd.f32 0.0, %v443
  %v445 = vpop.f32.mrb[0].mxu0
  %446 = vmatprep.mubr.bf16.mxu0 0
  %447 = vmatmul.mubr.bf16.gmra.mrb[0].mxu0 %v239
  %v448 = vpop.f32.mrb[0].mxu0
  %v449 = vadd.f32 0.0, %v448
  %v450 = vpop.f32.mrb[0].mxu0
  %v451 = vpop.f32.mrb[0].mxu0
  %v452 = vadd.f32 0.0, %v451
  %v453 = vpop.f32.mrb[0].mxu0
  %454 = vmatprep.mubr.bf16.mxu0 0
  %455 = vmatmul.mubr.bf16.gmra.mrb[0].mxu0 %v240
  %v456 = vpop.f32.mrb[0].mxu0
  %v457 = vadd.f32 0.0, %v456
  %v458 = vpop.f32.mrb[0].mxu0
  %v459 = vpop.f32.mrb[0].mxu0
  %v460 = vadd.f32 0.0, %v459
  %v461 = vpop.f32.mrb[0].mxu0
  %462 = vmatprep.mubr.bf16.mxu0 0
  %463 = vmatmul.mubr.bf16.gmra.mrb[0].mxu0 %v241
  %v464 = vpop.f32.mrb[0].mxu0
  %v465 = vadd.f32 0.0, %v464
  %v466 = vpop.f32.mrb[0].mxu0
  %v467 = vpop.f32.mrb[0].mxu0
  %v468 = vadd.f32 0.0, %v467
  %v469 = vpop.f32.mrb[0].mxu0
  %470 = vmatprep.mubr.bf16.mxu0 0
  %471 = vmatmul.mubr.bf16.gmra.mrb[0].mxu0 %v242
  %v472 = vpop.f32.mrb[0].mxu0
  %v473 = vadd.f32 0.0, %v472
  %v474 = vpop.f32.mrb[0].mxu0
  %v475 = vpop.f32.mrb[0].mxu0
  %v476 = vadd.f32 0.0, %v475
  %v477 = vpop.f32.mrb[0].mxu0
  %478 = vmatprep.mubr.bf16.mxu0 0
  %479 = vmatmul.mubr.bf16.gmra.mrb[0].mxu0 %v243
  %v480 = vpop.f32.mrb[0].mxu0
  %v481 = vadd.f32 0.0, %v480
  %v482 = vpop.f32.mrb[0].mxu0
  %v483 = vpop.f32.mrb[0].mxu0
  %v484 = vadd.f32 0.0, %v483
  %v485 = vpop.f32.mrb[0].mxu0
  %486 = vmatprep.mubr.bf16.mxu0 0
  %487 = vmatmul.mubr.bf16.gmra.mrb[0].mxu0 %v244
  %v488 = vpop.f32.mrb[0].mxu0
  %v489 = vadd.f32 0.0, %v488
  %v490 = vpop.f32.mrb[0].mxu0
  %v491 = vpop.f32.mrb[0].mxu0
  %v492 = vadd.f32 0.0, %v491
  %v493 = vpop.f32.mrb[0].mxu0
  %494 = vmatprep.mubr.bf16.mxu0 0
  %495 = vmatmul.mubr.bf16.gmra.mrb[0].mxu0 %v245
  %v496 = vpop.f32.mrb[0].mxu0
  %v497 = vadd.f32 0.0, %v496
  %v498 = vpop.f32.mrb[0].mxu0
  %v499 = vpop.f32.mrb[0].mxu0
  %v500 = vadd.f32 0.0, %v499
  %v501 = vpop.f32.mrb[0].mxu0
  %502 = vmatprep.mubr.bf16.mxu0 0
  %503 = vmatmul.mubr.bf16.gmra.mrb[0].mxu0 %v246
  %v504 = vpop.f32.mrb[0].mxu0
  %v505 = vadd.f32 0.0, %v504
  %v506 = vpop.f32.mrb[0].mxu0
  %v507 = vpop.f32.mrb[0].mxu0
  %v508 = vadd.f32 0.0, %v507
  %v509 = vpop.f32.mrb[0].mxu0
  %510 = vmatprep.mubr.bf16.mxu0 0
  %511 = vmatmul.mubr.bf16.gmra.mrb[0].mxu0 %v247
  %v512 = vpop.f32.mrb[0].mxu0
  %v513 = vadd.f32 0.0, %v512
  %v514 = vpop.f32.mrb[0].mxu0
  %v515 = vpop.f32.mrb[0].mxu0
  %v516 = vadd.f32 0.0, %v515
  %v517 = vpop.f32.mrb[0].mxu0
  %518 = vmatprep.mubr.bf16.mxu0 0
  %519 = vmatmul.mubr.bf16.gmra.mrb[0].mxu0 %v248
  %v520 = vpop.f32.mrb[0].mxu0
  %v521 = vadd.f32 0.0, %v520
  %v522 = vpop.f32.mrb[0].mxu0
  %v523 = vpop.f32.mrb[0].mxu0
  %v524 = vadd.f32 0.0, %v523
  %v525 = vpop.f32.mrb[0].mxu0
  %526 = vmatprep.mubr.bf16.mxu0 0
  %527 = vmatmul.mubr.bf16.gmra.mrb[0].mxu0 %v249
  %v528 = vpop.f32.mrb[0].mxu0
  %v529 = vadd.f32 0.0, %v528
  %v530 = vpop.f32.mrb[0].mxu0
  %v531 = vpop.f32.mrb[0].mxu0
  %v532 = vadd.f32 0.0, %v531
  %v533 = vpop.f32.mrb[0].mxu0
  %534 = vmatprep.mubr.bf16.mxu0 0
  %535 = vmatmul.mubr.bf16.gmra.mrb[0].mxu0 %v250
  %v536 = vpop.f32.mrb[0].mxu0
  %v537 = vadd.f32 0.0, %v536
  %v538 = vpop.f32.mrb[0].mxu0
  %v539 = vpop.f32.mrb[0].mxu0
  %v540 = vadd.f32 0.0, %v539
  %v541 = vpop.f32.mrb[0].mxu0
  %542 = vmatprep.mubr.bf16.mxu0 0
  %543 = vmatmul.mubr.bf16.gmra.mrb[0].mxu0 %v251
  %v544 = vpop.f32.mrb[0].mxu0
  %v545 = vadd.f32 0.0, %v544
  %v546 = vpop.f32.mrb[0].mxu0
  %v547 = vpop.f32.mrb[0].mxu0
  %v548 = vadd.f32 0.0, %v547
  %v549 = vpop.f32.mrb[0].mxu0
  %550 = vmatprep.mubr.bf16.mxu0 0
  %551 = vmatmul.mubr.bf16.gmra.mrb[0].mxu0 %v252
  %v552 = vpop.f32.mrb[0].mxu0
  %v553 = vadd.f32 0.0, %v552
  %v554 = vpop.f32.mrb[0].mxu0
  %v555 = vpop.f32.mrb[0].mxu0
  %v556 = vadd.f32 0.0, %v555
  %v557 = vpop.f32.mrb[0].mxu0
  %558 = vmatprep.mubr.bf16.mxu0 0
  %559 = vmatmul.mubr.bf16.gmra.mrb[0].mxu0 %v253
  %v560 = vpop.f32.mrb[0].mxu0
  %v561 = vadd.f32 0.0, %v560
  %v562 = vpop.f32.mrb[0].mxu0
  %v563 = vpop.f32.mrb[0].mxu0
  %v564 = vadd.f32 0.0, %v563
  %v565 = vpop.f32.mrb[0].mxu0
  %566 = vmatprep.mubr.bf16.mxu0 0
  %567 = vmatmul.mubr.bf16.gmra.mrb[0].mxu0 %v254
  %v568 = vpop.f32.mrb[0].mxu0
  %v569 = vadd.f32 0.0, %v568
  %v570 = vpop.f32.mrb[0].mxu0
  %v571 = vpop.f32.mrb[0].mxu0
  %v572 = vadd.f32 0.0, %v571
  %v573 = vpop.f32.mrb[0].mxu0
  %574 = vmatprep.mubr.bf16.mxu0 0
  %575 = vmatmul.mubr.bf16.gmra.mrb[0].mxu0 %v255
  %v576 = vpop.f32.mrb[0].mxu0
  %v577 = vadd.f32 0.0, %v576
  %v578 = vpop.f32.mrb[0].mxu0
  %v579 = vpop.f32.mrb[0].mxu0
  %v580 = vadd.f32 0.0, %v579
  %v581 = vpop.f32.mrb[0].mxu0
  %582 = vmatprep.mubr.bf16.mxu0 0
  %583 = vmatmul.mubr.bf16.gmra.mrb[0].mxu0 %v256
  %v584 = vpop.f32.mrb[0].mxu0
  %v585 = vadd.f32 0.0, %v584
  %v586 = vpop.f32.mrb[0].mxu0
  %v587 = vpop.f32.mrb[0].mxu0
  %v588 = vadd.f32 0.0, %v587
  %v589 = vpop.f32.mrb[0].mxu0
  %590 = vmatprep.mubr.bf16.mxu0 0
  %591 = vmatmul.mubr.bf16.gmra.mrb[0].mxu0 %v257
  %v592 = vpop.f32.mrb[0].mxu0
  %v593 = vadd.f32 0.0, %v592
  %v594 = vpop.f32.mrb[0].mxu0
  %v595 = vpop.f32.mrb[0].mxu0
  %v596 = vadd.f32 0.0, %v595
  %v597 = vpop.f32.mrb[0].mxu0
  %598 = vmatprep.mubr.bf16.mxu0 0
  %599 = vmatmul.mubr.bf16.gmra.mrb[0].mxu0 %v258
  %v600 = vpop.f32.mrb[0].mxu0
  %v601 = vadd.f32 0.0, %v600
  %v602 = vpop.f32.mrb[0].mxu0
  %v603 = vpop.f32.mrb[0].mxu0
  %v604 = vadd.f32 0.0, %v603
  %v605 = vpop.f32.mrb[0].mxu0
  %606 = vmatprep.mubr.bf16.mxu0 0
  %607 = vmatmul.mubr.bf16.gmra.mrb[0].mxu0 %v259
  %v608 = vpop.f32.mrb[0].mxu0
  %v609 = vadd.f32 0.0, %v608
  %v610 = vpop.f32.mrb[0].mxu0
  %v611 = vpop.f32.mrb[0].mxu0
  %v612 = vadd.f32 0.0, %v611
  %v613 = vpop.f32.mrb[0].mxu0
  %614 = vmatprep.mubr.bf16.mxu0 0
  %615 = vmatmul.mubr.bf16.gmra.mrb[0].mxu0 %v260
  %v616 = vpop.f32.mrb[0].mxu0
  %v617 = vadd.f32 0.0, %v616
  %v618 = vpop.f32.mrb[0].mxu0
  %v619 = vpop.f32.mrb[0].mxu0
  %v620 = vadd.f32 0.0, %v619
  %v621 = vpop.f32.mrb[0].mxu0
  %622 = vmatprep.mubr.bf16.mxu0 0
  %623 = vmatmul.mubr.bf16.gmra.mrb[0].mxu0 %v261
  %v624 = vpop.f32.mrb[0].mxu0
  %v625 = vadd.f32 0.0, %v624
  %v626 = vpop.f32.mrb[0].mxu0
  %v627 = vpop.f32.mrb[0].mxu0
  %v628 = vadd.f32 0.0, %v627
  %v629 = vpop.f32.mrb[0].mxu0
  %630 = vdwg.mxu0
  %v631 = vld [vmem:[#allocation2] sm:$0x1]
  %v632 = vld [vmem:[#allocation3] sm:$0x1]
  %v634 = vlaneseq
  %v635 = vshrl.u32 %v634, 7
  %v636 = vsub.s32 0, %v635
  %v637 = vrot.slane %v631, %v636
  %v639 = vmul.f32 %v377, %v637
  %v640 = vmul.f32 %v380, %v637
  %v641 = vmul.f32 %v385, %v637
  %v642 = vmul.f32 %v388, %v637
  %v643 = vmul.f32 %v393, %v637
  %v644 = vmul.f32 %v396, %v637
  %v645 = vmul.f32 %v401, %v637
  %v646 = vmul.f32 %v404, %v637
  %v647 = vmul.f32 %v409, %v637
  %v648 = vmul.f32 %v412, %v637
  %v649 = vmul.f32 %v417, %v637
  %v650 = vmul.f32 %v420, %v637
  %v651 = vmul.f32 %v425, %v637
  %v652 = vmul.f32 %v428, %v637
  %v653 = vmul.f32 %v433, %v637
  %v654 = vmul.f32 %v436, %v637
  %v655 = vmul.f32 %v441, %v637
  %v656 = vmul.f32 %v444, %v637
  %v657 = vmul.f32 %v449, %v637
  %v658 = vmul.f32 %v452, %v637
  %v659 = vmul.f32 %v457, %v637
  %v660 = vmul.f32 %v460, %v637
  %v661 = vmul.f32 %v465, %v637
  %v662 = vmul.f32 %v468, %v637
  %v663 = vmul.f32 %v473, %v637
  %v664 = vmul.f32 %v476, %v637
  %v665 = vmul.f32 %v481, %v637
  %v666 = vmul.f32 %v484, %v637
  %v667 = vmul.f32 %v489, %v637
  %v668 = vmul.f32 %v492, %v637
  %v669 = vmul.f32 %v497, %v637
  %v670 = vmul.f32 %v500, %v637
  %v671 = vmul.f32 %v505, %v637
  %v672 = vmul.f32 %v508, %v637
  %v673 = vmul.f32 %v513, %v637
  %v674 = vmul.f32 %v516, %v637
  %v675 = vmul.f32 %v521, %v637
  %v676 = vmul.f32 %v524, %v637
  %v677 = vmul.f32 %v529, %v637
  %v678 = vmul.f32 %v532, %v637
  %v679 = vmul.f32 %v537, %v637
  %v680 = vmul.f32 %v540, %v637
  %v681 = vmul.f32 %v545, %v637
  %v682 = vmul.f32 %v548, %v637
  %v683 = vmul.f32 %v553, %v637
  %v684 = vmul.f32 %v556, %v637
  %v685 = vmul.f32 %v561, %v637
  %v686 = vmul.f32 %v564, %v637
  %v687 = vmul.f32 %v569, %v637
  %v688 = vmul.f32 %v572, %v637
  %v689 = vmul.f32 %v577, %v637
  %v690 = vmul.f32 %v580, %v637
  %v691 = vmul.f32 %v585, %v637
  %v692 = vmul.f32 %v588, %v637
  %v693 = vmul.f32 %v593, %v637
  %v694 = vmul.f32 %v596, %v637
  %v695 = vmul.f32 %v601, %v637
  %v696 = vmul.f32 %v604, %v637
  %v697 = vmul.f32 %v609, %v637
  %v698 = vmul.f32 %v612, %v637
  %v699 = vmul.f32 %v617, %v637
  %v700 = vmul.f32 %v620, %v637
  %v701 = vmul.f32 %v625, %v637
  %v702 = vmul.f32 %v628, %v637
  %v704 = vlaneseq
  %v705 = vshrl.u32 %v704, 7
  %v706 = vsub.s32 0, %v705
  %v707 = vrot.slane %v632, %v706
  %v709 = vadd.f32 %v639, %v707
  %v710 = vadd.f32 %v640, %v707
  %v711 = vadd.f32 %v641, %v707
  %v712 = vadd.f32 %v642, %v707
  %v713 = vadd.f32 %v643, %v707
  %v714 = vadd.f32 %v644, %v707
  %v715 = vadd.f32 %v645, %v707
  %v716 = vadd.f32 %v646, %v707
  %v717 = vadd.f32 %v647, %v707
  %v718 = vadd.f32 %v648, %v707
  %v719 = vadd.f32 %v649, %v707
  %v720 = vadd.f32 %v650, %v707
  %v721 = vadd.f32 %v651, %v707
  %v722 = vadd.f32 %v652, %v707
  %v723 = vadd.f32 %v653, %v707
  %v724 = vadd.f32 %v654, %v707
  %v725 = vadd.f32 %v655, %v707
  %v726 = vadd.f32 %v656, %v707
  %v727 = vadd.f32 %v657, %v707
  %v728 = vadd.f32 %v658, %v707
  %v729 = vadd.f32 %v659, %v707
  %v730 = vadd.f32 %v660, %v707
  %v731 = vadd.f32 %v661, %v707
  %v732 = vadd.f32 %v662, %v707
  %v733 = vadd.f32 %v663, %v707
  %v734 = vadd.f32 %v664, %v707
  %v735 = vadd.f32 %v665, %v707
  %v736 = vadd.f32 %v666, %v707
  %v737 = vadd.f32 %v667, %v707
  %v738 = vadd.f32 %v668, %v707
  %v739 = vadd.f32 %v669, %v707
  %v740 = vadd.f32 %v670, %v707
  %v741 = vadd.f32 %v671, %v707
  %v742 = vadd.f32 %v672, %v707
  %v743 = vadd.f32 %v673, %v707
  %v744 = vadd.f32 %v674, %v707
  %v745 = vadd.f32 %v675, %v707
  %v746 = vadd.f32 %v676, %v707
  %v747 = vadd.f32 %v677, %v707
  %v748 = vadd.f32 %v678, %v707
  %v749 = vadd.f32 %v679, %v707
  %v750 = vadd.f32 %v680, %v707
  %v751 = vadd.f32 %v681, %v707
  %v752 = vadd.f32 %v682, %v707
  %v753 = vadd.f32 %v683, %v707
  %v754 = vadd.f32 %v684, %v707
  %v755 = vadd.f32 %v685, %v707
  %v756 = vadd.f32 %v686, %v707
  %v757 = vadd.f32 %v687, %v707
  %v758 = vadd.f32 %v688, %v707
  %v759 = vadd.f32 %v689, %v707
  %v760 = vadd.f32 %v690, %v707
  %v761 = vadd.f32 %v691, %v707
  %v762 = vadd.f32 %v692, %v707
  %v763 = vadd.f32 %v693, %v707
  %v764 = vadd.f32 %v694, %v707
  %v765 = vadd.f32 %v695, %v707
  %v766 = vadd.f32 %v696, %v707
  %v767 = vadd.f32 %v697, %v707
  %v768 = vadd.f32 %v698, %v707
  %v769 = vadd.f32 %v699, %v707
  %v770 = vadd.f32 %v700, %v707
  %v771 = vadd.f32 %v701, %v707
  %v772 = vadd.f32 %v702, %v707
  %v773 = vxor.u32 %v709, 2147483648
  %v774 = vxor.u32 %v710, 2147483648
  %v775 = vxor.u32 %v711, 2147483648
  %v776 = vxor.u32 %v712, 2147483648
  %v777 = vxor.u32 %v713, 2147483648
  %v778 = vxor.u32 %v714, 2147483648
  %v779 = vxor.u32 %v715, 2147483648
  %v780 = vxor.u32 %v716, 2147483648
  %v781 = vxor.u32 %v717, 2147483648
  %v782 = vxor.u32 %v718, 2147483648
  %v783 = vxor.u32 %v719, 2147483648
  %v784 = vxor.u32 %v720, 2147483648
  %v785 = vxor.u32 %v721, 2147483648
  %v786 = vxor.u32 %v722, 2147483648
  %v787 = vxor.u32 %v723, 2147483648
  %v788 = vxor.u32 %v724, 2147483648
  %v789 = vxor.u32 %v725, 2147483648
  %v790 = vxor.u32 %v726, 2147483648
  %v791 = vxor.u32 %v727, 2147483648
  %v792 = vxor.u32 %v728, 2147483648
  %v793 = vxor.u32 %v729, 2147483648
  %v794 = vxor.u32 %v730, 2147483648
  %v795 = vxor.u32 %v731, 2147483648
  %v796 = vxor.u32 %v732, 2147483648
  %v797 = vxor.u32 %v733, 2147483648
  %v798 = vxor.u32 %v734, 2147483648
  %v799 = vxor.u32 %v735, 2147483648
  %v800 = vxor.u32 %v736, 2147483648
  %v801 = vxor.u32 %v737, 2147483648
  %v802 = vxor.u32 %v738, 2147483648
  %v803 = vxor.u32 %v739, 2147483648
  %v804 = vxor.u32 %v740, 2147483648
  %v805 = vxor.u32 %v741, 2147483648
  %v806 = vxor.u32 %v742, 2147483648
  %v807 = vxor.u32 %v743, 2147483648
  %v808 = vxor.u32 %v744, 2147483648
  %v809 = vxor.u32 %v745, 2147483648
  %v810 = vxor.u32 %v746, 2147483648
  %v811 = vxor.u32 %v747, 2147483648
  %v812 = vxor.u32 %v748, 2147483648
  %v813 = vxor.u32 %v749, 2147483648
  %v814 = vxor.u32 %v750, 2147483648
  %v815 = vxor.u32 %v751, 2147483648
  %v816 = vxor.u32 %v752, 2147483648
  %v817 = vxor.u32 %v753, 2147483648
  %v818 = vxor.u32 %v754, 2147483648
  %v819 = vxor.u32 %v755, 2147483648
  %v820 = vxor.u32 %v756, 2147483648
  %v821 = vxor.u32 %v757, 2147483648
  %v822 = vxor.u32 %v758, 2147483648
  %v823 = vxor.u32 %v759, 2147483648
  %v824 = vxor.u32 %v760, 2147483648
  %v825 = vxor.u32 %v761, 2147483648
  %v826 = vxor.u32 %v762, 2147483648
  %v827 = vxor.u32 %v763, 2147483648
  %v828 = vxor.u32 %v764, 2147483648
  %v829 = vxor.u32 %v765, 2147483648
  %v830 = vxor.u32 %v766, 2147483648
  %v831 = vxor.u32 %v767, 2147483648
  %v832 = vxor.u32 %v768, 2147483648
  %v833 = vxor.u32 %v769, 2147483648
  %v834 = vxor.u32 %v770, 2147483648
  %v835 = vxor.u32 %v771, 2147483648
  %v836 = vxor.u32 %v772, 2147483648
  %v837 = vmul.f32 %v773, 1.442695
  %v838 = vpow.pop %v837
  %v839 = vmul.f32 %v774, 1.442695
  %v840 = vpow.pop %v839
  %v841 = vmul.f32 %v775, 1.442695
  %v842 = vpow.pop %v841
  %v843 = vmul.f32 %v776, 1.442695
  %v844 = vpow.pop %v843
  %v845 = vmul.f32 %v777, 1.442695
  %v846 = vpow.pop %v845
  %v847 = vmul.f32 %v778, 1.442695
  %v848 = vpow.pop %v847
  %v849 = vmul.f32 %v779, 1.442695
  %v850 = vpow.pop %v849
  %v851 = vmul.f32 %v780, 1.442695
  %v852 = vpow.pop %v851
  %v853 = vmul.f32 %v781, 1.442695
  %v854 = vpow.pop %v853
  %v855 = vmul.f32 %v782, 1.442695
  %v856 = vpow.pop %v855
  %v857 = vmul.f32 %v783, 1.442695
  %v858 = vpow.pop %v857
  %v859 = vmul.f32 %v784, 1.442695
  %v860 = vpow.pop %v859
  %v861 = vmul.f32 %v785, 1.442695
  %v862 = vpow.pop %v861
  %v863 = vmul.f32 %v786, 1.442695
  %v864 = vpow.pop %v863
  %v865 = vmul.f32 %v787, 1.442695
  %v866 = vpow.pop %v865
  %v867 = vmul.f32 %v788, 1.442695
  %v868 = vpow.pop %v867
  %v869 = vmul.f32 %v789, 1.442695
  %v870 = vpow.pop %v869
  %v871 = vmul.f32 %v790, 1.442695
  %v872 = vpow.pop %v871
  %v873 = vmul.f32 %v791, 1.442695
  %v874 = vpow.pop %v873
  %v875 = vmul.f32 %v792, 1.442695
  %v876 = vpow.pop %v875
  %v877 = vmul.f32 %v793, 1.442695
  %v878 = vpow.pop %v877
  %v879 = vmul.f32 %v794, 1.442695
  %v880 = vpow.pop %v879
  %v881 = vmul.f32 %v795, 1.442695
  %v882 = vpow.pop %v881
  %v883 = vmul.f32 %v796, 1.442695
  %v884 = vpow.pop %v883
  %v885 = vmul.f32 %v797, 1.442695
  %v886 = vpow.pop %v885
  %v887 = vmul.f32 %v798, 1.442695
  %v888 = vpow.pop %v887
  %v889 = vmul.f32 %v799, 1.442695
  %v890 = vpow.pop %v889
  %v891 = vmul.f32 %v800, 1.442695
  %v892 = vpow.pop %v891
  %v893 = vmul.f32 %v801, 1.442695
  %v894 = vpow.pop %v893
  %v895 = vmul.f32 %v802, 1.442695
  %v896 = vpow.pop %v895
  %v897 = vmul.f32 %v803, 1.442695
  %v898 = vpow.pop %v897
  %v899 = vmul.f32 %v804, 1.442695
  %v900 = vpow.pop %v899
  %v901 = vmul.f32 %v805, 1.442695
  %v902 = vpow.pop %v901
  %v903 = vmul.f32 %v806, 1.442695
  %v904 = vpow.pop %v903
  %v905 = vmul.f32 %v807, 1.442695
  %v906 = vpow.pop %v905
  %v907 = vmul.f32 %v808, 1.442695
  %v908 = vpow.pop %v907
  %v909 = vmul.f32 %v809, 1.442695
  %v910 = vpow.pop %v909
  %v911 = vmul.f32 %v810, 1.442695
  %v912 = vpow.pop %v911
  %v913 = vmul.f32 %v811, 1.442695
  %v914 = vpow.pop %v913
  %v915 = vmul.f32 %v812, 1.442695
  %v916 = vpow.pop %v915
  %v917 = vmul.f32 %v813, 1.442695
  %v918 = vpow.pop %v917
  %v919 = vmul.f32 %v814, 1.442695
  %v920 = vpow.pop %v919
  %v921 = vmul.f32 %v815, 1.442695
  %v922 = vpow.pop %v921
  %v923 = vmul.f32 %v816, 1.442695
  %v924 = vpow.pop %v923
  %v925 = vmul.f32 %v817, 1.442695
  %v926 = vpow.pop %v925
  %v927 = vmul.f32 %v818, 1.442695
  %v928 = vpow.pop %v927
  %v929 = vmul.f32 %v819, 1.442695
  %v930 = vpow.pop %v929
  %v931 = vmul.f32 %v820, 1.442695
  %v932 = vpow.pop %v931
  %v933 = vmul.f32 %v821, 1.442695
  %v934 = vpow.pop %v933
  %v935 = vmul.f32 %v822, 1.442695
  %v936 = vpow.pop %v935
  %v937 = vmul.f32 %v823, 1.442695
  %v938 = vpow.pop %v937
  %v939 = vmul.f32 %v824, 1.442695
  %v940 = vpow.pop %v939
  %v941 = vmul.f32 %v825, 1.442695
  %v942 = vpow.pop %v941
  %v943 = vmul.f32 %v826, 1.442695
  %v944 = vpow.pop %v943
  %v945 = vmul.f32 %v827, 1.442695
  %v946 = vpow.pop %v945
  %v947 = vmul.f32 %v828, 1.442695
  %v948 = vpow.pop %v947
  %v949 = vmul.f32 %v829, 1.442695
  %v950 = vpow.pop %v949
  %v951 = vmul.f32 %v830, 1.442695
  %v952 = vpow.pop %v951
  %v953 = vmul.f32 %v831, 1.442695
  %v954 = vpow.pop %v953
  %v955 = vmul.f32 %v832, 1.442695
  %v956 = vpow.pop %v955
  %v957 = vmul.f32 %v833, 1.442695
  %v958 = vpow.pop %v957
  %v959 = vmul.f32 %v834, 1.442695
  %v960 = vpow.pop %v959
  %v961 = vmul.f32 %v835, 1.442695
  %v962 = vpow.pop %v961
  %v963 = vmul.f32 %v836, 1.442695
  %v964 = vpow.pop %v963
  %v965 = vadd.f32 %v838, 1.0
  %v966 = vadd.f32 %v840, 1.0
  %v967 = vadd.f32 %v842, 1.0
  %v968 = vadd.f32 %v844, 1.0
  %v969 = vadd.f32 %v846, 1.0
  %v970 = vadd.f32 %v848, 1.0
  %v971 = vadd.f32 %v850, 1.0
  %v972 = vadd.f32 %v852, 1.0
  %v973 = vadd.f32 %v854, 1.0
  %v974 = vadd.f32 %v856, 1.0
  %v975 = vadd.f32 %v858, 1.0
  %v976 = vadd.f32 %v860, 1.0
  %v977 = vadd.f32 %v862, 1.0
  %v978 = vadd.f32 %v864, 1.0
  %v979 = vadd.f32 %v866, 1.0
  %v980 = vadd.f32 %v868, 1.0
  %v981 = vadd.f32 %v870, 1.0
  %v982 = vadd.f32 %v872, 1.0
  %v983 = vadd.f32 %v874, 1.0
  %v984 = vadd.f32 %v876, 1.0
  %v985 = vadd.f32 %v878, 1.0
  %v986 = vadd.f32 %v880, 1.0
  %v987 = vadd.f32 %v882, 1.0
  %v988 = vadd.f32 %v884, 1.0
  %v989 = vadd.f32 %v886, 1.0
  %v990 = vadd.f32 %v888, 1.0
  %v991 = vadd.f32 %v890, 1.0
  %v992 = vadd.f32 %v892, 1.0
  %v993 = vadd.f32 %v894, 1.0
  %v994 = vadd.f32 %v896, 1.0
  %v995 = vadd.f32 %v898, 1.0
  %v996 = vadd.f32 %v900, 1.0
  %v997 = vadd.f32 %v902, 1.0
  %v998 = vadd.f32 %v904, 1.0
  %v999 = vadd.f32 %v906, 1.0
  %v1000 = vadd.f32 %v908, 1.0
  %v1001 = vadd.f32 %v910, 1.0
  %v1002 = vadd.f32 %v912, 1.0
  %v1003 = vadd.f32 %v914, 1.0
  %v1004 = vadd.f32 %v916, 1.0
  %v1005 = vadd.f32 %v918, 1.0
  %v1006 = vadd.f32 %v920, 1.0
  %v1007 = vadd.f32 %v922, 1.0
  %v1008 = vadd.f32 %v924, 1.0
  %v1009 = vadd.f32 %v926, 1.0
  %v1010 = vadd.f32 %v928, 1.0
  %v1011 = vadd.f32 %v930, 1.0
  %v1012 = vadd.f32 %v932, 1.0
  %v1013 = vadd.f32 %v934, 1.0
  %v1014 = vadd.f32 %v936, 1.0
  %v1015 = vadd.f32 %v938, 1.0
  %v1016 = vadd.f32 %v940, 1.0
  %v1017 = vadd.f32 %v942, 1.0
  %v1018 = vadd.f32 %v944, 1.0
  %v1019 = vadd.f32 %v946, 1.0
  %v1020 = vadd.f32 %v948, 1.0
  %v1021 = vadd.f32 %v950, 1.0
  %v1022 = vadd.f32 %v952, 1.0
  %v1023 = vadd.f32 %v954, 1.0
  %v1024 = vadd.f32 %v956, 1.0
  %v1025 = vadd.f32 %v958, 1.0
  %v1026 = vadd.f32 %v960, 1.0
  %v1027 = vadd.f32 %v962, 1.0
  %v1028 = vadd.f32 %v964, 1.0
  %v1029 = vrcp.pop %v965
  %v1030 = vmul.f32 1.0, %v1029
  %v1031 = vrcp.pop %v966
  %v1032 = vmul.f32 1.0, %v1031
  %v1033 = vrcp.pop %v967
  %v1034 = vmul.f32 1.0, %v1033
  %v1035 = vrcp.pop %v968
  %v1036 = vmul.f32 1.0, %v1035
  %v1037 = vrcp.pop %v969
  %v1038 = vmul.f32 1.0, %v1037
  %v1039 = vrcp.pop %v970
  %v1040 = vmul.f32 1.0, %v1039
  %v1041 = vrcp.pop %v971
  %v1042 = vmul.f32 1.0, %v1041
  %v1043 = vrcp.pop %v972
  %v1044 = vmul.f32 1.0, %v1043
  %v1045 = vrcp.pop %v973
  %v1046 = vmul.f32 1.0, %v1045
  %v1047 = vrcp.pop %v974
  %v1048 = vmul.f32 1.0, %v1047
  %v1049 = vrcp.pop %v975
  %v1050 = vmul.f32 1.0, %v1049
  %v1051 = vrcp.pop %v976
  %v1052 = vmul.f32 1.0, %v1051
  %v1053 = vrcp.pop %v977
  %v1054 = vmul.f32 1.0, %v1053
  %v1055 = vrcp.pop %v978
  %v1056 = vmul.f32 1.0, %v1055
  %v1057 = vrcp.pop %v979
  %v1058 = vmul.f32 1.0, %v1057
  %v1059 = vrcp.pop %v980
  %v1060 = vmul.f32 1.0, %v1059
  %v1061 = vrcp.pop %v981
  %v1062 = vmul.f32 1.0, %v1061
  %v1063 = vrcp.pop %v982
  %v1064 = vmul.f32 1.0, %v1063
  %v1065 = vrcp.pop %v983
  %v1066 = vmul.f32 1.0, %v1065
  %v1067 = vrcp.pop %v984
  %v1068 = vmul.f32 1.0, %v1067
  %v1069 = vrcp.pop %v985
  %v1070 = vmul.f32 1.0, %v1069
  %v1071 = vrcp.pop %v986
  %v1072 = vmul.f32 1.0, %v1071
  %v1073 = vrcp.pop %v987
  %v1074 = vmul.f32 1.0, %v1073
  %v1075 = vrcp.pop %v988
  %v1076 = vmul.f32 1.0, %v1075
  %v1077 = vrcp.pop %v989
  %v1078 = vmul.f32 1.0, %v1077
  %v1079 = vrcp.pop %v990
  %v1080 = vmul.f32 1.0, %v1079
  %v1081 = vrcp.pop %v991
  %v1082 = vmul.f32 1.0, %v1081
  %v1083 = vrcp.pop %v992
  %v1084 = vmul.f32 1.0, %v1083
  %v1085 = vrcp.pop %v993
  %v1086 = vmul.f32 1.0, %v1085
  %v1087 = vrcp.pop %v994
  %v1088 = vmul.f32 1.0, %v1087
  %v1089 = vrcp.pop %v995
  %v1090 = vmul.f32 1.0, %v1089
  %v1091 = vrcp.pop %v996
  %v1092 = vmul.f32 1.0, %v1091
  %v1093 = vrcp.pop %v997
  %v1094 = vmul.f32 1.0, %v1093
  %v1095 = vrcp.pop %v998
  %v1096 = vmul.f32 1.0, %v1095
  %v1097 = vrcp.pop %v999
  %v1098 = vmul.f32 1.0, %v1097
  %v1099 = vrcp.pop %v1000
  %v1100 = vmul.f32 1.0, %v1099
  %v1101 = vrcp.pop %v1001
  %v1102 = vmul.f32 1.0, %v1101
  %v1103 = vrcp.pop %v1002
  %v1104 = vmul.f32 1.0, %v1103
  %v1105 = vrcp.pop %v1003
  %v1106 = vmul.f32 1.0, %v1105
  %v1107 = vrcp.pop %v1004
  %v1108 = vmul.f32 1.0, %v1107
  %v1109 = vrcp.pop %v1005
  %v1110 = vmul.f32 1.0, %v1109
  %v1111 = vrcp.pop %v1006
  %v1112 = vmul.f32 1.0, %v1111
  %v1113 = vrcp.pop %v1007
  %v1114 = vmul.f32 1.0, %v1113
  %v1115 = vrcp.pop %v1008
  %v1116 = vmul.f32 1.0, %v1115
  %v1117 = vrcp.pop %v1009
  %v1118 = vmul.f32 1.0, %v1117
  %v1119 = vrcp.pop %v1010
  %v1120 = vmul.f32 1.0, %v1119
  %v1121 = vrcp.pop %v1011
  %v1122 = vmul.f32 1.0, %v1121
  %v1123 = vrcp.pop %v1012
  %v1124 = vmul.f32 1.0, %v1123
  %v1125 = vrcp.pop %v1013
  %v1126 = vmul.f32 1.0, %v1125
  %v1127 = vrcp.pop %v1014
  %v1128 = vmul.f32 1.0, %v1127
  %v1129 = vrcp.pop %v1015
  %v1130 = vmul.f32 1.0, %v1129
  %v1131 = vrcp.pop %v1016
  %v1132 = vmul.f32 1.0, %v1131
  %v1133 = vrcp.pop %v1017
  %v1134 = vmul.f32 1.0, %v1133
  %v1135 = vrcp.pop %v1018
  %v1136 = vmul.f32 1.0, %v1135
  %v1137 = vrcp.pop %v1019
  %v1138 = vmul.f32 1.0, %v1137
  %v1139 = vrcp.pop %v1020
  %v1140 = vmul.f32 1.0, %v1139
  %v1141 = vrcp.pop %v1021
  %v1142 = vmul.f32 1.0, %v1141
  %v1143 = vrcp.pop %v1022
  %v1144 = vmul.f32 1.0, %v1143
  %v1145 = vrcp.pop %v1023
  %v1146 = vmul.f32 1.0, %v1145
  %v1147 = vrcp.pop %v1024
  %v1148 = vmul.f32 1.0, %v1147
  %v1149 = vrcp.pop %v1025
  %v1150 = vmul.f32 1.0, %v1149
  %v1151 = vrcp.pop %v1026
  %v1152 = vmul.f32 1.0, %v1151
  %v1153 = vrcp.pop %v1027
  %v1154 = vmul.f32 1.0, %v1153
  %v1155 = vrcp.pop %v1028
  %v1156 = vmul.f32 1.0, %v1155
  %vm1157 = vcmask 7168
  %1158 = vst.msk [vmem:[%s4] sm:$0xff] %vm1157, %v1030
  %1159 = vst.msk [vmem:[%s4 + $0x8] sm:$0xff] %vm1157, %v1032
  %1160 = vst.msk [vmem:[%s4 + $0x10] sm:$0xff] %vm1157, %v1034
  %1161 = vst.msk [vmem:[%s4 + $0x18] sm:$0xff] %vm1157, %v1036
  %1162 = vst.msk [vmem:[%s4 + $0x20] sm:$0xff] %vm1157, %v1038
  %1163 = vst.msk [vmem:[%s4 + $0x28] sm:$0xff] %vm1157, %v1040
  %1164 = vst.msk [vmem:[%s4 + $0x30] sm:$0xff] %vm1157, %v1042
  %1165 = vst.msk [vmem:[%s4 + $0x38] sm:$0xff] %vm1157, %v1044
  %1166 = vst.msk [vmem:[%s4 + $0x40] sm:$0xff] %vm1157, %v1046
  %1167 = vst.msk [vmem:[%s4 + $0x48] sm:$0xff] %vm1157, %v1048
  %1168 = vst.msk [vmem:[%s4 + $0x50] sm:$0xff] %vm1157, %v1050
  %1169 = vst.msk [vmem:[%s4 + $0x58] sm:$0xff] %vm1157, %v1052
  %1170 = vst.msk [vmem:[%s4 + $0x60] sm:$0xff] %vm1157, %v1054
  %1171 = vst.msk [vmem:[%s4 + $0x68] sm:$0xff] %vm1157, %v1056
  %1172 = vst.msk [vmem:[%s4 + $0x70] sm:$0xff] %vm1157, %v1058
  %1173 = vst.msk [vmem:[%s4 + $0x78] sm:$0xff] %vm1157, %v1060
  %1174 = vst.msk [vmem:[%s4 + $0x80] sm:$0xff] %vm1157, %v1062
  %1175 = vst.msk [vmem:[%s4 + $0x88] sm:$0xff] %vm1157, %v1064
  %1176 = vst.msk [vmem:[%s4 + $0x90] sm:$0xff] %vm1157, %v1066
  %1177 = vst.msk [vmem:[%s4 + $0x98] sm:$0xff] %vm1157, %v1068
  %1178 = vst.msk [vmem:[%s4 + $0xa0] sm:$0xff] %vm1157, %v1070
  %1179 = vst.msk [vmem:[%s4 + $0xa8] sm:$0xff] %vm1157, %v1072
  %1180 = vst.msk [vmem:[%s4 + $0xb0] sm:$0xff] %vm1157, %v1074
  %1181 = vst.msk [vmem:[%s4 + $0xb8] sm:$0xff] %vm1157, %v1076
  %1182 = vst.msk [vmem:[%s4 + $0xc0] sm:$0xff] %vm1157, %v1078
  %1183 = vst.msk [vmem:[%s4 + $0xc8] sm:$0xff] %vm1157, %v1080
  %1184 = vst.msk [vmem:[%s4 + $0xd0] sm:$0xff] %vm1157, %v1082
  %1185 = vst.msk [vmem:[%s4 + $0xd8] sm:$0xff] %vm1157, %v1084
  %1186 = vst.msk [vmem:[%s4 + $0xe0] sm:$0xff] %vm1157, %v1086
  %1187 = vst.msk [vmem:[%s4 + $0xe8] sm:$0xff] %vm1157, %v1088
  %1188 = vst.msk [vmem:[%s4 + $0xf0] sm:$0xff] %vm1157, %v1090
  %1189 = vst.msk [vmem:[%s4 + $0xf8] sm:$0xff] %vm1157, %v1092
  %1190 = vst.msk [vmem:[%s4 + $0x100] sm:$0xff] %vm1157, %v1094
  %1191 = vst.msk [vmem:[%s4 + $0x108] sm:$0xff] %vm1157, %v1096
  %1192 = vst.msk [vmem:[%s4 + $0x110] sm:$0xff] %vm1157, %v1098
  %1193 = vst.msk [vmem:[%s4 + $0x118] sm:$0xff] %vm1157, %v1100
  %1194 = vst.msk [vmem:[%s4 + $0x120] sm:$0xff] %vm1157, %v1102
  %1195 = vst.msk [vmem:[%s4 + $0x128] sm:$0xff] %vm1157, %v1104
  %1196 = vst.msk [vmem:[%s4 + $0x130] sm:$0xff] %vm1157, %v1106
  %1197 = vst.msk [vmem:[%s4 + $0x138] sm:$0xff] %vm1157, %v1108
  %1198 = vst.msk [vmem:[%s4 + $0x140] sm:$0xff] %vm1157, %v1110
  %1199 = vst.msk [vmem:[%s4 + $0x148] sm:$0xff] %vm1157, %v1112
  %1200 = vst.msk [vmem:[%s4 + $0x150] sm:$0xff] %vm1157, %v1114
  %1201 = vst.msk [vmem:[%s4 + $0x158] sm:$0xff] %vm1157, %v1116
  %1202 = vst.msk [vmem:[%s4 + $0x160] sm:$0xff] %vm1157, %v1118
  %1203 = vst.msk [vmem:[%s4 + $0x168] sm:$0xff] %vm1157, %v1120
  %1204 = vst.msk [vmem:[%s4 + $0x170] sm:$0xff] %vm1157, %v1122
  %1205 = vst.msk [vmem:[%s4 + $0x178] sm:$0xff] %vm1157, %v1124
  %1206 = vst.msk [vmem:[%s4 + $0x180] sm:$0xff] %vm1157, %v1126
  %1207 = vst.msk [vmem:[%s4 + $0x188] sm:$0xff] %vm1157, %v1128
  %1208 = vst.msk [vmem:[%s4 + $0x190] sm:$0xff] %vm1157, %v1130
  %1209 = vst.msk [vmem:[%s4 + $0x198] sm:$0xff] %vm1157, %v1132
  %1210 = vst.msk [vmem:[%s4 + $0x1a0] sm:$0xff] %vm1157, %v1134
  %1211 = vst.msk [vmem:[%s4 + $0x1a8] sm:$0xff] %vm1157, %v1136
  %1212 = vst.msk [vmem:[%s4 + $0x1b0] sm:$0xff] %vm1157, %v1138
  %1213 = vst.msk [vmem:[%s4 + $0x1b8] sm:$0xff] %vm1157, %v1140
  %1214 = vst.msk [vmem:[%s4 + $0x1c0] sm:$0xff] %vm1157, %v1142
  %1215 = vst.msk [vmem:[%s4 + $0x1c8] sm:$0xff] %vm1157, %v1144
  %1216 = vst.msk [vmem:[%s4 + $0x1d0] sm:$0xff] %vm1157, %v1146
  %1217 = vst.msk [vmem:[%s4 + $0x1d8] sm:$0xff] %vm1157, %v1148
  %1218 = vst.msk [vmem:[%s4 + $0x1e0] sm:$0xff] %vm1157, %v1150
  %1219 = vst.msk [vmem:[%s4 + $0x1e8] sm:$0xff] %vm1157, %v1152
  %1220 = vst.msk [vmem:[%s4 + $0x1f0] sm:$0xff] %vm1157, %v1154
  %1221 = vst.msk [vmem:[%s4 + $0x1f8] sm:$0xff] %vm1157, %v1156
  // Predicated region
  $region18: #{basic_block_forward.20} parent=0 // pred_check
    _
  $region19: #{basic_block_forward.20} parent=0 // pred_check_branch
    %1223 = sbr.rel (0) target = $region21
  $region20: #{basic_block_forward.20} parent=0 // pred_region
    _
  $region21: #{basic_block_forward.20} parent=0 // pred_fallthru
    _
  // Predicated region
  $region22: #{basic_block_forward.20} parent=0 // pred_check
    _
  $region23: #{basic_block_forward.20} parent=0 // pred_check_branch
    %1225 = sbr.rel (0) target = $region25
  $region24: #{basic_block_forward.20} parent=0 // pred_region
    _
  $region25: #{basic_block_forward.20} parent=0 // pred_fallthru
    _

// kernel: basic_block_forward.25
$region0: #{basic_block_forward.25}
  #allocation0 [shape = 'u32[]', space=smem, size = 0x4, offset = 0x4, fixed_abs, tag = 'smem constant byte address 0x4 - core index']
  #allocation1 [shape = 'u32[144,128]{1,0:T(1,128)}', space=vmem, size = 0x12000, scoped, tag = 'internal scratch']
  %s0 = inlined_call_operand.vmem [shape: bf16[2,16,16,8], index: 0, kind: input, shape index: {}]
  %s1 = inlined_call_operand.vmem [shape: f32[2,16,16,8], index: 1, kind: input, shape index: {}]
  %s2 = inlined_call_operand.vmem [shape: f32[2,16,16,1], index: 2, kind: input, shape index: {}]
  %s3 = inlined_call_operand.vmem [shape: f32[2,1,16,8], index: 3, kind: input, shape index: {}]
  %s4 = inlined_call_operand.vmem [shape: f32[2,16,1,8], index: 4, kind: input, shape index: {}]
  %s5 = inlined_call_operand.vmem [shape: f32[2,16,16,8], index: 5, kind: output, shape index: {}]
  %s6 = sld [smem:[#allocation0]]
  $region53: #{basic_block_forward.25} parent=0
    _
  %s8 = ssub.s32 1, %s6
  %s9 = scalar_select 0, %s8, %s6
  loop: start=0, step=1, limit=4
  $region2: #{basic_block_forward.25} parent=0 // loop_pre_header
    _
  $region3: #{basic_block_forward.25} parent=0 // loop_header
    %s11 = sphi 0, %s15
    %p12 = scmp.ge.s32.totalorder %s11, 4
    %s18 = sphi 0, %s30
    %s19 = sphi 0, %s26
    %s20 = sphi 0, %s18
    %s21 = sphi 0, %s19
    %s22 = sphi 0, %s20
    %s23 = sphi 0, %s21
    %s35 = sphi 0, %s37
    %s38 = sphi 0, %s35
    %s39 = sphi 0, %s38
    %s55 = sphi 0, %s39
    %s63 = sphi 0, %s65
    %s66 = sphi 0, %s63
    %s67 = sphi 0, %s66
    %s83 = sphi 0, %s67
    %s91 = sphi 0, %s93
    %s94 = sphi 0, %s91
    %s95 = sphi 0, %s94
    %s111 = sphi 0, %s95
    %s117 = sphi 0, %s119
    %s120 = sphi 0, %s117
    %s121 = sphi 0, %s120
    %s137 = sphi 0, %s121
    %s145 = sphi 0, %s147
    %s148 = sphi 0, %s145
    %s149 = sphi 0, %s148
    %s165 = sphi 0, %s149
    %s173 = sphi 0, %s175
    %s176 = sphi 0, %s173
    %s177 = sphi 0, %s176
    %s193 = sphi 0, %s177
  $region4: #{basic_block_forward.25} parent=0 // loop_header_branch
    %14 = sbr.rel (%p12) target = $region8
  $region5: #{basic_block_forward.25} parent=0 // loop_body
    %s16 = ssub.s32 %s11, 1
    %s17 = ssub.s32 %s11, 2
    %s24 = sadd.s32 1, %s19
    %p25 = scmp.ge.s32.totalorder %s24, 1
    %s26 = scalar_select %p25, 0, %s24
    %s27 = sadd.s32 1, %s18
    %s28 = scalar_select %p25, %s27, %s18
    %p29 = scmp.ge.s32.totalorder %s28, 2
    %s30 = scalar_select %p29, 0, %s28
    %s31 = ssub.s32 %s18, %s30
    %s32 = ssub.s32 %s19, %s26
    %s33 = sor.u32 %s31, %s32
    %p34 = scmp.eq.s32.totalorder %s33, 0
    %s36 = sadd.s32 %s35, 1
    %s37 = scalar_select %p34, %s35, %s36
    %p40 = pneg %p34
    %p41 = scmp.eq.s32.totalorder %s11, 1
    %p42 = por %p40, %p41
    %p43 = scmp.ne.s32.totalorder %s35, %s38
    %p44 = scmp.eq.s32.totalorder %s11, 0
    %p45 = por %p43, %p44
    %p46 = scmp.ne.s32.totalorder %s35, %s38
    %p47 = scmp.eq.s32.totalorder %s16, 1
    %p48 = por %p46, %p47
    %p49 = scmp.ne.s32.totalorder %s38, %s39
    %p50 = scmp.eq.s32.totalorder %s16, 0
    %p51 = por %p49, %p50
    %p52 = scmp.ne.s32.totalorder %s38, %s39
    %p53 = scmp.eq.s32.totalorder %s17, 1
    %p54 = por %p52, %p53
    %p56 = scmp.ne.s32.totalorder %s39, %s55
    %p57 = scmp.eq.s32.totalorder %s17, 0
    %p58 = por %p56, %p57
    %s59 = ssub.s32 %s18, %s30
    %s60 = ssub.s32 %s19, %s26
    %s61 = sor.u32 %s59, %s60
    %p62 = scmp.eq.s32.totalorder %s61, 0
    %s64 = sadd.s32 %s63, 1
    %s65 = scalar_select %p62, %s63, %s64
    %p68 = pneg %p62
    %p69 = scmp.eq.s32.totalorder %s11, 1
    %p70 = por %p68, %p69
    %p71 = scmp.ne.s32.totalorder %s63, %s66
    %p72 = scmp.eq.s32.totalorder %s11, 0
    %p73 = por %p71, %p72
    %p74 = scmp.ne.s32.totalorder %s63, %s66
    %p75 = scmp.eq.s32.totalorder %s16, 1
    %p76 = por %p74, %p75
    %p77 = scmp.ne.s32.totalorder %s66, %s67
    %p78 = scmp.eq.s32.totalorder %s16, 0
    %p79 = por %p77, %p78
    %p80 = scmp.ne.s32.totalorder %s66, %s67
    %p81 = scmp.eq.s32.totalorder %s17, 1
    %p82 = por %p80, %p81
    %p84 = scmp.ne.s32.totalorder %s67, %s83
    %p85 = scmp.eq.s32.totalorder %s17, 0
    %p86 = por %p84, %p85
    %s87 = ssub.s32 %s18, %s30
    %s88 = ssub.s32 %s19, %s26
    %s89 = sor.u32 %s87, %s88
    %p90 = scmp.eq.s32.totalorder %s89, 0
    %s92 = sadd.s32 %s91, 1
    %s93 = scalar_select %p90, %s91, %s92
    %p96 = pneg %p90
    %p97 = scmp.eq.s32.totalorder %s11, 1
    %p98 = por %p96, %p97
    %p99 = scmp.ne.s32.totalorder %s91, %s94
    %p100 = scmp.eq.s32.totalorder %s11, 0
    %p101 = por %p99, %p100
    %p102 = scmp.ne.s32.totalorder %s91, %s94
    %p103 = scmp.eq.s32.totalorder %s16, 1
    %p104 = por %p102, %p103
    %p105 = scmp.ne.s32.totalorder %s94, %s95
    %p106 = scmp.eq.s32.totalorder %s16, 0
    %p107 = por %p105, %p106
    %p108 = scmp.ne.s32.totalorder %s94, %s95
    %p109 = scmp.eq.s32.totalorder %s17, 1
    %p110 = por %p108, %p109
    %p112 = scmp.ne.s32.totalorder %s95, %s111
    %p113 = scmp.eq.s32.totalorder %s17, 0
    %p114 = por %p112, %p113
    %s115 = ssub.s32 %s18, %s30
    %p116 = scmp.eq.s32.totalorder %s115, 0
    %s118 = sadd.s32 %s117, 1
    %s119 = scalar_select %p116, %s117, %s118
    %p122 = pneg %p116
    %p123 = scmp.eq.s32.totalorder %s11, 1
    %p124 = por %p122, %p123
    %p125 = scmp.ne.s32.totalorder %s117, %s120
    %p126 = scmp.eq.s32.totalorder %s11, 0
    %p127 = por %p125, %p126
    %p128 = scmp.ne.s32.totalorder %s117, %s120
    %p129 = scmp.eq.s32.totalorder %s16, 1
    %p130 = por %p128, %p129
    %p131 = scmp.ne.s32.totalorder %s120, %s121
    %p132 = scmp.eq.s32.totalorder %s16, 0
    %p133 = por %p131, %p132
    %p134 = scmp.ne.s32.totalorder %s120, %s121
    %p135 = scmp.eq.s32.totalorder %s17, 1
    %p136 = por %p134, %p135
    %p138 = scmp.ne.s32.totalorder %s121, %s137
    %p139 = scmp.eq.s32.totalorder %s17, 0
    %p140 = por %p138, %p139
    %s141 = ssub.s32 %s18, %s30
    %s142 = ssub.s32 %s19, %s26
    %s143 = sor.u32 %s141, %s142
    %p144 = scmp.eq.s32.totalorder %s143, 0
    %s146 = sadd.s32 %s145, 1
    %s147 = scalar_select %p144, %s145, %s146
    %p150 = pneg %p144
    %p151 = scmp.eq.s32.totalorder %s11, 1
    %p152 = por %p150, %p151
    %p153 = scmp.ne.s32.totalorder %s145, %s148
    %p154 = scmp.eq.s32.totalorder %s11, 0
    %p155 = por %p153, %p154
    %p156 = scmp.ne.s32.totalorder %s145, %s148
    %p157 = scmp.eq.s32.totalorder %s16, 1
    %p158 = por %p156, %p157
    %p159 = scmp.ne.s32.totalorder %s148, %s149
    %p160 = scmp.eq.s32.totalorder %s16, 0
    %p161 = por %p159, %p160
    %p162 = scmp.ne.s32.totalorder %s148, %s149
    %p163 = scmp.eq.s32.totalorder %s17, 1
    %p164 = por %p162, %p163
    %p166 = scmp.ne.s32.totalorder %s149, %s165
    %p167 = scmp.eq.s32.totalorder %s17, 0
    %p168 = por %p166, %p167
    %s169 = ssub.s32 %s18, %s30
    %s170 = ssub.s32 %s19, %s26
    %s171 = sor.u32 %s169, %s170
    %p172 = scmp.eq.s32.totalorder %s171, 0
    %s174 = sadd.s32 %s173, 1
    %s175 = scalar_select %p172, %s173, %s174
    %p178 = pneg %p172
    %p179 = scmp.eq.s32.totalorder %s11, 1
    %p180 = por %p178, %p179
    %p181 = scmp.ne.s32.totalorder %s173, %s176
    %p182 = scmp.eq.s32.totalorder %s11, 0
    %p183 = por %p181, %p182
    %p184 = scmp.ne.s32.totalorder %s173, %s176
    %p185 = scmp.eq.s32.totalorder %s16, 1
    %p186 = por %p184, %p185
    %p187 = scmp.ne.s32.totalorder %s176, %s177
    %p188 = scmp.eq.s32.totalorder %s16, 0
    %p189 = por %p187, %p188
    %p190 = scmp.ne.s32.totalorder %s176, %s177
    %p191 = scmp.eq.s32.totalorder %s17, 1
    %p192 = por %p190, %p191
    %p194 = scmp.ne.s32.totalorder %s177, %s193
    %p195 = scmp.eq.s32.totalorder %s17, 0
    %p196 = por %p194, %p195
    %p197 = scmp.le.s32.totalorder 1, %s11
    %p198 = scmp.lt.s32.totalorder %s11, 3
    %p199 = pnand %p197, %p198
    %p200 = pneg %p199
    // Predicated region
    $region9: #{basic_block_forward.25} parent=5 // pred_check
      _
    $region10: #{basic_block_forward.25} parent=5 // pred_check_branch
      %202 = sbr.rel (%p199) target = $region12
    $region11: #{basic_block_forward.25} parent=5 // pred_region
      %s203 = ssub.s32 %s11, 1
    $region12: #{basic_block_forward.25} parent=5 // pred_fallthru
      _
    %p204 = scmp.lt.s32.totalorder %s11, 2
    // Predicated region
    $region13: #{basic_block_forward.25} parent=5 // pred_check
      %p205 = pneg %p204
    $region14: #{basic_block_forward.25} parent=5 // pred_check_branch
      %207 = sbr.rel (%p205) target = $region16
    $region15: #{basic_block_forward.25} parent=5 // pred_region
      // Predicated region
      $region17: #{basic_block_forward.25} parent=15 // pred_check
        %p208 = pneg %p45
      $region18: #{basic_block_forward.25} parent=15 // pred_check_branch
        %210 = sbr.rel (%p208) target = $region20
      $region19: #{basic_block_forward.25} parent=15 // pred_region
        %s211 = smul.u32 16, %s19
        %p212 = scmp.lt.s32.totalorder %s18, 1
        %s213 = scalar_select %p212, %s18, 1
        %p214 = scmp.lt.s32.totalorder %s211, 15
        %s215 = scalar_select %p214, %s211, 15
        %s216 = smul.addr %s215, 2
        %s217 = smul.addr %s213, 32
        %s218 = sadd.s32 %s216, %s217
        %s219 = smul.addr %s218, 4
        %s220 = scalar_lea.vmem %s0, %s219
        %s221 = smul.u32 16, %s19
      $region20: #{basic_block_forward.25} parent=15 // pred_fallthru
        _
      // Predicated region
      $region21: #{basic_block_forward.25} parent=15 // pred_check
        %p222 = pneg %p73
      $region22: #{basic_block_forward.25} parent=15 // pred_check_branch
        %224 = sbr.rel (%p222) target = $region24
      $region23: #{basic_block_forward.25} parent=15 // pred_region
        %s225 = smul.u32 16, %s19
        %p226 = scmp.lt.s32.totalorder %s18, 1
        %s227 = scalar_select %p226, %s18, 1
        %p228 = scmp.lt.s32.totalorder %s225, 15
        %s229 = scalar_select %p228, %s225, 15
        %s230 = smul.addr %s229, 2
        %s231 = smul.addr %s227, 32
        %s232 = sadd.s32 %s230, %s231
        %s233 = smul.addr %s232, 8
        %s234 = scalar_lea.vmem %s1, %s233
        %s235 = smul.u32 16, %s19
      $region24: #{basic_block_forward.25} parent=15 // pred_fallthru
        _
      // Predicated region
      $region25: #{basic_block_forward.25} parent=15 // pred_check
        %p236 = pneg %p101
      $region26: #{basic_block_forward.25} parent=15 // pred_check_branch
        %238 = sbr.rel (%p236) target = $region28
      $region27: #{basic_block_forward.25} parent=15 // pred_region
        %s239 = smul.u32 16, %s19
        %p240 = scmp.lt.s32.totalorder %s18, 1
        %s241 = scalar_select %p240, %s18, 1
        %p242 = scmp.lt.s32.totalorder %s239, 15
        %s243 = scalar_select %p242, %s239, 15
        %s244 = smul.addr %s243, 2
        %s245 = smul.addr %s241, 32
        %s246 = sadd.s32 %s244, %s245
        %s247 = smul.addr %s246, 8
        %s248 = scalar_lea.vmem %s2, %s247
        %s249 = smul.u32 16, %s19
      $region28: #{basic_block_forward.25} parent=15 // pred_fallthru
        _
      // Predicated region
      $region29: #{basic_block_forward.25} parent=15 // pred_check
        %p250 = pneg %p127
      $region30: #{basic_block_forward.25} parent=15 // pred_check_branch
        %252 = sbr.rel (%p250) target = $region32
      $region31: #{basic_block_forward.25} parent=15 // pred_region
        %p253 = scmp.lt.s32.totalorder %s18, 1
        %s254 = scalar_select %p253, %s18, 1
        %s255 = smul.addr %s254, 2
        %s256 = smul.addr %s255, 8
        %s257 = scalar_lea.vmem %s3, %s256
      $region32: #{basic_block_forward.25} parent=15 // pred_fallthru
        _
      // Predicated region
      $region33: #{basic_block_forward.25} parent=15 // pred_check
        %p258 = pneg %p155
      $region34: #{basic_block_forward.25} parent=15 // pred_check_branch
        %260 = sbr.rel (%p258) target = $region36
      $region35: #{basic_block_forward.25} parent=15 // pred_region
        %s261 = smul.u32 16, %s19
        %p262 = scmp.lt.s32.totalorder %s18, 1
        %s263 = scalar_select %p262, %s18, 1
        %p264 = scmp.lt.s32.totalorder %s261, 15
        %s265 = scalar_select %p264, %s261, 15
        %s266 = smul.addr %s263, 16
        %s267 = sadd.s32 %s265, %s266
        %s268 = scalar_lea.vmem %s4, %s267
        %s269 = smul.u32 16, %s19
      $region36: #{basic_block_forward.25} parent=15 // pred_fallthru
        _
    $region16: #{basic_block_forward.25} parent=5 // pred_fallthru
      _
    %p270 = scmp.le.s32.totalorder 1, %s11
    %p271 = scmp.lt.s32.totalorder %s11, 3
    %p272 = pnand %p270, %p271
    %p273 = pneg %p272
    // Predicated region
    $region37: #{basic_block_forward.25} parent=5 // pred_check
      _
    $region38: #{basic_block_forward.25} parent=5 // pred_check_branch
      %275 = sbr.rel (%p272) target = $region40
    $region39: #{basic_block_forward.25} parent=5 // pred_region
      %s276 = ssub.s32 %s11, 1
      %s277 = smul.u32 16, %s21
      %p278 = scmp.lt.s32.totalorder %s20, 1
      %s279 = scalar_select %p278, %s20, 1
      %p280 = scmp.lt.s32.totalorder %s277, 15
      %s281 = scalar_select %p280, %s277, 15
      %s282 = smul.addr %s281, 2
      %s283 = smul.addr %s279, 32
      %s284 = sadd.s32 %s282, %s283
      %s285 = smul.addr %s284, 4
      %s286 = scalar_lea.vmem %s0, %s285
      %p287 = pneg %p51
      %p288 = pneg %p48
      %s289 = smul.u32 16, %s21
      %p290 = scmp.lt.s32.totalorder %s20, 1
      %s291 = scalar_select %p290, %s20, 1
      %p292 = scmp.lt.s32.totalorder %s289, 15
      %s293 = scalar_select %p292, %s289, 15
      %s294 = smul.addr %s293, 2
      %s295 = smul.addr %s291, 32
      %s296 = sadd.s32 %s294, %s295
      %s297 = smul.addr %s296, 8
      %s298 = scalar_lea.vmem %s1, %s297
      %p299 = pneg %p79
      %p300 = pneg %p76
      %s301 = smul.u32 16, %s21
      %p302 = scmp.lt.s32.totalorder %s20, 1
      %s303 = scalar_select %p302, %s20, 1
      %p304 = scmp.lt.s32.totalorder %s301, 15
      %s305 = scalar_select %p304, %s301, 15
      %s306 = smul.addr %s305, 2
      %s307 = smul.addr %s303, 32
      %s308 = sadd.s32 %s306, %s307
      %s309 = smul.addr %s308, 8
      %s310 = scalar_lea.vmem %s2, %s309
      %p311 = pneg %p107
      %p312 = pneg %p104
      %p313 = scmp.lt.s32.totalorder %s20, 1
      %s314 = scalar_select %p313, %s20, 1
      %s315 = smul.addr %s314, 2
      %s316 = smul.addr %s315, 8
      %s317 = scalar_lea.vmem %s3, %s316
      %p318 = pneg %p133
      %p319 = pneg %p130
      %s320 = smul.u32 16, %s21
      %p321 = scmp.lt.s32.totalorder %s20, 1
      %s322 = scalar_select %p321, %s20, 1
      %p323 = scmp.lt.s32.totalorder %s320, 15
      %s324 = scalar_select %p323, %s320, 15
      %s325 = smul.addr %s322, 16
      %s326 = sadd.s32 %s324, %s325
      %s327 = scalar_lea.vmem %s4, %s326
      %p328 = pneg %p161
      %p329 = pneg %p158
      %p330 = pneg %p189
      %p331 = pneg %p186
      %s332 = smul.u32 16, %s21
      %p333 = scmp.lt.s32.totalorder %s20, 1
      %s334 = scalar_select %p333, %s20, 1
      %p335 = scmp.lt.s32.totalorder %s332, 15
      %s336 = scalar_select %p335, %s332, 15
      %s337 = smul.addr %s336, 2
      %s338 = smul.addr %s334, 32
      %s339 = sadd.s32 %s337, %s338
      %s340 = smul.addr %s339, 8
      %s341 = scalar_lea.vmem %s5, %s340
      %s342 = smul.u32 16, %s21
      %p343 = scmp.lt.s32.totalorder %s20, 1
      %s344 = scalar_select %p343, %s20, 1
      %p345 = scmp.lt.s32.totalorder %s342, 15
      %s346 = scalar_select %p345, %s342, 15
      %s347 = smul.addr %s346, 2
      %s348 = smul.addr %s344, 32
      %s349 = sadd.s32 %s347, %s348
      %s350 = smul.addr %s349, 4
      %s351 = scalar_lea.vmem %s0, %s350
      %s352 = smul.u32 16, %s21
      %s353 = smul.u32 16, %s21
      %p354 = scmp.lt.s32.totalorder %s20, 1
      %s355 = scalar_select %p354, %s20, 1
      %p356 = scmp.lt.s32.totalorder %s353, 15
      %s357 = scalar_select %p356, %s353, 15
      %s358 = smul.addr %s357, 2
      %s359 = smul.addr %s355, 32
      %s360 = sadd.s32 %s358, %s359
      %s361 = smul.addr %s360, 8
      %s362 = scalar_lea.vmem %s1, %s361
      %s363 = smul.u32 16, %s21
      %s364 = smul.u32 16, %s21
      %p365 = scmp.lt.s32.totalorder %s20, 1
      %s366 = scalar_select %p365, %s20, 1
      %p367 = scmp.lt.s32.totalorder %s364, 15
      %s368 = scalar_select %p367, %s364, 15
      %s369 = smul.addr %s368, 2
      %s370 = smul.addr %s366, 32
      %s371 = sadd.s32 %s369, %s370
      %s372 = smul.addr %s371, 8
      %s373 = scalar_lea.vmem %s2, %s372
      %s374 = smul.u32 16, %s21
      %p375 = scmp.lt.s32.totalorder %s20, 1
      %s376 = scalar_select %p375, %s20, 1
      %s377 = smul.addr %s376, 2
      %s378 = smul.addr %s377, 8
      %s379 = scalar_lea.vmem %s3, %s378
      %s380 = smul.u32 16, %s21
      %p381 = scmp.lt.s32.totalorder %s20, 1
      %s382 = scalar_select %p381, %s20, 1
      %p383 = scmp.lt.s32.totalorder %s380, 15
      %s384 = scalar_select %p383, %s380, 15
      %s385 = smul.addr %s382, 16
      %s386 = sadd.s32 %s384, %s385
      %s387 = scalar_lea.vmem %s4, %s386
      %s388 = smul.u32 16, %s21
      %s389 = smul.u32 16, %s21
      %p390 = scmp.lt.s32.totalorder %s20, 1
      %s391 = scalar_select %p390, %s20, 1
      %p392 = scmp.lt.s32.totalorder %s389, 15
      %s393 = scalar_select %p392, %s389, 15
      %s394 = smul.addr %s393, 2
      %s395 = smul.addr %s391, 32
      %s396 = sadd.s32 %s394, %s395
      %s397 = smul.addr %s396, 8
      %s398 = scalar_lea.vmem %s5, %s397
      %s399 = smul.u32 16, %s21
      %v400 = vld [vmem:[%s373] sm:$0xff]
      %v401 = vld [vmem:[%s373 + $0x8] sm:$0xff]
      %v402 = vld [vmem:[%s373 + $0x10] sm:$0xff]
      %v403 = vld [vmem:[%s373 + $0x18] sm:$0xff]
      %v404 = vld [vmem:[%s373 + $0x20] sm:$0xff]
      %v405 = vld [vmem:[%s373 + $0x28] sm:$0xff]
      %v406 = vld [vmem:[%s373 + $0x30] sm:$0xff]
      %v407 = vld [vmem:[%s373 + $0x38] sm:$0xff]
      %v408 = vld [vmem:[%s373 + $0x40] sm:$0xff]
      %v409 = vld [vmem:[%s373 + $0x48] sm:$0xff]
      %v410 = vld [vmem:[%s373 + $0x50] sm:$0xff]
      %v411 = vld [vmem:[%s373 + $0x58] sm:$0xff]
      %v412 = vld [vmem:[%s373 + $0x60] sm:$0xff]
      %v413 = vld [vmem:[%s373 + $0x68] sm:$0xff]
      %v414 = vld [vmem:[%s373 + $0x70] sm:$0xff]
      %v415 = vld [vmem:[%s373 + $0x78] sm:$0xff]
      %v416 = vld [vmem:[%s373 + $0x80] sm:$0xff]
      %v417 = vld [vmem:[%s373 + $0x88] sm:$0xff]
      %v418 = vld [vmem:[%s373 + $0x90] sm:$0xff]
      %v419 = vld [vmem:[%s373 + $0x98] sm:$0xff]
      %v420 = vld [vmem:[%s373 + $0xa0] sm:$0xff]
      %v421 = vld [vmem:[%s373 + $0xa8] sm:$0xff]
      %v422 = vld [vmem:[%s373 + $0xb0] sm:$0xff]
      %v423 = vld [vmem:[%s373 + $0xb8] sm:$0xff]
      %v424 = vld [vmem:[%s373 + $0xc0] sm:$0xff]
      %v425 = vld [vmem:[%s373 + $0xc8] sm:$0xff]
      %v426 = vld [vmem:[%s373 + $0xd0] sm:$0xff]
      %v427 = vld [vmem:[%s373 + $0xd8] sm:$0xff]
      %v428 = vld [vmem:[%s373 + $0xe0] sm:$0xff]
      %v429 = vld [vmem:[%s373 + $0xe8] sm:$0xff]
      %v430 = vld [vmem:[%s373 + $0xf0] sm:$0xff]
      %v431 = vld [vmem:[%s373 + $0xf8] sm:$0xff]
      %v432 = vld [vmem:[%s379] sm:$0xff]
      %v433 = vld [vmem:[%s379 + $0x8] sm:$0xff]
      %435 = vset.pattern.permute.xlu0 0
      %436 = vperm.xlu0 %435, %v400
      %v437 = vpop.permute.xlu0 %436
      %440 = vset.pattern.permute.xlu0 0
      %441 = vperm.xlu0 %440, %v401
      %v442 = vpop.permute.xlu0 %441
      %445 = vset.pattern.permute.xlu0 0
      %446 = vperm.xlu0 %445, %v402
      %v447 = vpop.permute.xlu0 %446
      %450 = vset.pattern.permute.xlu0 0
      %451 = vperm.xlu0 %450, %v403
      %v452 = vpop.permute.xlu0 %451
      %455 = vset.pattern.permute.xlu0 0
      %456 = vperm.xlu0 %455, %v404
      %v457 = vpop.permute.xlu0 %456
      %460 = vset.pattern.permute.xlu0 0
      %461 = vperm.xlu0 %460, %v405
      %v462 = vpop.permute.xlu0 %461
      %465 = vset.pattern.permute.xlu0 0
      %466 = vperm.xlu0 %465, %v406
      %v467 = vpop.permute.xlu0 %466
      %470 = vset.pattern.permute.xlu0 0
      %471 = vperm.xlu0 %470, %v407
      %v472 = vpop.permute.xlu0 %471
      %475 = vset.pattern.permute.xlu0 0
      %476 = vperm.xlu0 %475, %v408
      %v477 = vpop.permute.xlu0 %476
      %480 = vset.pattern.permute.xlu0 0
      %481 = vperm.xlu0 %480, %v409
      %v482 = vpop.permute.xlu0 %481
      %485 = vset.pattern.permute.xlu0 0
      %486 = vperm.xlu0 %485, %v410
      %v487 = vpop.permute.xlu0 %486
      %490 = vset.pattern.permute.xlu0 0
      %491 = vperm.xlu0 %490, %v411
      %v492 = vpop.permute.xlu0 %491
      %495 = vset.pattern.permute.xlu0 0
      %496 = vperm.xlu0 %495, %v412
      %v497 = vpop.permute.xlu0 %496
      %500 = vset.pattern.permute.xlu0 0
      %501 = vperm.xlu0 %500, %v413
      %v502 = vpop.permute.xlu0 %501
      %505 = vset.pattern.permute.xlu0 0
      %506 = vperm.xlu0 %505, %v414
      %v507 = vpop.permute.xlu0 %506
      %510 = vset.pattern.permute.xlu0 0
      %511 = vperm.xlu0 %510, %v415
      %v512 = vpop.permute.xlu0 %511
      %515 = vset.pattern.permute.xlu0 0
      %516 = vperm.xlu0 %515, %v416
      %v517 = vpop.permute.xlu0 %516
      %520 = vset.pattern.permute.xlu0 0
      %521 = vperm.xlu0 %520, %v417
      %v522 = vpop.permute.xlu0 %521
      %525 = vset.pattern.permute.xlu0 0
      %526 = vperm.xlu0 %525, %v418
      %v527 = vpop.permute.xlu0 %526
      %530 = vset.pattern.permute.xlu0 0
      %531 = vperm.xlu0 %530, %v419
      %v532 = vpop.permute.xlu0 %531
      %535 = vset.pattern.permute.xlu0 0
      %536 = vperm.xlu0 %535, %v420
      %v537 = vpop.permute.xlu0 %536
      %540 = vset.pattern.permute.xlu0 0
      %541 = vperm.xlu0 %540, %v421
      %v542 = vpop.permute.xlu0 %541
      %545 = vset.pattern.permute.xlu0 0
      %546 = vperm.xlu0 %545, %v422
      %v547 = vpop.permute.xlu0 %546
      %550 = vset.pattern.permute.xlu0 0
      %551 = vperm.xlu0 %550, %v423
      %v552 = vpop.permute.xlu0 %551
      %555 = vset.pattern.permute.xlu0 0
      %556 = vperm.xlu0 %555, %v424
      %v557 = vpop.permute.xlu0 %556
      %560 = vset.pattern.permute.xlu0 0
      %561 = vperm.xlu0 %560, %v425
      %v562 = vpop.permute.xlu0 %561
      %565 = vset.pattern.permute.xlu0 0
      %566 = vperm.xlu0 %565, %v426
      %v567 = vpop.permute.xlu0 %566
      %570 = vset.pattern.permute.xlu0 0
      %571 = vperm.xlu0 %570, %v427
      %v572 = vpop.permute.xlu0 %571
      %575 = vset.pattern.permute.xlu0 0
      %576 = vperm.xlu0 %575, %v428
      %v577 = vpop.permute.xlu0 %576
      %580 = vset.pattern.permute.xlu0 0
      %581 = vperm.xlu0 %580, %v429
      %v582 = vpop.permute.xlu0 %581
      %585 = vset.pattern.permute.xlu0 0
      %586 = vperm.xlu0 %585, %v430
      %v587 = vpop.permute.xlu0 %586
      %590 = vset.pattern.permute.xlu0 0
      %591 = vperm.xlu0 %590, %v431
      %v592 = vpop.permute.xlu0 %591
      %v594 = vadd.f32 %v437, %v432
      %v595 = vadd.f32 %v442, %v433
      %v596 = vadd.f32 %v447, %v432
      %v597 = vadd.f32 %v452, %v433
      %v598 = vadd.f32 %v457, %v432
      %v599 = vadd.f32 %v462, %v433
      %v600 = vadd.f32 %v467, %v432
      %v601 = vadd.f32 %v472, %v433
      %v602 = vadd.f32 %v477, %v432
      %v603 = vadd.f32 %v482, %v433
      %v604 = vadd.f32 %v487, %v432
      %v605 = vadd.f32 %v492, %v433
      %v606 = vadd.f32 %v497, %v432
      %v607 = vadd.f32 %v502, %v433
      %v608 = vadd.f32 %v507, %v432
      %v609 = vadd.f32 %v512, %v433
      %v610 = vadd.f32 %v517, %v432
      %v611 = vadd.f32 %v522, %v433
      %v612 = vadd.f32 %v527, %v432
      %v613 = vadd.f32 %v532, %v433
      %v614 = vadd.f32 %v537, %v432
      %v615 = vadd.f32 %v542, %v433
      %v616 = vadd.f32 %v547, %v432
      %v617 = vadd.f32 %v552, %v433
      %v618 = vadd.f32 %v557, %v432
      %v619 = vadd.f32 %v562, %v433
      %v620 = vadd.f32 %v567, %v432
      %v621 = vadd.f32 %v572, %v433
      %v622 = vadd.f32 %v577, %v432
      %v623 = vadd.f32 %v582, %v433
      %v624 = vadd.f32 %v587, %v432
      %v625 = vadd.f32 %v592, %v433
      %v626 = vld [vmem:[%s387] sm:$0x1]
      %v627 = vld [vmem:[%s387 + $0x1] sm:$0x1]
      %v628 = vld [vmem:[%s387 + $0x2] sm:$0x1]
      %v629 = vld [vmem:[%s387 + $0x3] sm:$0x1]
      %v630 = vld [vmem:[%s387 + $0x4] sm:$0x1]
      %v631 = vld [vmem:[%s387 + $0x5] sm:$0x1]
      %v632 = vld [vmem:[%s387 + $0x6] sm:$0x1]
      %v633 = vld [vmem:[%s387 + $0x7] sm:$0x1]
      %v634 = vld [vmem:[%s387 + $0x8] sm:$0x1]
      %v635 = vld [vmem:[%s387 + $0x9] sm:$0x1]
      %v636 = vld [vmem:[%s387 + $0xa] sm:$0x1]
      %v637 = vld [vmem:[%s387 + $0xb] sm:$0x1]
      %v638 = vld [vmem:[%s387 + $0xc] sm:$0x1]
      %v639 = vld [vmem:[%s387 + $0xd] sm:$0x1]
      %v640 = vld [vmem:[%s387 + $0xe] sm:$0x1]
      %v641 = vld [vmem:[%s387 + $0xf] sm:$0x1]
      %v658 = vlaneseq
      %v659 = vshrl.u32 %v658, 7
      %v660 = vsub.s32 0, %v659
      %v661 = vrot.slane %v626, %v660
      %v662 = vlaneseq
      %v663 = vshrl.u32 %v662, 7
      %v664 = vsub.s32 0, %v663
      %v665 = vrot.slane %v627, %v664
      %v666 = vlaneseq
      %v667 = vshrl.u32 %v666, 7
      %v668 = vsub.s32 0, %v667
      %v669 = vrot.slane %v628, %v668
      %v670 = vlaneseq
      %v671 = vshrl.u32 %v670, 7
      %v672 = vsub.s32 0, %v671
      %v673 = vrot.slane %v629, %v672
      %v674 = vlaneseq
      %v675 = vshrl.u32 %v674, 7
      %v676 = vsub.s32 0, %v675
      %v677 = vrot.slane %v630, %v676
      %v678 = vlaneseq
      %v679 = vshrl.u32 %v678, 7
      %v680 = vsub.s32 0, %v679
      %v681 = vrot.slane %v631, %v680
      %v682 = vlaneseq
      %v683 = vshrl.u32 %v682, 7
      %v684 = vsub.s32 0, %v683
      %v685 = vrot.slane %v632, %v684
      %v686 = vlaneseq
      %v687 = vshrl.u32 %v686, 7
      %v688 = vsub.s32 0, %v687
      %v689 = vrot.slane %v633, %v688
      %v690 = vlaneseq
      %v691 = vshrl.u32 %v690, 7
      %v692 = vsub.s32 0, %v691
      %v693 = vrot.slane %v634, %v692
      %v694 = vlaneseq
      %v695 = vshrl.u32 %v694, 7
      %v696 = vsub.s32 0, %v695
      %v697 = vrot.slane %v635, %v696
      %v698 = vlaneseq
      %v699 = vshrl.u32 %v698, 7
      %v700 = vsub.s32 0, %v699
      %v701 = vrot.slane %v636, %v700
      %v702 = vlaneseq
      %v703 = vshrl.u32 %v702, 7
      %v704 = vsub.s32 0, %v703
      %v705 = vrot.slane %v637, %v704
      %v706 = vlaneseq
      %v707 = vshrl.u32 %v706, 7
      %v708 = vsub.s32 0, %v707
      %v709 = vrot.slane %v638, %v708
      %v710 = vlaneseq
      %v711 = vshrl.u32 %v710, 7
      %v712 = vsub.s32 0, %v711
      %v713 = vrot.slane %v639, %v712
      %v714 = vlaneseq
      %v715 = vshrl.u32 %v714, 7
      %v716 = vsub.s32 0, %v715
      %v717 = vrot.slane %v640, %v716
      %v718 = vlaneseq
      %v719 = vshrl.u32 %v718, 7
      %v720 = vsub.s32 0, %v719
      %v721 = vrot.slane %v641, %v720
      %v738 = vadd.f32 %v594, %v661
      %v739 = vadd.f32 %v595, %v661
      %v740 = vadd.f32 %v596, %v665
      %v741 = vadd.f32 %v597, %v665
      %v742 = vadd.f32 %v598, %v669
      %v743 = vadd.f32 %v599, %v669
      %v744 = vadd.f32 %v600, %v673
      %v745 = vadd.f32 %v601, %v673
      %v746 = vadd.f32 %v602, %v677
      %v747 = vadd.f32 %v603, %v677
      %v748 = vadd.f32 %v604, %v681
      %v749 = vadd.f32 %v605, %v681
      %v750 = vadd.f32 %v606, %v685
      %v751 = vadd.f32 %v607, %v685
      %v752 = vadd.f32 %v608, %v689
      %v753 = vadd.f32 %v609, %v689
      %v754 = vadd.f32 %v610, %v693
      %v755 = vadd.f32 %v611, %v693
      %v756 = vadd.f32 %v612, %v697
      %v757 = vadd.f32 %v613, %v697
      %v758 = vadd.f32 %v614, %v701
      %v759 = vadd.f32 %v615, %v701
      %v760 = vadd.f32 %v616, %v705
      %v761 = vadd.f32 %v617, %v705
      %v762 = vadd.f32 %v618, %v709
      %v763 = vadd.f32 %v619, %v709
      %v764 = vadd.f32 %v620, %v713
      %v765 = vadd.f32 %v621, %v713
      %v766 = vadd.f32 %v622, %v717
      %v767 = vadd.f32 %v623, %v717
      %v768 = vadd.f32 %v624, %v721
      %v769 = vadd.f32 %v625, %v721
      %v770 = vmul.f32 %v738, 0.33333334
      %v771 = vmul.f32 %v739, 0.33333334
      %v772 = vmul.f32 %v740, 0.33333334
      %v773 = vmul.f32 %v741, 0.33333334
      %v774 = vmul.f32 %v742, 0.33333334
      %v775 = vmul.f32 %v743, 0.33333334
      %v776 = vmul.f32 %v744, 0.33333334
      %v777 = vmul.f32 %v745, 0.33333334
      %v778 = vmul.f32 %v746, 0.33333334
      %v779 = vmul.f32 %v747, 0.33333334
      %v780 = vmul.f32 %v748, 0.33333334
      %v781 = vmul.f32 %v749, 0.33333334
      %v782 = vmul.f32 %v750, 0.33333334
      %v783 = vmul.f32 %v751, 0.33333334
      %v784 = vmul.f32 %v752, 0.33333334
      %v785 = vmul.f32 %v753, 0.33333334
      %v786 = vmul.f32 %v754, 0.33333334
      %v787 = vmul.f32 %v755, 0.33333334
      %v788 = vmul.f32 %v756, 0.33333334
      %v789 = vmul.f32 %v757, 0.33333334
      %v790 = vmul.f32 %v758, 0.33333334
      %v791 = vmul.f32 %v759, 0.33333334
      %v792 = vmul.f32 %v760, 0.33333334
      %v793 = vmul.f32 %v761, 0.33333334
      %v794 = vmul.f32 %v762, 0.33333334
      %v795 = vmul.f32 %v763, 0.33333334
      %v796 = vmul.f32 %v764, 0.33333334
      %v797 = vmul.f32 %v765, 0.33333334
      %v798 = vmul.f32 %v766, 0.33333334
      %v799 = vmul.f32 %v767, 0.33333334
      %v800 = vmul.f32 %v768, 0.33333334
      %v801 = vmul.f32 %v769, 0.33333334
      %v802 = vld [vmem:[%s351] sm:$0xf]
      %v803 = vld [vmem:[%s351 + $0x4] sm:$0xf]
      %v804 = vld [vmem:[%s351 + $0x8] sm:$0xf]
      %v805 = vld [vmem:[%s351 + $0xc] sm:$0xf]
      %v806 = vld [vmem:[%s351 + $0x10] sm:$0xf]
      %v807 = vld [vmem:[%s351 + $0x14] sm:$0xf]
      %v808 = vld [vmem:[%s351 + $0x18] sm:$0xf]
      %v809 = vld [vmem:[%s351 + $0x1c] sm:$0xf]
      %v810 = vld [vmem:[%s351 + $0x20] sm:$0xf]
      %v811 = vld [vmem:[%s351 + $0x24] sm:$0xf]
      %v812 = vld [vmem:[%s351 + $0x28] sm:$0xf]
      %v813 = vld [vmem:[%s351 + $0x2c] sm:$0xf]
      %v814 = vld [vmem:[%s351 + $0x30] sm:$0xf]
      %v815 = vld [vmem:[%s351 + $0x34] sm:$0xf]
      %v816 = vld [vmem:[%s351 + $0x38] sm:$0xf]
      %v817 = vld [vmem:[%s351 + $0x3c] sm:$0xf]
      %v818 = vld [vmem:[%s351 + $0x40] sm:$0xf]
      %v819 = vld [vmem:[%s351 + $0x44] sm:$0xf]
      %v820 = vld [vmem:[%s351 + $0x48] sm:$0xf]
      %v821 = vld [vmem:[%s351 + $0x4c] sm:$0xf]
      %v822 = vld [vmem:[%s351 + $0x50] sm:$0xf]
      %v823 = vld [vmem:[%s351 + $0x54] sm:$0xf]
      %v824 = vld [vmem:[%s351 + $0x58] sm:$0xf]
      %v825 = vld [vmem:[%s351 + $0x5c] sm:$0xf]
      %v826 = vld [vmem:[%s351 + $0x60] sm:$0xf]
      %v827 = vld [vmem:[%s351 + $0x64] sm:$0xf]
      %v828 = vld [vmem:[%s351 + $0x68] sm:$0xf]
      %v829 = vld [vmem:[%s351 + $0x6c] sm:$0xf]
      %v830 = vld [vmem:[%s351 + $0x70] sm:$0xf]
      %v831 = vld [vmem:[%s351 + $0x74] sm:$0xf]
      %v832 = vld [vmem:[%s351 + $0x78] sm:$0xf]
      %v833 = vld [vmem:[%s351 + $0x7c] sm:$0xf]
      %v834 = vunpack.c.l.bf16 %v802
      %v835 = vunpack.c.l.bf16 %v803
      %v836 = vunpack.c.l.bf16 %v804
      %v837 = vunpack.c.l.bf16 %v805
      %v838 = vunpack.c.l.bf16 %v806
      %v839 = vunpack.c.l.bf16 %v807
      %v840 = vunpack.c.l.bf16 %v808
      %v841 = vunpack.c.l.bf16 %v809
      %v842 = vunpack.c.l.bf16 %v810
      %v843 = vunpack.c.l.bf16 %v811
      %v844 = vunpack.c.l.bf16 %v812
      %v845 = vunpack.c.l.bf16 %v813
      %v846 = vunpack.c.l.bf16 %v814
      %v847 = vunpack.c.l.bf16 %v815
      %v848 = vunpack.c.l.bf16 %v816
      %v849 = vunpack.c.l.bf16 %v817
      %v850 = vunpack.c.l.bf16 %v818
      %v851 = vunpack.c.l.bf16 %v819
      %v852 = vunpack.c.l.bf16 %v820
      %v853 = vunpack.c.l.bf16 %v821
      %v854 = vunpack.c.l.bf16 %v822
      %v855 = vunpack.c.l.bf16 %v823
      %v856 = vunpack.c.l.bf16 %v824
      %v857 = vunpack.c.l.bf16 %v825
      %v858 = vunpack.c.l.bf16 %v826
      %v859 = vunpack.c.l.bf16 %v827
      %v860 = vunpack.c.l.bf16 %v828
      %v861 = vunpack.c.l.bf16 %v829
      %v862 = vunpack.c.l.bf16 %v830
      %v863 = vunpack.c.l.bf16 %v831
      %v864 = vunpack.c.l.bf16 %v832
      %v865 = vunpack.c.l.bf16 %v833
      %v866 = vmul.f32 %v834, %v770
      %v867 = vmul.f32 %v835, %v771
      %v868 = vmul.f32 %v836, %v772
      %v869 = vmul.f32 %v837, %v773
      %v870 = vmul.f32 %v838, %v774
      %v871 = vmul.f32 %v839, %v775
      %v872 = vmul.f32 %v840, %v776
      %v873 = vmul.f32 %v841, %v777
      %v874 = vmul.f32 %v842, %v778
      %v875 = vmul.f32 %v843, %v779
      %v876 = vmul.f32 %v844, %v780
      %v877 = vmul.f32 %v845, %v781
      %v878 = vmul.f32 %v846, %v782
      %v879 = vmul.f32 %v847, %v783
      %v880 = vmul.f32 %v848, %v784
      %v881 = vmul.f32 %v849, %v785
      %v882 = vmul.f32 %v850, %v786
      %v883 = vmul.f32 %v851, %v787
      %v884 = vmul.f32 %v852, %v788
      %v885 = vmul.f32 %v853, %v789
      %v886 = vmul.f32 %v854, %v790
      %v887 = vmul.f32 %v855, %v791
      %v888 = vmul.f32 %v856, %v792
      %v889 = vmul.f32 %v857, %v793
      %v890 = vmul.f32 %v858, %v794
      %v891 = vmul.f32 %v859, %v795
      %v892 = vmul.f32 %v860, %v796
      %v893 = vmul.f32 %v861, %v797
      %v894 = vmul.f32 %v862, %v798
      %v895 = vmul.f32 %v863, %v799
      %v896 = vmul.f32 %v864, %v800
      %v897 = vmul.f32 %v865, %v801
      %v898 = vld [vmem:[%s362] sm:$0xff]
      %v899 = vld [vmem:[%s362 + $0x8] sm:$0xff]
      %v900 = vld [vmem:[%s362 + $0x10] sm:$0xff]
      %v901 = vld [vmem:[%s362 + $0x18] sm:$0xff]
      %v902 = vld [vmem:[%s362 + $0x20] sm:$0xff]
      %v903 = vld [vmem:[%s362 + $0x28] sm:$0xff]
      %v904 = vld [vmem:[%s362 + $0x30] sm:$0xff]
      %v905 = vld [vmem:[%s362 + $0x38] sm:$0xff]
      %v906 = vld [vmem:[%s362 + $0x40] sm:$0xff]
      %v907 = vld [vmem:[%s362 + $0x48] sm:$0xff]
      %v908 = vld [vmem:[%s362 + $0x50] sm:$0xff]
      %v909 = vld [vmem:[%s362 + $0x58] sm:$0xff]
      %v910 = vld [vmem:[%s362 + $0x60] sm:$0xff]
      %v911 = vld [vmem:[%s362 + $0x68] sm:$0xff]
      %v912 = vld [vmem:[%s362 + $0x70] sm:$0xff]
      %v913 = vld [vmem:[%s362 + $0x78] sm:$0xff]
      %v914 = vld [vmem:[%s362 + $0x80] sm:$0xff]
      %v915 = vld [vmem:[%s362 + $0x88] sm:$0xff]
      %v916 = vld [vmem:[%s362 + $0x90] sm:$0xff]
      %v917 = vld [vmem:[%s362 + $0x98] sm:$0xff]
      %v918 = vld [vmem:[%s362 + $0xa0] sm:$0xff]
      %v919 = vld [vmem:[%s362 + $0xa8] sm:$0xff]
      %v920 = vld [vmem:[%s362 + $0xb0] sm:$0xff]
      %v921 = vld [vmem:[%s362 + $0xb8] sm:$0xff]
      %v922 = vld [vmem:[%s362 + $0xc0] sm:$0xff]
      %v923 = vld [vmem:[%s362 + $0xc8] sm:$0xff]
      %v924 = vld [vmem:[%s362 + $0xd0] sm:$0xff]
      %v925 = vld [vmem:[%s362 + $0xd8] sm:$0xff]
      %v926 = vld [vmem:[%s362 + $0xe0] sm:$0xff]
      %v927 = vld [vmem:[%s362 + $0xe8] sm:$0xff]
      %v928 = vld [vmem:[%s362 + $0xf0] sm:$0xff]
      %v929 = vld [vmem:[%s362 + $0xf8] sm:$0xff]
      %v930 = vadd.f32 %v866, %v898
      %v931 = vadd.f32 %v867, %v899
      %v932 = vadd.f32 %v868, %v900
      %v933 = vadd.f32 %v869, %v901
      %v934 = vadd.f32 %v870, %v902
      %v935 = vadd.f32 %v871, %v903
      %v936 = vadd.f32 %v872, %v904
      %v937 = vadd.f32 %v873, %v905
      %v938 = vadd.f32 %v874, %v906
      %v939 = vadd.f32 %v875, %v907
      %v940 = vadd.f32 %v876, %v908
      %v941 = vadd.f32 %v877, %v909
      %v942 = vadd.f32 %v878, %v910
      %v943 = vadd.f32 %v879, %v911
      %v944 = vadd.f32 %v880, %v912
      %v945 = vadd.f32 %v881, %v913
      %v946 = vadd.f32 %v882, %v914
      %v947 = vadd.f32 %v883, %v915
      %v948 = vadd.f32 %v884, %v916
      %v949 = vadd.f32 %v885, %v917
      %v950 = vadd.f32 %v886, %v918
      %v951 = vadd.f32 %v887, %v919
      %v952 = vadd.f32 %v888, %v920
      %v953 = vadd.f32 %v889, %v921
      %v954 = vadd.f32 %v890, %v922
      %v955 = vadd.f32 %v891, %v923
      %v956 = vadd.f32 %v892, %v924
      %v957 = vadd.f32 %v893, %v925
      %v958 = vadd.f32 %v894, %v926
      %v959 = vadd.f32 %v895, %v927
      %v960 = vadd.f32 %v896, %v928
      %v961 = vadd.f32 %v897, %v929
      %v962 = vmax.f32 %v930, 0.0
      %v963 = vmax.f32 %v931, 0.0
      %v964 = vmax.f32 %v932, 0.0
      %v965 = vmax.f32 %v933, 0.0
      %v966 = vmax.f32 %v934, 0.0
      %v967 = vmax.f32 %v935, 0.0
      %v968 = vmax.f32 %v936, 0.0
      %v969 = vmax.f32 %v937, 0.0
      %v970 = vmax.f32 %v938, 0.0
      %v971 = vmax.f32 %v939, 0.0
      %v972 = vmax.f32 %v940, 0.0
      %v973 = vmax.f32 %v941, 0.0
      %v974 = vmax.f32 %v942, 0.0
      %v975 = vmax.f32 %v943, 0.0
      %v976 = vmax.f32 %v944, 0.0
      %v977 = vmax.f32 %v945, 0.0
      %v978 = vmax.f32 %v946, 0.0
      %v979 = vmax.f32 %v947, 0.0
      %v980 = vmax.f32 %v948, 0.0
      %v981 = vmax.f32 %v949, 0.0
      %v982 = vmax.f32 %v950, 0.0
      %v983 = vmax.f32 %v951, 0.0
      %v984 = vmax.f32 %v952, 0.0
      %v985 = vmax.f32 %v953, 0.0
      %v986 = vmax.f32 %v954, 0.0
      %v987 = vmax.f32 %v955, 0.0
      %v988 = vmax.f32 %v956, 0.0
      %v989 = vmax.f32 %v957, 0.0
      %v990 = vmax.f32 %v958, 0.0
      %v991 = vmax.f32 %v959, 0.0
      %v992 = vmax.f32 %v960, 0.0
      %v993 = vmax.f32 %v961, 0.0
      %vm994 = vcmask 64512
      %995 = vst.msk [vmem:[%s398] sm:$0xff] %vm994, %v962
      %996 = vst.msk [vmem:[%s398 + $0x8] sm:$0xff] %vm994, %v963
      %997 = vst.msk [vmem:[%s398 + $0x10] sm:$0xff] %vm994, %v964
      %998 = vst.msk [vmem:[%s398 + $0x18] sm:$0xff] %vm994, %v965
      %999 = vst.msk [vmem:[%s398 + $0x20] sm:$0xff] %vm994, %v966
      %1000 = vst.msk [vmem:[%s398 + $0x28] sm:$0xff] %vm994, %v967
      %1001 = vst.msk [vmem:[%s398 + $0x30] sm:$0xff] %vm994, %v968
      %1002 = vst.msk [vmem:[%s398 + $0x38] sm:$0xff] %vm994, %v969
      %1003 = vst.msk [vmem:[%s398 + $0x40] sm:$0xff] %vm994, %v970
      %1004 = vst.msk [vmem:[%s398 + $0x48] sm:$0xff] %vm994, %v971
      %1005 = vst.msk [vmem:[%s398 + $0x50] sm:$0xff] %vm994, %v972
      %1006 = vst.msk [vmem:[%s398 + $0x58] sm:$0xff] %vm994, %v973
      %1007 = vst.msk [vmem:[%s398 + $0x60] sm:$0xff] %vm994, %v974
      %1008 = vst.msk [vmem:[%s398 + $0x68] sm:$0xff] %vm994, %v975
      %1009 = vst.msk [vmem:[%s398 + $0x70] sm:$0xff] %vm994, %v976
      %1010 = vst.msk [vmem:[%s398 + $0x78] sm:$0xff] %vm994, %v977
      %1011 = vst.msk [vmem:[%s398 + $0x80] sm:$0xff] %vm994, %v978
      %1012 = vst.msk [vmem:[%s398 + $0x88] sm:$0xff] %vm994, %v979
      %1013 = vst.msk [vmem:[%s398 + $0x90] sm:$0xff] %vm994, %v980
      %1014 = vst.msk [vmem:[%s398 + $0x98] sm:$0xff] %vm994, %v981
      %1015 = vst.msk [vmem:[%s398 + $0xa0] sm:$0xff] %vm994, %v982
      %1016 = vst.msk [vmem:[%s398 + $0xa8] sm:$0xff] %vm994, %v983
      %1017 = vst.msk [vmem:[%s398 + $0xb0] sm:$0xff] %vm994, %v984
      %1018 = vst.msk [vmem:[%s398 + $0xb8] sm:$0xff] %vm994, %v985
      %1019 = vst.msk [vmem:[%s398 + $0xc0] sm:$0xff] %vm994, %v986
      %1020 = vst.msk [vmem:[%s398 + $0xc8] sm:$0xff] %vm994, %v987
      %1021 = vst.msk [vmem:[%s398 + $0xd0] sm:$0xff] %vm994, %v988
      %1022 = vst.msk [vmem:[%s398 + $0xd8] sm:$0xff] %vm994, %v989
      %1023 = vst.msk [vmem:[%s398 + $0xe0] sm:$0xff] %vm994, %v990
      %1024 = vst.msk [vmem:[%s398 + $0xe8] sm:$0xff] %vm994, %v991
      %1025 = vst.msk [vmem:[%s398 + $0xf0] sm:$0xff] %vm994, %v992
      %1026 = vst.msk [vmem:[%s398 + $0xf8] sm:$0xff] %vm994, %v993
      %s1027 = smul.u32 16, %s21
      %p1028 = scmp.lt.s32.totalorder %s20, 1
      %s1029 = scalar_select %p1028, %s20, 1
      %p1030 = scmp.lt.s32.totalorder %s1027, 15
      %s1031 = scalar_select %p1030, %s1027, 15
      %s1032 = smul.addr %s1031, 2
      %s1033 = smul.addr %s1029, 32
      %s1034 = sadd.s32 %s1032, %s1033
      %s1035 = smul.addr %s1034, 8
      %s1036 = scalar_lea.vmem %s5, %s1035
      // Predicated region
      $region41: #{basic_block_forward.25} parent=39 // pred_check
        %p1037 = pneg %p186
      $region42: #{basic_block_forward.25} parent=39 // pred_check_branch
        %1039 = sbr.rel (%p1037) target = $region44
      $region43: #{basic_block_forward.25} parent=39 // pred_region
        %s1040 = smul.u32 16, %s21
      $region44: #{basic_block_forward.25} parent=39 // pred_fallthru
        _
    $region40: #{basic_block_forward.25} parent=5 // pred_fallthru
      _
    %p1041 = scmp.le.s32.totalorder 2, %s11
    // Predicated region
    $region45: #{basic_block_forward.25} parent=5 // pred_check
      %p1042 = pneg %p1041
    $region46: #{basic_block_forward.25} parent=5 // pred_check_branch
      %1044 = sbr.rel (%p1042) target = $region48
    $region47: #{basic_block_forward.25} parent=5 // pred_region
      %s1045 = ssub.s32 %s11, 2
      // Predicated region
      $region49: #{basic_block_forward.25} parent=47 // pred_check
        %p1046 = pneg %p192
      $region50: #{basic_block_forward.25} parent=47 // pred_check_branch
        %1048 = sbr.rel (%p1046) target = $region52
      $region51: #{basic_block_forward.25} parent=47 // pred_region
        %s1049 = smul.u32 16, %s23
        %p1050 = scmp.lt.s32.totalorder %s22, 1
        %s1051 = scalar_select %p1050, %s22, 1
        %p1052 = scmp.lt.s32.totalorder %s1049, 15
        %s1053 = scalar_select %p1052, %s1049, 15
        %s1054 = smul.addr %s1053, 2
        %s1055 = smul.addr %s1051, 32
        %s1056 = sadd.s32 %s1054, %s1055
        %s1057 = smul.addr %s1056, 8
        %s1058 = scalar_lea.vmem %s5, %s1057
      $region52: #{basic_block_forward.25} parent=47 // pred_fallthru
        _
    $region48: #{basic_block_forward.25} parent=5 // pred_fallthru
      _
  $region6: #{basic_block_forward.25} parent=0 // loop_footer
    %s15 = sadd.s32 1, %s11
  $region7: #{basic_block_forward.25} parent=0 // loop_footer_branch
    %10 = sbr.rel target = $region3
  $region8: #{basic_block_forward.25} parent=0 // loop_exit
    _

</llo_original>
